<compile_context>
chip_gen: v5e
topology: v5e:2x2
jax: 0.10.0
libtpu: 0.0.40
codegen_flags: <defaults>
</compile_context>

<pallas_src>
import functools

import numpy as np
import jax
import jax.numpy as jnp
from jax.experimental import pallas as pl
from jax.experimental.pallas import tpu as pltpu

EPS = 1e-5          # torch.nn.InstanceNorm2d default eps (affine=False, biased var)
NEG_SLOPE = 0.01    # torch.nn.LeakyReLU default negative_slope
MM_DTYPE = jnp.bfloat16


# ----------------------------------------------------------------------------
# In-kernel helpers (channels-major (R, L) values, L = B_tile * P, f32 stats)
# ----------------------------------------------------------------------------
def _seg_matrices(bt, p):
    """Block-diagonal 0/1 matrices for per-sample segmented sums / broadcast (MXU)."""
    L = bt * p
    l_d = jax.lax.broadcasted_iota(jnp.int32, (L, bt), 0)
    b_d = jax.lax.broadcasted_iota(jnp.int32, (L, bt), 1)
    seg_down = ((l_d >= b_d * p) & (l_d < (b_d + 1) * p)).astype(jnp.float32)   # (L, bt)
    b_u = jax.lax.broadcasted_iota(jnp.int32, (bt, L), 0)
    l_u = jax.lax.broadcasted_iota(jnp.int32, (bt, L), 1)
    seg_up = ((l_u >= b_u * p) & (l_u < (b_u + 1) * p)).astype(jnp.float32)     # (bt, L)
    return seg_down, seg_up


def _in_lrelu_seg(x, seg_down, seg_up, n):
    """Per-(channel, sample) InstanceNorm + LeakyReLU; x: (C, L) f32, n = spatial size."""
    c = x.shape[0]
    r = jnp.dot(jnp.concatenate([x, x * x], axis=0), seg_down,
                preferred_element_type=jnp.float32)                 # (2C, Bt) sums on MXU
    mean = r[:c] * (1.0 / n)
    var = jnp.maximum(r[c:] * (1.0 / n) - mean * mean, 0.0)
    inv = jax.lax.rsqrt(var + EPS)
    b = jnp.dot(jnp.concatenate([mean * inv, inv], axis=0), seg_up,
                preferred_element_type=jnp.float32)                 # (2C, L) broadcast
    y = x * b[c:] - b[:c]
    return jnp.where(y >= 0, y, NEG_SLOPE * y)


def _in_lrelu_seg_grouped(y, c, groups, seg_down, seg_up, n):
    """IN + LReLU for a k2s2 up-conv result (groups*c, L) with rows ordered (group, channel).

    Stats per (channel, sample) over all `groups` sub-positions and all P lanes of that
    sample (= the full upsampled map; depth-to-space is order invariant)."""
    gc = groups * c
    r = jnp.dot(jnp.concatenate([y, y * y], axis=0), seg_down,
                preferred_element_type=jnp.float32)                 # (2*gc, Bt)
    s = sum(r[g * c:(g + 1) * c] for g in range(groups))            # (c, Bt)
    ss = sum(r[gc + g * c:gc + (g + 1) * c] for g in range(groups))
    mean = s * (1.0 / n)
    var = jnp.maximum(ss * (1.0 / n) - mean * mean, 0.0)
    inv = jax.lax.rsqrt(var + EPS)
    b = jnp.dot(jnp.concatenate([mean * inv, inv], axis=0), seg_up,
                preferred_element_type=jnp.float32)                 # (2c, L)
    scale = jnp.concatenate([b[c:]] * groups, axis=0)               # (gc, L)
    shift = jnp.concatenate([b[:c]] * groups, axis=0)
    z = y * scale - shift
    return jnp.where(z >= 0, z, NEG_SLOPE * z)


def _shifted_tap(xb, s, L, roll_mode, roll_sign):
    """Lane-shift a (Cin, L) bf16 activation by s (image-boundary masking done by caller)."""
    if roll_mode == "roll_bf16":
        return pltpu.roll(xb, (roll_sign * s) % L, 1)
    if roll_mode == "roll_f32":
        return pltpu.roll(xb.astype(jnp.float32), (roll_sign * s) % L, 1).astype(xb.dtype)
    # fallback: static slice + zero fill (equivalent to roll+mask, no wrap needed)
    pad = jnp.zeros((xb.shape[0], abs(s)), xb.dtype)
    if s > 0:
        return jnp.concatenate([xb[:, s:], pad], axis=1)
    return jnp.concatenate([pad, xb[:, :s]], axis=1)


def _conv3x3_cat(xb, mask_ref, w9, shifts, L, roll_mode, roll_sign):
    """3x3 'same' conv as ONE MXU matmul: (Cout, 9*Cin) x (9*Cin, L)."""
    parts = []
    for t, s in enumerate(shifts):
        if s == 0:
            parts.append(xb)
        else:
            parts.append(_shifted_tap(xb, s, L, roll_mode, roll_sign) * mask_ref[t])
    xcat = jnp.concatenate(parts, axis=0)                           # (9*Cin, L) bf16
    return jnp.dot(w9, xcat, preferred_element_type=jnp.float32)    # (Cout, L) f32


def _conv3x3_acc(xb, mask_ref, w_taps, shifts, L, roll_mode, roll_sign):
    """3x3 conv as 9 small matmuls (used when Cin is not bf16 sublane-tile aligned)."""
    acc = None
    for t, s in enumerate(shifts):
        xt = xb if s == 0 else _shifted_tap(xb, s, L, roll_mode, roll_sign) * mask_ref[t]
        d = jnp.dot(w_taps[t], xt, preferred_element_type=jnp.float32)
        acc = d if acc is None else acc + d
    return acc


# ----------------------------------------------------------------------------
# Pallas kernels (one grid step == one batch tile; intermediates stay in VMEM)
# ----------------------------------------------------------------------------
def _start_up_kernel(x_ref, wup_ref, o_ref, *, bt, p, c1):
    """start-IN + LReLU + first k2s2 up-conv + grouped IN + LReLU."""
    seg_down, seg_up = _seg_matrices(bt, p)
    x = _in_lrelu_seg(x_ref[0], seg_down, seg_up, p)                 # (c0, L) f32
    y = jnp.dot(wup_ref[...], x.astype(MM_DTYPE),
                preferred_element_type=jnp.float32)                  # (4*c1, L)
    y = _in_lrelu_seg_grouped(y, c1, 4, seg_down, seg_up, 4 * p)
    o_ref[0] = y.astype(o_ref.dtype)


def _convblock_up_kernel(x_ref, wc_ref, wup_ref, mask_ref, o_ref, *,
                         bt, p, cnext, n_convs, shifts, roll_mode, roll_sign, use_cat):
    """One middle block: n_convs x (3x3 conv + IN + LReLU) + next k2s2 up-conv + IN + LReLU."""
    L = bt * p
    seg_down, seg_up = _seg_matrices(bt, p)
    xb = x_ref[0]                                                    # (C, L) bf16
    for j in range(n_convs):
        if use_cat:
            acc = _conv3x3_cat(xb, mask_ref, wc_ref[j], shifts, L, roll_mode, roll_sign)
        else:
            acc = _conv3x3_acc(xb, mask_ref, wc_ref[j], shifts, L, roll_mode, roll_sign)
        xb = _in_lrelu_seg(acc, seg_down, seg_up, p).astype(MM_DTYPE)
    y = jnp.dot(wup_ref[...], xb, preferred_element_type=jnp.float32)   # (4*cnext, L)
    y = _in_lrelu_seg_grouped(y, cnext, 4, seg_down, seg_up, 4 * p)
    o_ref[0] = y.astype(o_ref.dtype)


def _end_conv_kernel(x_ref, w_ref, mask_ref, o_ref, *, bt, p, shifts, roll_mode, roll_sign):
    """Final 3x3 conv (8 -> n_channels, lane-padded), no norm / no activation."""
    L = bt * p
    o_ref[0] = _conv3x3_acc(x_ref[0], mask_ref, w_ref, shifts, L, roll_mode, roll_sign)


# ----------------------------------------------------------------------------
# One-time capability probe: pltpu.roll availability / dtype / rotation convention
# ----------------------------------------------------------------------------
def _probe_roll_sign(dtype):
    def k(x_ref, o_ref):
        o_ref[...] = pltpu.roll(x_ref[...], 3, 1)

    shape = (8, 32)
    x = np.arange(np.prod(shape), dtype=np.float32).reshape(shape)   # values exact in bf16
    try:
        y = np.asarray(pl.pallas_call(
            k, out_shape=jax.ShapeDtypeStruct(shape, dtype))(jnp.asarray(x, dtype=dtype)))
        v = float(y[0, 8])
    except Exception:
        return None
    if v == float(x[0, 5]):
        return -1        # jnp.roll convention: out[i] = x[i - shift]
    if v == float(x[0, 11]):
        return 1         # reversed convention: out[i] = x[i + shift]
    return None


def _probe_roll():
    s = _probe_roll_sign(jnp.bfloat16)
    if s is not None:
        return "roll_bf16", s
    s = _probe_roll_sign(jnp.float32)
    if s is not None:
        return "roll_f32", s
    return "shift", 0


# ----------------------------------------------------------------------------
# Static operator / weight-layout preparation (host side)
# ----------------------------------------------------------------------------
def _tap_shifts(w):
    return tuple((t // 3 - 1) * w + (t % 3 - 1) for t in range(9))


def _tap_masks(h, w, bt):
    """Per-tap source-pixel validity masks, tiled over the batch-folded lane axis."""
    p = h * w
    yy, xx = np.meshgrid(np.arange(h), np.arange(w), indexing="ij")
    yy, xx = yy.reshape(-1), xx.reshape(-1)
    m = np.zeros((9, 1, p), np.float32)
    for t in range(9):
        dy, dx = t // 3 - 1, t % 3 - 1
        valid = (yy + dy >= 0) & (yy + dy < h) & (xx + dx >= 0) & (xx + dx < w)
        m[t, 0] = valid.astype(np.float32)
    return jnp.asarray(np.tile(m, (1, 1, bt))).astype(MM_DTYPE)      # (9, 1, bt*p)


def _convT_k2s2_w(wt):
    # torch (cin, cout, 2, 2) -> (4*cout, cin) matmul weight, rows ordered (dy, dx, co)
    cin, cout = wt.shape[0], wt.shape[1]
    return jnp.transpose(wt, (2, 3, 1, 0)).reshape(4 * cout, cin).astype(MM_DTYPE)


def _convT_3x3_taps(wt):
    # ConvTranspose2d(k=3, s=1, p=1) == cross-correlation with flipped kernel:
    #   taps[ky*3+kx, co, ci] = Wt[ci, co, 2-ky, 2-kx]
    cin, cout = wt.shape[0], wt.shape[1]
    wflip = wt[:, :, ::-1, ::-1]
    return jnp.transpose(wflip, (2, 3, 1, 0)).reshape(9, cout, cin)


def init_generator_params(key, image_size, z_dim, h_size, strides):
    n_channels = int(image_size[0])
    img_size = np.array(image_size[1:])
    img_size_new = img_size // int(np.prod(strides))
    kH, kW = int(img_size_new[0]), int(img_size_new[1])
    assert min(kH, kW) >= 2, "h_size too long, one image dimension has already perished"

    scale = 0.1
    keys = iter(jax.random.split(key, 64))
    params, raw = {}, {}

    roll_mode, roll_sign = _probe_roll()
    params["roll_mode"], params["roll_sign"] = roll_mode, roll_sign

    c0 = h_size[0]
    wt_start = scale * jax.random.normal(next(keys), (z_dim, c0, kH, kW), jnp.float32)
    # start ConvT on a 1x1 latent as a dense matmul weight (c0, p0, zdim), used by XLA
    params["start_w"] = jnp.transpose(wt_start, (1, 2, 3, 0)).reshape(c0, kH * kW, z_dim)
    params["start_shape"] = (kH, kW, c0)
    params["n_channels"] = n_channels
    params["chans"] = list(h_size) + [8]
    raw["start"] = wt_start

    ups, convs, conv_is_cat, raw_ups, raw_convs = [], [], [], [], []
    h_bot = c0
    for idx in range(1, len(h_size)):
        h_top = h_size[idx]
        s = strides[idx - 1]
        assert s == 2, "this implementation handles the default stride of 2"
        wt_up = scale * jax.random.normal(next(keys), (h_bot, h_top, s, s), jnp.float32)
        ups.append(_convT_k2s2_w(wt_up))
        raw_ups.append(wt_up)
        blk_raw = [scale * jax.random.normal(next(keys), (h_top, h_top, 3, 3), jnp.float32)
                   for _ in range(3)]
        raw_convs.append(blk_raw)
        taps = jnp.stack([_convT_3x3_taps(w) for w in blk_raw], axis=0)  # (3, 9, C, C)
        if h_top % 16 == 0:
            # concatenated-tap layout: one (Cout, 9*Cin) MXU matmul per conv
            w9 = jnp.transpose(taps, (0, 2, 1, 3)).reshape(3, h_top, 9 * h_top)
            convs.append(w9.astype(MM_DTYPE))
            conv_is_cat.append(True)
        else:
            convs.append(taps.astype(MM_DTYPE))
            conv_is_cat.append(False)
        h_bot = h_top

    # end ConvBlock(h_bot, 8, n_convs=0, initial_stride=strides[-1]): k2s2 up-conv + IN + LReLU
    assert strides[-1] == 2
    wt_end_up = scale * jax.random.normal(next(keys), (h_bot, 8, 2, 2), jnp.float32)
    ups.append(_convT_k2s2_w(wt_end_up))
    params["ups"], params["convs"], params["conv_is_cat"] = ups, convs, conv_is_cat
    raw["ups"], raw["convs"], raw["end_up"] = raw_ups, raw_convs, wt_end_up

    # end ConvModule(8, n_channels, k=3, s=1, p=1, no norm, no act); lane-pad cout
    coutp = max(8, n_channels)
    wt_end = scale * jax.random.normal(next(keys), (8, n_channels, 3, 3), jnp.float32)
    taps_end = _convT_3x3_taps(wt_end)                               # (9, n_channels, 8)
    taps_end = jnp.pad(taps_end, ((0, 0), (0, coutp - n_channels), (0, 0)))
    params["end_conv_taps"] = taps_end.astype(MM_DTYPE)              # (9, coutp, 8)
    raw["end_conv"] = wt_end
    return params, raw


# ----------------------------------------------------------------------------
# Forward pass
# ----------------------------------------------------------------------------
def _choose_batch_tile(n, p_final, max_lanes=2048):
    """Largest divisor of n that keeps >=2 grid steps (v7x megacore) and bounded lanes."""
    if n <= 1:
        return 1
    cap = max(1, min(n // 2, max_lanes // max(p_final, 1) if p_final <= max_lanes else 1))
    for d in range(cap, 0, -1):
        if n % d == 0:
            return d
    return 1


def _depth_to_space(y, c, bt, h, w):
    """(T, 4*c, bt*h*w) with rows (dy, dx, ch) -> (T, c, bt*(2h)*(2w)), sample-major lanes."""
    t = y.shape[0]
    y = y.reshape(t, 2, 2, c, bt, h, w)
    y = jnp.transpose(y, (0, 3, 4, 5, 1, 6, 2))          # (T, c, b, y, dy, x, dx)
    return y.reshape(t, c, bt * (2 * h) * (2 * w))


def _cparams():
    return pltpu.CompilerParams(dimension_semantics=("parallel",))


def generator_liu_forward(params, z_nchw):
    """z_nchw: (N, z_dim, 1, 1) NCHW latent; returns (N, n_channels, H, W) NCHW output."""
    N = z_nchw.shape[0]
    zdim = z_nchw.shape[1]
    kH, kW, c0 = params["start_shape"]
    p0 = kH * kW
    chans = params["chans"]
    nch = params["n_channels"]
    coutp = params["end_conv_taps"].shape[1]
    roll_mode, roll_sign = params["roll_mode"], params["roll_sign"]

    n_up = len(params["ups"])
    p_final = (kH * (2 ** n_up)) * (kW * (2 ** n_up))
    Bt = _choose_batch_tile(N, p_final)
    n_tiles = N // Bt

    # --- start ConvT hoisted to one dense XLA matmul (no latent replication / mask trick)
    zv = z_nchw.reshape(N, zdim).astype(jnp.float32)
    x0 = jnp.einsum('bz,cpz->bcp', zv, params["start_w"])            # (N, c0, p0) f32
    x0 = x0.reshape(n_tiles, Bt, c0, p0).transpose(0, 2, 1, 3).reshape(n_tiles, c0, Bt * p0)

    # --- K1: start IN/LReLU + first k2s2 up-conv + grouped IN/LReLU
    c1 = chans[1]
    L0 = Bt * p0
    y = pl.pallas_call(
        functools.partial(_start_up_kernel, bt=Bt, p=p0, c1=c1),
        out_shape=jax.ShapeDtypeStruct((n_tiles, 4 * c1, L0), MM_DTYPE),
        grid=(n_tiles,),
        in_specs=[
            pl.BlockSpec((1, c0, L0), lambda n: (n, 0, 0)),
            pl.BlockSpec((4 * c1, c0), lambda n: (0, 0)),
        ],
        out_specs=pl.BlockSpec((1, 4 * c1, L0), lambda n: (n, 0, 0)),
        compiler_params=_cparams(),
    )(x0, params["ups"][0])

    H, W = kH, kW
    x = _depth_to_space(y, c1, Bt, H, W)                              # bf16 intermediate
    H, W = 2 * H, 2 * W

    # --- middle blocks: 3x (3x3 conv + IN + LReLU) + next up-conv + IN + LReLU, fused
    for i, wc in enumerate(params["convs"]):
        C = chans[i + 1]
        cn = chans[i + 2]
        wup = params["ups"][i + 1]
        P = H * W
        L = Bt * P
        masks = _tap_masks(H, W, Bt)
        shifts = _tap_shifts(W)
        wrank = len(wc.shape)
        y = pl.pallas_call(
            functools.partial(_convblock_up_kernel, bt=Bt, p=P, cnext=cn,
                              n_convs=int(wc.shape[0]), shifts=shifts,
                              roll_mode=roll_mode, roll_sign=roll_sign,
                              use_cat=params["conv_is_cat"][i]),
            out_shape=jax.ShapeDtypeStruct((n_tiles, 4 * cn, L), MM_DTYPE),
            grid=(n_tiles,),
            in_specs=[
                pl.BlockSpec((1, C, L), lambda n: (n, 0, 0)),
                pl.BlockSpec(tuple(wc.shape), lambda n, r=wrank: (0,) * r),
                pl.BlockSpec(tuple(wup.shape), lambda n: (0, 0)),
                pl.BlockSpec(tuple(masks.shape), lambda n: (0, 0, 0)),
            ],
            out_specs=pl.BlockSpec((1, 4 * cn, L), lambda n: (n, 0, 0)),
            compiler_params=_cparams(),
        )(x, wc, wup, masks)
        x = _depth_to_space(y, cn, Bt, H, W)
        H, W = 2 * H, 2 * W

    # --- final 3x3 conv (no norm / activation); output channels lane-padded
    C = chans[-1]
    P = H * W
    L = Bt * P
    masks = _tap_masks(H, W, Bt)
    shifts = _tap_shifts(W)
    out = pl.pallas_call(
        functools.partial(_end_conv_kernel, bt=Bt, p=P, shifts=shifts,
                          roll_mode=roll_mode, roll_sign=roll_sign),
        out_shape=jax.ShapeDtypeStruct((n_tiles, coutp, L), jnp.float32),
        grid=(n_tiles,),
        in_specs=[
            pl.BlockSpec((1, C, L), lambda n: (n, 0, 0)),
            pl.BlockSpec(tuple(params["end_conv_taps"].shape), lambda n: (0, 0, 0)),
            pl.BlockSpec(tuple(masks.shape), lambda n: (0, 0, 0)),
        ],
        out_specs=pl.BlockSpec((1, coutp, L), lambda n: (n, 0, 0)),
        compiler_params=_cparams(),
    )(x, params["end_conv_taps"], masks)

    out = out[:, :nch, :].reshape(n_tiles, nch, Bt, H, W)
    out = out.transpose(0, 2, 1, 3, 4).reshape(N, nch, H, W)          # already NCHW
    return out


# ----------------------------------------------------------------------------
# Pure-JAX reference (f32, NCHW) used only as a correctness check in __main__
# ----------------------------------------------------------------------------
def _reference_forward(raw, z_nchw):
    def inorm_lrelu(x):
        m = jnp.mean(x, axis=(2, 3), keepdims=True)
        v = jnp.mean((x - m) ** 2, axis=(2, 3), keepdims=True)
        y = (x - m) * jax.lax.rsqrt(v + EPS)
        return jnp.where(y >= 0, y, NEG_SLOPE * y)

    def up2(x, w):                      # ConvTranspose2d(k=2, s=2, bias=False)
        t = jnp.einsum('nihw,iokl->nohkwl', x, w)
        n, co, h, _, wd, _ = t.shape
        return t.reshape(n, co, 2 * h, 2 * wd)

    def conv3(x, w):                    # ConvTranspose2d(k=3, s=1, p=1, bias=False)
        n, ci, h, wd = x.shape
        xp = jnp.pad(x, ((0, 0), (0, 0), (1, 1), (1, 1)))
        out = 0.0
        for ky in range(3):
            for kx in range(3):
                out = out + jnp.einsum('nihw,io->nohw',
                                       xp[:, :, ky:ky + h, kx:kx + wd],
                                       w[:, :, 2 - ky, 2 - kx])
        return out

    zv = z_nchw[:, :, 0, 0]
    x = inorm_lrelu(jnp.einsum('nz,zcyx->ncyx', zv, raw["start"]))
    for wu, wcs in zip(raw["ups"], raw["convs"]):
        x = inorm_lrelu(up2(x, wu))
        for wc in wcs:
            x = inorm_lrelu(conv3(x, wc))
    x = inorm_lrelu(up2(x, raw["end_up"]))
    return conv3(x, raw["end_conv"])


# ----------------------------------------------------------------------------
if __name__ == "__main__":
    # Config consistent with the module: image (3, 16, 16), z_dim=64,
    # h_size=(64, 32, 16), strides=[2, 2, 2]  =>  start spatial 16 // 8 = 2x2.
    image_size = (3, 16, 16)
    z_dim = 64
    h_size = (64, 32, 16)
    strides = [2, 2, 2]
    batch = 8            # folded onto lanes in tiles of 4 -> 2 "parallel" grid steps

    key = jax.random.PRNGKey(0)
    kp, kz = jax.random.split(key)
    params, raw = init_generator_params(kp, image_size, z_dim, h_size, strides)
    z = jax.random.normal(kz, (batch, z_dim, 1, 1), jnp.float32)

    fwd = jax.jit(functools.partial(generator_liu_forward, params))
    out = jax.block_until_ready(fwd(z))

    assert out.shape == (batch, image_size[0], image_size[1], image_size[2]), out.shape
    assert bool(jnp.isfinite(out).all())

    # Check against a pure-JAX f32 reference (kernels run bf16 on the MXU with f32
    # accumulation and f32 InstanceNorm stats, so only layout / shift / segmentation
    # errors would exceed these bounds).
    ref = jax.block_until_ready(_reference_forward(raw, z))
    err = jnp.abs(out - ref)
    max_err = float(jnp.max(err))
    mean_err = float(jnp.mean(err))
    assert np.isfinite(max_err) and max_err < 0.3 and mean_err < 0.035, (max_err, mean_err)

    print("KERNEL_OK")
</pallas_src>

<mosaic_0001>
module attributes {stable_mosaic.version = 11 : i64} {
  func.func @k(%arg0: memref<8x32xbf16, #tpu.memory_space<vmem>>, %arg1: memref<8x32xbf16, #tpu.memory_space<vmem>>) attributes {dimension_semantics = [], scalar_prefetch = 0 : i64, scratch_operands = 0 : i64, tpu.core_type = #tpu.core_type<tc>} {
    %c0 = arith.constant 0 : index
    %c0_0 = arith.constant 0 : index
    %0 = vector.load %arg0[%c0, %c0_0] : memref<8x32xbf16, #tpu.memory_space<vmem>>, vector<8x32xbf16>
    %c3_i32 = arith.constant 3 : i32
    %1 = tpu.dynamic_rotate %0 by %c3_i32 dim 1 : vector<8x32xbf16>, i32 -> vector<8x32xbf16>
    %c0_1 = arith.constant 0 : index
    %c0_2 = arith.constant 0 : index
    %2 = vector.load %arg1[%c0_1, %c0_2] : memref<8x32xbf16, #tpu.memory_space<vmem>>, vector<8x32xbf16>
    tpu.vector_store %arg1[%c0_1, %c0_2], %1 {strides = array<i32>} : memref<8x32xbf16, #tpu.memory_space<vmem>>, vector<8x32xbf16>,
    return
  }
}

module attributes {stable_mosaic.version = 11 : i64} {
  func.func @k(%arg0: memref<8x32xf32, #tpu.memory_space<vmem>>, %arg1: memref<8x32xf32, #tpu.memory_space<vmem>>) attributes {dimension_semantics = [], scalar_prefetch = 0 : i64, scratch_operands = 0 : i64, tpu.core_type = #tpu.core_type<tc>} {
    %c0 = arith.constant 0 : index
    %c0_0 = arith.constant 0 : index
    %0 = vector.load %arg0[%c0, %c0_0] : memref<8x32xf32, #tpu.memory_space<vmem>>, vector<8x32xf32>
    %c3_i32 = arith.constant 3 : i32
    %1 = tpu.dynamic_rotate %0 by %c3_i32 dim 1 : vector<8x32xf32>, i32 -> vector<8x32xf32>
    %c0_1 = arith.constant 0 : index
    %c0_2 = arith.constant 0 : index
    %2 = vector.load %arg1[%c0_1, %c0_2] : memref<8x32xf32, #tpu.memory_space<vmem>>, vector<8x32xf32>
    tpu.vector_store %arg1[%c0_1, %c0_2], %1 {strides = array<i32>} : memref<8x32xf32, #tpu.memory_space<vmem>>, vector<8x32xf32>,
    return
  }
}

module attributes {stable_mosaic.version = 11 : i64} {
  func.func @_start_up_kernel(%arg0: i32, %arg1: memref<1x64x16xf32, #tpu.memory_space<vmem>>, %arg2: memref<128x64xbf16, #tpu.memory_space<vmem>>, %arg3: memref<1x128x16xbf16, #tpu.memory_space<vmem>>) attributes {dimension_semantics = [#tpu.dimension_semantics<parallel>], iteration_bounds = array<i64: 2>, scalar_prefetch = 0 : i64, scratch_operands = 0 : i64, tpu.core_type = #tpu.core_type<tc>, window_params = [{transform_indices = @transform_0, window_bounds = array<i64: 1, 64, 16>}, {pipeline_mode = #tpu.pipeline_mode<synchronous>, transform_indices = @transform_1, window_bounds = array<i64: 128, 64>}, {transform_indices = @transform_2, window_bounds = array<i64: 1, 128, 16>}]} {
    %0 = tpu.iota {dimensions = array<i32: 0>} : vector<16x4xi32>
    %1 = tpu.iota {dimensions = array<i32: 1>} : vector<16x4xi32>
    %c4_i32 = arith.constant 4 : i32
    %2 = vector.broadcast %c4_i32 : i32 to vector<16x4xi32>
    %3 = arith.muli %1, %2 : vector<16x4xi32>
    %4 = arith.cmpi sge, %0, %3 : vector<16x4xi32>
    %c1_i32 = arith.constant 1 : i32
    %5 = vector.broadcast %c1_i32 : i32 to vector<16x4xi32>
    %6 = arith.addi %1, %5 : vector<16x4xi32>
    %c4_i32_0 = arith.constant 4 : i32
    %7 = vector.broadcast %c4_i32_0 : i32 to vector<16x4xi32>
    %8 = arith.muli %6, %7 : vector<16x4xi32>
    %9 = arith.cmpi slt, %0, %8 : vector<16x4xi32>
    %10 = arith.andi %4, %9 : vector<16x4xi1>
    %11 = arith.extui %10 : vector<16x4xi1> to vector<16x4xi32>
    %12 = arith.sitofp %11 : vector<16x4xi32> to vector<16x4xf32>
    %13 = tpu.iota {dimensions = array<i32: 0>} : vector<4x16xi32>
    %14 = tpu.iota {dimensions = array<i32: 1>} : vector<4x16xi32>
    %c4_i32_1 = arith.constant 4 : i32
    %15 = vector.broadcast %c4_i32_1 : i32 to vector<4x16xi32>
    %16 = arith.muli %13, %15 : vector<4x16xi32>
    %17 = arith.cmpi sge, %14, %16 : vector<4x16xi32>
    %c1_i32_2 = arith.constant 1 : i32
    %18 = vector.broadcast %c1_i32_2 : i32 to vector<4x16xi32>
    %19 = arith.addi %13, %18 : vector<4x16xi32>
    %c4_i32_3 = arith.constant 4 : i32
    %20 = vector.broadcast %c4_i32_3 : i32 to vector<4x16xi32>
    %21 = arith.muli %19, %20 : vector<4x16xi32>
    %22 = arith.cmpi slt, %14, %21 : vector<4x16xi32>
    %23 = arith.andi %17, %22 : vector<4x16xi1>
    %24 = arith.extui %23 : vector<4x16xi1> to vector<4x16xi32>
    %25 = arith.sitofp %24 : vector<4x16xi32> to vector<4x16xf32>
    %c0 = arith.constant 0 : index
    %c0_4 = arith.constant 0 : index
    %c0_5 = arith.constant 0 : index
    %26 = vector.load %arg1[%c0, %c0_4, %c0_5] : memref<1x64x16xf32, #tpu.memory_space<vmem>>, vector<1x64x16xf32>
    %27 = vector.shape_cast %26 : vector<1x64x16xf32> to vector<64x16xf32>
    %28 = arith.mulf %27, %27 : vector<64x16xf32>
    %29 = tpu.concatenate %27, %28 in 0 : vector<64x16xf32>, vector<64x16xf32> -> vector<128x16xf32>
    %cst = arith.constant dense<0.000000e+00> : vector<128x4xf32>
    %30 = tpu.matmul %29, %12, %cst {dimension_numbers = #tpu.dot_dimension_numbers<[1], [0], [0], [1], [0, 0, 1, 1], [], []>} : vector<128x16xf32>, vector<16x4xf32>, vector<128x4xf32> -> vector<128x4xf32>
    %31 = vector.extract_strided_slice %30 {offsets = [0, 0], sizes = [64, 4], strides = [1, 1]} : vector<128x4xf32> to vector<64x4xf32>
    %cst_6 = arith.constant 2.500000e-01 : f32
    %32 = vector.broadcast %cst_6 : f32 to vector<64x4xf32>
    %33 = arith.mulf %31, %32 : vector<64x4xf32>
    %34 = vector.extract_strided_slice %30 {offsets = [64, 0], sizes = [64, 4], strides = [1, 1]} : vector<128x4xf32> to vector<64x4xf32>
    %cst_7 = arith.constant 2.500000e-01 : f32
    %35 = vector.broadcast %cst_7 : f32 to vector<64x4xf32>
    %36 = arith.mulf %34, %35 : vector<64x4xf32>
    %37 = arith.mulf %33, %33 : vector<64x4xf32>
    %38 = arith.subf %36, %37 : vector<64x4xf32>
    %cst_8 = arith.constant 0.000000e+00 : f32
    %39 = vector.broadcast %cst_8 : f32 to vector<64x4xf32>
    %40 = arith.maximumf %38, %39 : vector<64x4xf32>
    %cst_9 = arith.constant 9.99999974E-6 : f32
    %41 = vector.broadcast %cst_9 : f32 to vector<64x4xf32>
    %42 = arith.addf %40, %41 : vector<64x4xf32>
    %43 = math.rsqrt %42 : vector<64x4xf32>
    %44 = arith.mulf %33, %43 : vector<64x4xf32>
    %45 = tpu.concatenate %44, %43 in 0 : vector<64x4xf32>, vector<64x4xf32> -> vector<128x4xf32>
    %cst_10 = arith.constant dense<0.000000e+00> : vector<128x16xf32>
    %46 = tpu.matmul %45, %25, %cst_10 {dimension_numbers = #tpu.dot_dimension_numbers<[1], [0], [0], [1], [0, 0, 1, 1], [], []>} : vector<128x4xf32>, vector<4x16xf32>, vector<128x16xf32> -> vector<128x16xf32>
    %47 = vector.extract_strided_slice %46 {offsets = [64, 0], sizes = [64, 16], strides = [1, 1]} : vector<128x16xf32> to vector<64x16xf32>
    %48 = arith.mulf %27, %47 : vector<64x16xf32>
    %49 = vector.extract_strided_slice %46 {offsets = [0, 0], sizes = [64, 16], strides = [1, 1]} : vector<128x16xf32> to vector<64x16xf32>
    %50 = arith.subf %48, %49 : vector<64x16xf32>
    %cst_11 = arith.constant 0.000000e+00 : f32
    %51 = vector.broadcast %cst_11 : f32 to vector<64x16xf32>
    %52 = arith.cmpf oge, %50, %51 : vector<64x16xf32>
    %cst_12 = arith.constant 0.00999999977 : f32
    %53 = vector.broadcast %cst_12 : f32 to vector<64x16xf32>
    %54 = arith.mulf %53, %50 : vector<64x16xf32>
    %55 = arith.select %52, %50, %54 : vector<64x16xi1>, vector<64x16xf32>
    %c0_13 = arith.constant 0 : index
    %c0_14 = arith.constant 0 : index
    %56 = vector.load %arg2[%c0_13, %c0_14] : memref<128x64xbf16, #tpu.memory_space<vmem>>, vector<128x64xbf16>
    %57 = arith.truncf %55 : vector<64x16xf32> to vector<64x16xbf16>
    %cst_15 = arith.constant dense<0.000000e+00> : vector<128x16xf32>
    %58 = tpu.matmul %56, %57, %cst_15 {dimension_numbers = #tpu.dot_dimension_numbers<[1], [0], [0], [1], [0, 0, 1, 1], [], []>} : vector<128x64xbf16>, vector<64x16xbf16>, vector<128x16xf32> -> vector<128x16xf32>
    %59 = arith.mulf %58, %58 : vector<128x16xf32>
    %60 = tpu.concatenate %58, %59 in 0 : vector<128x16xf32>, vector<128x16xf32> -> vector<256x16xf32>
    %cst_16 = arith.constant dense<0.000000e+00> : vector<256x4xf32>
    %61 = tpu.matmul %60, %12, %cst_16 {dimension_numbers = #tpu.dot_dimension_numbers<[1], [0], [0], [1], [0, 0, 1, 1], [], []>} : vector<256x16xf32>, vector<16x4xf32>, vector<256x4xf32> -> vector<256x4xf32>
    %62 = vector.extract_strided_slice %61 {offsets = [0, 0], sizes = [32, 4], strides = [1, 1]} : vector<256x4xf32> to vector<32x4xf32>
    %cst_17 = arith.constant 0.000000e+00 : f32
    %63 = vector.broadcast %cst_17 : f32 to vector<32x4xf32>
    %64 = arith.addf %63, %62 : vector<32x4xf32>
    %65 = vector.extract_strided_slice %61 {offsets = [32, 0], sizes = [32, 4], strides = [1, 1]} : vector<256x4xf32> to vector<32x4xf32>
    %66 = arith.addf %64, %65 : vector<32x4xf32>
    %67 = vector.extract_strided_slice %61 {offsets = [64, 0], sizes = [32, 4], strides = [1, 1]} : vector<256x4xf32> to vector<32x4xf32>
    %68 = arith.addf %66, %67 : vector<32x4xf32>
    %69 = vector.extract_strided_slice %61 {offsets = [96, 0], sizes = [32, 4], strides = [1, 1]} : vector<256x4xf32> to vector<32x4xf32>
    %70 = arith.addf %68, %69 : vector<32x4xf32>
    %71 = vector.extract_strided_slice %61 {offsets = [128, 0], sizes = [32, 4], strides = [1, 1]} : vector<256x4xf32> to vector<32x4xf32>
    %cst_18 = arith.constant 0.000000e+00 : f32
    %72 = vector.broadcast %cst_18 : f32 to vector<32x4xf32>
    %73 = arith.addf %72, %71 : vector<32x4xf32>
    %74 = vector.extract_strided_slice %61 {offsets = [160, 0], sizes = [32, 4], strides = [1, 1]} : vector<256x4xf32> to vector<32x4xf32>
    %75 = arith.addf %73, %74 : vector<32x4xf32>
    %76 = vector.extract_strided_slice %61 {offsets = [192, 0], sizes = [32, 4], strides = [1, 1]} : vector<256x4xf32> to vector<32x4xf32>
    %77 = arith.addf %75, %76 : vector<32x4xf32>
    %78 = vector.extract_strided_slice %61 {offsets = [224, 0], sizes = [32, 4], strides = [1, 1]} : vector<256x4xf32> to vector<32x4xf32>
    %79 = arith.addf %77, %78 : vector<32x4xf32>
    %cst_19 = arith.constant 6.250000e-02 : f32
    %80 = vector.broadcast %cst_19 : f32 to vector<32x4xf32>
    %81 = arith.mulf %70, %80 : vector<32x4xf32>
    %cst_20 = arith.constant 6.250000e-02 : f32
    %82 = vector.broadcast %cst_20 : f32 to vector<32x4xf32>
    %83 = arith.mulf %79, %82 : vector<32x4xf32>
    %84 = arith.mulf %81, %81 : vector<32x4xf32>
    %85 = arith.subf %83, %84 : vector<32x4xf32>
    %cst_21 = arith.constant 0.000000e+00 : f32
    %86 = vector.broadcast %cst_21 : f32 to vector<32x4xf32>
    %87 = arith.maximumf %85, %86 : vector<32x4xf32>
    %cst_22 = arith.constant 9.99999974E-6 : f32
    %88 = vector.broadcast %cst_22 : f32 to vector<32x4xf32>
    %89 = arith.addf %87, %88 : vector<32x4xf32>
    %90 = math.rsqrt %89 : vector<32x4xf32>
    %91 = arith.mulf %81, %90 : vector<32x4xf32>
    %92 = tpu.concatenate %91, %90 in 0 : vector<32x4xf32>, vector<32x4xf32> -> vector<64x4xf32>
    %cst_23 = arith.constant dense<0.000000e+00> : vector<64x16xf32>
    %93 = tpu.matmul %92, %25, %cst_23 {dimension_numbers = #tpu.dot_dimension_numbers<[1], [0], [0], [1], [0, 0, 1, 1], [], []>} : vector<64x4xf32>, vector<4x16xf32>, vector<64x16xf32> -> vector<64x16xf32>
    %94 = vector.extract_strided_slice %93 {offsets = [32, 0], sizes = [32, 16], strides = [1, 1]} : vector<64x16xf32> to vector<32x16xf32>
    %95 = tpu.concatenate %94, %94, %94, %94 in 0 : vector<32x16xf32>, vector<32x16xf32>, vector<32x16xf32>, vector<32x16xf32> -> vector<128x16xf32>
    %96 = vector.extract_strided_slice %93 {offsets = [0, 0], sizes = [32, 16], strides = [1, 1]} : vector<64x16xf32> to vector<32x16xf32>
    %97 = tpu.concatenate %96, %96, %96, %96 in 0 : vector<32x16xf32>, vector<32x16xf32>, vector<32x16xf32>, vector<32x16xf32> -> vector<128x16xf32>
    %98 = arith.mulf %58, %95 : vector<128x16xf32>
    %99 = arith.subf %98, %97 : vector<128x16xf32>
    %cst_24 = arith.constant 0.000000e+00 : f32
    %100 = vector.broadcast %cst_24 : f32 to vector<128x16xf32>
    %101 = arith.cmpf oge, %99, %100 : vector<128x16xf32>
    %cst_25 = arith.constant 0.00999999977 : f32
    %102 = vector.broadcast %cst_25 : f32 to vector<128x16xf32>
    %103 = arith.mulf %102, %99 : vector<128x16xf32>
    %104 = arith.select %101, %99, %103 : vector<128x16xi1>, vector<128x16xf32>
    %105 = arith.truncf %104 : vector<128x16xf32> to vector<128x16xbf16>
    %c0_26 = arith.constant 0 : index
    %c0_27 = arith.constant 0 : index
    %c0_28 = arith.constant 0 : index
    %106 = vector.load %arg3[%c0_26, %c0_27, %c0_28] : memref<1x128x16xbf16, #tpu.memory_space<vmem>>, vector<1x128x16xbf16>
    %107 = vector.shape_cast %106 : vector<1x128x16xbf16> to vector<128x16xbf16>
    %108 = vector.shape_cast %105 : vector<128x16xbf16> to vector<1x128x16xbf16>
    tpu.vector_store %arg3[%c0_26, %c0_27, %c0_28], %108 {strides = array<i32>} : memref<1x128x16xbf16, #tpu.memory_space<vmem>>, vector<1x128x16xbf16>,
    return
  }
  func.func @transform_0(%arg0: i32) -> (i32, i32, i32) {
    %c0_i32 = arith.constant 0 : i32
    %c0_i32_0 = arith.constant 0 : i32
    %c0_i32_1 = arith.constant 0 : i32
    return %arg0, %c0_i32, %c0_i32_0 : i32, i32, i32
  }
  func.func @transform_1(%arg0: i32) -> (i32, i32) {
    %c0_i32 = arith.constant 0 : i32
    %c0_i32_0 = arith.constant 0 : i32
    %c0_i32_1 = arith.constant 0 : i32
    return %c0_i32, %c0_i32_0 : i32, i32
  }
  func.func @transform_2(%arg0: i32) -> (i32, i32, i32) {
    %c0_i32 = arith.constant 0 : i32
    %c0_i32_0 = arith.constant 0 : i32
    %c0_i32_1 = arith.constant 0 : i32
    return %arg0, %c0_i32, %c0_i32_0 : i32, i32, i32
  }
}

module attributes {stable_mosaic.version = 11 : i64} {
  func.func @_convblock_up_kernel(%arg0: i32, %arg1: memref<1x32x64xbf16, #tpu.memory_space<vmem>>, %arg2: memref<3x32x288xbf16, #tpu.memory_space<vmem>>, %arg3: memref<64x32xbf16, #tpu.memory_space<vmem>>, %arg4: memref<9x1x64xbf16, #tpu.memory_space<vmem>>, %arg5: memref<1x64x64xbf16, #tpu.memory_space<vmem>>) attributes {dimension_semantics = [#tpu.dimension_semantics<parallel>], iteration_bounds = array<i64: 2>, scalar_prefetch = 0 : i64, scratch_operands = 0 : i64, tpu.core_type = #tpu.core_type<tc>, window_params = [{transform_indices = @transform_0, window_bounds = array<i64: 1, 32, 64>}, {pipeline_mode = #tpu.pipeline_mode<synchronous>, transform_indices = @transform_1, window_bounds = array<i64: 3, 32, 288>}, {pipeline_mode = #tpu.pipeline_mode<synchronous>, transform_indices = @transform_2, window_bounds = array<i64: 64, 32>}, {pipeline_mode = #tpu.pipeline_mode<synchronous>, transform_indices = @transform_3, window_bounds = array<i64: 9, 1, 64>}, {transform_indices = @transform_4, window_bounds = array<i64: 1, 64, 64>}]} {
    %0 = tpu.iota {dimensions = array<i32: 0>} : vector<64x4xi32>
    %1 = tpu.iota {dimensions = array<i32: 1>} : vector<64x4xi32>
    %c16_i32 = arith.constant 16 : i32
    %2 = vector.broadcast %c16_i32 : i32 to vector<64x4xi32>
    %3 = arith.muli %1, %2 : vector<64x4xi32>
    %4 = arith.cmpi sge, %0, %3 : vector<64x4xi32>
    %c1_i32 = arith.constant 1 : i32
    %5 = vector.broadcast %c1_i32 : i32 to vector<64x4xi32>
    %6 = arith.addi %1, %5 : vector<64x4xi32>
    %c16_i32_0 = arith.constant 16 : i32
    %7 = vector.broadcast %c16_i32_0 : i32 to vector<64x4xi32>
    %8 = arith.muli %6, %7 : vector<64x4xi32>
    %9 = arith.cmpi slt, %0, %8 : vector<64x4xi32>
    %10 = arith.andi %4, %9 : vector<64x4xi1>
    %11 = arith.extui %10 : vector<64x4xi1> to vector<64x4xi32>
    %12 = arith.sitofp %11 : vector<64x4xi32> to vector<64x4xf32>
    %13 = tpu.iota {dimensions = array<i32: 0>} : vector<4x64xi32>
    %14 = tpu.iota {dimensions = array<i32: 1>} : vector<4x64xi32>
    %c16_i32_1 = arith.constant 16 : i32
    %15 = vector.broadcast %c16_i32_1 : i32 to vector<4x64xi32>
    %16 = arith.muli %13, %15 : vector<4x64xi32>
    %17 = arith.cmpi sge, %14, %16 : vector<4x64xi32>
    %c1_i32_2 = arith.constant 1 : i32
    %18 = vector.broadcast %c1_i32_2 : i32 to vector<4x64xi32>
    %19 = arith.addi %13, %18 : vector<4x64xi32>
    %c16_i32_3 = arith.constant 16 : i32
    %20 = vector.broadcast %c16_i32_3 : i32 to vector<4x64xi32>
    %21 = arith.muli %19, %20 : vector<4x64xi32>
    %22 = arith.cmpi slt, %14, %21 : vector<4x64xi32>
    %23 = arith.andi %17, %22 : vector<4x64xi1>
    %24 = arith.extui %23 : vector<4x64xi1> to vector<4x64xi32>
    %25 = arith.sitofp %24 : vector<4x64xi32> to vector<4x64xf32>
    %c0 = arith.constant 0 : index
    %c0_4 = arith.constant 0 : index
    %c0_5 = arith.constant 0 : index
    %26 = vector.load %arg1[%c0, %c0_4, %c0_5] : memref<1x32x64xbf16, #tpu.memory_space<vmem>>, vector<1x32x64xbf16>
    %27 = vector.shape_cast %26 : vector<1x32x64xbf16> to vector<32x64xbf16>
    %c0_6 = arith.constant 0 : index
    %c0_7 = arith.constant 0 : index
    %c0_8 = arith.constant 0 : index
    %28 = vector.load %arg2[%c0_6, %c0_7, %c0_8] : memref<3x32x288xbf16, #tpu.memory_space<vmem>>, vector<1x32x288xbf16>
    %29 = vector.shape_cast %28 : vector<1x32x288xbf16> to vector<32x288xbf16>
    %cst = arith.constant 0.000000e+00 : bf16
    %30 = vector.broadcast %cst : bf16 to vector<32x5xbf16>
    %31 = vector.extract_strided_slice %27 {offsets = [0, 0], sizes = [32, 59], strides = [1, 1]} : vector<32x64xbf16> to vector<32x59xbf16>
    %32 = tpu.concatenate %30, %31 in 1 : vector<32x5xbf16>, vector<32x59xbf16> -> vector<32x64xbf16>
    %c0_9 = arith.constant 0 : index
    %c0_10 = arith.constant 0 : index
    %c0_11 = arith.constant 0 : index
    %33 = vector.load %arg4[%c0_9, %c0_10, %c0_11] : memref<9x1x64xbf16, #tpu.memory_space<vmem>>, vector<1x1x64xbf16>
    %34 = vector.shape_cast %33 : vector<1x1x64xbf16> to vector<1x64xbf16>
    %35 = vector.broadcast %34 : vector<1x64xbf16> to vector<32x64xbf16>
    %36 = arith.mulf %32, %35 : vector<32x64xbf16>
    %cst_12 = arith.constant 0.000000e+00 : bf16
    %37 = vector.broadcast %cst_12 : bf16 to vector<32x4xbf16>
    %38 = vector.extract_strided_slice %27 {offsets = [0, 0], sizes = [32, 60], strides = [1, 1]} : vector<32x64xbf16> to vector<32x60xbf16>
    %39 = tpu.concatenate %37, %38 in 1 : vector<32x4xbf16>, vector<32x60xbf16> -> vector<32x64xbf16>
    %c1 = arith.constant 1 : index
    %c0_13 = arith.constant 0 : index
    %c0_14 = arith.constant 0 : index
    %40 = vector.load %arg4[%c1, %c0_13, %c0_14] : memref<9x1x64xbf16, #tpu.memory_space<vmem>>, vector<1x1x64xbf16>
    %41 = vector.shape_cast %40 : vector<1x1x64xbf16> to vector<1x64xbf16>
    %42 = vector.broadcast %41 : vector<1x64xbf16> to vector<32x64xbf16>
    %43 = arith.mulf %39, %42 : vector<32x64xbf16>
    %cst_15 = arith.constant 0.000000e+00 : bf16
    %44 = vector.broadcast %cst_15 : bf16 to vector<32x3xbf16>
    %45 = vector.extract_strided_slice %27 {offsets = [0, 0], sizes = [32, 61], strides = [1, 1]} : vector<32x64xbf16> to vector<32x61xbf16>
    %46 = tpu.concatenate %44, %45 in 1 : vector<32x3xbf16>, vector<32x61xbf16> -> vector<32x64xbf16>
    %c2 = arith.constant 2 : index
    %c0_16 = arith.constant 0 : index
    %c0_17 = arith.constant 0 : index
    %47 = vector.load %arg4[%c2, %c0_16, %c0_17] : memref<9x1x64xbf16, #tpu.memory_space<vmem>>, vector<1x1x64xbf16>
    %48 = vector.shape_cast %47 : vector<1x1x64xbf16> to vector<1x64xbf16>
    %49 = vector.broadcast %48 : vector<1x64xbf16> to vector<32x64xbf16>
    %50 = arith.mulf %46, %49 : vector<32x64xbf16>
    %cst_18 = arith.constant 0.000000e+00 : bf16
    %51 = vector.broadcast %cst_18 : bf16 to vector<32x1xbf16>
    %52 = vector.extract_strided_slice %27 {offsets = [0, 0], sizes = [32, 63], strides = [1, 1]} : vector<32x64xbf16> to vector<32x63xbf16>
    %53 = tpu.concatenate %51, %52 in 1 : vector<32x1xbf16>, vector<32x63xbf16> -> vector<32x64xbf16>
    %c3 = arith.constant 3 : index
    %c0_19 = arith.constant 0 : index
    %c0_20 = arith.constant 0 : index
    %54 = vector.load %arg4[%c3, %c0_19, %c0_20] : memref<9x1x64xbf16, #tpu.memory_space<vmem>>, vector<1x1x64xbf16>
    %55 = vector.shape_cast %54 : vector<1x1x64xbf16> to vector<1x64xbf16>
    %56 = vector.broadcast %55 : vector<1x64xbf16> to vector<32x64xbf16>
    %57 = arith.mulf %53, %56 : vector<32x64xbf16>
    %cst_21 = arith.constant 0.000000e+00 : bf16
    %58 = vector.broadcast %cst_21 : bf16 to vector<32x1xbf16>
    %59 = vector.extract_strided_slice %27 {offsets = [0, 1], sizes = [32, 63], strides = [1, 1]} : vector<32x64xbf16> to vector<32x63xbf16>
    %60 = tpu.concatenate %59, %58 in 1 : vector<32x63xbf16>, vector<32x1xbf16> -> vector<32x64xbf16>
    %c5 = arith.constant 5 : index
    %c0_22 = arith.constant 0 : index
    %c0_23 = arith.constant 0 : index
    %61 = vector.load %arg4[%c5, %c0_22, %c0_23] : memref<9x1x64xbf16, #tpu.memory_space<vmem>>, vector<1x1x64xbf16>
    %62 = vector.shape_cast %61 : vector<1x1x64xbf16> to vector<1x64xbf16>
    %63 = vector.broadcast %62 : vector<1x64xbf16> to vector<32x64xbf16>
    %64 = arith.mulf %60, %63 : vector<32x64xbf16>
    %cst_24 = arith.constant 0.000000e+00 : bf16
    %65 = vector.broadcast %cst_24 : bf16 to vector<32x3xbf16>
    %66 = vector.extract_strided_slice %27 {offsets = [0, 3], sizes = [32, 61], strides = [1, 1]} : vector<32x64xbf16> to vector<32x61xbf16>
    %67 = tpu.concatenate %66, %65 in 1 : vector<32x61xbf16>, vector<32x3xbf16> -> vector<32x64xbf16>
    %c6 = arith.constant 6 : index
    %c0_25 = arith.constant 0 : index
    %c0_26 = arith.constant 0 : index
    %68 = vector.load %arg4[%c6, %c0_25, %c0_26] : memref<9x1x64xbf16, #tpu.memory_space<vmem>>, vector<1x1x64xbf16>
    %69 = vector.shape_cast %68 : vector<1x1x64xbf16> to vector<1x64xbf16>
    %70 = vector.broadcast %69 : vector<1x64xbf16> to vector<32x64xbf16>
    %71 = arith.mulf %67, %70 : vector<32x64xbf16>
    %cst_27 = arith.constant 0.000000e+00 : bf16
    %72 = vector.broadcast %cst_27 : bf16 to vector<32x4xbf16>
    %73 = vector.extract_strided_slice %27 {offsets = [0, 4], sizes = [32, 60], strides = [1, 1]} : vector<32x64xbf16> to vector<32x60xbf16>
    %74 = tpu.concatenate %73, %72 in 1 : vector<32x60xbf16>, vector<32x4xbf16> -> vector<32x64xbf16>
    %c7 = arith.constant 7 : index
    %c0_28 = arith.constant 0 : index
    %c0_29 = arith.constant 0 : index
    %75 = vector.load %arg4[%c7, %c0_28, %c0_29] : memref<9x1x64xbf16, #tpu.memory_space<vmem>>, vector<1x1x64xbf16>
    %76 = vector.shape_cast %75 : vector<1x1x64xbf16> to vector<1x64xbf16>
    %77 = vector.broadcast %76 : vector<1x64xbf16> to vector<32x64xbf16>
    %78 = arith.mulf %74, %77 : vector<32x64xbf16>
    %cst_30 = arith.constant 0.000000e+00 : bf16
    %79 = vector.broadcast %cst_30 : bf16 to vector<32x5xbf16>
    %80 = vector.extract_strided_slice %27 {offsets = [0, 5], sizes = [32, 59], strides = [1, 1]} : vector<32x64xbf16> to vector<32x59xbf16>
    %81 = tpu.concatenate %80, %79 in 1 : vector<32x59xbf16>, vector<32x5xbf16> -> vector<32x64xbf16>
    %c8 = arith.constant 8 : index
    %c0_31 = arith.constant 0 : index
    %c0_32 = arith.constant 0 : index
    %82 = vector.load %arg4[%c8, %c0_31, %c0_32] : memref<9x1x64xbf16, #tpu.memory_space<vmem>>, vector<1x1x64xbf16>
    %83 = vector.shape_cast %82 : vector<1x1x64xbf16> to vector<1x64xbf16>
    %84 = vector.broadcast %83 : vector<1x64xbf16> to vector<32x64xbf16>
    %85 = arith.mulf %81, %84 : vector<32x64xbf16>
    %86 = tpu.concatenate %36, %43, %50, %57, %27, %64, %71, %78, %85 in 0 : vector<32x64xbf16>, vector<32x64xbf16>, vector<32x64xbf16>, vector<32x64xbf16>, vector<32x64xbf16>, vector<32x64xbf16>, vector<32x64xbf16>, vector<32x64xbf16>, vector<32x64xbf16> -> vector<288x64xbf16>
    %cst_33 = arith.constant dense<0.000000e+00> : vector<32x64xf32>
    %87 = tpu.matmul %29, %86, %cst_33 {dimension_numbers = #tpu.dot_dimension_numbers<[1], [0], [0], [1], [0, 0, 1, 1], [], []>} : vector<32x288xbf16>, vector<288x64xbf16>, vector<32x64xf32> -> vector<32x64xf32>
    %88 = arith.mulf %87, %87 : vector<32x64xf32>
    %89 = tpu.concatenate %87, %88 in 0 : vector<32x64xf32>, vector<32x64xf32> -> vector<64x64xf32>
    %cst_34 = arith.constant dense<0.000000e+00> : vector<64x4xf32>
    %90 = tpu.matmul %89, %12, %cst_34 {dimension_numbers = #tpu.dot_dimension_numbers<[1], [0], [0], [1], [0, 0, 1, 1], [], []>} : vector<64x64xf32>, vector<64x4xf32>, vector<64x4xf32> -> vector<64x4xf32>
    %91 = vector.extract_strided_slice %90 {offsets = [0, 0], sizes = [32, 4], strides = [1, 1]} : vector<64x4xf32> to vector<32x4xf32>
    %cst_35 = arith.constant 6.250000e-02 : f32
    %92 = vector.broadcast %cst_35 : f32 to vector<32x4xf32>
    %93 = arith.mulf %91, %92 : vector<32x4xf32>
    %94 = vector.extract_strided_slice %90 {offsets = [32, 0], sizes = [32, 4], strides = [1, 1]} : vector<64x4xf32> to vector<32x4xf32>
    %cst_36 = arith.constant 6.250000e-02 : f32
    %95 = vector.broadcast %cst_36 : f32 to vector<32x4xf32>
    %96 = arith.mulf %94, %95 : vector<32x4xf32>
    %97 = arith.mulf %93, %93 : vector<32x4xf32>
    %98 = arith.subf %96, %97 : vector<32x4xf32>
    %cst_37 = arith.constant 0.000000e+00 : f32
    %99 = vector.broadcast %cst_37 : f32 to vector<32x4xf32>
    %100 = arith.maximumf %98, %99 : vector<32x4xf32>
    %cst_38 = arith.constant 9.99999974E-6 : f32
    %101 = vector.broadcast %cst_38 : f32 to vector<32x4xf32>
    %102 = arith.addf %100, %101 : vector<32x4xf32>
    %103 = math.rsqrt %102 : vector<32x4xf32>
    %104 = arith.mulf %93, %103 : vector<32x4xf32>
    %105 = tpu.concatenate %104, %103 in 0 : vector<32x4xf32>, vector<32x4xf32> -> vector<64x4xf32>
    %cst_39 = arith.constant dense<0.000000e+00> : vector<64x64xf32>
    %106 = tpu.matmul %105, %25, %cst_39 {dimension_numbers = #tpu.dot_dimension_numbers<[1], [0], [0], [1], [0, 0, 1, 1], [], []>} : vector<64x4xf32>, vector<4x64xf32>, vector<64x64xf32> -> vector<64x64xf32>
    %107 = vector.extract_strided_slice %106 {offsets = [32, 0], sizes = [32, 64], strides = [1, 1]} : vector<64x64xf32> to vector<32x64xf32>
    %108 = arith.mulf %87, %107 : vector<32x64xf32>
    %109 = vector.extract_strided_slice %106 {offsets = [0, 0], sizes = [32, 64], strides = [1, 1]} : vector<64x64xf32> to vector<32x64xf32>
    %110 = arith.subf %108, %109 : vector<32x64xf32>
    %cst_40 = arith.constant 0.000000e+00 : f32
    %111 = vector.broadcast %cst_40 : f32 to vector<32x64xf32>
    %112 = arith.cmpf oge, %110, %111 : vector<32x64xf32>
    %cst_41 = arith.constant 0.00999999977 : f32
    %113 = vector.broadcast %cst_41 : f32 to vector<32x64xf32>
    %114 = arith.mulf %113, %110 : vector<32x64xf32>
    %115 = arith.select %112, %110, %114 : vector<32x64xi1>, vector<32x64xf32>
    %116 = arith.truncf %115 : vector<32x64xf32> to vector<32x64xbf16>
    %c1_42 = arith.constant 1 : index
    %c0_43 = arith.constant 0 : index
    %c0_44 = arith.constant 0 : index
    %117 = vector.load %arg2[%c1_42, %c0_43, %c0_44] : memref<3x32x288xbf16, #tpu.memory_space<vmem>>, vector<1x32x288xbf16>
    %118 = vector.shape_cast %117 : vector<1x32x288xbf16> to vector<32x288xbf16>
    %cst_45 = arith.constant 0.000000e+00 : bf16
    %119 = vector.broadcast %cst_45 : bf16 to vector<32x5xbf16>
    %120 = vector.extract_strided_slice %116 {offsets = [0, 0], sizes = [32, 59], strides = [1, 1]} : vector<32x64xbf16> to vector<32x59xbf16>
    %121 = tpu.concatenate %119, %120 in 1 : vector<32x5xbf16>, vector<32x59xbf16> -> vector<32x64xbf16>
    %c0_46 = arith.constant 0 : index
    %c0_47 = arith.constant 0 : index
    %c0_48 = arith.constant 0 : index
    %122 = vector.load %arg4[%c0_46, %c0_47, %c0_48] : memref<9x1x64xbf16, #tpu.memory_space<vmem>>, vector<1x1x64xbf16>
    %123 = vector.shape_cast %122 : vector<1x1x64xbf16> to vector<1x64xbf16>
    %124 = vector.broadcast %123 : vector<1x64xbf16> to vector<32x64xbf16>
    %125 = arith.mulf %121, %124 : vector<32x64xbf16>
    %cst_49 = arith.constant 0.000000e+00 : bf16
    %126 = vector.broadcast %cst_49 : bf16 to vector<32x4xbf16>
    %127 = vector.extract_strided_slice %116 {offsets = [0, 0], sizes = [32, 60], strides = [1, 1]} : vector<32x64xbf16> to vector<32x60xbf16>
    %128 = tpu.concatenate %126, %127 in 1 : vector<32x4xbf16>, vector<32x60xbf16> -> vector<32x64xbf16>
    %c1_50 = arith.constant 1 : index
    %c0_51 = arith.constant 0 : index
    %c0_52 = arith.constant 0 : index
    %129 = vector.load %arg4[%c1_50, %c0_51, %c0_52] : memref<9x1x64xbf16, #tpu.memory_space<vmem>>, vector<1x1x64xbf16>
    %130 = vector.shape_cast %129 : vector<1x1x64xbf16> to vector<1x64xbf16>
    %131 = vector.broadcast %130 : vector<1x64xbf16> to vector<32x64xbf16>
    %132 = arith.mulf %128, %131 : vector<32x64xbf16>
    %cst_53 = arith.constant 0.000000e+00 : bf16
    %133 = vector.broadcast %cst_53 : bf16 to vector<32x3xbf16>
    %134 = vector.extract_strided_slice %116 {offsets = [0, 0], sizes = [32, 61], strides = [1, 1]} : vector<32x64xbf16> to vector<32x61xbf16>
    %135 = tpu.concatenate %133, %134 in 1 : vector<32x3xbf16>, vector<32x61xbf16> -> vector<32x64xbf16>
    %c2_54 = arith.constant 2 : index
    %c0_55 = arith.constant 0 : index
    %c0_56 = arith.constant 0 : index
    %136 = vector.load %arg4[%c2_54, %c0_55, %c0_56] : memref<9x1x64xbf16, #tpu.memory_space<vmem>>, vector<1x1x64xbf16>
    %137 = vector.shape_cast %136 : vector<1x1x64xbf16> to vector<1x64xbf16>
    %138 = vector.broadcast %137 : vector<1x64xbf16> to vector<32x64xbf16>
    %139 = arith.mulf %135, %138 : vector<32x64xbf16>
    %cst_57 = arith.constant 0.000000e+00 : bf16
    %140 = vector.broadcast %cst_57 : bf16 to vector<32x1xbf16>
    %141 = vector.extract_strided_slice %116 {offsets = [0, 0], sizes = [32, 63], strides = [1, 1]} : vector<32x64xbf16> to vector<32x63xbf16>
    %142 = tpu.concatenate %140, %141 in 1 : vector<32x1xbf16>, vector<32x63xbf16> -> vector<32x64xbf16>
    %c3_58 = arith.constant 3 : index
    %c0_59 = arith.constant 0 : index
    %c0_60 = arith.constant 0 : index
    %143 = vector.load %arg4[%c3_58, %c0_59, %c0_60] : memref<9x1x64xbf16, #tpu.memory_space<vmem>>, vector<1x1x64xbf16>
    %144 = vector.shape_cast %143 : vector<1x1x64xbf16> to vector<1x64xbf16>
    %145 = vector.broadcast %144 : vector<1x64xbf16> to vector<32x64xbf16>
    %146 = arith.mulf %142, %145 : vector<32x64xbf16>
    %cst_61 = arith.constant 0.000000e+00 : bf16
    %147 = vector.broadcast %cst_61 : bf16 to vector<32x1xbf16>
    %148 = vector.extract_strided_slice %116 {offsets = [0, 1], sizes = [32, 63], strides = [1, 1]} : vector<32x64xbf16> to vector<32x63xbf16>
    %149 = tpu.concatenate %148, %147 in 1 : vector<32x63xbf16>, vector<32x1xbf16> -> vector<32x64xbf16>
    %c5_62 = arith.constant 5 : index
    %c0_63 = arith.constant 0 : index
    %c0_64 = arith.constant 0 : index
    %150 = vector.load %arg4[%c5_62, %c0_63, %c0_64] : memref<9x1x64xbf16, #tpu.memory_space<vmem>>, vector<1x1x64xbf16>
    %151 = vector.shape_cast %150 : vector<1x1x64xbf16> to vector<1x64xbf16>
    %152 = vector.broadcast %151 : vector<1x64xbf16> to vector<32x64xbf16>
    %153 = arith.mulf %149, %152 : vector<32x64xbf16>
    %cst_65 = arith.constant 0.000000e+00 : bf16
    %154 = vector.broadcast %cst_65 : bf16 to vector<32x3xbf16>
    %155 = vector.extract_strided_slice %116 {offsets = [0, 3], sizes = [32, 61], strides = [1, 1]} : vector<32x64xbf16> to vector<32x61xbf16>
    %156 = tpu.concatenate %155, %154 in 1 : vector<32x61xbf16>, vector<32x3xbf16> -> vector<32x64xbf16>
    %c6_66 = arith.constant 6 : index
    %c0_67 = arith.constant 0 : index
    %c0_68 = arith.constant 0 : index
    %157 = vector.load %arg4[%c6_66, %c0_67, %c0_68] : memref<9x1x64xbf16, #tpu.memory_space<vmem>>, vector<1x1x64xbf16>
    %158 = vector.shape_cast %157 : vector<1x1x64xbf16> to vector<1x64xbf16>
    %159 = vector.broadcast %158 : vector<1x64xbf16> to vector<32x64xbf16>
    %160 = arith.mulf %156, %159 : vector<32x64xbf16>
    %cst_69 = arith.constant 0.000000e+00 : bf16
    %161 = vector.broadcast %cst_69 : bf16 to vector<32x4xbf16>
    %162 = vector.extract_strided_slice %116 {offsets = [0, 4], sizes = [32, 60], strides = [1, 1]} : vector<32x64xbf16> to vector<32x60xbf16>
    %163 = tpu.concatenate %162, %161 in 1 : vector<32x60xbf16>, vector<32x4xbf16> -> vector<32x64xbf16>
    %c7_70 = arith.constant 7 : index
    %c0_71 = arith.constant 0 : index
    %c0_72 = arith.constant 0 : index
    %164 = vector.load %arg4[%c7_70, %c0_71, %c0_72] : memref<9x1x64xbf16, #tpu.memory_space<vmem>>, vector<1x1x64xbf16>
    %165 = vector.shape_cast %164 : vector<1x1x64xbf16> to vector<1x64xbf16>
    %166 = vector.broadcast %165 : vector<1x64xbf16> to vector<32x64xbf16>
    %167 = arith.mulf %163, %166 : vector<32x64xbf16>
    %cst_73 = arith.constant 0.000000e+00 : bf16
    %168 = vector.broadcast %cst_73 : bf16 to vector<32x5xbf16>
    %169 = vector.extract_strided_slice %116 {offsets = [0, 5], sizes = [32, 59], strides = [1, 1]} : vector<32x64xbf16> to vector<32x59xbf16>
    %170 = tpu.concatenate %169, %168 in 1 : vector<32x59xbf16>, vector<32x5xbf16> -> vector<32x64xbf16>
    %c8_74 = arith.constant 8 : index
    %c0_75 = arith.constant 0 : index
    %c0_76 = arith.constant 0 : index
    %171 = vector.load %arg4[%c8_74, %c0_75, %c0_76] : memref<9x1x64xbf16, #tpu.memory_space<vmem>>, vector<1x1x64xbf16>
    %172 = vector.shape_cast %171 : vector<1x1x64xbf16> to vector<1x64xbf16>
    %173 = vector.broadcast %172 : vector<1x64xbf16> to vector<32x64xbf16>
    %174 = arith.mulf %170, %173 : vector<32x64xbf16>
    %175 = tpu.concatenate %125, %132, %139, %146, %116, %153, %160, %167, %174 in 0 : vector<32x64xbf16>, vector<32x64xbf16>, vector<32x64xbf16>, vector<32x64xbf16>, vector<32x64xbf16>, vector<32x64xbf16>, vector<32x64xbf16>, vector<32x64xbf16>, vector<32x64xbf16> -> vector<288x64xbf16>
    %cst_77 = arith.constant dense<0.000000e+00> : vector<32x64xf32>
    %176 = tpu.matmul %118, %175, %cst_77 {dimension_numbers = #tpu.dot_dimension_numbers<[1], [0], [0], [1], [0, 0, 1, 1], [], []>} : vector<32x288xbf16>, vector<288x64xbf16>, vector<32x64xf32> -> vector<32x64xf32>
    %177 = arith.mulf %176, %176 : vector<32x64xf32>
    %178 = tpu.concatenate %176, %177 in 0 : vector<32x64xf32>, vector<32x64xf32> -> vector<64x64xf32>
    %cst_78 = arith.constant dense<0.000000e+00> : vector<64x4xf32>
    %179 = tpu.matmul %178, %12, %cst_78 {dimension_numbers = #tpu.dot_dimension_numbers<[1], [0], [0], [1], [0, 0, 1, 1], [], []>} : vector<64x64xf32>, vector<64x4xf32>, vector<64x4xf32> -> vector<64x4xf32>
    %180 = vector.extract_strided_slice %179 {offsets = [0, 0], sizes = [32, 4], strides = [1, 1]} : vector<64x4xf32> to vector<32x4xf32>
    %cst_79 = arith.constant 6.250000e-02 : f32
    %181 = vector.broadcast %cst_79 : f32 to vector<32x4xf32>
    %182 = arith.mulf %180, %181 : vector<32x4xf32>
    %183 = vector.extract_strided_slice %179 {offsets = [32, 0], sizes = [32, 4], strides = [1, 1]} : vector<64x4xf32> to vector<32x4xf32>
    %cst_80 = arith.constant 6.250000e-02 : f32
    %184 = vector.broadcast %cst_80 : f32 to vector<32x4xf32>
    %185 = arith.mulf %183, %184 : vector<32x4xf32>
    %186 = arith.mulf %182, %182 : vector<32x4xf32>
    %187 = arith.subf %185, %186 : vector<32x4xf32>
    %cst_81 = arith.constant 0.000000e+00 : f32
    %188 = vector.broadcast %cst_81 : f32 to vector<32x4xf32>
    %189 = arith.maximumf %187, %188 : vector<32x4xf32>
    %cst_82 = arith.constant 9.99999974E-6 : f32
    %190 = vector.broadcast %cst_82 : f32 to vector<32x4xf32>
    %191 = arith.addf %189, %190 : vector<32x4xf32>
    %192 = math.rsqrt %191 : vector<32x4xf32>
    %193 = arith.mulf %182, %192 : vector<32x4xf32>
    %194 = tpu.concatenate %193, %192 in 0 : vector<32x4xf32>, vector<32x4xf32> -> vector<64x4xf32>
    %cst_83 = arith.constant dense<0.000000e+00> : vector<64x64xf32>
    %195 = tpu.matmul %194, %25, %cst_83 {dimension_numbers = #tpu.dot_dimension_numbers<[1], [0], [0], [1], [0, 0, 1, 1], [], []>} : vector<64x4xf32>, vector<4x64xf32>, vector<64x64xf32> -> vector<64x64xf32>
    %196 = vector.extract_strided_slice %195 {offsets = [32, 0], sizes = [32, 64], strides = [1, 1]} : vector<64x64xf32> to vector<32x64xf32>
    %197 = arith.mulf %176, %196 : vector<32x64xf32>
    %198 = vector.extract_strided_slice %195 {offsets = [0, 0], sizes = [32, 64], strides = [1, 1]} : vector<64x64xf32> to vector<32x64xf32>
    %199 = arith.subf %197, %198 : vector<32x64xf32>
    %cst_84 = arith.constant 0.000000e+00 : f32
    %200 = vector.broadcast %cst_84 : f32 to vector<32x64xf32>
    %201 = arith.cmpf oge, %199, %200 : vector<32x64xf32>
    %cst_85 = arith.constant 0.00999999977 : f32
    %202 = vector.broadcast %cst_85 : f32 to vector<32x64xf32>
    %203 = arith.mulf %202, %199 : vector<32x64xf32>
    %204 = arith.select %201, %199, %203 : vector<32x64xi1>, vector<32x64xf32>
    %205 = arith.truncf %204 : vector<32x64xf32> to vector<32x64xbf16>
    %c2_86 = arith.constant 2 : index
    %c0_87 = arith.constant 0 : index
    %c0_88 = arith.constant 0 : index
    %206 = vector.load %arg2[%c2_86, %c0_87, %c0_88] : memref<3x32x288xbf16, #tpu.memory_space<vmem>>, vector<1x32x288xbf16>
    %207 = vector.shape_cast %206 : vector<1x32x288xbf16> to vector<32x288xbf16>
    %cst_89 = arith.constant 0.000000e+00 : bf16
    %208 = vector.broadcast %cst_89 : bf16 to vector<32x5xbf16>
    %209 = vector.extract_strided_slice %205 {offsets = [0, 0], sizes = [32, 59], strides = [1, 1]} : vector<32x64xbf16> to vector<32x59xbf16>
    %210 = tpu.concatenate %208, %209 in 1 : vector<32x5xbf16>, vector<32x59xbf16> -> vector<32x64xbf16>
    %c0_90 = arith.constant 0 : index
    %c0_91 = arith.constant 0 : index
    %c0_92 = arith.constant 0 : index
    %211 = vector.load %arg4[%c0_90, %c0_91, %c0_92] : memref<9x1x64xbf16, #tpu.memory_space<vmem>>, vector<1x1x64xbf16>
    %212 = vector.shape_cast %211 : vector<1x1x64xbf16> to vector<1x64xbf16>
    %213 = vector.broadcast %212 : vector<1x64xbf16> to vector<32x64xbf16>
    %214 = arith.mulf %210, %213 : vector<32x64xbf16>
    %cst_93 = arith.constant 0.000000e+00 : bf16
    %215 = vector.broadcast %cst_93 : bf16 to vector<32x4xbf16>
    %216 = vector.extract_strided_slice %205 {offsets = [0, 0], sizes = [32, 60], strides = [1, 1]} : vector<32x64xbf16> to vector<32x60xbf16>
    %217 = tpu.concatenate %215, %216 in 1 : vector<32x4xbf16>, vector<32x60xbf16> -> vector<32x64xbf16>
    %c1_94 = arith.constant 1 : index
    %c0_95 = arith.constant 0 : index
    %c0_96 = arith.constant 0 : index
    %218 = vector.load %arg4[%c1_94, %c0_95, %c0_96] : memref<9x1x64xbf16, #tpu.memory_space<vmem>>, vector<1x1x64xbf16>
    %219 = vector.shape_cast %218 : vector<1x1x64xbf16> to vector<1x64xbf16>
    %220 = vector.broadcast %219 : vector<1x64xbf16> to vector<32x64xbf16>
    %221 = arith.mulf %217, %220 : vector<32x64xbf16>
    %cst_97 = arith.constant 0.000000e+00 : bf16
    %222 = vector.broadcast %cst_97 : bf16 to vector<32x3xbf16>
    %223 = vector.extract_strided_slice %205 {offsets = [0, 0], sizes = [32, 61], strides = [1, 1]} : vector<32x64xbf16> to vector<32x61xbf16>
    %224 = tpu.concatenate %222, %223 in 1 : vector<32x3xbf16>, vector<32x61xbf16> -> vector<32x64xbf16>
    %c2_98 = arith.constant 2 : index
    %c0_99 = arith.constant 0 : index
    %c0_100 = arith.constant 0 : index
    %225 = vector.load %arg4[%c2_98, %c0_99, %c0_100] : memref<9x1x64xbf16, #tpu.memory_space<vmem>>, vector<1x1x64xbf16>
    %226 = vector.shape_cast %225 : vector<1x1x64xbf16> to vector<1x64xbf16>
    %227 = vector.broadcast %226 : vector<1x64xbf16> to vector<32x64xbf16>
    %228 = arith.mulf %224, %227 : vector<32x64xbf16>
    %cst_101 = arith.constant 0.000000e+00 : bf16
    %229 = vector.broadcast %cst_101 : bf16 to vector<32x1xbf16>
    %230 = vector.extract_strided_slice %205 {offsets = [0, 0], sizes = [32, 63], strides = [1, 1]} : vector<32x64xbf16> to vector<32x63xbf16>
    %231 = tpu.concatenate %229, %230 in 1 : vector<32x1xbf16>, vector<32x63xbf16> -> vector<32x64xbf16>
    %c3_102 = arith.constant 3 : index
    %c0_103 = arith.constant 0 : index
    %c0_104 = arith.constant 0 : index
    %232 = vector.load %arg4[%c3_102, %c0_103, %c0_104] : memref<9x1x64xbf16, #tpu.memory_space<vmem>>, vector<1x1x64xbf16>
    %233 = vector.shape_cast %232 : vector<1x1x64xbf16> to vector<1x64xbf16>
    %234 = vector.broadcast %233 : vector<1x64xbf16> to vector<32x64xbf16>
    %235 = arith.mulf %231, %234 : vector<32x64xbf16>
    %cst_105 = arith.constant 0.000000e+00 : bf16
    %236 = vector.broadcast %cst_105 : bf16 to vector<32x1xbf16>
    %237 = vector.extract_strided_slice %205 {offsets = [0, 1], sizes = [32, 63], strides = [1, 1]} : vector<32x64xbf16> to vector<32x63xbf16>
    %238 = tpu.concatenate %237, %236 in 1 : vector<32x63xbf16>, vector<32x1xbf16> -> vector<32x64xbf16>
    %c5_106 = arith.constant 5 : index
    %c0_107 = arith.constant 0 : index
    %c0_108 = arith.constant 0 : index
    %239 = vector.load %arg4[%c5_106, %c0_107, %c0_108] : memref<9x1x64xbf16, #tpu.memory_space<vmem>>, vector<1x1x64xbf16>
    %240 = vector.shape_cast %239 : vector<1x1x64xbf16> to vector<1x64xbf16>
    %241 = vector.broadcast %240 : vector<1x64xbf16> to vector<32x64xbf16>
    %242 = arith.mulf %238, %241 : vector<32x64xbf16>
    %cst_109 = arith.constant 0.000000e+00 : bf16
    %243 = vector.broadcast %cst_109 : bf16 to vector<32x3xbf16>
    %244 = vector.extract_strided_slice %205 {offsets = [0, 3], sizes = [32, 61], strides = [1, 1]} : vector<32x64xbf16> to vector<32x61xbf16>
    %245 = tpu.concatenate %244, %243 in 1 : vector<32x61xbf16>, vector<32x3xbf16> -> vector<32x64xbf16>
    %c6_110 = arith.constant 6 : index
    %c0_111 = arith.constant 0 : index
    %c0_112 = arith.constant 0 : index
    %246 = vector.load %arg4[%c6_110, %c0_111, %c0_112] : memref<9x1x64xbf16, #tpu.memory_space<vmem>>, vector<1x1x64xbf16>
    %247 = vector.shape_cast %246 : vector<1x1x64xbf16> to vector<1x64xbf16>
    %248 = vector.broadcast %247 : vector<1x64xbf16> to vector<32x64xbf16>
    %249 = arith.mulf %245, %248 : vector<32x64xbf16>
    %cst_113 = arith.constant 0.000000e+00 : bf16
    %250 = vector.broadcast %cst_113 : bf16 to vector<32x4xbf16>
    %251 = vector.extract_strided_slice %205 {offsets = [0, 4], sizes = [32, 60], strides = [1, 1]} : vector<32x64xbf16> to vector<32x60xbf16>
    %252 = tpu.concatenate %251, %250 in 1 : vector<32x60xbf16>, vector<32x4xbf16> -> vector<32x64xbf16>
    %c7_114 = arith.constant 7 : index
    %c0_115 = arith.constant 0 : index
    %c0_116 = arith.constant 0 : index
    %253 = vector.load %arg4[%c7_114, %c0_115, %c0_116] : memref<9x1x64xbf16, #tpu.memory_space<vmem>>, vector<1x1x64xbf16>
    %254 = vector.shape_cast %253 : vector<1x1x64xbf16> to vector<1x64xbf16>
    %255 = vector.broadcast %254 : vector<1x64xbf16> to vector<32x64xbf16>
    %256 = arith.mulf %252, %255 : vector<32x64xbf16>
    %cst_117 = arith.constant 0.000000e+00 : bf16
    %257 = vector.broadcast %cst_117 : bf16 to vector<32x5xbf16>
    %258 = vector.extract_strided_slice %205 {offsets = [0, 5], sizes = [32, 59], strides = [1, 1]} : vector<32x64xbf16> to vector<32x59xbf16>
    %259 = tpu.concatenate %258, %257 in 1 : vector<32x59xbf16>, vector<32x5xbf16> -> vector<32x64xbf16>
    %c8_118 = arith.constant 8 : index
    %c0_119 = arith.constant 0 : index
    %c0_120 = arith.constant 0 : index
    %260 = vector.load %arg4[%c8_118, %c0_119, %c0_120] : memref<9x1x64xbf16, #tpu.memory_space<vmem>>, vector<1x1x64xbf16>
    %261 = vector.shape_cast %260 : vector<1x1x64xbf16> to vector<1x64xbf16>
    %262 = vector.broadcast %261 : vector<1x64xbf16> to vector<32x64xbf16>
    %263 = arith.mulf %259, %262 : vector<32x64xbf16>
    %264 = tpu.concatenate %214, %221, %228, %235, %205, %242, %249, %256, %263 in 0 : vector<32x64xbf16>, vector<32x64xbf16>, vector<32x64xbf16>, vector<32x64xbf16>, vector<32x64xbf16>, vector<32x64xbf16>, vector<32x64xbf16>, vector<32x64xbf16>, vector<32x64xbf16> -> vector<288x64xbf16>
    %cst_121 = arith.constant dense<0.000000e+00> : vector<32x64xf32>
    %265 = tpu.matmul %207, %264, %cst_121 {dimension_numbers = #tpu.dot_dimension_numbers<[1], [0], [0], [1], [0, 0, 1, 1], [], []>} : vector<32x288xbf16>, vector<288x64xbf16>, vector<32x64xf32> -> vector<32x64xf32>
    %266 = arith.mulf %265, %265 : vector<32x64xf32>
    %267 = tpu.concatenate %265, %266 in 0 : vector<32x64xf32>, vector<32x64xf32> -> vector<64x64xf32>
    %cst_122 = arith.constant dense<0.000000e+00> : vector<64x4xf32>
    %268 = tpu.matmul %267, %12, %cst_122 {dimension_numbers = #tpu.dot_dimension_numbers<[1], [0], [0], [1], [0, 0, 1, 1], [], []>} : vector<64x64xf32>, vector<64x4xf32>, vector<64x4xf32> -> vector<64x4xf32>
    %269 = vector.extract_strided_slice %268 {offsets = [0, 0], sizes = [32, 4], strides = [1, 1]} : vector<64x4xf32> to vector<32x4xf32>
    %cst_123 = arith.constant 6.250000e-02 : f32
    %270 = vector.broadcast %cst_123 : f32 to vector<32x4xf32>
    %271 = arith.mulf %269, %270 : vector<32x4xf32>
    %272 = vector.extract_strided_slice %268 {offsets = [32, 0], sizes = [32, 4], strides = [1, 1]} : vector<64x4xf32> to vector<32x4xf32>
    %cst_124 = arith.constant 6.250000e-02 : f32
    %273 = vector.broadcast %cst_124 : f32 to vector<32x4xf32>
    %274 = arith.mulf %272, %273 : vector<32x4xf32>
    %275 = arith.mulf %271, %271 : vector<32x4xf32>
    %276 = arith.subf %274, %275 : vector<32x4xf32>
    %cst_125 = arith.constant 0.000000e+00 : f32
    %277 = vector.broadcast %cst_125 : f32 to vector<32x4xf32>
    %278 = arith.maximumf %276, %277 : vector<32x4xf32>
    %cst_126 = arith.constant 9.99999974E-6 : f32
    %279 = vector.broadcast %cst_126 : f32 to vector<32x4xf32>
    %280 = arith.addf %278, %279 : vector<32x4xf32>
    %281 = math.rsqrt %280 : vector<32x4xf32>
    %282 = arith.mulf %271, %281 : vector<32x4xf32>
    %283 = tpu.concatenate %282, %281 in 0 : vector<32x4xf32>, vector<32x4xf32> -> vector<64x4xf32>
    %cst_127 = arith.constant dense<0.000000e+00> : vector<64x64xf32>
    %284 = tpu.matmul %283, %25, %cst_127 {dimension_numbers = #tpu.dot_dimension_numbers<[1], [0], [0], [1], [0, 0, 1, 1], [], []>} : vector<64x4xf32>, vector<4x64xf32>, vector<64x64xf32> -> vector<64x64xf32>
    %285 = vector.extract_strided_slice %284 {offsets = [32, 0], sizes = [32, 64], strides = [1, 1]} : vector<64x64xf32> to vector<32x64xf32>
    %286 = arith.mulf %265, %285 : vector<32x64xf32>
    %287 = vector.extract_strided_slice %284 {offsets = [0, 0], sizes = [32, 64], strides = [1, 1]} : vector<64x64xf32> to vector<32x64xf32>
    %288 = arith.subf %286, %287 : vector<32x64xf32>
    %cst_128 = arith.constant 0.000000e+00 : f32
    %289 = vector.broadcast %cst_128 : f32 to vector<32x64xf32>
    %290 = arith.cmpf oge, %288, %289 : vector<32x64xf32>
    %cst_129 = arith.constant 0.00999999977 : f32
    %291 = vector.broadcast %cst_129 : f32 to vector<32x64xf32>
    %292 = arith.mulf %291, %288 : vector<32x64xf32>
    %293 = arith.select %290, %288, %292 : vector<32x64xi1>, vector<32x64xf32>
    %294 = arith.truncf %293 : vector<32x64xf32> to vector<32x64xbf16>
    %c0_130 = arith.constant 0 : index
    %c0_131 = arith.constant 0 : index
    %295 = vector.load %arg3[%c0_130, %c0_131] : memref<64x32xbf16, #tpu.memory_space<vmem>>, vector<64x32xbf16>
    %cst_132 = arith.constant dense<0.000000e+00> : vector<64x64xf32>
    %296 = tpu.matmul %295, %294, %cst_132 {dimension_numbers = #tpu.dot_dimension_numbers<[1], [0], [0], [1], [0, 0, 1, 1], [], []>} : vector<64x32xbf16>, vector<32x64xbf16>, vector<64x64xf32> -> vector<64x64xf32>
    %297 = arith.mulf %296, %296 : vector<64x64xf32>
    %298 = tpu.concatenate %296, %297 in 0 : vector<64x64xf32>, vector<64x64xf32> -> vector<128x64xf32>
    %cst_133 = arith.constant dense<0.000000e+00> : vector<128x4xf32>
    %299 = tpu.matmul %298, %12, %cst_133 {dimension_numbers = #tpu.dot_dimension_numbers<[1], [0], [0], [1], [0, 0, 1, 1], [], []>} : vector<128x64xf32>, vector<64x4xf32>, vector<128x4xf32> -> vector<128x4xf32>
    %300 = vector.extract_strided_slice %299 {offsets = [0, 0], sizes = [16, 4], strides = [1, 1]} : vector<128x4xf32> to vector<16x4xf32>
    %cst_134 = arith.constant 0.000000e+00 : f32
    %301 = vector.broadcast %cst_134 : f32 to vector<16x4xf32>
    %302 = arith.addf %301, %300 : vector<16x4xf32>
    %303 = vector.extract_strided_slice %299 {offsets = [16, 0], sizes = [16, 4], strides = [1, 1]} : vector<128x4xf32> to vector<16x4xf32>
    %304 = arith.addf %302, %303 : vector<16x4xf32>
    %305 = vector.extract_strided_slice %299 {offsets = [32, 0], sizes = [16, 4], strides = [1, 1]} : vector<128x4xf32> to vector<16x4xf32>
    %306 = arith.addf %304, %305 : vector<16x4xf32>
    %307 = vector.extract_strided_slice %299 {offsets = [48, 0], sizes = [16, 4], strides = [1, 1]} : vector<128x4xf32> to vector<16x4xf32>
    %308 = arith.addf %306, %307 : vector<16x4xf32>
    %309 = vector.extract_strided_slice %299 {offsets = [64, 0], sizes = [16, 4], strides = [1, 1]} : vector<128x4xf32> to vector<16x4xf32>
    %cst_135 = arith.constant 0.000000e+00 : f32
    %310 = vector.broadcast %cst_135 : f32 to vector<16x4xf32>
    %311 = arith.addf %310, %309 : vector<16x4xf32>
    %312 = vector.extract_strided_slice %299 {offsets = [80, 0], sizes = [16, 4], strides = [1, 1]} : vector<128x4xf32> to vector<16x4xf32>
    %313 = arith.addf %311, %312 : vector<16x4xf32>
    %314 = vector.extract_strided_slice %299 {offsets = [96, 0], sizes = [16, 4], strides = [1, 1]} : vector<128x4xf32> to vector<16x4xf32>
    %315 = arith.addf %313, %314 : vector<16x4xf32>
    %316 = vector.extract_strided_slice %299 {offsets = [112, 0], sizes = [16, 4], strides = [1, 1]} : vector<128x4xf32> to vector<16x4xf32>
    %317 = arith.addf %315, %316 : vector<16x4xf32>
    %cst_136 = arith.constant 1.562500e-02 : f32
    %318 = vector.broadcast %cst_136 : f32 to vector<16x4xf32>
    %319 = arith.mulf %308, %318 : vector<16x4xf32>
    %cst_137 = arith.constant 1.562500e-02 : f32
    %320 = vector.broadcast %cst_137 : f32 to vector<16x4xf32>
    %321 = arith.mulf %317, %320 : vector<16x4xf32>
    %322 = arith.mulf %319, %319 : vector<16x4xf32>
    %323 = arith.subf %321, %322 : vector<16x4xf32>
    %cst_138 = arith.constant 0.000000e+00 : f32
    %324 = vector.broadcast %cst_138 : f32 to vector<16x4xf32>
    %325 = arith.maximumf %323, %324 : vector<16x4xf32>
    %cst_139 = arith.constant 9.99999974E-6 : f32
    %326 = vector.broadcast %cst_139 : f32 to vector<16x4xf32>
    %327 = arith.addf %325, %326 : vector<16x4xf32>
    %328 = math.rsqrt %327 : vector<16x4xf32>
    %329 = arith.mulf %319, %328 : vector<16x4xf32>
    %330 = tpu.concatenate %329, %328 in 0 : vector<16x4xf32>, vector<16x4xf32> -> vector<32x4xf32>
    %cst_140 = arith.constant dense<0.000000e+00> : vector<32x64xf32>
    %331 = tpu.matmul %330, %25, %cst_140 {dimension_numbers = #tpu.dot_dimension_numbers<[1], [0], [0], [1], [0, 0, 1, 1], [], []>} : vector<32x4xf32>, vector<4x64xf32>, vector<32x64xf32> -> vector<32x64xf32>
    %332 = vector.extract_strided_slice %331 {offsets = [16, 0], sizes = [16, 64], strides = [1, 1]} : vector<32x64xf32> to vector<16x64xf32>
    %333 = tpu.concatenate %332, %332, %332, %332 in 0 : vector<16x64xf32>, vector<16x64xf32>, vector<16x64xf32>, vector<16x64xf32> -> vector<64x64xf32>
    %334 = vector.extract_strided_slice %331 {offsets = [0, 0], sizes = [16, 64], strides = [1, 1]} : vector<32x64xf32> to vector<16x64xf32>
    %335 = tpu.concatenate %334, %334, %334, %334 in 0 : vector<16x64xf32>, vector<16x64xf32>, vector<16x64xf32>, vector<16x64xf32> -> vector<64x64xf32>
    %336 = arith.mulf %296, %333 : vector<64x64xf32>
    %337 = arith.subf %336, %335 : vector<64x64xf32>
    %cst_141 = arith.constant 0.000000e+00 : f32
    %338 = vector.broadcast %cst_141 : f32 to vector<64x64xf32>
    %339 = arith.cmpf oge, %337, %338 : vector<64x64xf32>
    %cst_142 = arith.constant 0.00999999977 : f32
    %340 = vector.broadcast %cst_142 : f32 to vector<64x64xf32>
    %341 = arith.mulf %340, %337 : vector<64x64xf32>
    %342 = arith.select %339, %337, %341 : vector<64x64xi1>, vector<64x64xf32>
    %343 = arith.truncf %342 : vector<64x64xf32> to vector<64x64xbf16>
    %c0_143 = arith.constant 0 : index
    %c0_144 = arith.constant 0 : index
    %c0_145 = arith.constant 0 : index
    %344 = vector.load %arg5[%c0_143, %c0_144, %c0_145] : memref<1x64x64xbf16, #tpu.memory_space<vmem>>, vector<1x64x64xbf16>
    %345 = vector.shape_cast %344 : vector<1x64x64xbf16> to vector<64x64xbf16>
    %346 = vector.shape_cast %343 : vector<64x64xbf16> to vector<1x64x64xbf16>
    tpu.vector_store %arg5[%c0_143, %c0_144, %c0_145], %346 {strides = array<i32>} : memref<1x64x64xbf16, #tpu.memory_space<vmem>>, vector<1x64x64xbf16>,
    return
  }
  func.func @transform_0(%arg0: i32) -> (i32, i32, i32) {
    %c0_i32 = arith.constant 0 : i32
    %c0_i32_0 = arith.constant 0 : i32
    %c0_i32_1 = arith.constant 0 : i32
    return %arg0, %c0_i32, %c0_i32_0 : i32, i32, i32
  }
  func.func @transform_1(%arg0: i32) -> (i32, i32, i32) {
    %c0_i32 = arith.constant 0 : i32
    %c0_i32_0 = arith.constant 0 : i32
    %c0_i32_1 = arith.constant 0 : i32
    %c0_i32_2 = arith.constant 0 : i32
    return %c0_i32, %c0_i32_0, %c0_i32_1 : i32, i32, i32
  }
  func.func @transform_2(%arg0: i32) -> (i32, i32) {
    %c0_i32 = arith.constant 0 : i32
    %c0_i32_0 = arith.constant 0 : i32
    %c0_i32_1 = arith.constant 0 : i32
    return %c0_i32, %c0_i32_0 : i32, i32
  }
  func.func @transform_3(%arg0: i32) -> (i32, i32, i32) {
    %c0_i32 = arith.constant 0 : i32
    %c0_i32_0 = arith.constant 0 : i32
    %c0_i32_1 = arith.constant 0 : i32
    %c0_i32_2 = arith.constant 0 : i32
    return %c0_i32, %c0_i32_0, %c0_i32_1 : i32, i32, i32
  }
  func.func @transform_4(%arg0: i32) -> (i32, i32, i32) {
    %c0_i32 = arith.constant 0 : i32
    %c0_i32_0 = arith.constant 0 : i32
    %c0_i32_1 = arith.constant 0 : i32
    return %arg0, %c0_i32, %c0_i32_0 : i32, i32, i32
  }
}

module attributes {stable_mosaic.version = 11 : i64} {
  func.func @_convblock_up_kernel(%arg0: i32, %arg1: memref<1x16x256xbf16, #tpu.memory_space<vmem>>, %arg2: memref<3x16x144xbf16, #tpu.memory_space<vmem>>, %arg3: memref<32x16xbf16, #tpu.memory_space<vmem>>, %arg4: memref<9x1x256xbf16, #tpu.memory_space<vmem>>, %arg5: memref<1x32x256xbf16, #tpu.memory_space<vmem>>) attributes {dimension_semantics = [#tpu.dimension_semantics<parallel>], iteration_bounds = array<i64: 2>, scalar_prefetch = 0 : i64, scratch_operands = 0 : i64, tpu.core_type = #tpu.core_type<tc>, window_params = [{transform_indices = @transform_0, window_bounds = array<i64: 1, 16, 256>}, {pipeline_mode = #tpu.pipeline_mode<synchronous>, transform_indices = @transform_1, window_bounds = array<i64: 3, 16, 144>}, {pipeline_mode = #tpu.pipeline_mode<synchronous>, transform_indices = @transform_2, window_bounds = array<i64: 32, 16>}, {pipeline_mode = #tpu.pipeline_mode<synchronous>, transform_indices = @transform_3, window_bounds = array<i64: 9, 1, 256>}, {transform_indices = @transform_4, window_bounds = array<i64: 1, 32, 256>}]} {
    %0 = tpu.iota {dimensions = array<i32: 0>} : vector<256x4xi32>
    %1 = tpu.iota {dimensions = array<i32: 1>} : vector<256x4xi32>
    %c64_i32 = arith.constant 64 : i32
    %2 = vector.broadcast %c64_i32 : i32 to vector<256x4xi32>
    %3 = arith.muli %1, %2 : vector<256x4xi32>
    %4 = arith.cmpi sge, %0, %3 : vector<256x4xi32>
    %c1_i32 = arith.constant 1 : i32
    %5 = vector.broadcast %c1_i32 : i32 to vector<256x4xi32>
    %6 = arith.addi %1, %5 : vector<256x4xi32>
    %c64_i32_0 = arith.constant 64 : i32
    %7 = vector.broadcast %c64_i32_0 : i32 to vector<256x4xi32>
    %8 = arith.muli %6, %7 : vector<256x4xi32>
    %9 = arith.cmpi slt, %0, %8 : vector<256x4xi32>
    %10 = arith.andi %4, %9 : vector<256x4xi1>
    %11 = arith.extui %10 : vector<256x4xi1> to vector<256x4xi32>
    %12 = arith.sitofp %11 : vector<256x4xi32> to vector<256x4xf32>
    %13 = tpu.iota {dimensions = array<i32: 0>} : vector<4x256xi32>
    %14 = tpu.iota {dimensions = array<i32: 1>} : vector<4x256xi32>
    %c64_i32_1 = arith.constant 64 : i32
    %15 = vector.broadcast %c64_i32_1 : i32 to vector<4x256xi32>
    %16 = arith.muli %13, %15 : vector<4x256xi32>
    %17 = arith.cmpi sge, %14, %16 : vector<4x256xi32>
    %c1_i32_2 = arith.constant 1 : i32
    %18 = vector.broadcast %c1_i32_2 : i32 to vector<4x256xi32>
    %19 = arith.addi %13, %18 : vector<4x256xi32>
    %c64_i32_3 = arith.constant 64 : i32
    %20 = vector.broadcast %c64_i32_3 : i32 to vector<4x256xi32>
    %21 = arith.muli %19, %20 : vector<4x256xi32>
    %22 = arith.cmpi slt, %14, %21 : vector<4x256xi32>
    %23 = arith.andi %17, %22 : vector<4x256xi1>
    %24 = arith.extui %23 : vector<4x256xi1> to vector<4x256xi32>
    %25 = arith.sitofp %24 : vector<4x256xi32> to vector<4x256xf32>
    %c0 = arith.constant 0 : index
    %c0_4 = arith.constant 0 : index
    %c0_5 = arith.constant 0 : index
    %26 = vector.load %arg1[%c0, %c0_4, %c0_5] : memref<1x16x256xbf16, #tpu.memory_space<vmem>>, vector<1x16x256xbf16>
    %27 = vector.shape_cast %26 : vector<1x16x256xbf16> to vector<16x256xbf16>
    %c0_6 = arith.constant 0 : index
    %c0_7 = arith.constant 0 : index
    %c0_8 = arith.constant 0 : index
    %28 = vector.load %arg2[%c0_6, %c0_7, %c0_8] : memref<3x16x144xbf16, #tpu.memory_space<vmem>>, vector<1x16x144xbf16>
    %29 = vector.shape_cast %28 : vector<1x16x144xbf16> to vector<16x144xbf16>
    %cst = arith.constant 0.000000e+00 : bf16
    %30 = vector.broadcast %cst : bf16 to vector<16x9xbf16>
    %31 = vector.extract_strided_slice %27 {offsets = [0, 0], sizes = [16, 247], strides = [1, 1]} : vector<16x256xbf16> to vector<16x247xbf16>
    %32 = tpu.concatenate %30, %31 in 1 : vector<16x9xbf16>, vector<16x247xbf16> -> vector<16x256xbf16>
    %c0_9 = arith.constant 0 : index
    %c0_10 = arith.constant 0 : index
    %c0_11 = arith.constant 0 : index
    %33 = vector.load %arg4[%c0_9, %c0_10, %c0_11] : memref<9x1x256xbf16, #tpu.memory_space<vmem>>, vector<1x1x256xbf16>
    %34 = vector.shape_cast %33 : vector<1x1x256xbf16> to vector<1x256xbf16>
    %35 = vector.broadcast %34 : vector<1x256xbf16> to vector<16x256xbf16>
    %36 = arith.mulf %32, %35 : vector<16x256xbf16>
    %cst_12 = arith.constant 0.000000e+00 : bf16
    %37 = vector.broadcast %cst_12 : bf16 to vector<16x8xbf16>
    %38 = vector.extract_strided_slice %27 {offsets = [0, 0], sizes = [16, 248], strides = [1, 1]} : vector<16x256xbf16> to vector<16x248xbf16>
    %39 = tpu.concatenate %37, %38 in 1 : vector<16x8xbf16>, vector<16x248xbf16> -> vector<16x256xbf16>
    %c1 = arith.constant 1 : index
    %c0_13 = arith.constant 0 : index
    %c0_14 = arith.constant 0 : index
    %40 = vector.load %arg4[%c1, %c0_13, %c0_14] : memref<9x1x256xbf16, #tpu.memory_space<vmem>>, vector<1x1x256xbf16>
    %41 = vector.shape_cast %40 : vector<1x1x256xbf16> to vector<1x256xbf16>
    %42 = vector.broadcast %41 : vector<1x256xbf16> to vector<16x256xbf16>
    %43 = arith.mulf %39, %42 : vector<16x256xbf16>
    %cst_15 = arith.constant 0.000000e+00 : bf16
    %44 = vector.broadcast %cst_15 : bf16 to vector<16x7xbf16>
    %45 = vector.extract_strided_slice %27 {offsets = [0, 0], sizes = [16, 249], strides = [1, 1]} : vector<16x256xbf16> to vector<16x249xbf16>
    %46 = tpu.concatenate %44, %45 in 1 : vector<16x7xbf16>, vector<16x249xbf16> -> vector<16x256xbf16>
    %c2 = arith.constant 2 : index
    %c0_16 = arith.constant 0 : index
    %c0_17 = arith.constant 0 : index
    %47 = vector.load %arg4[%c2, %c0_16, %c0_17] : memref<9x1x256xbf16, #tpu.memory_space<vmem>>, vector<1x1x256xbf16>
    %48 = vector.shape_cast %47 : vector<1x1x256xbf16> to vector<1x256xbf16>
    %49 = vector.broadcast %48 : vector<1x256xbf16> to vector<16x256xbf16>
    %50 = arith.mulf %46, %49 : vector<16x256xbf16>
    %cst_18 = arith.constant 0.000000e+00 : bf16
    %51 = vector.broadcast %cst_18 : bf16 to vector<16x1xbf16>
    %52 = vector.extract_strided_slice %27 {offsets = [0, 0], sizes = [16, 255], strides = [1, 1]} : vector<16x256xbf16> to vector<16x255xbf16>
    %53 = tpu.concatenate %51, %52 in 1 : vector<16x1xbf16>, vector<16x255xbf16> -> vector<16x256xbf16>
    %c3 = arith.constant 3 : index
    %c0_19 = arith.constant 0 : index
    %c0_20 = arith.constant 0 : index
    %54 = vector.load %arg4[%c3, %c0_19, %c0_20] : memref<9x1x256xbf16, #tpu.memory_space<vmem>>, vector<1x1x256xbf16>
    %55 = vector.shape_cast %54 : vector<1x1x256xbf16> to vector<1x256xbf16>
    %56 = vector.broadcast %55 : vector<1x256xbf16> to vector<16x256xbf16>
    %57 = arith.mulf %53, %56 : vector<16x256xbf16>
    %cst_21 = arith.constant 0.000000e+00 : bf16
    %58 = vector.broadcast %cst_21 : bf16 to vector<16x1xbf16>
    %59 = vector.extract_strided_slice %27 {offsets = [0, 1], sizes = [16, 255], strides = [1, 1]} : vector<16x256xbf16> to vector<16x255xbf16>
    %60 = tpu.concatenate %59, %58 in 1 : vector<16x255xbf16>, vector<16x1xbf16> -> vector<16x256xbf16>
    %c5 = arith.constant 5 : index
    %c0_22 = arith.constant 0 : index
    %c0_23 = arith.constant 0 : index
    %61 = vector.load %arg4[%c5, %c0_22, %c0_23] : memref<9x1x256xbf16, #tpu.memory_space<vmem>>, vector<1x1x256xbf16>
    %62 = vector.shape_cast %61 : vector<1x1x256xbf16> to vector<1x256xbf16>
    %63 = vector.broadcast %62 : vector<1x256xbf16> to vector<16x256xbf16>
    %64 = arith.mulf %60, %63 : vector<16x256xbf16>
    %cst_24 = arith.constant 0.000000e+00 : bf16
    %65 = vector.broadcast %cst_24 : bf16 to vector<16x7xbf16>
    %66 = vector.extract_strided_slice %27 {offsets = [0, 7], sizes = [16, 249], strides = [1, 1]} : vector<16x256xbf16> to vector<16x249xbf16>
    %67 = tpu.concatenate %66, %65 in 1 : vector<16x249xbf16>, vector<16x7xbf16> -> vector<16x256xbf16>
    %c6 = arith.constant 6 : index
    %c0_25 = arith.constant 0 : index
    %c0_26 = arith.constant 0 : index
    %68 = vector.load %arg4[%c6, %c0_25, %c0_26] : memref<9x1x256xbf16, #tpu.memory_space<vmem>>, vector<1x1x256xbf16>
    %69 = vector.shape_cast %68 : vector<1x1x256xbf16> to vector<1x256xbf16>
    %70 = vector.broadcast %69 : vector<1x256xbf16> to vector<16x256xbf16>
    %71 = arith.mulf %67, %70 : vector<16x256xbf16>
    %cst_27 = arith.constant 0.000000e+00 : bf16
    %72 = vector.broadcast %cst_27 : bf16 to vector<16x8xbf16>
    %73 = vector.extract_strided_slice %27 {offsets = [0, 8], sizes = [16, 248], strides = [1, 1]} : vector<16x256xbf16> to vector<16x248xbf16>
    %74 = tpu.concatenate %73, %72 in 1 : vector<16x248xbf16>, vector<16x8xbf16> -> vector<16x256xbf16>
    %c7 = arith.constant 7 : index
    %c0_28 = arith.constant 0 : index
    %c0_29 = arith.constant 0 : index
    %75 = vector.load %arg4[%c7, %c0_28, %c0_29] : memref<9x1x256xbf16, #tpu.memory_space<vmem>>, vector<1x1x256xbf16>
    %76 = vector.shape_cast %75 : vector<1x1x256xbf16> to vector<1x256xbf16>
    %77 = vector.broadcast %76 : vector<1x256xbf16> to vector<16x256xbf16>
    %78 = arith.mulf %74, %77 : vector<16x256xbf16>
    %cst_30 = arith.constant 0.000000e+00 : bf16
    %79 = vector.broadcast %cst_30 : bf16 to vector<16x9xbf16>
    %80 = vector.extract_strided_slice %27 {offsets = [0, 9], sizes = [16, 247], strides = [1, 1]} : vector<16x256xbf16> to vector<16x247xbf16>
    %81 = tpu.concatenate %80, %79 in 1 : vector<16x247xbf16>, vector<16x9xbf16> -> vector<16x256xbf16>
    %c8 = arith.constant 8 : index
    %c0_31 = arith.constant 0 : index
    %c0_32 = arith.constant 0 : index
    %82 = vector.load %arg4[%c8, %c0_31, %c0_32] : memref<9x1x256xbf16, #tpu.memory_space<vmem>>, vector<1x1x256xbf16>
    %83 = vector.shape_cast %82 : vector<1x1x256xbf16> to vector<1x256xbf16>
    %84 = vector.broadcast %83 : vector<1x256xbf16> to vector<16x256xbf16>
    %85 = arith.mulf %81, %84 : vector<16x256xbf16>
    %86 = tpu.concatenate %36, %43, %50, %57, %27, %64, %71, %78, %85 in 0 : vector<16x256xbf16>, vector<16x256xbf16>, vector<16x256xbf16>, vector<16x256xbf16>, vector<16x256xbf16>, vector<16x256xbf16>, vector<16x256xbf16>, vector<16x256xbf16>, vector<16x256xbf16> -> vector<144x256xbf16>
    %cst_33 = arith.constant dense<0.000000e+00> : vector<16x256xf32>
    %87 = tpu.matmul %29, %86, %cst_33 {dimension_numbers = #tpu.dot_dimension_numbers<[1], [0], [0], [1], [0, 0, 1, 1], [], []>} : vector<16x144xbf16>, vector<144x256xbf16>, vector<16x256xf32> -> vector<16x256xf32>
    %88 = arith.mulf %87, %87 : vector<16x256xf32>
    %89 = tpu.concatenate %87, %88 in 0 : vector<16x256xf32>, vector<16x256xf32> -> vector<32x256xf32>
    %cst_34 = arith.constant dense<0.000000e+00> : vector<32x4xf32>
    %90 = tpu.matmul %89, %12, %cst_34 {dimension_numbers = #tpu.dot_dimension_numbers<[1], [0], [0], [1], [0, 0, 1, 1], [], []>} : vector<32x256xf32>, vector<256x4xf32>, vector<32x4xf32> -> vector<32x4xf32>
    %91 = vector.extract_strided_slice %90 {offsets = [0, 0], sizes = [16, 4], strides = [1, 1]} : vector<32x4xf32> to vector<16x4xf32>
    %cst_35 = arith.constant 1.562500e-02 : f32
    %92 = vector.broadcast %cst_35 : f32 to vector<16x4xf32>
    %93 = arith.mulf %91, %92 : vector<16x4xf32>
    %94 = vector.extract_strided_slice %90 {offsets = [16, 0], sizes = [16, 4], strides = [1, 1]} : vector<32x4xf32> to vector<16x4xf32>
    %cst_36 = arith.constant 1.562500e-02 : f32
    %95 = vector.broadcast %cst_36 : f32 to vector<16x4xf32>
    %96 = arith.mulf %94, %95 : vector<16x4xf32>
    %97 = arith.mulf %93, %93 : vector<16x4xf32>
    %98 = arith.subf %96, %97 : vector<16x4xf32>
    %cst_37 = arith.constant 0.000000e+00 : f32
    %99 = vector.broadcast %cst_37 : f32 to vector<16x4xf32>
    %100 = arith.maximumf %98, %99 : vector<16x4xf32>
    %cst_38 = arith.constant 9.99999974E-6 : f32
    %101 = vector.broadcast %cst_38 : f32 to vector<16x4xf32>
    %102 = arith.addf %100, %101 : vector<16x4xf32>
    %103 = math.rsqrt %102 : vector<16x4xf32>
    %104 = arith.mulf %93, %103 : vector<16x4xf32>
    %105 = tpu.concatenate %104, %103 in 0 : vector<16x4xf32>, vector<16x4xf32> -> vector<32x4xf32>
    %cst_39 = arith.constant dense<0.000000e+00> : vector<32x256xf32>
    %106 = tpu.matmul %105, %25, %cst_39 {dimension_numbers = #tpu.dot_dimension_numbers<[1], [0], [0], [1], [0, 0, 1, 1], [], []>} : vector<32x4xf32>, vector<4x256xf32>, vector<32x256xf32> -> vector<32x256xf32>
    %107 = vector.extract_strided_slice %106 {offsets = [16, 0], sizes = [16, 256], strides = [1, 1]} : vector<32x256xf32> to vector<16x256xf32>
    %108 = arith.mulf %87, %107 : vector<16x256xf32>
    %109 = vector.extract_strided_slice %106 {offsets = [0, 0], sizes = [16, 256], strides = [1, 1]} : vector<32x256xf32> to vector<16x256xf32>
    %110 = arith.subf %108, %109 : vector<16x256xf32>
    %cst_40 = arith.constant 0.000000e+00 : f32
    %111 = vector.broadcast %cst_40 : f32 to vector<16x256xf32>
    %112 = arith.cmpf oge, %110, %111 : vector<16x256xf32>
    %cst_41 = arith.constant 0.00999999977 : f32
    %113 = vector.broadcast %cst_41 : f32 to vector<16x256xf32>
    %114 = arith.mulf %113, %110 : vector<16x256xf32>
    %115 = arith.select %112, %110, %114 : vector<16x256xi1>, vector<16x256xf32>
    %116 = arith.truncf %115 : vector<16x256xf32> to vector<16x256xbf16>
    %c1_42 = arith.constant 1 : index
    %c0_43 = arith.constant 0 : index
    %c0_44 = arith.constant 0 : index
    %117 = vector.load %arg2[%c1_42, %c0_43, %c0_44] : memref<3x16x144xbf16, #tpu.memory_space<vmem>>, vector<1x16x144xbf16>
    %118 = vector.shape_cast %117 : vector<1x16x144xbf16> to vector<16x144xbf16>
    %cst_45 = arith.constant 0.000000e+00 : bf16
    %119 = vector.broadcast %cst_45 : bf16 to vector<16x9xbf16>
    %120 = vector.extract_strided_slice %116 {offsets = [0, 0], sizes = [16, 247], strides = [1, 1]} : vector<16x256xbf16> to vector<16x247xbf16>
    %121 = tpu.concatenate %119, %120 in 1 : vector<16x9xbf16>, vector<16x247xbf16> -> vector<16x256xbf16>
    %c0_46 = arith.constant 0 : index
    %c0_47 = arith.constant 0 : index
    %c0_48 = arith.constant 0 : index
    %122 = vector.load %arg4[%c0_46, %c0_47, %c0_48] : memref<9x1x256xbf16, #tpu.memory_space<vmem>>, vector<1x1x256xbf16>
    %123 = vector.shape_cast %122 : vector<1x1x256xbf16> to vector<1x256xbf16>
    %124 = vector.broadcast %123 : vector<1x256xbf16> to vector<16x256xbf16>
    %125 = arith.mulf %121, %124 : vector<16x256xbf16>
    %cst_49 = arith.constant 0.000000e+00 : bf16
    %126 = vector.broadcast %cst_49 : bf16 to vector<16x8xbf16>
    %127 = vector.extract_strided_slice %116 {offsets = [0, 0], sizes = [16, 248], strides = [1, 1]} : vector<16x256xbf16> to vector<16x248xbf16>
    %128 = tpu.concatenate %126, %127 in 1 : vector<16x8xbf16>, vector<16x248xbf16> -> vector<16x256xbf16>
    %c1_50 = arith.constant 1 : index
    %c0_51 = arith.constant 0 : index
    %c0_52 = arith.constant 0 : index
    %129 = vector.load %arg4[%c1_50, %c0_51, %c0_52] : memref<9x1x256xbf16, #tpu.memory_space<vmem>>, vector<1x1x256xbf16>
    %130 = vector.shape_cast %129 : vector<1x1x256xbf16> to vector<1x256xbf16>
    %131 = vector.broadcast %130 : vector<1x256xbf16> to vector<16x256xbf16>
    %132 = arith.mulf %128, %131 : vector<16x256xbf16>
    %cst_53 = arith.constant 0.000000e+00 : bf16
    %133 = vector.broadcast %cst_53 : bf16 to vector<16x7xbf16>
    %134 = vector.extract_strided_slice %116 {offsets = [0, 0], sizes = [16, 249], strides = [1, 1]} : vector<16x256xbf16> to vector<16x249xbf16>
    %135 = tpu.concatenate %133, %134 in 1 : vector<16x7xbf16>, vector<16x249xbf16> -> vector<16x256xbf16>
    %c2_54 = arith.constant 2 : index
    %c0_55 = arith.constant 0 : index
    %c0_56 = arith.constant 0 : index
    %136 = vector.load %arg4[%c2_54, %c0_55, %c0_56] : memref<9x1x256xbf16, #tpu.memory_space<vmem>>, vector<1x1x256xbf16>
    %137 = vector.shape_cast %136 : vector<1x1x256xbf16> to vector<1x256xbf16>
    %138 = vector.broadcast %137 : vector<1x256xbf16> to vector<16x256xbf16>
    %139 = arith.mulf %135, %138 : vector<16x256xbf16>
    %cst_57 = arith.constant 0.000000e+00 : bf16
    %140 = vector.broadcast %cst_57 : bf16 to vector<16x1xbf16>
    %141 = vector.extract_strided_slice %116 {offsets = [0, 0], sizes = [16, 255], strides = [1, 1]} : vector<16x256xbf16> to vector<16x255xbf16>
    %142 = tpu.concatenate %140, %141 in 1 : vector<16x1xbf16>, vector<16x255xbf16> -> vector<16x256xbf16>
    %c3_58 = arith.constant 3 : index
    %c0_59 = arith.constant 0 : index
    %c0_60 = arith.constant 0 : index
    %143 = vector.load %arg4[%c3_58, %c0_59, %c0_60] : memref<9x1x256xbf16, #tpu.memory_space<vmem>>, vector<1x1x256xbf16>
    %144 = vector.shape_cast %143 : vector<1x1x256xbf16> to vector<1x256xbf16>
    %145 = vector.broadcast %144 : vector<1x256xbf16> to vector<16x256xbf16>
    %146 = arith.mulf %142, %145 : vector<16x256xbf16>
    %cst_61 = arith.constant 0.000000e+00 : bf16
    %147 = vector.broadcast %cst_61 : bf16 to vector<16x1xbf16>
    %148 = vector.extract_strided_slice %116 {offsets = [0, 1], sizes = [16, 255], strides = [1, 1]} : vector<16x256xbf16> to vector<16x255xbf16>
    %149 = tpu.concatenate %148, %147 in 1 : vector<16x255xbf16>, vector<16x1xbf16> -> vector<16x256xbf16>
    %c5_62 = arith.constant 5 : index
    %c0_63 = arith.constant 0 : index
    %c0_64 = arith.constant 0 : index
    %150 = vector.load %arg4[%c5_62, %c0_63, %c0_64] : memref<9x1x256xbf16, #tpu.memory_space<vmem>>, vector<1x1x256xbf16>
    %151 = vector.shape_cast %150 : vector<1x1x256xbf16> to vector<1x256xbf16>
    %152 = vector.broadcast %151 : vector<1x256xbf16> to vector<16x256xbf16>
    %153 = arith.mulf %149, %152 : vector<16x256xbf16>
    %cst_65 = arith.constant 0.000000e+00 : bf16
    %154 = vector.broadcast %cst_65 : bf16 to vector<16x7xbf16>
    %155 = vector.extract_strided_slice %116 {offsets = [0, 7], sizes = [16, 249], strides = [1, 1]} : vector<16x256xbf16> to vector<16x249xbf16>
    %156 = tpu.concatenate %155, %154 in 1 : vector<16x249xbf16>, vector<16x7xbf16> -> vector<16x256xbf16>
    %c6_66 = arith.constant 6 : index
    %c0_67 = arith.constant 0 : index
    %c0_68 = arith.constant 0 : index
    %157 = vector.load %arg4[%c6_66, %c0_67, %c0_68] : memref<9x1x256xbf16, #tpu.memory_space<vmem>>, vector<1x1x256xbf16>
    %158 = vector.shape_cast %157 : vector<1x1x256xbf16> to vector<1x256xbf16>
    %159 = vector.broadcast %158 : vector<1x256xbf16> to vector<16x256xbf16>
    %160 = arith.mulf %156, %159 : vector<16x256xbf16>
    %cst_69 = arith.constant 0.000000e+00 : bf16
    %161 = vector.broadcast %cst_69 : bf16 to vector<16x8xbf16>
    %162 = vector.extract_strided_slice %116 {offsets = [0, 8], sizes = [16, 248], strides = [1, 1]} : vector<16x256xbf16> to vector<16x248xbf16>
    %163 = tpu.concatenate %162, %161 in 1 : vector<16x248xbf16>, vector<16x8xbf16> -> vector<16x256xbf16>
    %c7_70 = arith.constant 7 : index
    %c0_71 = arith.constant 0 : index
    %c0_72 = arith.constant 0 : index
    %164 = vector.load %arg4[%c7_70, %c0_71, %c0_72] : memref<9x1x256xbf16, #tpu.memory_space<vmem>>, vector<1x1x256xbf16>
    %165 = vector.shape_cast %164 : vector<1x1x256xbf16> to vector<1x256xbf16>
    %166 = vector.broadcast %165 : vector<1x256xbf16> to vector<16x256xbf16>
    %167 = arith.mulf %163, %166 : vector<16x256xbf16>
    %cst_73 = arith.constant 0.000000e+00 : bf16
    %168 = vector.broadcast %cst_73 : bf16 to vector<16x9xbf16>
    %169 = vector.extract_strided_slice %116 {offsets = [0, 9], sizes = [16, 247], strides = [1, 1]} : vector<16x256xbf16> to vector<16x247xbf16>
    %170 = tpu.concatenate %169, %168 in 1 : vector<16x247xbf16>, vector<16x9xbf16> -> vector<16x256xbf16>
    %c8_74 = arith.constant 8 : index
    %c0_75 = arith.constant 0 : index
    %c0_76 = arith.constant 0 : index
    %171 = vector.load %arg4[%c8_74, %c0_75, %c0_76] : memref<9x1x256xbf16, #tpu.memory_space<vmem>>, vector<1x1x256xbf16>
    %172 = vector.shape_cast %171 : vector<1x1x256xbf16> to vector<1x256xbf16>
    %173 = vector.broadcast %172 : vector<1x256xbf16> to vector<16x256xbf16>
    %174 = arith.mulf %170, %173 : vector<16x256xbf16>
    %175 = tpu.concatenate %125, %132, %139, %146, %116, %153, %160, %167, %174 in 0 : vector<16x256xbf16>, vector<16x256xbf16>, vector<16x256xbf16>, vector<16x256xbf16>, vector<16x256xbf16>, vector<16x256xbf16>, vector<16x256xbf16>, vector<16x256xbf16>, vector<16x256xbf16> -> vector<144x256xbf16>
    %cst_77 = arith.constant dense<0.000000e+00> : vector<16x256xf32>
    %176 = tpu.matmul %118, %175, %cst_77 {dimension_numbers = #tpu.dot_dimension_numbers<[1], [0], [0], [1], [0, 0, 1, 1], [], []>} : vector<16x144xbf16>, vector<144x256xbf16>, vector<16x256xf32> -> vector<16x256xf32>
    %177 = arith.mulf %176, %176 : vector<16x256xf32>
    %178 = tpu.concatenate %176, %177 in 0 : vector<16x256xf32>, vector<16x256xf32> -> vector<32x256xf32>
    %cst_78 = arith.constant dense<0.000000e+00> : vector<32x4xf32>
    %179 = tpu.matmul %178, %12, %cst_78 {dimension_numbers = #tpu.dot_dimension_numbers<[1], [0], [0], [1], [0, 0, 1, 1], [], []>} : vector<32x256xf32>, vector<256x4xf32>, vector<32x4xf32> -> vector<32x4xf32>
    %180 = vector.extract_strided_slice %179 {offsets = [0, 0], sizes = [16, 4], strides = [1, 1]} : vector<32x4xf32> to vector<16x4xf32>
    %cst_79 = arith.constant 1.562500e-02 : f32
    %181 = vector.broadcast %cst_79 : f32 to vector<16x4xf32>
    %182 = arith.mulf %180, %181 : vector<16x4xf32>
    %183 = vector.extract_strided_slice %179 {offsets = [16, 0], sizes = [16, 4], strides = [1, 1]} : vector<32x4xf32> to vector<16x4xf32>
    %cst_80 = arith.constant 1.562500e-02 : f32
    %184 = vector.broadcast %cst_80 : f32 to vector<16x4xf32>
    %185 = arith.mulf %183, %184 : vector<16x4xf32>
    %186 = arith.mulf %182, %182 : vector<16x4xf32>
    %187 = arith.subf %185, %186 : vector<16x4xf32>
    %cst_81 = arith.constant 0.000000e+00 : f32
    %188 = vector.broadcast %cst_81 : f32 to vector<16x4xf32>
    %189 = arith.maximumf %187, %188 : vector<16x4xf32>
    %cst_82 = arith.constant 9.99999974E-6 : f32
    %190 = vector.broadcast %cst_82 : f32 to vector<16x4xf32>
    %191 = arith.addf %189, %190 : vector<16x4xf32>
    %192 = math.rsqrt %191 : vector<16x4xf32>
    %193 = arith.mulf %182, %192 : vector<16x4xf32>
    %194 = tpu.concatenate %193, %192 in 0 : vector<16x4xf32>, vector<16x4xf32> -> vector<32x4xf32>
    %cst_83 = arith.constant dense<0.000000e+00> : vector<32x256xf32>
    %195 = tpu.matmul %194, %25, %cst_83 {dimension_numbers = #tpu.dot_dimension_numbers<[1], [0], [0], [1], [0, 0, 1, 1], [], []>} : vector<32x4xf32>, vector<4x256xf32>, vector<32x256xf32> -> vector<32x256xf32>
    %196 = vector.extract_strided_slice %195 {offsets = [16, 0], sizes = [16, 256], strides = [1, 1]} : vector<32x256xf32> to vector<16x256xf32>
    %197 = arith.mulf %176, %196 : vector<16x256xf32>
    %198 = vector.extract_strided_slice %195 {offsets = [0, 0], sizes = [16, 256], strides = [1, 1]} : vector<32x256xf32> to vector<16x256xf32>
    %199 = arith.subf %197, %198 : vector<16x256xf32>
    %cst_84 = arith.constant 0.000000e+00 : f32
    %200 = vector.broadcast %cst_84 : f32 to vector<16x256xf32>
    %201 = arith.cmpf oge, %199, %200 : vector<16x256xf32>
    %cst_85 = arith.constant 0.00999999977 : f32
    %202 = vector.broadcast %cst_85 : f32 to vector<16x256xf32>
    %203 = arith.mulf %202, %199 : vector<16x256xf32>
    %204 = arith.select %201, %199, %203 : vector<16x256xi1>, vector<16x256xf32>
    %205 = arith.truncf %204 : vector<16x256xf32> to vector<16x256xbf16>
    %c2_86 = arith.constant 2 : index
    %c0_87 = arith.constant 0 : index
    %c0_88 = arith.constant 0 : index
    %206 = vector.load %arg2[%c2_86, %c0_87, %c0_88] : memref<3x16x144xbf16, #tpu.memory_space<vmem>>, vector<1x16x144xbf16>
    %207 = vector.shape_cast %206 : vector<1x16x144xbf16> to vector<16x144xbf16>
    %cst_89 = arith.constant 0.000000e+00 : bf16
    %208 = vector.broadcast %cst_89 : bf16 to vector<16x9xbf16>
    %209 = vector.extract_strided_slice %205 {offsets = [0, 0], sizes = [16, 247], strides = [1, 1]} : vector<16x256xbf16> to vector<16x247xbf16>
    %210 = tpu.concatenate %208, %209 in 1 : vector<16x9xbf16>, vector<16x247xbf16> -> vector<16x256xbf16>
    %c0_90 = arith.constant 0 : index
    %c0_91 = arith.constant 0 : index
    %c0_92 = arith.constant 0 : index
    %211 = vector.load %arg4[%c0_90, %c0_91, %c0_92] : memref<9x1x256xbf16, #tpu.memory_space<vmem>>, vector<1x1x256xbf16>
    %212 = vector.shape_cast %211 : vector<1x1x256xbf16> to vector<1x256xbf16>
    %213 = vector.broadcast %212 : vector<1x256xbf16> to vector<16x256xbf16>
    %214 = arith.mulf %210, %213 : vector<16x256xbf16>
    %cst_93 = arith.constant 0.000000e+00 : bf16
    %215 = vector.broadcast %cst_93 : bf16 to vector<16x8xbf16>
    %216 = vector.extract_strided_slice %205 {offsets = [0, 0], sizes = [16, 248], strides = [1, 1]} : vector<16x256xbf16> to vector<16x248xbf16>
    %217 = tpu.concatenate %215, %216 in 1 : vector<16x8xbf16>, vector<16x248xbf16> -> vector<16x256xbf16>
    %c1_94 = arith.constant 1 : index
    %c0_95 = arith.constant 0 : index
    %c0_96 = arith.constant 0 : index
    %218 = vector.load %arg4[%c1_94, %c0_95, %c0_96] : memref<9x1x256xbf16, #tpu.memory_space<vmem>>, vector<1x1x256xbf16>
    %219 = vector.shape_cast %218 : vector<1x1x256xbf16> to vector<1x256xbf16>
    %220 = vector.broadcast %219 : vector<1x256xbf16> to vector<16x256xbf16>
    %221 = arith.mulf %217, %220 : vector<16x256xbf16>
    %cst_97 = arith.constant 0.000000e+00 : bf16
    %222 = vector.broadcast %cst_97 : bf16 to vector<16x7xbf16>
    %223 = vector.extract_strided_slice %205 {offsets = [0, 0], sizes = [16, 249], strides = [1, 1]} : vector<16x256xbf16> to vector<16x249xbf16>
    %224 = tpu.concatenate %222, %223 in 1 : vector<16x7xbf16>, vector<16x249xbf16> -> vector<16x256xbf16>
    %c2_98 = arith.constant 2 : index
    %c0_99 = arith.constant 0 : index
    %c0_100 = arith.constant 0 : index
    %225 = vector.load %arg4[%c2_98, %c0_99, %c0_100] : memref<9x1x256xbf16, #tpu.memory_space<vmem>>, vector<1x1x256xbf16>
    %226 = vector.shape_cast %225 : vector<1x1x256xbf16> to vector<1x256xbf16>
    %227 = vector.broadcast %226 : vector<1x256xbf16> to vector<16x256xbf16>
    %228 = arith.mulf %224, %227 : vector<16x256xbf16>
    %cst_101 = arith.constant 0.000000e+00 : bf16
    %229 = vector.broadcast %cst_101 : bf16 to vector<16x1xbf16>
    %230 = vector.extract_strided_slice %205 {offsets = [0, 0], sizes = [16, 255], strides = [1, 1]} : vector<16x256xbf16> to vector<16x255xbf16>
    %231 = tpu.concatenate %229, %230 in 1 : vector<16x1xbf16>, vector<16x255xbf16> -> vector<16x256xbf16>
    %c3_102 = arith.constant 3 : index
    %c0_103 = arith.constant 0 : index
    %c0_104 = arith.constant 0 : index
    %232 = vector.load %arg4[%c3_102, %c0_103, %c0_104] : memref<9x1x256xbf16, #tpu.memory_space<vmem>>, vector<1x1x256xbf16>
    %233 = vector.shape_cast %232 : vector<1x1x256xbf16> to vector<1x256xbf16>
    %234 = vector.broadcast %233 : vector<1x256xbf16> to vector<16x256xbf16>
    %235 = arith.mulf %231, %234 : vector<16x256xbf16>
    %cst_105 = arith.constant 0.000000e+00 : bf16
    %236 = vector.broadcast %cst_105 : bf16 to vector<16x1xbf16>
    %237 = vector.extract_strided_slice %205 {offsets = [0, 1], sizes = [16, 255], strides = [1, 1]} : vector<16x256xbf16> to vector<16x255xbf16>
    %238 = tpu.concatenate %237, %236 in 1 : vector<16x255xbf16>, vector<16x1xbf16> -> vector<16x256xbf16>
    %c5_106 = arith.constant 5 : index
    %c0_107 = arith.constant 0 : index
    %c0_108 = arith.constant 0 : index
    %239 = vector.load %arg4[%c5_106, %c0_107, %c0_108] : memref<9x1x256xbf16, #tpu.memory_space<vmem>>, vector<1x1x256xbf16>
    %240 = vector.shape_cast %239 : vector<1x1x256xbf16> to vector<1x256xbf16>
    %241 = vector.broadcast %240 : vector<1x256xbf16> to vector<16x256xbf16>
    %242 = arith.mulf %238, %241 : vector<16x256xbf16>
    %cst_109 = arith.constant 0.000000e+00 : bf16
    %243 = vector.broadcast %cst_109 : bf16 to vector<16x7xbf16>
    %244 = vector.extract_strided_slice %205 {offsets = [0, 7], sizes = [16, 249], strides = [1, 1]} : vector<16x256xbf16> to vector<16x249xbf16>
    %245 = tpu.concatenate %244, %243 in 1 : vector<16x249xbf16>, vector<16x7xbf16> -> vector<16x256xbf16>
    %c6_110 = arith.constant 6 : index
    %c0_111 = arith.constant 0 : index
    %c0_112 = arith.constant 0 : index
    %246 = vector.load %arg4[%c6_110, %c0_111, %c0_112] : memref<9x1x256xbf16, #tpu.memory_space<vmem>>, vector<1x1x256xbf16>
    %247 = vector.shape_cast %246 : vector<1x1x256xbf16> to vector<1x256xbf16>
    %248 = vector.broadcast %247 : vector<1x256xbf16> to vector<16x256xbf16>
    %249 = arith.mulf %245, %248 : vector<16x256xbf16>
    %cst_113 = arith.constant 0.000000e+00 : bf16
    %250 = vector.broadcast %cst_113 : bf16 to vector<16x8xbf16>
    %251 = vector.extract_strided_slice %205 {offsets = [0, 8], sizes = [16, 248], strides = [1, 1]} : vector<16x256xbf16> to vector<16x248xbf16>
    %252 = tpu.concatenate %251, %250 in 1 : vector<16x248xbf16>, vector<16x8xbf16> -> vector<16x256xbf16>
    %c7_114 = arith.constant 7 : index
    %c0_115 = arith.constant 0 : index
    %c0_116 = arith.constant 0 : index
    %253 = vector.load %arg4[%c7_114, %c0_115, %c0_116] : memref<9x1x256xbf16, #tpu.memory_space<vmem>>, vector<1x1x256xbf16>
    %254 = vector.shape_cast %253 : vector<1x1x256xbf16> to vector<1x256xbf16>
    %255 = vector.broadcast %254 : vector<1x256xbf16> to vector<16x256xbf16>
    %256 = arith.mulf %252, %255 : vector<16x256xbf16>
    %cst_117 = arith.constant 0.000000e+00 : bf16
    %257 = vector.broadcast %cst_117 : bf16 to vector<16x9xbf16>
    %258 = vector.extract_strided_slice %205 {offsets = [0, 9], sizes = [16, 247], strides = [1, 1]} : vector<16x256xbf16> to vector<16x247xbf16>
    %259 = tpu.concatenate %258, %257 in 1 : vector<16x247xbf16>, vector<16x9xbf16> -> vector<16x256xbf16>
    %c8_118 = arith.constant 8 : index
    %c0_119 = arith.constant 0 : index
    %c0_120 = arith.constant 0 : index
    %260 = vector.load %arg4[%c8_118, %c0_119, %c0_120] : memref<9x1x256xbf16, #tpu.memory_space<vmem>>, vector<1x1x256xbf16>
    %261 = vector.shape_cast %260 : vector<1x1x256xbf16> to vector<1x256xbf16>
    %262 = vector.broadcast %261 : vector<1x256xbf16> to vector<16x256xbf16>
    %263 = arith.mulf %259, %262 : vector<16x256xbf16>
    %264 = tpu.concatenate %214, %221, %228, %235, %205, %242, %249, %256, %263 in 0 : vector<16x256xbf16>, vector<16x256xbf16>, vector<16x256xbf16>, vector<16x256xbf16>, vector<16x256xbf16>, vector<16x256xbf16>, vector<16x256xbf16>, vector<16x256xbf16>, vector<16x256xbf16> -> vector<144x256xbf16>
    %cst_121 = arith.constant dense<0.000000e+00> : vector<16x256xf32>
    %265 = tpu.matmul %207, %264, %cst_121 {dimension_numbers = #tpu.dot_dimension_numbers<[1], [0], [0], [1], [0, 0, 1, 1], [], []>} : vector<16x144xbf16>, vector<144x256xbf16>, vector<16x256xf32> -> vector<16x256xf32>
    %266 = arith.mulf %265, %265 : vector<16x256xf32>
    %267 = tpu.concatenate %265, %266 in 0 : vector<16x256xf32>, vector<16x256xf32> -> vector<32x256xf32>
    %cst_122 = arith.constant dense<0.000000e+00> : vector<32x4xf32>
    %268 = tpu.matmul %267, %12, %cst_122 {dimension_numbers = #tpu.dot_dimension_numbers<[1], [0], [0], [1], [0, 0, 1, 1], [], []>} : vector<32x256xf32>, vector<256x4xf32>, vector<32x4xf32> -> vector<32x4xf32>
    %269 = vector.extract_strided_slice %268 {offsets = [0, 0], sizes = [16, 4], strides = [1, 1]} : vector<32x4xf32> to vector<16x4xf32>
    %cst_123 = arith.constant 1.562500e-02 : f32
    %270 = vector.broadcast %cst_123 : f32 to vector<16x4xf32>
    %271 = arith.mulf %269, %270 : vector<16x4xf32>
    %272 = vector.extract_strided_slice %268 {offsets = [16, 0], sizes = [16, 4], strides = [1, 1]} : vector<32x4xf32> to vector<16x4xf32>
    %cst_124 = arith.constant 1.562500e-02 : f32
    %273 = vector.broadcast %cst_124 : f32 to vector<16x4xf32>
    %274 = arith.mulf %272, %273 : vector<16x4xf32>
    %275 = arith.mulf %271, %271 : vector<16x4xf32>
    %276 = arith.subf %274, %275 : vector<16x4xf32>
    %cst_125 = arith.constant 0.000000e+00 : f32
    %277 = vector.broadcast %cst_125 : f32 to vector<16x4xf32>
    %278 = arith.maximumf %276, %277 : vector<16x4xf32>
    %cst_126 = arith.constant 9.99999974E-6 : f32
    %279 = vector.broadcast %cst_126 : f32 to vector<16x4xf32>
    %280 = arith.addf %278, %279 : vector<16x4xf32>
    %281 = math.rsqrt %280 : vector<16x4xf32>
    %282 = arith.mulf %271, %281 : vector<16x4xf32>
    %283 = tpu.concatenate %282, %281 in 0 : vector<16x4xf32>, vector<16x4xf32> -> vector<32x4xf32>
    %cst_127 = arith.constant dense<0.000000e+00> : vector<32x256xf32>
    %284 = tpu.matmul %283, %25, %cst_127 {dimension_numbers = #tpu.dot_dimension_numbers<[1], [0], [0], [1], [0, 0, 1, 1], [], []>} : vector<32x4xf32>, vector<4x256xf32>, vector<32x256xf32> -> vector<32x256xf32>
    %285 = vector.extract_strided_slice %284 {offsets = [16, 0], sizes = [16, 256], strides = [1, 1]} : vector<32x256xf32> to vector<16x256xf32>
    %286 = arith.mulf %265, %285 : vector<16x256xf32>
    %287 = vector.extract_strided_slice %284 {offsets = [0, 0], sizes = [16, 256], strides = [1, 1]} : vector<32x256xf32> to vector<16x256xf32>
    %288 = arith.subf %286, %287 : vector<16x256xf32>
    %cst_128 = arith.constant 0.000000e+00 : f32
    %289 = vector.broadcast %cst_128 : f32 to vector<16x256xf32>
    %290 = arith.cmpf oge, %288, %289 : vector<16x256xf32>
    %cst_129 = arith.constant 0.00999999977 : f32
    %291 = vector.broadcast %cst_129 : f32 to vector<16x256xf32>
    %292 = arith.mulf %291, %288 : vector<16x256xf32>
    %293 = arith.select %290, %288, %292 : vector<16x256xi1>, vector<16x256xf32>
    %294 = arith.truncf %293 : vector<16x256xf32> to vector<16x256xbf16>
    %c0_130 = arith.constant 0 : index
    %c0_131 = arith.constant 0 : index
    %295 = vector.load %arg3[%c0_130, %c0_131] : memref<32x16xbf16, #tpu.memory_space<vmem>>, vector<32x16xbf16>
    %cst_132 = arith.constant dense<0.000000e+00> : vector<32x256xf32>
    %296 = tpu.matmul %295, %294, %cst_132 {dimension_numbers = #tpu.dot_dimension_numbers<[1], [0], [0], [1], [0, 0, 1, 1], [], []>} : vector<32x16xbf16>, vector<16x256xbf16>, vector<32x256xf32> -> vector<32x256xf32>
    %297 = arith.mulf %296, %296 : vector<32x256xf32>
    %298 = tpu.concatenate %296, %297 in 0 : vector<32x256xf32>, vector<32x256xf32> -> vector<64x256xf32>
    %cst_133 = arith.constant dense<0.000000e+00> : vector<64x4xf32>
    %299 = tpu.matmul %298, %12, %cst_133 {dimension_numbers = #tpu.dot_dimension_numbers<[1], [0], [0], [1], [0, 0, 1, 1], [], []>} : vector<64x256xf32>, vector<256x4xf32>, vector<64x4xf32> -> vector<64x4xf32>
    %300 = vector.extract_strided_slice %299 {offsets = [0, 0], sizes = [8, 4], strides = [1, 1]} : vector<64x4xf32> to vector<8x4xf32>
    %cst_134 = arith.constant 0.000000e+00 : f32
    %301 = vector.broadcast %cst_134 : f32 to vector<8x4xf32>
    %302 = arith.addf %301, %300 : vector<8x4xf32>
    %303 = vector.extract_strided_slice %299 {offsets = [8, 0], sizes = [8, 4], strides = [1, 1]} : vector<64x4xf32> to vector<8x4xf32>
    %304 = arith.addf %302, %303 : vector<8x4xf32>
    %305 = vector.extract_strided_slice %299 {offsets = [16, 0], sizes = [8, 4], strides = [1, 1]} : vector<64x4xf32> to vector<8x4xf32>
    %306 = arith.addf %304, %305 : vector<8x4xf32>
    %307 = vector.extract_strided_slice %299 {offsets = [24, 0], sizes = [8, 4], strides = [1, 1]} : vector<64x4xf32> to vector<8x4xf32>
    %308 = arith.addf %306, %307 : vector<8x4xf32>
    %309 = vector.extract_strided_slice %299 {offsets = [32, 0], sizes = [8, 4], strides = [1, 1]} : vector<64x4xf32> to vector<8x4xf32>
    %cst_135 = arith.constant 0.000000e+00 : f32
    %310 = vector.broadcast %cst_135 : f32 to vector<8x4xf32>
    %311 = arith.addf %310, %309 : vector<8x4xf32>
    %312 = vector.extract_strided_slice %299 {offsets = [40, 0], sizes = [8, 4], strides = [1, 1]} : vector<64x4xf32> to vector<8x4xf32>
    %313 = arith.addf %311, %312 : vector<8x4xf32>
    %314 = vector.extract_strided_slice %299 {offsets = [48, 0], sizes = [8, 4], strides = [1, 1]} : vector<64x4xf32> to vector<8x4xf32>
    %315 = arith.addf %313, %314 : vector<8x4xf32>
    %316 = vector.extract_strided_slice %299 {offsets = [56, 0], sizes = [8, 4], strides = [1, 1]} : vector<64x4xf32> to vector<8x4xf32>
    %317 = arith.addf %315, %316 : vector<8x4xf32>
    %cst_136 = arith.constant 3.906250e-03 : f32
    %318 = vector.broadcast %cst_136 : f32 to vector<8x4xf32>
    %319 = arith.mulf %308, %318 : vector<8x4xf32>
    %cst_137 = arith.constant 3.906250e-03 : f32
    %320 = vector.broadcast %cst_137 : f32 to vector<8x4xf32>
    %321 = arith.mulf %317, %320 : vector<8x4xf32>
    %322 = arith.mulf %319, %319 : vector<8x4xf32>
    %323 = arith.subf %321, %322 : vector<8x4xf32>
    %cst_138 = arith.constant 0.000000e+00 : f32
    %324 = vector.broadcast %cst_138 : f32 to vector<8x4xf32>
    %325 = arith.maximumf %323, %324 : vector<8x4xf32>
    %cst_139 = arith.constant 9.99999974E-6 : f32
    %326 = vector.broadcast %cst_139 : f32 to vector<8x4xf32>
    %327 = arith.addf %325, %326 : vector<8x4xf32>
    %328 = math.rsqrt %327 : vector<8x4xf32>
    %329 = arith.mulf %319, %328 : vector<8x4xf32>
    %330 = tpu.concatenate %329, %328 in 0 : vector<8x4xf32>, vector<8x4xf32> -> vector<16x4xf32>
    %cst_140 = arith.constant dense<0.000000e+00> : vector<16x256xf32>
    %331 = tpu.matmul %330, %25, %cst_140 {dimension_numbers = #tpu.dot_dimension_numbers<[1], [0], [0], [1], [0, 0, 1, 1], [], []>} : vector<16x4xf32>, vector<4x256xf32>, vector<16x256xf32> -> vector<16x256xf32>
    %332 = vector.extract_strided_slice %331 {offsets = [8, 0], sizes = [8, 256], strides = [1, 1]} : vector<16x256xf32> to vector<8x256xf32>
    %333 = tpu.concatenate %332, %332, %332, %332 in 0 : vector<8x256xf32>, vector<8x256xf32>, vector<8x256xf32>, vector<8x256xf32> -> vector<32x256xf32>
    %334 = vector.extract_strided_slice %331 {offsets = [0, 0], sizes = [8, 256], strides = [1, 1]} : vector<16x256xf32> to vector<8x256xf32>
    %335 = tpu.concatenate %334, %334, %334, %334 in 0 : vector<8x256xf32>, vector<8x256xf32>, vector<8x256xf32>, vector<8x256xf32> -> vector<32x256xf32>
    %336 = arith.mulf %296, %333 : vector<32x256xf32>
    %337 = arith.subf %336, %335 : vector<32x256xf32>
    %cst_141 = arith.constant 0.000000e+00 : f32
    %338 = vector.broadcast %cst_141 : f32 to vector<32x256xf32>
    %339 = arith.cmpf oge, %337, %338 : vector<32x256xf32>
    %cst_142 = arith.constant 0.00999999977 : f32
    %340 = vector.broadcast %cst_142 : f32 to vector<32x256xf32>
    %341 = arith.mulf %340, %337 : vector<32x256xf32>
    %342 = arith.select %339, %337, %341 : vector<32x256xi1>, vector<32x256xf32>
    %343 = arith.truncf %342 : vector<32x256xf32> to vector<32x256xbf16>
    %c0_143 = arith.constant 0 : index
    %c0_144 = arith.constant 0 : index
    %c0_145 = arith.constant 0 : index
    %344 = vector.load %arg5[%c0_143, %c0_144, %c0_145] : memref<1x32x256xbf16, #tpu.memory_space<vmem>>, vector<1x32x256xbf16>
    %345 = vector.shape_cast %344 : vector<1x32x256xbf16> to vector<32x256xbf16>
    %346 = vector.shape_cast %343 : vector<32x256xbf16> to vector<1x32x256xbf16>
    tpu.vector_store %arg5[%c0_143, %c0_144, %c0_145], %346 {strides = array<i32>} : memref<1x32x256xbf16, #tpu.memory_space<vmem>>, vector<1x32x256xbf16>,
    return
  }
  func.func @transform_0(%arg0: i32) -> (i32, i32, i32) {
    %c0_i32 = arith.constant 0 : i32
    %c0_i32_0 = arith.constant 0 : i32
    %c0_i32_1 = arith.constant 0 : i32
    return %arg0, %c0_i32, %c0_i32_0 : i32, i32, i32
  }
  func.func @transform_1(%arg0: i32) -> (i32, i32, i32) {
    %c0_i32 = arith.constant 0 : i32
    %c0_i32_0 = arith.constant 0 : i32
    %c0_i32_1 = arith.constant 0 : i32
    %c0_i32_2 = arith.constant 0 : i32
    return %c0_i32, %c0_i32_0, %c0_i32_1 : i32, i32, i32
  }
  func.func @transform_2(%arg0: i32) -> (i32, i32) {
    %c0_i32 = arith.constant 0 : i32
    %c0_i32_0 = arith.constant 0 : i32
    %c0_i32_1 = arith.constant 0 : i32
    return %c0_i32, %c0_i32_0 : i32, i32
  }
  func.func @transform_3(%arg0: i32) -> (i32, i32, i32) {
    %c0_i32 = arith.constant 0 : i32
    %c0_i32_0 = arith.constant 0 : i32
    %c0_i32_1 = arith.constant 0 : i32
    %c0_i32_2 = arith.constant 0 : i32
    return %c0_i32, %c0_i32_0, %c0_i32_1 : i32, i32, i32
  }
  func.func @transform_4(%arg0: i32) -> (i32, i32, i32) {
    %c0_i32 = arith.constant 0 : i32
    %c0_i32_0 = arith.constant 0 : i32
    %c0_i32_1 = arith.constant 0 : i32
    return %arg0, %c0_i32, %c0_i32_0 : i32, i32, i32
  }
}

module attributes {stable_mosaic.version = 11 : i64} {
  func.func @_end_conv_kernel(%arg0: i32, %arg1: memref<1x8x1024xbf16, #tpu.memory_space<vmem>>, %arg2: memref<9x8x8xbf16, #tpu.memory_space<vmem>>, %arg3: memref<9x1x1024xbf16, #tpu.memory_space<vmem>>, %arg4: memref<1x8x1024xf32, #tpu.memory_space<vmem>>) attributes {dimension_semantics = [#tpu.dimension_semantics<parallel>], iteration_bounds = array<i64: 2>, scalar_prefetch = 0 : i64, scratch_operands = 0 : i64, tpu.core_type = #tpu.core_type<tc>, window_params = [{transform_indices = @transform_0, window_bounds = array<i64: 1, 8, 1024>}, {pipeline_mode = #tpu.pipeline_mode<synchronous>, transform_indices = @transform_1, window_bounds = array<i64: 9, 8, 8>}, {pipeline_mode = #tpu.pipeline_mode<synchronous>, transform_indices = @transform_2, window_bounds = array<i64: 9, 1, 1024>}, {transform_indices = @transform_3, window_bounds = array<i64: 1, 8, 1024>}]} {
    %c0 = arith.constant 0 : index
    %c0_0 = arith.constant 0 : index
    %c0_1 = arith.constant 0 : index
    %0 = vector.load %arg1[%c0, %c0_0, %c0_1] : memref<1x8x1024xbf16, #tpu.memory_space<vmem>>, vector<1x8x1024xbf16>
    %1 = vector.shape_cast %0 : vector<1x8x1024xbf16> to vector<8x1024xbf16>
    %cst = arith.constant 0.000000e+00 : bf16
    %2 = vector.broadcast %cst : bf16 to vector<8x17xbf16>
    %3 = vector.extract_strided_slice %1 {offsets = [0, 0], sizes = [8, 1007], strides = [1, 1]} : vector<8x1024xbf16> to vector<8x1007xbf16>
    %4 = tpu.concatenate %2, %3 in 1 : vector<8x17xbf16>, vector<8x1007xbf16> -> vector<8x1024xbf16>
    %c0_2 = arith.constant 0 : index
    %c0_3 = arith.constant 0 : index
    %c0_4 = arith.constant 0 : index
    %5 = vector.load %arg3[%c0_2, %c0_3, %c0_4] : memref<9x1x1024xbf16, #tpu.memory_space<vmem>>, vector<1x1x1024xbf16>
    %6 = vector.shape_cast %5 : vector<1x1x1024xbf16> to vector<1x1024xbf16>
    %7 = vector.broadcast %6 : vector<1x1024xbf16> to vector<8x1024xbf16>
    %8 = arith.mulf %4, %7 : vector<8x1024xbf16>
    %c0_5 = arith.constant 0 : index
    %c0_6 = arith.constant 0 : index
    %c0_7 = arith.constant 0 : index
    %9 = vector.load %arg2[%c0_5, %c0_6, %c0_7] : memref<9x8x8xbf16, #tpu.memory_space<vmem>>, vector<1x8x8xbf16>
    %10 = vector.shape_cast %9 : vector<1x8x8xbf16> to vector<8x8xbf16>
    %cst_8 = arith.constant dense<0.000000e+00> : vector<8x1024xf32>
    %11 = tpu.matmul %10, %8, %cst_8 {dimension_numbers = #tpu.dot_dimension_numbers<[1], [0], [0], [1], [0, 0, 1, 1], [], []>} : vector<8x8xbf16>, vector<8x1024xbf16>, vector<8x1024xf32> -> vector<8x1024xf32>
    %cst_9 = arith.constant 0.000000e+00 : bf16
    %12 = vector.broadcast %cst_9 : bf16 to vector<8x16xbf16>
    %13 = vector.extract_strided_slice %1 {offsets = [0, 0], sizes = [8, 1008], strides = [1, 1]} : vector<8x1024xbf16> to vector<8x1008xbf16>
    %14 = tpu.concatenate %12, %13 in 1 : vector<8x16xbf16>, vector<8x1008xbf16> -> vector<8x1024xbf16>
    %c1 = arith.constant 1 : index
    %c0_10 = arith.constant 0 : index
    %c0_11 = arith.constant 0 : index
    %15 = vector.load %arg3[%c1, %c0_10, %c0_11] : memref<9x1x1024xbf16, #tpu.memory_space<vmem>>, vector<1x1x1024xbf16>
    %16 = vector.shape_cast %15 : vector<1x1x1024xbf16> to vector<1x1024xbf16>
    %17 = vector.broadcast %16 : vector<1x1024xbf16> to vector<8x1024xbf16>
    %18 = arith.mulf %14, %17 : vector<8x1024xbf16>
    %c1_12 = arith.constant 1 : index
    %c0_13 = arith.constant 0 : index
    %c0_14 = arith.constant 0 : index
    %19 = vector.load %arg2[%c1_12, %c0_13, %c0_14] : memref<9x8x8xbf16, #tpu.memory_space<vmem>>, vector<1x8x8xbf16>
    %20 = vector.shape_cast %19 : vector<1x8x8xbf16> to vector<8x8xbf16>
    %cst_15 = arith.constant dense<0.000000e+00> : vector<8x1024xf32>
    %21 = tpu.matmul %20, %18, %cst_15 {dimension_numbers = #tpu.dot_dimension_numbers<[1], [0], [0], [1], [0, 0, 1, 1], [], []>} : vector<8x8xbf16>, vector<8x1024xbf16>, vector<8x1024xf32> -> vector<8x1024xf32>
    %22 = arith.addf %11, %21 : vector<8x1024xf32>
    %cst_16 = arith.constant 0.000000e+00 : bf16
    %23 = vector.broadcast %cst_16 : bf16 to vector<8x15xbf16>
    %24 = vector.extract_strided_slice %1 {offsets = [0, 0], sizes = [8, 1009], strides = [1, 1]} : vector<8x1024xbf16> to vector<8x1009xbf16>
    %25 = tpu.concatenate %23, %24 in 1 : vector<8x15xbf16>, vector<8x1009xbf16> -> vector<8x1024xbf16>
    %c2 = arith.constant 2 : index
    %c0_17 = arith.constant 0 : index
    %c0_18 = arith.constant 0 : index
    %26 = vector.load %arg3[%c2, %c0_17, %c0_18] : memref<9x1x1024xbf16, #tpu.memory_space<vmem>>, vector<1x1x1024xbf16>
    %27 = vector.shape_cast %26 : vector<1x1x1024xbf16> to vector<1x1024xbf16>
    %28 = vector.broadcast %27 : vector<1x1024xbf16> to vector<8x1024xbf16>
    %29 = arith.mulf %25, %28 : vector<8x1024xbf16>
    %c2_19 = arith.constant 2 : index
    %c0_20 = arith.constant 0 : index
    %c0_21 = arith.constant 0 : index
    %30 = vector.load %arg2[%c2_19, %c0_20, %c0_21] : memref<9x8x8xbf16, #tpu.memory_space<vmem>>, vector<1x8x8xbf16>
    %31 = vector.shape_cast %30 : vector<1x8x8xbf16> to vector<8x8xbf16>
    %cst_22 = arith.constant dense<0.000000e+00> : vector<8x1024xf32>
    %32 = tpu.matmul %31, %29, %cst_22 {dimension_numbers = #tpu.dot_dimension_numbers<[1], [0], [0], [1], [0, 0, 1, 1], [], []>} : vector<8x8xbf16>, vector<8x1024xbf16>, vector<8x1024xf32> -> vector<8x1024xf32>
    %33 = arith.addf %22, %32 : vector<8x1024xf32>
    %cst_23 = arith.constant 0.000000e+00 : bf16
    %34 = vector.broadcast %cst_23 : bf16 to vector<8x1xbf16>
    %35 = vector.extract_strided_slice %1 {offsets = [0, 0], sizes = [8, 1023], strides = [1, 1]} : vector<8x1024xbf16> to vector<8x1023xbf16>
    %36 = tpu.concatenate %34, %35 in 1 : vector<8x1xbf16>, vector<8x1023xbf16> -> vector<8x1024xbf16>
    %c3 = arith.constant 3 : index
    %c0_24 = arith.constant 0 : index
    %c0_25 = arith.constant 0 : index
    %37 = vector.load %arg3[%c3, %c0_24, %c0_25] : memref<9x1x1024xbf16, #tpu.memory_space<vmem>>, vector<1x1x1024xbf16>
    %38 = vector.shape_cast %37 : vector<1x1x1024xbf16> to vector<1x1024xbf16>
    %39 = vector.broadcast %38 : vector<1x1024xbf16> to vector<8x1024xbf16>
    %40 = arith.mulf %36, %39 : vector<8x1024xbf16>
    %c3_26 = arith.constant 3 : index
    %c0_27 = arith.constant 0 : index
    %c0_28 = arith.constant 0 : index
    %41 = vector.load %arg2[%c3_26, %c0_27, %c0_28] : memref<9x8x8xbf16, #tpu.memory_space<vmem>>, vector<1x8x8xbf16>
    %42 = vector.shape_cast %41 : vector<1x8x8xbf16> to vector<8x8xbf16>
    %cst_29 = arith.constant dense<0.000000e+00> : vector<8x1024xf32>
    %43 = tpu.matmul %42, %40, %cst_29 {dimension_numbers = #tpu.dot_dimension_numbers<[1], [0], [0], [1], [0, 0, 1, 1], [], []>} : vector<8x8xbf16>, vector<8x1024xbf16>, vector<8x1024xf32> -> vector<8x1024xf32>
    %44 = arith.addf %33, %43 : vector<8x1024xf32>
    %c4 = arith.constant 4 : index
    %c0_30 = arith.constant 0 : index
    %c0_31 = arith.constant 0 : index
    %45 = vector.load %arg2[%c4, %c0_30, %c0_31] : memref<9x8x8xbf16, #tpu.memory_space<vmem>>, vector<1x8x8xbf16>
    %46 = vector.shape_cast %45 : vector<1x8x8xbf16> to vector<8x8xbf16>
    %cst_32 = arith.constant dense<0.000000e+00> : vector<8x1024xf32>
    %47 = tpu.matmul %46, %1, %cst_32 {dimension_numbers = #tpu.dot_dimension_numbers<[1], [0], [0], [1], [0, 0, 1, 1], [], []>} : vector<8x8xbf16>, vector<8x1024xbf16>, vector<8x1024xf32> -> vector<8x1024xf32>
    %48 = arith.addf %44, %47 : vector<8x1024xf32>
    %cst_33 = arith.constant 0.000000e+00 : bf16
    %49 = vector.broadcast %cst_33 : bf16 to vector<8x1xbf16>
    %50 = vector.extract_strided_slice %1 {offsets = [0, 1], sizes = [8, 1023], strides = [1, 1]} : vector<8x1024xbf16> to vector<8x1023xbf16>
    %51 = tpu.concatenate %50, %49 in 1 : vector<8x1023xbf16>, vector<8x1xbf16> -> vector<8x1024xbf16>
    %c5 = arith.constant 5 : index
    %c0_34 = arith.constant 0 : index
    %c0_35 = arith.constant 0 : index
    %52 = vector.load %arg3[%c5, %c0_34, %c0_35] : memref<9x1x1024xbf16, #tpu.memory_space<vmem>>, vector<1x1x1024xbf16>
    %53 = vector.shape_cast %52 : vector<1x1x1024xbf16> to vector<1x1024xbf16>
    %54 = vector.broadcast %53 : vector<1x1024xbf16> to vector<8x1024xbf16>
    %55 = arith.mulf %51, %54 : vector<8x1024xbf16>
    %c5_36 = arith.constant 5 : index
    %c0_37 = arith.constant 0 : index
    %c0_38 = arith.constant 0 : index
    %56 = vector.load %arg2[%c5_36, %c0_37, %c0_38] : memref<9x8x8xbf16, #tpu.memory_space<vmem>>, vector<1x8x8xbf16>
    %57 = vector.shape_cast %56 : vector<1x8x8xbf16> to vector<8x8xbf16>
    %cst_39 = arith.constant dense<0.000000e+00> : vector<8x1024xf32>
    %58 = tpu.matmul %57, %55, %cst_39 {dimension_numbers = #tpu.dot_dimension_numbers<[1], [0], [0], [1], [0, 0, 1, 1], [], []>} : vector<8x8xbf16>, vector<8x1024xbf16>, vector<8x1024xf32> -> vector<8x1024xf32>
    %59 = arith.addf %48, %58 : vector<8x1024xf32>
    %cst_40 = arith.constant 0.000000e+00 : bf16
    %60 = vector.broadcast %cst_40 : bf16 to vector<8x15xbf16>
    %61 = vector.extract_strided_slice %1 {offsets = [0, 15], sizes = [8, 1009], strides = [1, 1]} : vector<8x1024xbf16> to vector<8x1009xbf16>
    %62 = tpu.concatenate %61, %60 in 1 : vector<8x1009xbf16>, vector<8x15xbf16> -> vector<8x1024xbf16>
    %c6 = arith.constant 6 : index
    %c0_41 = arith.constant 0 : index
    %c0_42 = arith.constant 0 : index
    %63 = vector.load %arg3[%c6, %c0_41, %c0_42] : memref<9x1x1024xbf16, #tpu.memory_space<vmem>>, vector<1x1x1024xbf16>
    %64 = vector.shape_cast %63 : vector<1x1x1024xbf16> to vector<1x1024xbf16>
    %65 = vector.broadcast %64 : vector<1x1024xbf16> to vector<8x1024xbf16>
    %66 = arith.mulf %62, %65 : vector<8x1024xbf16>
    %c6_43 = arith.constant 6 : index
    %c0_44 = arith.constant 0 : index
    %c0_45 = arith.constant 0 : index
    %67 = vector.load %arg2[%c6_43, %c0_44, %c0_45] : memref<9x8x8xbf16, #tpu.memory_space<vmem>>, vector<1x8x8xbf16>
    %68 = vector.shape_cast %67 : vector<1x8x8xbf16> to vector<8x8xbf16>
    %cst_46 = arith.constant dense<0.000000e+00> : vector<8x1024xf32>
    %69 = tpu.matmul %68, %66, %cst_46 {dimension_numbers = #tpu.dot_dimension_numbers<[1], [0], [0], [1], [0, 0, 1, 1], [], []>} : vector<8x8xbf16>, vector<8x1024xbf16>, vector<8x1024xf32> -> vector<8x1024xf32>
    %70 = arith.addf %59, %69 : vector<8x1024xf32>
    %cst_47 = arith.constant 0.000000e+00 : bf16
    %71 = vector.broadcast %cst_47 : bf16 to vector<8x16xbf16>
    %72 = vector.extract_strided_slice %1 {offsets = [0, 16], sizes = [8, 1008], strides = [1, 1]} : vector<8x1024xbf16> to vector<8x1008xbf16>
    %73 = tpu.concatenate %72, %71 in 1 : vector<8x1008xbf16>, vector<8x16xbf16> -> vector<8x1024xbf16>
    %c7 = arith.constant 7 : index
    %c0_48 = arith.constant 0 : index
    %c0_49 = arith.constant 0 : index
    %74 = vector.load %arg3[%c7, %c0_48, %c0_49] : memref<9x1x1024xbf16, #tpu.memory_space<vmem>>, vector<1x1x1024xbf16>
    %75 = vector.shape_cast %74 : vector<1x1x1024xbf16> to vector<1x1024xbf16>
    %76 = vector.broadcast %75 : vector<1x1024xbf16> to vector<8x1024xbf16>
    %77 = arith.mulf %73, %76 : vector<8x1024xbf16>
    %c7_50 = arith.constant 7 : index
    %c0_51 = arith.constant 0 : index
    %c0_52 = arith.constant 0 : index
    %78 = vector.load %arg2[%c7_50, %c0_51, %c0_52] : memref<9x8x8xbf16, #tpu.memory_space<vmem>>, vector<1x8x8xbf16>
    %79 = vector.shape_cast %78 : vector<1x8x8xbf16> to vector<8x8xbf16>
    %cst_53 = arith.constant dense<0.000000e+00> : vector<8x1024xf32>
    %80 = tpu.matmul %79, %77, %cst_53 {dimension_numbers = #tpu.dot_dimension_numbers<[1], [0], [0], [1], [0, 0, 1, 1], [], []>} : vector<8x8xbf16>, vector<8x1024xbf16>, vector<8x1024xf32> -> vector<8x1024xf32>
    %81 = arith.addf %70, %80 : vector<8x1024xf32>
    %cst_54 = arith.constant 0.000000e+00 : bf16
    %82 = vector.broadcast %cst_54 : bf16 to vector<8x17xbf16>
    %83 = vector.extract_strided_slice %1 {offsets = [0, 17], sizes = [8, 1007], strides = [1, 1]} : vector<8x1024xbf16> to vector<8x1007xbf16>
    %84 = tpu.concatenate %83, %82 in 1 : vector<8x1007xbf16>, vector<8x17xbf16> -> vector<8x1024xbf16>
    %c8 = arith.constant 8 : index
    %c0_55 = arith.constant 0 : index
    %c0_56 = arith.constant 0 : index
    %85 = vector.load %arg3[%c8, %c0_55, %c0_56] : memref<9x1x1024xbf16, #tpu.memory_space<vmem>>, vector<1x1x1024xbf16>
    %86 = vector.shape_cast %85 : vector<1x1x1024xbf16> to vector<1x1024xbf16>
    %87 = vector.broadcast %86 : vector<1x1024xbf16> to vector<8x1024xbf16>
    %88 = arith.mulf %84, %87 : vector<8x1024xbf16>
    %c8_57 = arith.constant 8 : index
    %c0_58 = arith.constant 0 : index
    %c0_59 = arith.constant 0 : index
    %89 = vector.load %arg2[%c8_57, %c0_58, %c0_59] : memref<9x8x8xbf16, #tpu.memory_space<vmem>>, vector<1x8x8xbf16>
    %90 = vector.shape_cast %89 : vector<1x8x8xbf16> to vector<8x8xbf16>
    %cst_60 = arith.constant dense<0.000000e+00> : vector<8x1024xf32>
    %91 = tpu.matmul %90, %88, %cst_60 {dimension_numbers = #tpu.dot_dimension_numbers<[1], [0], [0], [1], [0, 0, 1, 1], [], []>} : vector<8x8xbf16>, vector<8x1024xbf16>, vector<8x1024xf32> -> vector<8x1024xf32>
    %92 = arith.addf %81, %91 : vector<8x1024xf32>
    %c0_61 = arith.constant 0 : index
    %c0_62 = arith.constant 0 : index
    %c0_63 = arith.constant 0 : index
    %93 = vector.load %arg4[%c0_61, %c0_62, %c0_63] : memref<1x8x1024xf32, #tpu.memory_space<vmem>>, vector<1x8x1024xf32>
    %94 = vector.shape_cast %93 : vector<1x8x1024xf32> to vector<8x1024xf32>
    %95 = vector.shape_cast %92 : vector<8x1024xf32> to vector<1x8x1024xf32>
    tpu.vector_store %arg4[%c0_61, %c0_62, %c0_63], %95 {strides = array<i32>} : memref<1x8x1024xf32, #tpu.memory_space<vmem>>, vector<1x8x1024xf32>,
    return
  }
  func.func @transform_0(%arg0: i32) -> (i32, i32, i32) {
    %c0_i32 = arith.constant 0 : i32
    %c0_i32_0 = arith.constant 0 : i32
    %c0_i32_1 = arith.constant 0 : i32
    return %arg0, %c0_i32, %c0_i32_0 : i32, i32, i32
  }
  func.func @transform_1(%arg0: i32) -> (i32, i32, i32) {
    %c0_i32 = arith.constant 0 : i32
    %c0_i32_0 = arith.constant 0 : i32
    %c0_i32_1 = arith.constant 0 : i32
    %c0_i32_2 = arith.constant 0 : i32
    return %c0_i32, %c0_i32_0, %c0_i32_1 : i32, i32, i32
  }
  func.func @transform_2(%arg0: i32) -> (i32, i32, i32) {
    %c0_i32 = arith.constant 0 : i32
    %c0_i32_0 = arith.constant 0 : i32
    %c0_i32_1 = arith.constant 0 : i32
    %c0_i32_2 = arith.constant 0 : i32
    return %c0_i32, %c0_i32_0, %c0_i32_1 : i32, i32, i32
  }
  func.func @transform_3(%arg0: i32) -> (i32, i32, i32) {
    %c0_i32 = arith.constant 0 : i32
    %c0_i32_0 = arith.constant 0 : i32
    %c0_i32_1 = arith.constant 0 : i32
    return %arg0, %c0_i32, %c0_i32_0 : i32, i32, i32
  }
}

</mosaic_0001>

<llo_original>
// kernel: tpu_custom_call.1
$region0: #{tpu_custom_call.1}
  #allocation0 [shape = 'u32[]', space=smem, size = 0x4, offset = 0x4, fixed_abs, tag = 'smem constant byte address 0x4 - core index']
  #allocation1 [shape = 'u32[72,128]{1,0:T(1,128)}', space=vmem, size = 0x9000, scoped, tag = 'internal scratch']
  %s0 = inlined_call_operand.hbm [shape: f32[8,32], index: 0, kind: input, shape index: {}]
  %s1 = inlined_call_operand.hbm [shape: f32[8,32], index: 1, kind: output, shape index: {}]
  %s2 = sld [smem:[#allocation0]]
  $region18: #{tpu_custom_call.1} parent=0
    _
  %s4 = ssub.s32 1, %s2
  %s5 = scalar_select 0, %s4, %s2
  $region1: #{tpu_custom_call.1} parent=0
    #allocation2 [shape = 'u8[4096]{0}', space=vmem, size = 0x1000, scoped, tag = 'input window, operand 0, single buffered']
    #allocation3 [shape = 's32[1]{0}', space=sflag, size = 0x4, scoped, tag = 'scoped memory for tpu_custom_call.1']
    #allocation4 [shape = 's32[1]{0}', space=sflag, size = 0x4, scoped, tag = 'scoped memory for tpu_custom_call.1']
    #allocation5 [shape = 'u8[4096]{0}', space=vmem, size = 0x1000, scoped, tag = 'output window, operand 0, single buffered']
    %6 = vsyncpa [#allocation3], 0
    %7 = vsyncpa [#allocation4], 0
    // Predicated region
    $region2: #{tpu_custom_call.1} parent=1 // pred_check
      _
    $region3: #{tpu_custom_call.1} parent=1 // pred_check_branch
      %9 = sbr.rel (0) target = $region5
    $region4: #{tpu_custom_call.1} parent=1 // pred_region
      %11 = vsyncadd [#allocation3], 0
      %s13 = sshll.u32 %s0, 4
      %s14 = int_to_ptr.hbm [resolvable:$true] %s13
      %s15 = sshll.u32 [#allocation2], 4
      %s16 = int_to_ptr.vmem [resolvable:$true] %s15
      %18 = dma.hbm_to_vmem [thread:$0]  %s14, 128, %s16, [#allocation3]
    $region5: #{tpu_custom_call.1} parent=1 // pred_fallthru
      _
    // Predicated region
    $region6: #{tpu_custom_call.1} parent=1 // pred_check
      _
    $region7: #{tpu_custom_call.1} parent=1 // pred_check_branch
      %20 = sbr.rel (0) target = $region9
    $region8: #{tpu_custom_call.1} parent=1 // pred_region
      %22 = dma.done [#allocation3], 128
    $region9: #{tpu_custom_call.1} parent=1 // pred_fallthru
      _
    %v23 = vld [vmem:[#allocation2] sm:$0xff]
    %vm24 = vcmask 1047808
    %25 = vrot.lane.b32.xlu0 %v23, 32
    %v26 = vpop.permute.xlu0 %25
    %v27 = vsel %vm24, %v26, %v23
    %28 = vrot.lane.b32.xlu0 %v27, 32
    %v29 = vpop.permute.xlu0 %28
    %v30 = vsel %vm24, %v29, %v23
    %32 = vrot.lane.b32.xlu0 %v30, 99
    %v33 = vpop.permute.xlu0 %32
    %vm35 = vcmask 261120
    %36 = vst.msk [vmem:[#allocation5] sm:$0xff] %vm35, %v33
    // Predicated region
    $region10: #{tpu_custom_call.1} parent=1 // pred_check
      _
    $region11: #{tpu_custom_call.1} parent=1 // pred_check_branch
      %38 = sbr.rel (0) target = $region13
    $region12: #{tpu_custom_call.1} parent=1 // pred_region
      %40 = vsyncadd [#allocation4], 0
      %s42 = sshll.u32 [#allocation5], 4
      %s43 = int_to_ptr.vmem [resolvable:$true] %s42
      %s44 = sshll.u32 %s1, 4
      %s45 = int_to_ptr.hbm [resolvable:$true] %s44
      %47 = dma.vmem_to_hbm [thread:$0]  %s43, 128, %s45, [#allocation4]
    $region13: #{tpu_custom_call.1} parent=1 // pred_fallthru
      _
    // Predicated region
    $region14: #{tpu_custom_call.1} parent=1 // pred_check
      _
    $region15: #{tpu_custom_call.1} parent=1 // pred_check_branch
      %49 = sbr.rel (0) target = $region17
    $region16: #{tpu_custom_call.1} parent=1 // pred_region
      %51 = dma.done [#allocation4], 128
    $region17: #{tpu_custom_call.1} parent=1 // pred_fallthru
      _
    %52 = vsyncpa [#allocation3], 1
    %53 = vsyncpa [#allocation4], 1

// kernel: generator_liu_forward.4
$region0: #{generator_liu_forward.4}
  #allocation0 [shape = 'u32[]', space=smem, size = 0x4, offset = 0x4, fixed_abs, tag = 'smem constant byte address 0x4 - core index']
  #allocation1 [shape = 'u32[72,128]{1,0:T(1,128)}', space=vmem, size = 0x9000, scoped, tag = 'internal scratch']
  %s0 = inlined_call_operand.vmem [shape: f32[2,64,16], index: 0, kind: input, shape index: {}]
  %s1 = inlined_call_operand.vmem [shape: bf16[128,64], index: 1, kind: input, shape index: {}]
  %s2 = inlined_call_operand.vmem [shape: bf16[2,128,16], index: 2, kind: output, shape index: {}]
  %s3 = sld [smem:[#allocation0]]
  $region41: #{generator_liu_forward.4} parent=0
    _
  %s5 = ssub.s32 1, %s3
  %s6 = scalar_select 0, %s5, %s3
  loop: start=0, step=1, limit=4
  $region2: #{generator_liu_forward.4} parent=0 // loop_pre_header
    _
  $region3: #{generator_liu_forward.4} parent=0 // loop_header
    %s8 = sphi 0, %s12
    %p9 = scmp.ge.s32.totalorder %s8, 4
    %s18 = sphi 0, %s20
    %s21 = sphi 0, %s18
    %s22 = sphi 0, %s21
    %s38 = sphi 0, %s22
    %s42 = sphi 0, %s42
    %s44 = sphi 0, %s42
    %s45 = sphi 0, %s44
    %s59 = sphi 0, %s45
    %s65 = sphi 0, %s67
    %s68 = sphi 0, %s65
    %s69 = sphi 0, %s68
    %s85 = sphi 0, %s69
  $region4: #{generator_liu_forward.4} parent=0 // loop_header_branch
    %11 = sbr.rel (%p9) target = $region8
  $region5: #{generator_liu_forward.4} parent=0 // loop_body
    %s13 = ssub.s32 %s8, 1
    %s14 = ssub.s32 %s8, 2
    %s15 = sadd.s32 %s8, 1
    %s16 = ssub.s32 %s8, %s15
    %p17 = scmp.eq.s32.totalorder %s16, 0
    %s19 = sadd.s32 %s18, 1
    %s20 = scalar_select %p17, %s18, %s19
    %p23 = pneg %p17
    %p24 = scmp.eq.s32.totalorder %s8, 1
    %p25 = por %p23, %p24
    %p26 = scmp.ne.s32.totalorder %s18, %s21
    %p27 = scmp.eq.s32.totalorder %s8, 0
    %p28 = por %p26, %p27
    %p29 = scmp.ne.s32.totalorder %s18, %s21
    %p30 = scmp.eq.s32.totalorder %s13, 1
    %p31 = por %p29, %p30
    %p32 = scmp.ne.s32.totalorder %s21, %s22
    %p33 = scmp.eq.s32.totalorder %s13, 0
    %p34 = por %p32, %p33
    %p35 = scmp.ne.s32.totalorder %s21, %s22
    %p36 = scmp.eq.s32.totalorder %s14, 1
    %p37 = por %p35, %p36
    %p39 = scmp.ne.s32.totalorder %s22, %s38
    %p40 = scmp.eq.s32.totalorder %s14, 0
    %p41 = por %p39, %p40
    %s43 = sadd.s32 %s42, 1
    %p46 = scmp.eq.s32.totalorder %s8, 1
    %p47 = scmp.ne.s32.totalorder %s42, %s44
    %p48 = scmp.eq.s32.totalorder %s8, 0
    %p49 = por %p47, %p48
    %p50 = scmp.ne.s32.totalorder %s42, %s44
    %p51 = scmp.eq.s32.totalorder %s13, 1
    %p52 = por %p50, %p51
    %p53 = scmp.ne.s32.totalorder %s44, %s45
    %p54 = scmp.eq.s32.totalorder %s13, 0
    %p55 = por %p53, %p54
    %p56 = scmp.ne.s32.totalorder %s44, %s45
    %p57 = scmp.eq.s32.totalorder %s14, 1
    %p58 = por %p56, %p57
    %p60 = scmp.ne.s32.totalorder %s45, %s59
    %p61 = scmp.eq.s32.totalorder %s14, 0
    %p62 = por %p60, %p61
    %s63 = ssub.s32 %s8, %s15
    %p64 = scmp.eq.s32.totalorder %s63, 0
    %s66 = sadd.s32 %s65, 1
    %s67 = scalar_select %p64, %s65, %s66
    %p70 = pneg %p64
    %p71 = scmp.eq.s32.totalorder %s8, 1
    %p72 = por %p70, %p71
    %p73 = scmp.ne.s32.totalorder %s65, %s68
    %p74 = scmp.eq.s32.totalorder %s8, 0
    %p75 = por %p73, %p74
    %p76 = scmp.ne.s32.totalorder %s65, %s68
    %p77 = scmp.eq.s32.totalorder %s13, 1
    %p78 = por %p76, %p77
    %p79 = scmp.ne.s32.totalorder %s68, %s69
    %p80 = scmp.eq.s32.totalorder %s13, 0
    %p81 = por %p79, %p80
    %p82 = scmp.ne.s32.totalorder %s68, %s69
    %p83 = scmp.eq.s32.totalorder %s14, 1
    %p84 = por %p82, %p83
    %p86 = scmp.ne.s32.totalorder %s69, %s85
    %p87 = scmp.eq.s32.totalorder %s14, 0
    %p88 = por %p86, %p87
    %p89 = scmp.le.s32.totalorder 1, %s8
    %p90 = scmp.lt.s32.totalorder %s8, 3
    %p91 = pnand %p89, %p90
    %p92 = pneg %p91
    // Predicated region
    $region9: #{generator_liu_forward.4} parent=5 // pred_check
      _
    $region10: #{generator_liu_forward.4} parent=5 // pred_check_branch
      %94 = sbr.rel (%p91) target = $region12
    $region11: #{generator_liu_forward.4} parent=5 // pred_region
      %s95 = ssub.s32 %s8, 1
      // Predicated region
      $region13: #{generator_liu_forward.4} parent=11 // pred_check
        %p96 = pneg %p55
      $region14: #{generator_liu_forward.4} parent=11 // pred_check_branch
        %98 = sbr.rel (%p96) target = $region16
      $region15: #{generator_liu_forward.4} parent=11 // pred_region
        _
      $region16: #{generator_liu_forward.4} parent=11 // pred_fallthru
        _
    $region12: #{generator_liu_forward.4} parent=5 // pred_fallthru
      _
    %p99 = scmp.lt.s32.totalorder %s8, 2
    // Predicated region
    $region17: #{generator_liu_forward.4} parent=5 // pred_check
      %p100 = pneg %p99
    $region18: #{generator_liu_forward.4} parent=5 // pred_check_branch
      %102 = sbr.rel (%p100) target = $region20
    $region19: #{generator_liu_forward.4} parent=5 // pred_region
      // Predicated region
      $region21: #{generator_liu_forward.4} parent=19 // pred_check
        %p103 = pneg %p28
      $region22: #{generator_liu_forward.4} parent=19 // pred_check_branch
        %105 = sbr.rel (%p103) target = $region24
      $region23: #{generator_liu_forward.4} parent=19 // pred_region
        %p106 = scmp.lt.s32.totalorder %s8, 1
        %s107 = scalar_select %p106, %s8, 1
        %s108 = smul.addr %s107, 8
        %s109 = smul.addr %s108, 8
        %s110 = scalar_lea.vmem %s0, %s109
      $region24: #{generator_liu_forward.4} parent=19 // pred_fallthru
        _
    $region20: #{generator_liu_forward.4} parent=5 // pred_fallthru
      _
    %p111 = scmp.le.s32.totalorder 1, %s8
    %p112 = scmp.lt.s32.totalorder %s8, 3
    %p113 = pnand %p111, %p112
    %p114 = pneg %p113
    // Predicated region
    $region25: #{generator_liu_forward.4} parent=5 // pred_check
      _
    $region26: #{generator_liu_forward.4} parent=5 // pred_check_branch
      %116 = sbr.rel (%p113) target = $region28
    $region27: #{generator_liu_forward.4} parent=5 // pred_region
      %s117 = ssub.s32 %s8, 1
      %p118 = scmp.lt.s32.totalorder %s13, 1
      %s119 = scalar_select %p118, %s13, 1
      %s120 = smul.addr %s119, 8
      %s121 = smul.addr %s120, 8
      %s122 = scalar_lea.vmem %s0, %s121
      %p123 = pneg %p34
      %p124 = pneg %p31
      %p125 = pneg %p55
      %p126 = pneg %p52
      %p127 = pneg %p81
      %p128 = pneg %p78
      %p129 = scmp.lt.s32.totalorder %s13, 1
      %s130 = scalar_select %p129, %s13, 1
      %s131 = smul.addr %s130, 16
      %s132 = smul.addr %s131, 4
      %s133 = scalar_lea.vmem %s2, %s132
      %p134 = scmp.lt.s32.totalorder %s13, 1
      %s135 = scalar_select %p134, %s13, 1
      %s136 = smul.addr %s135, 8
      %s137 = smul.addr %s136, 8
      %s138 = scalar_lea.vmem %s0, %s137
      %p139 = scmp.lt.s32.totalorder %s13, 1
      %s140 = scalar_select %p139, %s13, 1
      %s141 = smul.addr %s140, 16
      %s142 = smul.addr %s141, 4
      %s143 = scalar_lea.vmem %s2, %s142
      %v145 = vlaneseq
      %v146 = vshrl.u32 %v145, 7
      %v147 = vadd.s32 %v146, 8
      %v148 = vlaneseq
      %v149 = vand.u32 %v148, 127
      %v150 = vmul.u32 %v149, 4
      %vm151 = vcmp.ge.s32.totalorder %v146, %v150
      %vm152 = vcmp.ge.s32.totalorder %v147, %v150
      %v153 = vadd.s32 %v149, 1
      %v154 = vmul.u32 %v153, 4
      %vm155 = vcmp.lt.s32.totalorder %v146, %v154
      %vm156 = vcmp.lt.s32.totalorder %v147, %v154
      %vm157 = vmand %vm151, %vm155
      %vm158 = vmand %vm152, %vm156
      %v159 = vsel %vm157, 1, 0
      %v160 = vsel %vm158, 1, 0
      %v161 = vcvt.s32.f32 %v159
      %v162 = vcvt.s32.f32 %v160
      %v163 = vmul.u32 %v146, 4
      %vm164 = vcmp.ge.s32.totalorder %v149, %v163
      %v165 = vadd.s32 %v146, 1
      %v166 = vmul.u32 %v165, 4
      %vm167 = vcmp.lt.s32.totalorder %v149, %v166
      %vm168 = vmand %vm164, %vm167
      %v169 = vsel %vm168, 1, 0
      %v170 = vcvt.s32.f32 %v169
      %v171 = vld [vmem:[%s138] sm:$0xff]
      %v172 = vld [vmem:[%s138 + $0x8] sm:$0xff]
      %v173 = vld [vmem:[%s138 + $0x10] sm:$0xff]
      %v174 = vld [vmem:[%s138 + $0x18] sm:$0xff]
      %v175 = vld [vmem:[%s138 + $0x20] sm:$0xff]
      %v176 = vld [vmem:[%s138 + $0x28] sm:$0xff]
      %v177 = vld [vmem:[%s138 + $0x30] sm:$0xff]
      %v178 = vld [vmem:[%s138 + $0x38] sm:$0xff]
      %v179 = vmul.f32 %v171, %v171
      %v180 = vmul.f32 %v172, %v172
      %v181 = vmul.f32 %v173, %v173
      %v182 = vmul.f32 %v174, %v174
      %v183 = vmul.f32 %v175, %v175
      %v184 = vmul.f32 %v176, %v176
      %v185 = vmul.f32 %v177, %v177
      %v186 = vmul.f32 %v178, %v178
      %vm187 = vcmask 130048
      %v189 = vsel %vm187, %v171, 0
      %v192 = vsel %vm187, %v172, 0
      %v195 = vsel %vm187, %v173, 0
      %v198 = vsel %vm187, %v174, 0
      %v201 = vsel %vm187, %v175, 0
      %v204 = vsel %vm187, %v176, 0
      %v207 = vsel %vm187, %v177, 0
      %v210 = vsel %vm187, %v178, 0
      %v213 = vsel %vm187, %v179, 0
      %v216 = vsel %vm187, %v180, 0
      %v219 = vsel %vm187, %v181, 0
      %v222 = vsel %vm187, %v182, 0
      %v225 = vsel %vm187, %v183, 0
      %v228 = vsel %vm187, %v184, 0
      %v231 = vsel %vm187, %v185, 0
      %v234 = vsel %vm187, %v186, 0
      %236 = vmatpush.msra.mxu0 0.0
      %237 = vmatpush.msra.mxu0 0.0
      %238 = vmatpush.msra.mxu0 0.0
      %239 = vmatpush.msra.mxu0 0.0
      %240 = vmatpush.msra.mxu0 0.0
      %241 = vmatpush.msra.mxu0 0.0
      %242 = vmatpush.msra.mxu0 0.0
      %243 = vmatpush.msra.mxu0 0.0
      %244 = vmatpush.msra.mxu0 0.0
      %245 = vmatpush.msra.mxu0 0.0
      %246 = vmatpush.msra.mxu0 0.0
      %247 = vmatpush.msra.mxu0 0.0
      %248 = vmatpush.msra.mxu0 0.0
      %249 = vmatpush.msra.mxu0 0.0
      %250 = vmatpush.msra.mxu0 %v162
      %251 = vmatpush.msra.mxu0 %v161
      %252 = vmatmul.f32.gmra.mxu0 %v189
      %v253 = vpop.f32.mrf.mxu0
      %v254 = vadd.f32 0.0, %v253
      %255 = vmatmul.f32.gmra.mxu0 %v192
      %v256 = vpop.f32.mrf.mxu0
      %v257 = vadd.f32 0.0, %v256
      %258 = vmatmul.f32.gmra.mxu0 %v195
      %v259 = vpop.f32.mrf.mxu0
      %v260 = vadd.f32 0.0, %v259
      %261 = vmatmul.f32.gmra.mxu0 %v198
      %v262 = vpop.f32.mrf.mxu0
      %v263 = vadd.f32 0.0, %v262
      %264 = vmatmul.f32.gmra.mxu0 %v201
      %v265 = vpop.f32.mrf.mxu0
      %v266 = vadd.f32 0.0, %v265
      %267 = vmatmul.f32.gmra.mxu0 %v204
      %v268 = vpop.f32.mrf.mxu0
      %v269 = vadd.f32 0.0, %v268
      %270 = vmatmul.f32.gmra.mxu0 %v207
      %v271 = vpop.f32.mrf.mxu0
      %v272 = vadd.f32 0.0, %v271
      %273 = vmatmul.f32.gmra.mxu0 %v210
      %v274 = vpop.f32.mrf.mxu0
      %v275 = vadd.f32 0.0, %v274
      %276 = vmatmul.f32.gmra.mxu0 %v213
      %v277 = vpop.f32.mrf.mxu0
      %v278 = vadd.f32 0.0, %v277
      %279 = vmatmul.f32.gmra.mxu0 %v216
      %v280 = vpop.f32.mrf.mxu0
      %v281 = vadd.f32 0.0, %v280
      %282 = vmatmul.f32.gmra.mxu0 %v219
      %v283 = vpop.f32.mrf.mxu0
      %v284 = vadd.f32 0.0, %v283
      %285 = vmatmul.f32.gmra.mxu0 %v222
      %v286 = vpop.f32.mrf.mxu0
      %v287 = vadd.f32 0.0, %v286
      %288 = vmatmul.f32.gmra.mxu0 %v225
      %v289 = vpop.f32.mrf.mxu0
      %v290 = vadd.f32 0.0, %v289
      %291 = vmatmul.f32.gmra.mxu0 %v228
      %v292 = vpop.f32.mrf.mxu0
      %v293 = vadd.f32 0.0, %v292
      %294 = vmatmul.f32.gmra.mxu0 %v231
      %v295 = vpop.f32.mrf.mxu0
      %v296 = vadd.f32 0.0, %v295
      %297 = vmatmul.f32.gmra.mxu0 %v234
      %v298 = vpop.f32.mrf.mxu0
      %v299 = vadd.f32 0.0, %v298
      %300 = vdwg.mxu0
      %v301 = vmul.f32 %v254, 0.25
      %v302 = vmul.f32 %v257, 0.25
      %v303 = vmul.f32 %v260, 0.25
      %v304 = vmul.f32 %v263, 0.25
      %v305 = vmul.f32 %v266, 0.25
      %v306 = vmul.f32 %v269, 0.25
      %v307 = vmul.f32 %v272, 0.25
      %v308 = vmul.f32 %v275, 0.25
      %v309 = vmul.f32 %v278, 0.25
      %v310 = vmul.f32 %v281, 0.25
      %v311 = vmul.f32 %v284, 0.25
      %v312 = vmul.f32 %v287, 0.25
      %v313 = vmul.f32 %v290, 0.25
      %v314 = vmul.f32 %v293, 0.25
      %v315 = vmul.f32 %v296, 0.25
      %v316 = vmul.f32 %v299, 0.25
      %v317 = vmul.f32 %v301, %v301
      %v318 = vmul.f32 %v302, %v302
      %v319 = vmul.f32 %v303, %v303
      %v320 = vmul.f32 %v304, %v304
      %v321 = vmul.f32 %v305, %v305
      %v322 = vmul.f32 %v306, %v306
      %v323 = vmul.f32 %v307, %v307
      %v324 = vmul.f32 %v308, %v308
      %v325 = vsub.f32 %v309, %v317
      %v326 = vsub.f32 %v310, %v318
      %v327 = vsub.f32 %v311, %v319
      %v328 = vsub.f32 %v312, %v320
      %v329 = vsub.f32 %v313, %v321
      %v330 = vsub.f32 %v314, %v322
      %v331 = vsub.f32 %v315, %v323
      %v332 = vsub.f32 %v316, %v324
      %v333 = vmax.f32 %v325, 0.0
      %v334 = vmax.f32 %v326, 0.0
      %v335 = vmax.f32 %v327, 0.0
      %v336 = vmax.f32 %v328, 0.0
      %v337 = vmax.f32 %v329, 0.0
      %v338 = vmax.f32 %v330, 0.0
      %v339 = vmax.f32 %v331, 0.0
      %v340 = vmax.f32 %v332, 0.0
      %v341 = vadd.f32 %v333, 1e-05
      %v342 = vadd.f32 %v334, 1e-05
      %v343 = vadd.f32 %v335, 1e-05
      %v344 = vadd.f32 %v336, 1e-05
      %v345 = vadd.f32 %v337, 1e-05
      %v346 = vadd.f32 %v338, 1e-05
      %v347 = vadd.f32 %v339, 1e-05
      %v348 = vadd.f32 %v340, 1e-05
      %v349 = vrsqrt.pop %v341
      %v350 = vmul.f32 %v349, %v341
      %v351 = vmul.f32 %v350, %v349
      %v352 = vmul.f32 0.5, %v351
      %v353 = vsub.f32 1.5, %v352
      %v354 = vmul.f32 %v349, %v353
      %vm355 = vweird.f32 %v341
      %vm356 = vweird.f32 %v349
      %vm357 = vmor %vm355, %vm356
      %v358 = vsel %vm357, %v349, %v354
      %v359 = vrsqrt.pop %v342
      %v360 = vmul.f32 %v359, %v342
      %v361 = vmul.f32 %v360, %v359
      %v362 = vmul.f32 0.5, %v361
      %v363 = vsub.f32 1.5, %v362
      %v364 = vmul.f32 %v359, %v363
      %vm365 = vweird.f32 %v342
      %vm366 = vweird.f32 %v359
      %vm367 = vmor %vm365, %vm366
      %v368 = vsel %vm367, %v359, %v364
      %v369 = vrsqrt.pop %v343
      %v370 = vmul.f32 %v369, %v343
      %v371 = vmul.f32 %v370, %v369
      %v372 = vmul.f32 0.5, %v371
      %v373 = vsub.f32 1.5, %v372
      %v374 = vmul.f32 %v369, %v373
      %vm375 = vweird.f32 %v343
      %vm376 = vweird.f32 %v369
      %vm377 = vmor %vm375, %vm376
      %v378 = vsel %vm377, %v369, %v374
      %v379 = vrsqrt.pop %v344
      %v380 = vmul.f32 %v379, %v344
      %v381 = vmul.f32 %v380, %v379
      %v382 = vmul.f32 0.5, %v381
      %v383 = vsub.f32 1.5, %v382
      %v384 = vmul.f32 %v379, %v383
      %vm385 = vweird.f32 %v344
      %vm386 = vweird.f32 %v379
      %vm387 = vmor %vm385, %vm386
      %v388 = vsel %vm387, %v379, %v384
      %v389 = vrsqrt.pop %v345
      %v390 = vmul.f32 %v389, %v345
      %v391 = vmul.f32 %v390, %v389
      %v392 = vmul.f32 0.5, %v391
      %v393 = vsub.f32 1.5, %v392
      %v394 = vmul.f32 %v389, %v393
      %vm395 = vweird.f32 %v345
      %vm396 = vweird.f32 %v389
      %vm397 = vmor %vm395, %vm396
      %v398 = vsel %vm397, %v389, %v394
      %v399 = vrsqrt.pop %v346
      %v400 = vmul.f32 %v399, %v346
      %v401 = vmul.f32 %v400, %v399
      %v402 = vmul.f32 0.5, %v401
      %v403 = vsub.f32 1.5, %v402
      %v404 = vmul.f32 %v399, %v403
      %vm405 = vweird.f32 %v346
      %vm406 = vweird.f32 %v399
      %vm407 = vmor %vm405, %vm406
      %v408 = vsel %vm407, %v399, %v404
      %v409 = vrsqrt.pop %v347
      %v410 = vmul.f32 %v409, %v347
      %v411 = vmul.f32 %v410, %v409
      %v412 = vmul.f32 0.5, %v411
      %v413 = vsub.f32 1.5, %v412
      %v414 = vmul.f32 %v409, %v413
      %vm415 = vweird.f32 %v347
      %vm416 = vweird.f32 %v409
      %vm417 = vmor %vm415, %vm416
      %v418 = vsel %vm417, %v409, %v414
      %v419 = vrsqrt.pop %v348
      %v420 = vmul.f32 %v419, %v348
      %v421 = vmul.f32 %v420, %v419
      %v422 = vmul.f32 0.5, %v421
      %v423 = vsub.f32 1.5, %v422
      %v424 = vmul.f32 %v419, %v423
      %vm425 = vweird.f32 %v348
      %vm426 = vweird.f32 %v419
      %vm427 = vmor %vm425, %vm426
      %v428 = vsel %vm427, %v419, %v424
      %v429 = vmul.f32 %v301, %v358
      %v430 = vmul.f32 %v302, %v368
      %v431 = vmul.f32 %v303, %v378
      %v432 = vmul.f32 %v304, %v388
      %v433 = vmul.f32 %v305, %v398
      %v434 = vmul.f32 %v306, %v408
      %v435 = vmul.f32 %v307, %v418
      %v436 = vmul.f32 %v308, %v428
      %vm437 = vcmask 31744
      %v439 = vsel %vm437, %v429, 0
      %v442 = vsel %vm437, %v430, 0
      %v445 = vsel %vm437, %v431, 0
      %v448 = vsel %vm437, %v432, 0
      %v451 = vsel %vm437, %v433, 0
      %v454 = vsel %vm437, %v434, 0
      %v457 = vsel %vm437, %v435, 0
      %v460 = vsel %vm437, %v436, 0
      %v463 = vsel %vm437, %v358, 0
      %v466 = vsel %vm437, %v368, 0
      %v469 = vsel %vm437, %v378, 0
      %v472 = vsel %vm437, %v388, 0
      %v475 = vsel %vm437, %v398, 0
      %v478 = vsel %vm437, %v408, 0
      %v481 = vsel %vm437, %v418, 0
      %v484 = vsel %vm437, %v428, 0
      %vm486 = vcmask 1043456
      %v488 = vsel %vm486, %v170, 0
      %490 = vmatpush.msra.mxu0 0.0
      %491 = vmatpush.msra.mxu0 0.0
      %492 = vmatpush.msra.mxu0 0.0
      %493 = vmatpush.msra.mxu0 0.0
      %494 = vmatpush.msra.mxu0 0.0
      %495 = vmatpush.msra.mxu0 0.0
      %496 = vmatpush.msra.mxu0 0.0
      %497 = vmatpush.msra.mxu0 0.0
      %498 = vmatpush.msra.mxu0 0.0
      %499 = vmatpush.msra.mxu0 0.0
      %500 = vmatpush.msra.mxu0 0.0
      %501 = vmatpush.msra.mxu0 0.0
      %502 = vmatpush.msra.mxu0 0.0
      %503 = vmatpush.msra.mxu0 0.0
      %504 = vmatpush.msra.mxu0 0.0
      %505 = vmatpush.msra.mxu0 %v488
      %506 = vmatmul.f32.gmra.mxu0 %v439
      %v507 = vpop.f32.mrf.mxu0
      %v508 = vadd.f32 0.0, %v507
      %509 = vmatmul.f32.gmra.mxu0 %v442
      %v510 = vpop.f32.mrf.mxu0
      %v511 = vadd.f32 0.0, %v510
      %512 = vmatmul.f32.gmra.mxu0 %v445
      %v513 = vpop.f32.mrf.mxu0
      %v514 = vadd.f32 0.0, %v513
      %515 = vmatmul.f32.gmra.mxu0 %v448
      %v516 = vpop.f32.mrf.mxu0
      %v517 = vadd.f32 0.0, %v516
      %518 = vmatmul.f32.gmra.mxu0 %v451
      %v519 = vpop.f32.mrf.mxu0
      %v520 = vadd.f32 0.0, %v519
      %521 = vmatmul.f32.gmra.mxu0 %v454
      %v522 = vpop.f32.mrf.mxu0
      %v523 = vadd.f32 0.0, %v522
      %524 = vmatmul.f32.gmra.mxu0 %v457
      %v525 = vpop.f32.mrf.mxu0
      %v526 = vadd.f32 0.0, %v525
      %527 = vmatmul.f32.gmra.mxu0 %v460
      %v528 = vpop.f32.mrf.mxu0
      %v529 = vadd.f32 0.0, %v528
      %530 = vmatmul.f32.gmra.mxu0 %v463
      %v531 = vpop.f32.mrf.mxu0
      %v532 = vadd.f32 0.0, %v531
      %533 = vmatmul.f32.gmra.mxu0 %v466
      %v534 = vpop.f32.mrf.mxu0
      %v535 = vadd.f32 0.0, %v534
      %536 = vmatmul.f32.gmra.mxu0 %v469
      %v537 = vpop.f32.mrf.mxu0
      %v538 = vadd.f32 0.0, %v537
      %539 = vmatmul.f32.gmra.mxu0 %v472
      %v540 = vpop.f32.mrf.mxu0
      %v541 = vadd.f32 0.0, %v540
      %542 = vmatmul.f32.gmra.mxu0 %v475
      %v543 = vpop.f32.mrf.mxu0
      %v544 = vadd.f32 0.0, %v543
      %545 = vmatmul.f32.gmra.mxu0 %v478
      %v546 = vpop.f32.mrf.mxu0
      %v547 = vadd.f32 0.0, %v546
      %548 = vmatmul.f32.gmra.mxu0 %v481
      %v549 = vpop.f32.mrf.mxu0
      %v550 = vadd.f32 0.0, %v549
      %551 = vmatmul.f32.gmra.mxu0 %v484
      %v552 = vpop.f32.mrf.mxu0
      %v553 = vadd.f32 0.0, %v552
      %554 = vdwg.mxu0
      %v555 = vmul.f32 %v171, %v532
      %v556 = vmul.f32 %v172, %v535
      %v557 = vmul.f32 %v173, %v538
      %v558 = vmul.f32 %v174, %v541
      %v559 = vmul.f32 %v175, %v544
      %v560 = vmul.f32 %v176, %v547
      %v561 = vmul.f32 %v177, %v550
      %v562 = vmul.f32 %v178, %v553
      %v563 = vsub.f32 %v555, %v508
      %v564 = vsub.f32 %v556, %v511
      %v565 = vsub.f32 %v557, %v514
      %v566 = vsub.f32 %v558, %v517
      %v567 = vsub.f32 %v559, %v520
      %v568 = vsub.f32 %v560, %v523
      %v569 = vsub.f32 %v561, %v526
      %v570 = vsub.f32 %v562, %v529
      %vm571 = vcmp.ge.f32.partialorder %v563, 0.0
      %vm572 = vcmp.ge.f32.partialorder %v564, 0.0
      %vm573 = vcmp.ge.f32.partialorder %v565, 0.0
      %vm574 = vcmp.ge.f32.partialorder %v566, 0.0
      %vm575 = vcmp.ge.f32.partialorder %v567, 0.0
      %vm576 = vcmp.ge.f32.partialorder %v568, 0.0
      %vm577 = vcmp.ge.f32.partialorder %v569, 0.0
      %vm578 = vcmp.ge.f32.partialorder %v570, 0.0
      %v579 = vmul.f32 %v563, 0.01
      %v580 = vmul.f32 %v564, 0.01
      %v581 = vmul.f32 %v565, 0.01
      %v582 = vmul.f32 %v566, 0.01
      %v583 = vmul.f32 %v567, 0.01
      %v584 = vmul.f32 %v568, 0.01
      %v585 = vmul.f32 %v569, 0.01
      %v586 = vmul.f32 %v570, 0.01
      %v587 = vsel %vm571, %v563, %v579
      %v588 = vsel %vm572, %v564, %v580
      %v589 = vsel %vm573, %v565, %v581
      %v590 = vsel %vm574, %v566, %v582
      %v591 = vsel %vm575, %v567, %v583
      %v592 = vsel %vm576, %v568, %v584
      %v593 = vsel %vm577, %v569, %v585
      %v594 = vsel %vm578, %v570, %v586
      %v595 = vld [vmem:[%s1] sm:$0xf]
      %v596 = vld [vmem:[%s1 + $0x4] sm:$0xf]
      %v597 = vld [vmem:[%s1 + $0x8] sm:$0xf]
      %v598 = vld [vmem:[%s1 + $0xc] sm:$0xf]
      %v599 = vld [vmem:[%s1 + $0x10] sm:$0xf]
      %v600 = vld [vmem:[%s1 + $0x14] sm:$0xf]
      %v601 = vld [vmem:[%s1 + $0x18] sm:$0xf]
      %v602 = vld [vmem:[%s1 + $0x1c] sm:$0xf]
      %v603 = vld [vmem:[%s1 + $0x20] sm:$0xf]
      %v604 = vld [vmem:[%s1 + $0x24] sm:$0xf]
      %v605 = vld [vmem:[%s1 + $0x28] sm:$0xf]
      %v606 = vld [vmem:[%s1 + $0x2c] sm:$0xf]
      %v607 = vld [vmem:[%s1 + $0x30] sm:$0xf]
      %v608 = vld [vmem:[%s1 + $0x34] sm:$0xf]
      %v609 = vld [vmem:[%s1 + $0x38] sm:$0xf]
      %v610 = vld [vmem:[%s1 + $0x3c] sm:$0xf]
      %v611 = vpack.c.bf16 %v588, %v587
      %v612 = vpack.c.bf16 %v590, %v589
      %v613 = vpack.c.bf16 %v592, %v591
      %v614 = vpack.c.bf16 %v594, %v593
      %v631 = vunpack.c.l.b16 %v595
      %v632 = vunpack.c.l.b16 %v596
      %v633 = vunpack.c.l.b16 %v597
      %v634 = vunpack.c.l.b16 %v598
      %v635 = vunpack.c.l.b16 %v599
      %v636 = vunpack.c.l.b16 %v600
      %v637 = vunpack.c.l.b16 %v601
      %v638 = vunpack.c.l.b16 %v602
      %v639 = vunpack.c.l.b16 %v603
      %v640 = vunpack.c.l.b16 %v604
      %v641 = vunpack.c.l.b16 %v605
      %v642 = vunpack.c.l.b16 %v606
      %v643 = vunpack.c.l.b16 %v607
      %v644 = vunpack.c.l.b16 %v608
      %v645 = vunpack.c.l.b16 %v609
      %v646 = vunpack.c.l.b16 %v610
      %v647 = vpack.c.b16 %v632, %v631
      %v648 = vpack.c.b16 %v634, %v633
      %v649 = vpack.c.b16 %v636, %v635
      %v650 = vpack.c.b16 %v638, %v637
      %v651 = vpack.c.b16 %v640, %v639
      %v652 = vpack.c.b16 %v642, %v641
      %v653 = vpack.c.b16 %v644, %v643
      %v654 = vpack.c.b16 %v646, %v645
      %vm655 = vcmask 523264
      %v657 = vsel %vm655, %v647, 0
      %v660 = vsel %vm655, %v648, 0
      %v663 = vsel %vm655, %v649, 0
      %v666 = vsel %vm655, %v650, 0
      %v669 = vsel %vm655, %v651, 0
      %v672 = vsel %vm655, %v652, 0
      %v675 = vsel %vm655, %v653, 0
      %v678 = vsel %vm655, %v654, 0
      %680 = vmatpush.bf16.msra.mxu0 0
      %681 = vmatpush.bf16.msra.mxu0 0
      %682 = vmatpush.bf16.msra.mxu0 0
      %683 = vmatpush.bf16.msra.mxu0 0
      %684 = vmatpush.bf16.msra.mxu0 %v614
      %685 = vmatpush.bf16.msra.mxu0 %v613
      %686 = vmatpush.bf16.msra.mxu0 %v612
      %687 = vmatpush.bf16.msra.mxu0 %v611
      %688 = vmatmul.bf16.gmra.mxu0 %v657
      %v689 = vpop.f32.mrf.mxu0
      %v690 = vadd.f32 0.0, %v689
      %v691 = vpop.f32.mrf.mxu0
      %v692 = vadd.f32 0.0, %v691
      %693 = vmatmul.bf16.gmra.mxu0 %v660
      %v694 = vpop.f32.mrf.mxu0
      %v695 = vadd.f32 0.0, %v694
      %v696 = vpop.f32.mrf.mxu0
      %v697 = vadd.f32 0.0, %v696
      %698 = vmatmul.bf16.gmra.mxu0 %v663
      %v699 = vpop.f32.mrf.mxu0
      %v700 = vadd.f32 0.0, %v699
      %v701 = vpop.f32.mrf.mxu0
      %v702 = vadd.f32 0.0, %v701
      %703 = vmatmul.bf16.gmra.mxu0 %v666
      %v704 = vpop.f32.mrf.mxu0
      %v705 = vadd.f32 0.0, %v704
      %v706 = vpop.f32.mrf.mxu0
      %v707 = vadd.f32 0.0, %v706
      %708 = vmatmul.bf16.gmra.mxu0 %v669
      %v709 = vpop.f32.mrf.mxu0
      %v710 = vadd.f32 0.0, %v709
      %v711 = vpop.f32.mrf.mxu0
      %v712 = vadd.f32 0.0, %v711
      %713 = vmatmul.bf16.gmra.mxu0 %v672
      %v714 = vpop.f32.mrf.mxu0
      %v715 = vadd.f32 0.0, %v714
      %v716 = vpop.f32.mrf.mxu0
      %v717 = vadd.f32 0.0, %v716
      %718 = vmatmul.bf16.gmra.mxu0 %v675
      %v719 = vpop.f32.mrf.mxu0
      %v720 = vadd.f32 0.0, %v719
      %v721 = vpop.f32.mrf.mxu0
      %v722 = vadd.f32 0.0, %v721
      %723 = vmatmul.bf16.gmra.mxu0 %v678
      %v724 = vpop.f32.mrf.mxu0
      %v725 = vadd.f32 0.0, %v724
      %v726 = vpop.f32.mrf.mxu0
      %v727 = vadd.f32 0.0, %v726
      %728 = vdwg.mxu0
      %v729 = vmul.f32 %v690, %v690
      %v730 = vmul.f32 %v692, %v692
      %v731 = vmul.f32 %v695, %v695
      %v732 = vmul.f32 %v697, %v697
      %v733 = vmul.f32 %v700, %v700
      %v734 = vmul.f32 %v702, %v702
      %v735 = vmul.f32 %v705, %v705
      %v736 = vmul.f32 %v707, %v707
      %v737 = vmul.f32 %v710, %v710
      %v738 = vmul.f32 %v712, %v712
      %v739 = vmul.f32 %v715, %v715
      %v740 = vmul.f32 %v717, %v717
      %v741 = vmul.f32 %v720, %v720
      %v742 = vmul.f32 %v722, %v722
      %v743 = vmul.f32 %v725, %v725
      %v744 = vmul.f32 %v727, %v727
      %v746 = vsel %vm187, %v690, 0
      %v749 = vsel %vm187, %v692, 0
      %v752 = vsel %vm187, %v695, 0
      %v755 = vsel %vm187, %v697, 0
      %v758 = vsel %vm187, %v700, 0
      %v761 = vsel %vm187, %v702, 0
      %v764 = vsel %vm187, %v705, 0
      %v767 = vsel %vm187, %v707, 0
      %v770 = vsel %vm187, %v710, 0
      %v773 = vsel %vm187, %v712, 0
      %v776 = vsel %vm187, %v715, 0
      %v779 = vsel %vm187, %v717, 0
      %v782 = vsel %vm187, %v720, 0
      %v785 = vsel %vm187, %v722, 0
      %v788 = vsel %vm187, %v725, 0
      %v791 = vsel %vm187, %v727, 0
      %v794 = vsel %vm187, %v729, 0
      %v797 = vsel %vm187, %v730, 0
      %v800 = vsel %vm187, %v731, 0
      %v803 = vsel %vm187, %v732, 0
      %v806 = vsel %vm187, %v733, 0
      %v809 = vsel %vm187, %v734, 0
      %v812 = vsel %vm187, %v735, 0
      %v815 = vsel %vm187, %v736, 0
      %v818 = vsel %vm187, %v737, 0
      %v821 = vsel %vm187, %v738, 0
      %v824 = vsel %vm187, %v739, 0
      %v827 = vsel %vm187, %v740, 0
      %v830 = vsel %vm187, %v741, 0
      %v833 = vsel %vm187, %v742, 0
      %v836 = vsel %vm187, %v743, 0
      %v839 = vsel %vm187, %v744, 0
      %841 = vmatpush.msra.mxu0 0.0
      %842 = vmatpush.msra.mxu0 0.0
      %843 = vmatpush.msra.mxu0 0.0
      %844 = vmatpush.msra.mxu0 0.0
      %845 = vmatpush.msra.mxu0 0.0
      %846 = vmatpush.msra.mxu0 0.0
      %847 = vmatpush.msra.mxu0 0.0
      %848 = vmatpush.msra.mxu0 0.0
      %849 = vmatpush.msra.mxu0 0.0
      %850 = vmatpush.msra.mxu0 0.0
      %851 = vmatpush.msra.mxu0 0.0
      %852 = vmatpush.msra.mxu0 0.0
      %853 = vmatpush.msra.mxu0 0.0
      %854 = vmatpush.msra.mxu0 0.0
      %855 = vmatpush.msra.mxu0 %v162
      %856 = vmatpush.msra.mxu0 %v161
      %857 = vmatmul.f32.gmra.mxu0 %v746
      %v858 = vpop.f32.mrf.mxu0
      %v859 = vadd.f32 0.0, %v858
      %860 = vmatmul.f32.gmra.mxu0 %v749
      %v861 = vpop.f32.mrf.mxu0
      %v862 = vadd.f32 0.0, %v861
      %863 = vmatmul.f32.gmra.mxu0 %v752
      %v864 = vpop.f32.mrf.mxu0
      %v865 = vadd.f32 0.0, %v864
      %866 = vmatmul.f32.gmra.mxu0 %v755
      %v867 = vpop.f32.mrf.mxu0
      %v868 = vadd.f32 0.0, %v867
      %869 = vmatmul.f32.gmra.mxu0 %v758
      %v870 = vpop.f32.mrf.mxu0
      %v871 = vadd.f32 0.0, %v870
      %872 = vmatmul.f32.gmra.mxu0 %v761
      %v873 = vpop.f32.mrf.mxu0
      %v874 = vadd.f32 0.0, %v873
      %875 = vmatmul.f32.gmra.mxu0 %v764
      %v876 = vpop.f32.mrf.mxu0
      %v877 = vadd.f32 0.0, %v876
      %878 = vmatmul.f32.gmra.mxu0 %v767
      %v879 = vpop.f32.mrf.mxu0
      %v880 = vadd.f32 0.0, %v879
      %881 = vmatmul.f32.gmra.mxu0 %v770
      %v882 = vpop.f32.mrf.mxu0
      %v883 = vadd.f32 0.0, %v882
      %884 = vmatmul.f32.gmra.mxu0 %v773
      %v885 = vpop.f32.mrf.mxu0
      %v886 = vadd.f32 0.0, %v885
      %887 = vmatmul.f32.gmra.mxu0 %v776
      %v888 = vpop.f32.mrf.mxu0
      %v889 = vadd.f32 0.0, %v888
      %890 = vmatmul.f32.gmra.mxu0 %v779
      %v891 = vpop.f32.mrf.mxu0
      %v892 = vadd.f32 0.0, %v891
      %893 = vmatmul.f32.gmra.mxu0 %v782
      %v894 = vpop.f32.mrf.mxu0
      %v895 = vadd.f32 0.0, %v894
      %896 = vmatmul.f32.gmra.mxu0 %v785
      %v897 = vpop.f32.mrf.mxu0
      %v898 = vadd.f32 0.0, %v897
      %899 = vmatmul.f32.gmra.mxu0 %v788
      %v900 = vpop.f32.mrf.mxu0
      %v901 = vadd.f32 0.0, %v900
      %902 = vmatmul.f32.gmra.mxu0 %v791
      %v903 = vpop.f32.mrf.mxu0
      %v904 = vadd.f32 0.0, %v903
      %905 = vmatmul.f32.gmra.mxu0 %v794
      %v906 = vpop.f32.mrf.mxu0
      %v907 = vadd.f32 0.0, %v906
      %908 = vmatmul.f32.gmra.mxu0 %v797
      %v909 = vpop.f32.mrf.mxu0
      %v910 = vadd.f32 0.0, %v909
      %911 = vmatmul.f32.gmra.mxu0 %v800
      %v912 = vpop.f32.mrf.mxu0
      %v913 = vadd.f32 0.0, %v912
      %914 = vmatmul.f32.gmra.mxu0 %v803
      %v915 = vpop.f32.mrf.mxu0
      %v916 = vadd.f32 0.0, %v915
      %917 = vmatmul.f32.gmra.mxu0 %v806
      %v918 = vpop.f32.mrf.mxu0
      %v919 = vadd.f32 0.0, %v918
      %920 = vmatmul.f32.gmra.mxu0 %v809
      %v921 = vpop.f32.mrf.mxu0
      %v922 = vadd.f32 0.0, %v921
      %923 = vmatmul.f32.gmra.mxu0 %v812
      %v924 = vpop.f32.mrf.mxu0
      %v925 = vadd.f32 0.0, %v924
      %926 = vmatmul.f32.gmra.mxu0 %v815
      %v927 = vpop.f32.mrf.mxu0
      %v928 = vadd.f32 0.0, %v927
      %929 = vmatmul.f32.gmra.mxu0 %v818
      %v930 = vpop.f32.mrf.mxu0
      %v931 = vadd.f32 0.0, %v930
      %932 = vmatmul.f32.gmra.mxu0 %v821
      %v933 = vpop.f32.mrf.mxu0
      %v934 = vadd.f32 0.0, %v933
      %935 = vmatmul.f32.gmra.mxu0 %v824
      %v936 = vpop.f32.mrf.mxu0
      %v937 = vadd.f32 0.0, %v936
      %938 = vmatmul.f32.gmra.mxu0 %v827
      %v939 = vpop.f32.mrf.mxu0
      %v940 = vadd.f32 0.0, %v939
      %941 = vmatmul.f32.gmra.mxu0 %v830
      %v942 = vpop.f32.mrf.mxu0
      %v943 = vadd.f32 0.0, %v942
      %944 = vmatmul.f32.gmra.mxu0 %v833
      %v945 = vpop.f32.mrf.mxu0
      %v946 = vadd.f32 0.0, %v945
      %947 = vmatmul.f32.gmra.mxu0 %v836
      %v948 = vpop.f32.mrf.mxu0
      %v949 = vadd.f32 0.0, %v948
      %950 = vmatmul.f32.gmra.mxu0 %v839
      %v951 = vpop.f32.mrf.mxu0
      %v952 = vadd.f32 0.0, %v951
      %953 = vdwg.mxu0
      %v954 = vadd.f32 %v859, 0.0
      %v955 = vadd.f32 %v862, 0.0
      %v956 = vadd.f32 %v865, 0.0
      %v957 = vadd.f32 %v868, 0.0
      %v958 = vadd.f32 %v954, %v871
      %v959 = vadd.f32 %v955, %v874
      %v960 = vadd.f32 %v956, %v877
      %v961 = vadd.f32 %v957, %v880
      %v962 = vadd.f32 %v958, %v883
      %v963 = vadd.f32 %v959, %v886
      %v964 = vadd.f32 %v960, %v889
      %v965 = vadd.f32 %v961, %v892
      %v966 = vadd.f32 %v962, %v895
      %v967 = vadd.f32 %v963, %v898
      %v968 = vadd.f32 %v964, %v901
      %v969 = vadd.f32 %v965, %v904
      %v970 = vadd.f32 %v907, 0.0
      %v971 = vadd.f32 %v910, 0.0
      %v972 = vadd.f32 %v913, 0.0
      %v973 = vadd.f32 %v916, 0.0
      %v974 = vadd.f32 %v970, %v919
      %v975 = vadd.f32 %v971, %v922
      %v976 = vadd.f32 %v972, %v925
      %v977 = vadd.f32 %v973, %v928
      %v978 = vadd.f32 %v974, %v931
      %v979 = vadd.f32 %v975, %v934
      %v980 = vadd.f32 %v976, %v937
      %v981 = vadd.f32 %v977, %v940
      %v982 = vadd.f32 %v978, %v943
      %v983 = vadd.f32 %v979, %v946
      %v984 = vadd.f32 %v980, %v949
      %v985 = vadd.f32 %v981, %v952
      %v986 = vmul.f32 %v966, 0.0625
      %v987 = vmul.f32 %v967, 0.0625
      %v988 = vmul.f32 %v968, 0.0625
      %v989 = vmul.f32 %v969, 0.0625
      %v990 = vmul.f32 %v982, 0.0625
      %v991 = vmul.f32 %v983, 0.0625
      %v992 = vmul.f32 %v984, 0.0625
      %v993 = vmul.f32 %v985, 0.0625
      %v994 = vmul.f32 %v986, %v986
      %v995 = vmul.f32 %v987, %v987
      %v996 = vmul.f32 %v988, %v988
      %v997 = vmul.f32 %v989, %v989
      %v998 = vsub.f32 %v990, %v994
      %v999 = vsub.f32 %v991, %v995
      %v1000 = vsub.f32 %v992, %v996
      %v1001 = vsub.f32 %v993, %v997
      %v1002 = vmax.f32 %v998, 0.0
      %v1003 = vmax.f32 %v999, 0.0
      %v1004 = vmax.f32 %v1000, 0.0
      %v1005 = vmax.f32 %v1001, 0.0
      %v1006 = vadd.f32 %v1002, 1e-05
      %v1007 = vadd.f32 %v1003, 1e-05
      %v1008 = vadd.f32 %v1004, 1e-05
      %v1009 = vadd.f32 %v1005, 1e-05
      %v1010 = vrsqrt.pop %v1006
      %v1011 = vmul.f32 %v1010, %v1006
      %v1012 = vmul.f32 %v1011, %v1010
      %v1013 = vmul.f32 0.5, %v1012
      %v1014 = vsub.f32 1.5, %v1013
      %v1015 = vmul.f32 %v1010, %v1014
      %vm1016 = vweird.f32 %v1006
      %vm1017 = vweird.f32 %v1010
      %vm1018 = vmor %vm1016, %vm1017
      %v1019 = vsel %vm1018, %v1010, %v1015
      %v1020 = vrsqrt.pop %v1007
      %v1021 = vmul.f32 %v1020, %v1007
      %v1022 = vmul.f32 %v1021, %v1020
      %v1023 = vmul.f32 0.5, %v1022
      %v1024 = vsub.f32 1.5, %v1023
      %v1025 = vmul.f32 %v1020, %v1024
      %vm1026 = vweird.f32 %v1007
      %vm1027 = vweird.f32 %v1020
      %vm1028 = vmor %vm1026, %vm1027
      %v1029 = vsel %vm1028, %v1020, %v1025
      %v1030 = vrsqrt.pop %v1008
      %v1031 = vmul.f32 %v1030, %v1008
      %v1032 = vmul.f32 %v1031, %v1030
      %v1033 = vmul.f32 0.5, %v1032
      %v1034 = vsub.f32 1.5, %v1033
      %v1035 = vmul.f32 %v1030, %v1034
      %vm1036 = vweird.f32 %v1008
      %vm1037 = vweird.f32 %v1030
      %vm1038 = vmor %vm1036, %vm1037
      %v1039 = vsel %vm1038, %v1030, %v1035
      %v1040 = vrsqrt.pop %v1009
      %v1041 = vmul.f32 %v1040, %v1009
      %v1042 = vmul.f32 %v1041, %v1040
      %v1043 = vmul.f32 0.5, %v1042
      %v1044 = vsub.f32 1.5, %v1043
      %v1045 = vmul.f32 %v1040, %v1044
      %vm1046 = vweird.f32 %v1009
      %vm1047 = vweird.f32 %v1040
      %vm1048 = vmor %vm1046, %vm1047
      %v1049 = vsel %vm1048, %v1040, %v1045
      %v1050 = vmul.f32 %v986, %v1019
      %v1051 = vmul.f32 %v987, %v1029
      %v1052 = vmul.f32 %v988, %v1039
      %v1053 = vmul.f32 %v989, %v1049
      %v1055 = vsel %vm437, %v1050, 0
      %v1058 = vsel %vm437, %v1051, 0
      %v1061 = vsel %vm437, %v1052, 0
      %v1064 = vsel %vm437, %v1053, 0
      %v1067 = vsel %vm437, %v1019, 0
      %v1070 = vsel %vm437, %v1029, 0
      %v1073 = vsel %vm437, %v1039, 0
      %v1076 = vsel %vm437, %v1049, 0
      %1078 = vmatpush.msra.mxu0 0.0
      %1079 = vmatpush.msra.mxu0 0.0
      %1080 = vmatpush.msra.mxu0 0.0
      %1081 = vmatpush.msra.mxu0 0.0
      %1082 = vmatpush.msra.mxu0 0.0
      %1083 = vmatpush.msra.mxu0 0.0
      %1084 = vmatpush.msra.mxu0 0.0
      %1085 = vmatpush.msra.mxu0 0.0
      %1086 = vmatpush.msra.mxu0 0.0
      %1087 = vmatpush.msra.mxu0 0.0
      %1088 = vmatpush.msra.mxu0 0.0
      %1089 = vmatpush.msra.mxu0 0.0
      %1090 = vmatpush.msra.mxu0 0.0
      %1091 = vmatpush.msra.mxu0 0.0
      %1092 = vmatpush.msra.mxu0 0.0
      %1093 = vmatpush.msra.mxu0 %v488
      %1094 = vmatmul.f32.gmra.mxu0 %v1055
      %v1095 = vpop.f32.mrf.mxu0
      %v1096 = vadd.f32 0.0, %v1095
      %1097 = vmatmul.f32.gmra.mxu0 %v1058
      %v1098 = vpop.f32.mrf.mxu0
      %v1099 = vadd.f32 0.0, %v1098
      %1100 = vmatmul.f32.gmra.mxu0 %v1061
      %v1101 = vpop.f32.mrf.mxu0
      %v1102 = vadd.f32 0.0, %v1101
      %1103 = vmatmul.f32.gmra.mxu0 %v1064
      %v1104 = vpop.f32.mrf.mxu0
      %v1105 = vadd.f32 0.0, %v1104
      %1106 = vmatmul.f32.gmra.mxu0 %v1067
      %v1107 = vpop.f32.mrf.mxu0
      %v1108 = vadd.f32 0.0, %v1107
      %1109 = vmatmul.f32.gmra.mxu0 %v1070
      %v1110 = vpop.f32.mrf.mxu0
      %v1111 = vadd.f32 0.0, %v1110
      %1112 = vmatmul.f32.gmra.mxu0 %v1073
      %v1113 = vpop.f32.mrf.mxu0
      %v1114 = vadd.f32 0.0, %v1113
      %1115 = vmatmul.f32.gmra.mxu0 %v1076
      %v1116 = vpop.f32.mrf.mxu0
      %v1117 = vadd.f32 0.0, %v1116
      %1118 = vdwg.mxu0
      %v1119 = vmul.f32 %v690, %v1108
      %v1120 = vmul.f32 %v692, %v1111
      %v1121 = vmul.f32 %v695, %v1114
      %v1122 = vmul.f32 %v697, %v1117
      %v1123 = vmul.f32 %v700, %v1108
      %v1124 = vmul.f32 %v702, %v1111
      %v1125 = vmul.f32 %v705, %v1114
      %v1126 = vmul.f32 %v707, %v1117
      %v1127 = vmul.f32 %v710, %v1108
      %v1128 = vmul.f32 %v712, %v1111
      %v1129 = vmul.f32 %v715, %v1114
      %v1130 = vmul.f32 %v717, %v1117
      %v1131 = vmul.f32 %v720, %v1108
      %v1132 = vmul.f32 %v722, %v1111
      %v1133 = vmul.f32 %v725, %v1114
      %v1134 = vmul.f32 %v727, %v1117
      %v1135 = vsub.f32 %v1119, %v1096
      %v1136 = vsub.f32 %v1120, %v1099
      %v1137 = vsub.f32 %v1121, %v1102
      %v1138 = vsub.f32 %v1122, %v1105
      %v1139 = vsub.f32 %v1123, %v1096
      %v1140 = vsub.f32 %v1124, %v1099
      %v1141 = vsub.f32 %v1125, %v1102
      %v1142 = vsub.f32 %v1126, %v1105
      %v1143 = vsub.f32 %v1127, %v1096
      %v1144 = vsub.f32 %v1128, %v1099
      %v1145 = vsub.f32 %v1129, %v1102
      %v1146 = vsub.f32 %v1130, %v1105
      %v1147 = vsub.f32 %v1131, %v1096
      %v1148 = vsub.f32 %v1132, %v1099
      %v1149 = vsub.f32 %v1133, %v1102
      %v1150 = vsub.f32 %v1134, %v1105
      %vm1151 = vcmp.ge.f32.partialorder %v1135, 0.0
      %vm1152 = vcmp.ge.f32.partialorder %v1136, 0.0
      %vm1153 = vcmp.ge.f32.partialorder %v1137, 0.0
      %vm1154 = vcmp.ge.f32.partialorder %v1138, 0.0
      %vm1155 = vcmp.ge.f32.partialorder %v1139, 0.0
      %vm1156 = vcmp.ge.f32.partialorder %v1140, 0.0
      %vm1157 = vcmp.ge.f32.partialorder %v1141, 0.0
      %vm1158 = vcmp.ge.f32.partialorder %v1142, 0.0
      %vm1159 = vcmp.ge.f32.partialorder %v1143, 0.0
      %vm1160 = vcmp.ge.f32.partialorder %v1144, 0.0
      %vm1161 = vcmp.ge.f32.partialorder %v1145, 0.0
      %vm1162 = vcmp.ge.f32.partialorder %v1146, 0.0
      %vm1163 = vcmp.ge.f32.partialorder %v1147, 0.0
      %vm1164 = vcmp.ge.f32.partialorder %v1148, 0.0
      %vm1165 = vcmp.ge.f32.partialorder %v1149, 0.0
      %vm1166 = vcmp.ge.f32.partialorder %v1150, 0.0
      %v1167 = vmul.f32 %v1135, 0.01
      %v1168 = vmul.f32 %v1136, 0.01
      %v1169 = vmul.f32 %v1137, 0.01
      %v1170 = vmul.f32 %v1138, 0.01
      %v1171 = vmul.f32 %v1139, 0.01
      %v1172 = vmul.f32 %v1140, 0.01
      %v1173 = vmul.f32 %v1141, 0.01
      %v1174 = vmul.f32 %v1142, 0.01
      %v1175 = vmul.f32 %v1143, 0.01
      %v1176 = vmul.f32 %v1144, 0.01
      %v1177 = vmul.f32 %v1145, 0.01
      %v1178 = vmul.f32 %v1146, 0.01
      %v1179 = vmul.f32 %v1147, 0.01
      %v1180 = vmul.f32 %v1148, 0.01
      %v1181 = vmul.f32 %v1149, 0.01
      %v1182 = vmul.f32 %v1150, 0.01
      %v1183 = vsel %vm1151, %v1135, %v1167
      %v1184 = vsel %vm1152, %v1136, %v1168
      %v1185 = vsel %vm1153, %v1137, %v1169
      %v1186 = vsel %vm1154, %v1138, %v1170
      %v1187 = vsel %vm1155, %v1139, %v1171
      %v1188 = vsel %vm1156, %v1140, %v1172
      %v1189 = vsel %vm1157, %v1141, %v1173
      %v1190 = vsel %vm1158, %v1142, %v1174
      %v1191 = vsel %vm1159, %v1143, %v1175
      %v1192 = vsel %vm1160, %v1144, %v1176
      %v1193 = vsel %vm1161, %v1145, %v1177
      %v1194 = vsel %vm1162, %v1146, %v1178
      %v1195 = vsel %vm1163, %v1147, %v1179
      %v1196 = vsel %vm1164, %v1148, %v1180
      %v1197 = vsel %vm1165, %v1149, %v1181
      %v1198 = vsel %vm1166, %v1150, %v1182
      %v1199 = vpack.c.bf16 %v1183, %v1183
      %v1200 = vpack.c.bf16 %v1184, %v1184
      %v1201 = vpack.c.bf16 %v1185, %v1185
      %v1202 = vpack.c.bf16 %v1186, %v1186
      %v1203 = vpack.c.bf16 %v1187, %v1187
      %v1204 = vpack.c.bf16 %v1188, %v1188
      %v1205 = vpack.c.bf16 %v1189, %v1189
      %v1206 = vpack.c.bf16 %v1190, %v1190
      %v1207 = vpack.c.bf16 %v1191, %v1191
      %v1208 = vpack.c.bf16 %v1192, %v1192
      %v1209 = vpack.c.bf16 %v1193, %v1193
      %v1210 = vpack.c.bf16 %v1194, %v1194
      %v1211 = vpack.c.bf16 %v1195, %v1195
      %v1212 = vpack.c.bf16 %v1196, %v1196
      %v1213 = vpack.c.bf16 %v1197, %v1197
      %v1214 = vpack.c.bf16 %v1198, %v1198
      %vm1215 = vcmask 125952
      %1216 = vst.msk [vmem:[%s143] sm:$0xf] %vm1215, %v1199
      %1217 = vst.msk [vmem:[%s143 + $0x4] sm:$0xf] %vm1215, %v1200
      %1218 = vst.msk [vmem:[%s143 + $0x8] sm:$0xf] %vm1215, %v1201
      %1219 = vst.msk [vmem:[%s143 + $0xc] sm:$0xf] %vm1215, %v1202
      %1220 = vst.msk [vmem:[%s143 + $0x10] sm:$0xf] %vm1215, %v1203
      %1221 = vst.msk [vmem:[%s143 + $0x14] sm:$0xf] %vm1215, %v1204
      %1222 = vst.msk [vmem:[%s143 + $0x18] sm:$0xf] %vm1215, %v1205
      %1223 = vst.msk [vmem:[%s143 + $0x1c] sm:$0xf] %vm1215, %v1206
      %1224 = vst.msk [vmem:[%s143 + $0x20] sm:$0xf] %vm1215, %v1207
      %1225 = vst.msk [vmem:[%s143 + $0x24] sm:$0xf] %vm1215, %v1208
      %1226 = vst.msk [vmem:[%s143 + $0x28] sm:$0xf] %vm1215, %v1209
      %1227 = vst.msk [vmem:[%s143 + $0x2c] sm:$0xf] %vm1215, %v1210
      %1228 = vst.msk [vmem:[%s143 + $0x30] sm:$0xf] %vm1215, %v1211
      %1229 = vst.msk [vmem:[%s143 + $0x34] sm:$0xf] %vm1215, %v1212
      %1230 = vst.msk [vmem:[%s143 + $0x38] sm:$0xf] %vm1215, %v1213
      %1231 = vst.msk [vmem:[%s143 + $0x3c] sm:$0xf] %vm1215, %v1214
      %p1232 = scmp.lt.s32.totalorder %s13, 1
      %s1233 = scalar_select %p1232, %s13, 1
      %s1234 = smul.addr %s1233, 16
      %s1235 = smul.addr %s1234, 4
      %s1236 = scalar_lea.vmem %s2, %s1235
      // Predicated region
      $region29: #{generator_liu_forward.4} parent=27 // pred_check
        %p1237 = pneg %p78
      $region30: #{generator_liu_forward.4} parent=27 // pred_check_branch
        %1239 = sbr.rel (%p1237) target = $region32
      $region31: #{generator_liu_forward.4} parent=27 // pred_region
        _
      $region32: #{generator_liu_forward.4} parent=27 // pred_fallthru
        _
    $region28: #{generator_liu_forward.4} parent=5 // pred_fallthru
      _
    %p1240 = scmp.le.s32.totalorder 2, %s8
    // Predicated region
    $region33: #{generator_liu_forward.4} parent=5 // pred_check
      %p1241 = pneg %p1240
    $region34: #{generator_liu_forward.4} parent=5 // pred_check_branch
      %1243 = sbr.rel (%p1241) target = $region36
    $region35: #{generator_liu_forward.4} parent=5 // pred_region
      %s1244 = ssub.s32 %s8, 2
      // Predicated region
      $region37: #{generator_liu_forward.4} parent=35 // pred_check
        %p1245 = pneg %p84
      $region38: #{generator_liu_forward.4} parent=35 // pred_check_branch
        %1247 = sbr.rel (%p1245) target = $region40
      $region39: #{generator_liu_forward.4} parent=35 // pred_region
        %p1248 = scmp.lt.s32.totalorder %s14, 1
        %s1249 = scalar_select %p1248, %s14, 1
        %s1250 = smul.addr %s1249, 16
        %s1251 = smul.addr %s1250, 4
        %s1252 = scalar_lea.vmem %s2, %s1251
      $region40: #{generator_liu_forward.4} parent=35 // pred_fallthru
        _
    $region36: #{generator_liu_forward.4} parent=5 // pred_fallthru
      _
  $region6: #{generator_liu_forward.4} parent=0 // loop_footer
    %s12 = sadd.s32 1, %s8
  $region7: #{generator_liu_forward.4} parent=0 // loop_footer_branch
    %7 = sbr.rel target = $region3
  $region8: #{generator_liu_forward.4} parent=0 // loop_exit
    _

// kernel: generator_liu_forward.5
$region0: #{generator_liu_forward.5}
  #allocation0 [shape = 'u32[]', space=smem, size = 0x4, offset = 0x4, fixed_abs, tag = 'smem constant byte address 0x4 - core index']
  #allocation1 [shape = 'u32[72,128]{1,0:T(1,128)}', space=vmem, size = 0x9000, scoped, tag = 'internal scratch']
  %s0 = inlined_call_operand.vmem [shape: bf16[2,32,64], index: 0, kind: input, shape index: {}]
  %s1 = inlined_call_operand.vmem [shape: bf16[3,32,288], index: 1, kind: input, shape index: {}]
  %s2 = inlined_call_operand.vmem [shape: bf16[64,32], index: 2, kind: input, shape index: {}]
  %s3 = inlined_call_operand.vmem [shape: bf16[9,1,64], index: 3, kind: input, shape index: {}]
  %s4 = inlined_call_operand.vmem [shape: bf16[2,64,64], index: 4, kind: output, shape index: {}]
  %s5 = sld [smem:[#allocation0]]
  $region49: #{generator_liu_forward.5} parent=0
    _
  %s7 = ssub.s32 1, %s5
  %s8 = scalar_select 0, %s7, %s5
  loop: start=0, step=1, limit=4
  $region2: #{generator_liu_forward.5} parent=0 // loop_pre_header
    _
  $region3: #{generator_liu_forward.5} parent=0 // loop_header
    %s10 = sphi 0, %s14
    %p11 = scmp.ge.s32.totalorder %s10, 4
    %s20 = sphi 0, %s22
    %s23 = sphi 0, %s20
    %s24 = sphi 0, %s23
    %s40 = sphi 0, %s24
    %s44 = sphi 0, %s44
    %s46 = sphi 0, %s44
    %s47 = sphi 0, %s46
    %s61 = sphi 0, %s47
    %s65 = sphi 0, %s65
    %s67 = sphi 0, %s65
    %s68 = sphi 0, %s67
    %s82 = sphi 0, %s68
    %s86 = sphi 0, %s86
    %s88 = sphi 0, %s86
    %s89 = sphi 0, %s88
    %s103 = sphi 0, %s89
    %s109 = sphi 0, %s111
    %s112 = sphi 0, %s109
    %s113 = sphi 0, %s112
    %s129 = sphi 0, %s113
  $region4: #{generator_liu_forward.5} parent=0 // loop_header_branch
    %13 = sbr.rel (%p11) target = $region8
  $region5: #{generator_liu_forward.5} parent=0 // loop_body
    %s15 = ssub.s32 %s10, 1
    %s16 = ssub.s32 %s10, 2
    %s17 = sadd.s32 %s10, 1
    %s18 = ssub.s32 %s10, %s17
    %p19 = scmp.eq.s32.totalorder %s18, 0
    %s21 = sadd.s32 %s20, 1
    %s22 = scalar_select %p19, %s20, %s21
    %p25 = pneg %p19
    %p26 = scmp.eq.s32.totalorder %s10, 1
    %p27 = por %p25, %p26
    %p28 = scmp.ne.s32.totalorder %s20, %s23
    %p29 = scmp.eq.s32.totalorder %s10, 0
    %p30 = por %p28, %p29
    %p31 = scmp.ne.s32.totalorder %s20, %s23
    %p32 = scmp.eq.s32.totalorder %s15, 1
    %p33 = por %p31, %p32
    %p34 = scmp.ne.s32.totalorder %s23, %s24
    %p35 = scmp.eq.s32.totalorder %s15, 0
    %p36 = por %p34, %p35
    %p37 = scmp.ne.s32.totalorder %s23, %s24
    %p38 = scmp.eq.s32.totalorder %s16, 1
    %p39 = por %p37, %p38
    %p41 = scmp.ne.s32.totalorder %s24, %s40
    %p42 = scmp.eq.s32.totalorder %s16, 0
    %p43 = por %p41, %p42
    %s45 = sadd.s32 %s44, 1
    %p48 = scmp.eq.s32.totalorder %s10, 1
    %p49 = scmp.ne.s32.totalorder %s44, %s46
    %p50 = scmp.eq.s32.totalorder %s10, 0
    %p51 = por %p49, %p50
    %p52 = scmp.ne.s32.totalorder %s44, %s46
    %p53 = scmp.eq.s32.totalorder %s15, 1
    %p54 = por %p52, %p53
    %p55 = scmp.ne.s32.totalorder %s46, %s47
    %p56 = scmp.eq.s32.totalorder %s15, 0
    %p57 = por %p55, %p56
    %p58 = scmp.ne.s32.totalorder %s46, %s47
    %p59 = scmp.eq.s32.totalorder %s16, 1
    %p60 = por %p58, %p59
    %p62 = scmp.ne.s32.totalorder %s47, %s61
    %p63 = scmp.eq.s32.totalorder %s16, 0
    %p64 = por %p62, %p63
    %s66 = sadd.s32 %s65, 1
    %p69 = scmp.eq.s32.totalorder %s10, 1
    %p70 = scmp.ne.s32.totalorder %s65, %s67
    %p71 = scmp.eq.s32.totalorder %s10, 0
    %p72 = por %p70, %p71
    %p73 = scmp.ne.s32.totalorder %s65, %s67
    %p74 = scmp.eq.s32.totalorder %s15, 1
    %p75 = por %p73, %p74
    %p76 = scmp.ne.s32.totalorder %s67, %s68
    %p77 = scmp.eq.s32.totalorder %s15, 0
    %p78 = por %p76, %p77
    %p79 = scmp.ne.s32.totalorder %s67, %s68
    %p80 = scmp.eq.s32.totalorder %s16, 1
    %p81 = por %p79, %p80
    %p83 = scmp.ne.s32.totalorder %s68, %s82
    %p84 = scmp.eq.s32.totalorder %s16, 0
    %p85 = por %p83, %p84
    %s87 = sadd.s32 %s86, 1
    %p90 = scmp.eq.s32.totalorder %s10, 1
    %p91 = scmp.ne.s32.totalorder %s86, %s88
    %p92 = scmp.eq.s32.totalorder %s10, 0
    %p93 = por %p91, %p92
    %p94 = scmp.ne.s32.totalorder %s86, %s88
    %p95 = scmp.eq.s32.totalorder %s15, 1
    %p96 = por %p94, %p95
    %p97 = scmp.ne.s32.totalorder %s88, %s89
    %p98 = scmp.eq.s32.totalorder %s15, 0
    %p99 = por %p97, %p98
    %p100 = scmp.ne.s32.totalorder %s88, %s89
    %p101 = scmp.eq.s32.totalorder %s16, 1
    %p102 = por %p100, %p101
    %p104 = scmp.ne.s32.totalorder %s89, %s103
    %p105 = scmp.eq.s32.totalorder %s16, 0
    %p106 = por %p104, %p105
    %s107 = ssub.s32 %s10, %s17
    %p108 = scmp.eq.s32.totalorder %s107, 0
    %s110 = sadd.s32 %s109, 1
    %s111 = scalar_select %p108, %s109, %s110
    %p114 = pneg %p108
    %p115 = scmp.eq.s32.totalorder %s10, 1
    %p116 = por %p114, %p115
    %p117 = scmp.ne.s32.totalorder %s109, %s112
    %p118 = scmp.eq.s32.totalorder %s10, 0
    %p119 = por %p117, %p118
    %p120 = scmp.ne.s32.totalorder %s109, %s112
    %p121 = scmp.eq.s32.totalorder %s15, 1
    %p122 = por %p120, %p121
    %p123 = scmp.ne.s32.totalorder %s112, %s113
    %p124 = scmp.eq.s32.totalorder %s15, 0
    %p125 = por %p123, %p124
    %p126 = scmp.ne.s32.totalorder %s112, %s113
    %p127 = scmp.eq.s32.totalorder %s16, 1
    %p128 = por %p126, %p127
    %p130 = scmp.ne.s32.totalorder %s113, %s129
    %p131 = scmp.eq.s32.totalorder %s16, 0
    %p132 = por %p130, %p131
    %p133 = scmp.le.s32.totalorder 1, %s10
    %p134 = scmp.lt.s32.totalorder %s10, 3
    %p135 = pnand %p133, %p134
    %p136 = pneg %p135
    // Predicated region
    $region9: #{generator_liu_forward.5} parent=5 // pred_check
      _
    $region10: #{generator_liu_forward.5} parent=5 // pred_check_branch
      %138 = sbr.rel (%p135) target = $region12
    $region11: #{generator_liu_forward.5} parent=5 // pred_region
      %s139 = ssub.s32 %s10, 1
      // Predicated region
      $region13: #{generator_liu_forward.5} parent=11 // pred_check
        %p140 = pneg %p57
      $region14: #{generator_liu_forward.5} parent=11 // pred_check_branch
        %142 = sbr.rel (%p140) target = $region16
      $region15: #{generator_liu_forward.5} parent=11 // pred_region
        _
      $region16: #{generator_liu_forward.5} parent=11 // pred_fallthru
        _
      // Predicated region
      $region17: #{generator_liu_forward.5} parent=11 // pred_check
        %p143 = pneg %p78
      $region18: #{generator_liu_forward.5} parent=11 // pred_check_branch
        %145 = sbr.rel (%p143) target = $region20
      $region19: #{generator_liu_forward.5} parent=11 // pred_region
        _
      $region20: #{generator_liu_forward.5} parent=11 // pred_fallthru
        _
      // Predicated region
      $region21: #{generator_liu_forward.5} parent=11 // pred_check
        %p146 = pneg %p99
      $region22: #{generator_liu_forward.5} parent=11 // pred_check_branch
        %148 = sbr.rel (%p146) target = $region24
      $region23: #{generator_liu_forward.5} parent=11 // pred_region
        _
      $region24: #{generator_liu_forward.5} parent=11 // pred_fallthru
        _
    $region12: #{generator_liu_forward.5} parent=5 // pred_fallthru
      _
    %p149 = scmp.lt.s32.totalorder %s10, 2
    // Predicated region
    $region25: #{generator_liu_forward.5} parent=5 // pred_check
      %p150 = pneg %p149
    $region26: #{generator_liu_forward.5} parent=5 // pred_check_branch
      %152 = sbr.rel (%p150) target = $region28
    $region27: #{generator_liu_forward.5} parent=5 // pred_region
      // Predicated region
      $region29: #{generator_liu_forward.5} parent=27 // pred_check
        %p153 = pneg %p30
      $region30: #{generator_liu_forward.5} parent=27 // pred_check_branch
        %155 = sbr.rel (%p153) target = $region32
      $region31: #{generator_liu_forward.5} parent=27 // pred_region
        %p156 = scmp.lt.s32.totalorder %s10, 1
        %s157 = scalar_select %p156, %s10, 1
        %s158 = smul.addr %s157, 4
        %s159 = smul.addr %s158, 4
        %s160 = scalar_lea.vmem %s0, %s159
      $region32: #{generator_liu_forward.5} parent=27 // pred_fallthru
        _
    $region28: #{generator_liu_forward.5} parent=5 // pred_fallthru
      _
    %p161 = scmp.le.s32.totalorder 1, %s10
    %p162 = scmp.lt.s32.totalorder %s10, 3
    %p163 = pnand %p161, %p162
    %p164 = pneg %p163
    // Predicated region
    $region33: #{generator_liu_forward.5} parent=5 // pred_check
      _
    $region34: #{generator_liu_forward.5} parent=5 // pred_check_branch
      %166 = sbr.rel (%p163) target = $region36
    $region35: #{generator_liu_forward.5} parent=5 // pred_region
      %s167 = ssub.s32 %s10, 1
      %p168 = scmp.lt.s32.totalorder %s15, 1
      %s169 = scalar_select %p168, %s15, 1
      %s170 = smul.addr %s169, 4
      %s171 = smul.addr %s170, 4
      %s172 = scalar_lea.vmem %s0, %s171
      %p173 = pneg %p36
      %p174 = pneg %p33
      %p175 = pneg %p57
      %p176 = pneg %p54
      %p177 = pneg %p78
      %p178 = pneg %p75
      %p179 = pneg %p99
      %p180 = pneg %p96
      %p181 = pneg %p125
      %p182 = pneg %p122
      %p183 = scmp.lt.s32.totalorder %s15, 1
      %s184 = scalar_select %p183, %s15, 1
      %s185 = smul.addr %s184, 8
      %s186 = smul.addr %s185, 4
      %s187 = scalar_lea.vmem %s4, %s186
      %p188 = scmp.lt.s32.totalorder %s15, 1
      %s189 = scalar_select %p188, %s15, 1
      %s190 = smul.addr %s189, 4
      %s191 = smul.addr %s190, 4
      %s192 = scalar_lea.vmem %s0, %s191
      %p193 = scmp.lt.s32.totalorder %s15, 1
      %s194 = scalar_select %p193, %s15, 1
      %s195 = smul.addr %s194, 8
      %s196 = smul.addr %s195, 4
      %s197 = scalar_lea.vmem %s4, %s196
      %v199 = vlaneseq
      %v200 = vshrl.u32 %v199, 7
      %v201 = vadd.s32 %v200, 8
      %v202 = vadd.s32 %v200, 16
      %v203 = vadd.s32 %v200, 24
      %v204 = vadd.s32 %v200, 32
      %v205 = vadd.s32 %v200, 40
      %v206 = vadd.s32 %v200, 48
      %v207 = vadd.s32 %v200, 56
      %v208 = vlaneseq
      %v209 = vand.u32 %v208, 127
      %v210 = vmul.u32 %v209, 16
      %vm211 = vcmp.ge.s32.totalorder %v200, %v210
      %vm212 = vcmp.ge.s32.totalorder %v201, %v210
      %vm213 = vcmp.ge.s32.totalorder %v202, %v210
      %vm214 = vcmp.ge.s32.totalorder %v203, %v210
      %vm215 = vcmp.ge.s32.totalorder %v204, %v210
      %vm216 = vcmp.ge.s32.totalorder %v205, %v210
      %vm217 = vcmp.ge.s32.totalorder %v206, %v210
      %vm218 = vcmp.ge.s32.totalorder %v207, %v210
      %v219 = vadd.s32 %v209, 1
      %v220 = vmul.u32 %v219, 16
      %vm221 = vcmp.lt.s32.totalorder %v200, %v220
      %vm222 = vcmp.lt.s32.totalorder %v201, %v220
      %vm223 = vcmp.lt.s32.totalorder %v202, %v220
      %vm224 = vcmp.lt.s32.totalorder %v203, %v220
      %vm225 = vcmp.lt.s32.totalorder %v204, %v220
      %vm226 = vcmp.lt.s32.totalorder %v205, %v220
      %vm227 = vcmp.lt.s32.totalorder %v206, %v220
      %vm228 = vcmp.lt.s32.totalorder %v207, %v220
      %vm229 = vmand %vm211, %vm221
      %vm230 = vmand %vm212, %vm222
      %vm231 = vmand %vm213, %vm223
      %vm232 = vmand %vm214, %vm224
      %vm233 = vmand %vm215, %vm225
      %vm234 = vmand %vm216, %vm226
      %vm235 = vmand %vm217, %vm227
      %vm236 = vmand %vm218, %vm228
      %v237 = vsel %vm229, 1, 0
      %v238 = vsel %vm230, 1, 0
      %v239 = vsel %vm231, 1, 0
      %v240 = vsel %vm232, 1, 0
      %v241 = vsel %vm233, 1, 0
      %v242 = vsel %vm234, 1, 0
      %v243 = vsel %vm235, 1, 0
      %v244 = vsel %vm236, 1, 0
      %v245 = vcvt.s32.f32 %v237
      %v246 = vcvt.s32.f32 %v238
      %v247 = vcvt.s32.f32 %v239
      %v248 = vcvt.s32.f32 %v240
      %v249 = vcvt.s32.f32 %v241
      %v250 = vcvt.s32.f32 %v242
      %v251 = vcvt.s32.f32 %v243
      %v252 = vcvt.s32.f32 %v244
      %v253 = vmul.u32 %v200, 16
      %vm254 = vcmp.ge.s32.totalorder %v209, %v253
      %v255 = vadd.s32 %v200, 1
      %v256 = vmul.u32 %v255, 16
      %vm257 = vcmp.lt.s32.totalorder %v209, %v256
      %vm258 = vmand %vm254, %vm257
      %v259 = vsel %vm258, 1, 0
      %v260 = vcvt.s32.f32 %v259
      %v261 = vld [vmem:[%s192] sm:$0xf]
      %v262 = vld [vmem:[%s192 + $0x4] sm:$0xf]
      %v263 = vld [vmem:[%s192 + $0x8] sm:$0xf]
      %v264 = vld [vmem:[%s192 + $0xc] sm:$0xf]
      %v265 = vld [vmem:[%s1] sm:$0xff]
      %v266 = vld [vmem:[%s1 + $0x8] sm:$0xf]
      %v267 = vld [vmem:[%s1 + $0xc] sm:$0xff]
      %v268 = vld [vmem:[%s1 + $0x14] sm:$0xf]
      %v269 = vld [vmem:[%s1 + $0x18] sm:$0xff]
      %v270 = vld [vmem:[%s1 + $0x20] sm:$0xf]
      %v271 = vld [vmem:[%s1 + $0x24] sm:$0xff]
      %v272 = vld [vmem:[%s1 + $0x2c] sm:$0xf]
      %v277 = vunpack.c.l.b16 %v261
      %v278 = vunpack.c.l.b16 %v262
      %v279 = vunpack.c.l.b16 %v263
      %v280 = vunpack.c.l.b16 %v264
      %v281 = vpack.c.b16 %v278, %v277
      %v282 = vpack.c.b16 %v280, %v279
      %283 = vrot.lane.b32.xlu0 %v281, 5
      %v284 = vpop.permute.xlu0 %283
      %285 = vrot.lane.b32.xlu0 %v282, 5
      %v286 = vpop.permute.xlu0 %285
      %vm287 = vcmask 39936
      %v290 = vsel %vm287, 0, %v284
      %v293 = vsel %vm287, 0, %v286
      %v295 = vld [vmem:[%s3] sm:$0x1]
      %v297 = vpack.i.b16 %v295, %v295
      %v299 = vperm.slane %v297, 0
      %v300 = vunpack.c.l.bf16 %v290
      %v301 = vunpack.c.h.bf16 %v290
      %v302 = vunpack.c.l.bf16 %v293
      %v303 = vunpack.c.h.bf16 %v293
      %v304 = vunpack.c.l.bf16 %v299
      %v305 = vmul.f32 %v300, %v304
      %v306 = vmul.f32 %v301, %v304
      %v307 = vmul.f32 %v302, %v304
      %v308 = vmul.f32 %v303, %v304
      %v309 = vpack.c.bf16 %v305, %v305
      %v310 = vpack.c.bf16 %v306, %v306
      %v311 = vpack.c.bf16 %v307, %v307
      %v312 = vpack.c.bf16 %v308, %v308
      %313 = vrot.lane.b32.xlu0 %v281, 4
      %v314 = vpop.permute.xlu0 %313
      %315 = vrot.lane.b32.xlu0 %v282, 4
      %v316 = vpop.permute.xlu0 %315
      %vm317 = vcmask 31744
      %v319 = vsel %vm317, 0, %v314
      %v322 = vsel %vm317, 0, %v316
      %s324 = scalar_lea.vmem %s3, 1
      %v325 = vld [vmem:[%s324] sm:$0x1]
      %v327 = vpack.i.b16 %v325, %v325
      %v329 = vperm.slane %v327, 0
      %v330 = vunpack.c.l.bf16 %v319
      %v331 = vunpack.c.h.bf16 %v319
      %v332 = vunpack.c.l.bf16 %v322
      %v333 = vunpack.c.h.bf16 %v322
      %v334 = vunpack.c.l.bf16 %v329
      %v335 = vmul.f32 %v330, %v334
      %v336 = vmul.f32 %v331, %v334
      %v337 = vmul.f32 %v332, %v334
      %v338 = vmul.f32 %v333, %v334
      %v339 = vpack.c.bf16 %v335, %v335
      %v340 = vpack.c.bf16 %v336, %v336
      %v341 = vpack.c.bf16 %v337, %v337
      %v342 = vpack.c.bf16 %v338, %v338
      %343 = vrot.lane.b32.xlu0 %v281, 3
      %v344 = vpop.permute.xlu0 %343
      %345 = vrot.lane.b32.xlu0 %v282, 3
      %v346 = vpop.permute.xlu0 %345
      %vm347 = vcmask 23552
      %v349 = vsel %vm347, 0, %v344
      %v352 = vsel %vm347, 0, %v346
      %s354 = scalar_lea.vmem %s3, 2
      %v355 = vld [vmem:[%s354] sm:$0x1]
      %v357 = vpack.i.b16 %v355, %v355
      %v359 = vperm.slane %v357, 0
      %v360 = vunpack.c.l.bf16 %v349
      %v361 = vunpack.c.h.bf16 %v349
      %v362 = vunpack.c.l.bf16 %v352
      %v363 = vunpack.c.h.bf16 %v352
      %v364 = vunpack.c.l.bf16 %v359
      %v365 = vmul.f32 %v360, %v364
      %v366 = vmul.f32 %v361, %v364
      %v367 = vmul.f32 %v362, %v364
      %v368 = vmul.f32 %v363, %v364
      %v369 = vpack.c.bf16 %v365, %v365
      %v370 = vpack.c.bf16 %v366, %v366
      %v371 = vpack.c.bf16 %v367, %v367
      %v372 = vpack.c.bf16 %v368, %v368
      %373 = vrot.lane.b32.xlu0 %v281, 1
      %v374 = vpop.permute.xlu0 %373
      %375 = vrot.lane.b32.xlu0 %v282, 1
      %v376 = vpop.permute.xlu0 %375
      %vm377 = vcmask 7168
      %v379 = vsel %vm377, 0, %v374
      %v382 = vsel %vm377, 0, %v376
      %s384 = scalar_lea.vmem %s3, 3
      %v385 = vld [vmem:[%s384] sm:$0x1]
      %v387 = vpack.i.b16 %v385, %v385
      %v389 = vperm.slane %v387, 0
      %v390 = vunpack.c.l.bf16 %v379
      %v391 = vunpack.c.h.bf16 %v379
      %v392 = vunpack.c.l.bf16 %v382
      %v393 = vunpack.c.h.bf16 %v382
      %v394 = vunpack.c.l.bf16 %v389
      %v395 = vmul.f32 %v390, %v394
      %v396 = vmul.f32 %v391, %v394
      %v397 = vmul.f32 %v392, %v394
      %v398 = vmul.f32 %v393, %v394
      %v399 = vpack.c.bf16 %v395, %v395
      %v400 = vpack.c.bf16 %v396, %v396
      %v401 = vpack.c.bf16 %v397, %v397
      %v402 = vpack.c.bf16 %v398, %v398
      %403 = vrot.lane.b32.xlu0 %v281, 127
      %v404 = vpop.permute.xlu0 %403
      %405 = vrot.lane.b32.xlu0 %v282, 127
      %v406 = vpop.permute.xlu0 %405
      %vm407 = vcmask 515072
      %v409 = vsel %vm407, %v404, 0
      %v412 = vsel %vm407, %v406, 0
      %s414 = scalar_lea.vmem %s3, 5
      %v415 = vld [vmem:[%s414] sm:$0x1]
      %v417 = vpack.i.b16 %v415, %v415
      %v419 = vperm.slane %v417, 0
      %v420 = vunpack.c.l.bf16 %v409
      %v421 = vunpack.c.h.bf16 %v409
      %v422 = vunpack.c.l.bf16 %v412
      %v423 = vunpack.c.h.bf16 %v412
      %v424 = vunpack.c.l.bf16 %v419
      %v425 = vmul.f32 %v420, %v424
      %v426 = vmul.f32 %v421, %v424
      %v427 = vmul.f32 %v422, %v424
      %v428 = vmul.f32 %v423, %v424
      %v429 = vpack.c.bf16 %v425, %v425
      %v430 = vpack.c.bf16 %v426, %v426
      %v431 = vpack.c.bf16 %v427, %v427
      %v432 = vpack.c.bf16 %v428, %v428
      %433 = vrot.lane.b32.xlu0 %v281, 125
      %v434 = vpop.permute.xlu0 %433
      %435 = vrot.lane.b32.xlu0 %v282, 125
      %v436 = vpop.permute.xlu0 %435
      %vm437 = vcmask 498688
      %v439 = vsel %vm437, %v434, 0
      %v442 = vsel %vm437, %v436, 0
      %s444 = scalar_lea.vmem %s3, 6
      %v445 = vld [vmem:[%s444] sm:$0x1]
      %v447 = vpack.i.b16 %v445, %v445
      %v449 = vperm.slane %v447, 0
      %v450 = vunpack.c.l.bf16 %v439
      %v451 = vunpack.c.h.bf16 %v439
      %v452 = vunpack.c.l.bf16 %v442
      %v453 = vunpack.c.h.bf16 %v442
      %v454 = vunpack.c.l.bf16 %v449
      %v455 = vmul.f32 %v450, %v454
      %v456 = vmul.f32 %v451, %v454
      %v457 = vmul.f32 %v452, %v454
      %v458 = vmul.f32 %v453, %v454
      %v459 = vpack.c.bf16 %v455, %v455
      %v460 = vpack.c.bf16 %v456, %v456
      %v461 = vpack.c.bf16 %v457, %v457
      %v462 = vpack.c.bf16 %v458, %v458
      %463 = vrot.lane.b32.xlu0 %v281, 124
      %v464 = vpop.permute.xlu0 %463
      %465 = vrot.lane.b32.xlu0 %v282, 124
      %v466 = vpop.permute.xlu0 %465
      %vm467 = vcmask 490496
      %v469 = vsel %vm467, %v464, 0
      %v472 = vsel %vm467, %v466, 0
      %s474 = scalar_lea.vmem %s3, 7
      %v475 = vld [vmem:[%s474] sm:$0x1]
      %v477 = vpack.i.b16 %v475, %v475
      %v479 = vperm.slane %v477, 0
      %v480 = vunpack.c.l.bf16 %v469
      %v481 = vunpack.c.h.bf16 %v469
      %v482 = vunpack.c.l.bf16 %v472
      %v483 = vunpack.c.h.bf16 %v472
      %v484 = vunpack.c.l.bf16 %v479
      %v485 = vmul.f32 %v480, %v484
      %v486 = vmul.f32 %v481, %v484
      %v487 = vmul.f32 %v482, %v484
      %v488 = vmul.f32 %v483, %v484
      %v489 = vpack.c.bf16 %v485, %v485
      %v490 = vpack.c.bf16 %v486, %v486
      %v491 = vpack.c.bf16 %v487, %v487
      %v492 = vpack.c.bf16 %v488, %v488
      %493 = vrot.lane.b32.xlu0 %v281, 123
      %v494 = vpop.permute.xlu0 %493
      %495 = vrot.lane.b32.xlu0 %v282, 123
      %v496 = vpop.permute.xlu0 %495
      %vm497 = vcmask 482304
      %v499 = vsel %vm497, %v494, 0
      %v502 = vsel %vm497, %v496, 0
      %s504 = scalar_lea.vmem %s3, 8
      %v505 = vld [vmem:[%s504] sm:$0x1]
      %v507 = vpack.i.b16 %v505, %v505
      %v509 = vperm.slane %v507, 0
      %v510 = vunpack.c.l.bf16 %v499
      %v511 = vunpack.c.h.bf16 %v499
      %v512 = vunpack.c.l.bf16 %v502
      %v513 = vunpack.c.h.bf16 %v502
      %v514 = vunpack.c.l.bf16 %v509
      %v515 = vmul.f32 %v510, %v514
      %v516 = vmul.f32 %v511, %v514
      %v517 = vmul.f32 %v512, %v514
      %v518 = vmul.f32 %v513, %v514
      %v519 = vpack.c.bf16 %v515, %v515
      %v520 = vpack.c.bf16 %v516, %v516
      %v521 = vpack.c.bf16 %v517, %v517
      %v522 = vpack.c.bf16 %v518, %v518
      %v527 = vunpack.c.l.b16 %v309
      %v528 = vunpack.c.l.b16 %v310
      %v529 = vunpack.c.l.b16 %v311
      %v530 = vunpack.c.l.b16 %v312
      %v531 = vpack.c.b16 %v528, %v527
      %v532 = vpack.c.b16 %v530, %v529
      %v539 = vunpack.c.l.b16 %v339
      %v540 = vunpack.c.l.b16 %v340
      %v541 = vunpack.c.l.b16 %v341
      %v542 = vunpack.c.l.b16 %v342
      %v543 = vpack.c.b16 %v540, %v539
      %v544 = vpack.c.b16 %v542, %v541
      %v551 = vunpack.c.l.b16 %v369
      %v552 = vunpack.c.l.b16 %v370
      %v553 = vunpack.c.l.b16 %v371
      %v554 = vunpack.c.l.b16 %v372
      %v555 = vpack.c.b16 %v552, %v551
      %v556 = vpack.c.b16 %v554, %v553
      %v563 = vunpack.c.l.b16 %v399
      %v564 = vunpack.c.l.b16 %v400
      %v565 = vunpack.c.l.b16 %v401
      %v566 = vunpack.c.l.b16 %v402
      %v567 = vpack.c.b16 %v564, %v563
      %v568 = vpack.c.b16 %v566, %v565
      %v577 = vunpack.c.l.b16 %v429
      %v578 = vunpack.c.l.b16 %v430
      %v579 = vunpack.c.l.b16 %v431
      %v580 = vunpack.c.l.b16 %v432
      %v581 = vpack.c.b16 %v578, %v577
      %v582 = vpack.c.b16 %v580, %v579
      %v589 = vunpack.c.l.b16 %v459
      %v590 = vunpack.c.l.b16 %v460
      %v591 = vunpack.c.l.b16 %v461
      %v592 = vunpack.c.l.b16 %v462
      %v593 = vpack.c.b16 %v590, %v589
      %v594 = vpack.c.b16 %v592, %v591
      %v601 = vunpack.c.l.b16 %v489
      %v602 = vunpack.c.l.b16 %v490
      %v603 = vunpack.c.l.b16 %v491
      %v604 = vunpack.c.l.b16 %v492
      %v605 = vpack.c.b16 %v602, %v601
      %v606 = vpack.c.b16 %v604, %v603
      %v613 = vunpack.c.l.b16 %v519
      %v614 = vunpack.c.l.b16 %v520
      %v615 = vunpack.c.l.b16 %v521
      %v616 = vunpack.c.l.b16 %v522
      %v617 = vpack.c.b16 %v614, %v613
      %v618 = vpack.c.b16 %v616, %v615
      %v629 = vunpack.c.l.b16 %v265
      %v630 = vunpack.c.h.b16 %v265
      %v631 = vunpack.c.l.b16 %v266
      %v632 = vunpack.c.l.b16 %v267
      %v633 = vunpack.c.h.b16 %v267
      %v634 = vunpack.c.l.b16 %v268
      %v635 = vunpack.c.l.b16 %v269
      %v636 = vunpack.c.h.b16 %v269
      %v637 = vunpack.c.l.b16 %v270
      %v638 = vunpack.c.l.b16 %v271
      %v639 = vunpack.c.h.b16 %v271
      %v640 = vunpack.c.l.b16 %v272
      %v641 = vpack.c.b16 %v632, %v629
      %v642 = vpack.c.b16 %v633, %v630
      %v643 = vpack.c.b16 %v634, %v631
      %v644 = vpack.c.b16 %v638, %v635
      %v645 = vpack.c.b16 %v639, %v636
      %v646 = vpack.c.b16 %v640, %v637
      %vm651 = vcmask 261120
      %v653 = vsel %vm651, %v643, 0
      %v656 = vsel %vm651, %v646, 0
      %658 = vmatpush.bf16.msra.mxu0 %v568
      %659 = vmatpush.bf16.msra.mxu0 %v567
      %660 = vmatpush.bf16.msra.mxu0 %v556
      %661 = vmatpush.bf16.msra.mxu0 %v555
      %662 = vmatpush.bf16.msra.mxu0 %v544
      %663 = vmatpush.bf16.msra.mxu0 %v543
      %664 = vmatpush.bf16.msra.mxu0 %v532
      %665 = vmatpush.bf16.msra.mxu0 %v531
      %666 = vmatmul.bf16.gmra.mxu0 %v641
      %v667 = vpop.f32.mrf.mxu0
      %v668 = vadd.f32 0.0, %v667
      %v669 = vpop.f32.mrf.mxu0
      %v670 = vadd.f32 0.0, %v669
      %671 = vmatmul.bf16.gmra.mxu0 %v644
      %v672 = vpop.f32.mrf.mxu0
      %v673 = vadd.f32 0.0, %v672
      %v674 = vpop.f32.mrf.mxu0
      %v675 = vadd.f32 0.0, %v674
      %676 = vdwg.mxu0
      %677 = vmatpush.bf16.msra.mxu0 %v606
      %678 = vmatpush.bf16.msra.mxu0 %v605
      %679 = vmatpush.bf16.msra.mxu0 %v594
      %680 = vmatpush.bf16.msra.mxu0 %v593
      %681 = vmatpush.bf16.msra.mxu0 %v582
      %682 = vmatpush.bf16.msra.mxu0 %v581
      %683 = vmatpush.bf16.msra.mxu0 %v282
      %684 = vmatpush.bf16.msra.mxu0 %v281
      %685 = vmatmul.bf16.gmra.mxu0 %v642
      %v686 = vpop.f32.mrf.mxu0
      %v687 = vadd.f32 %v668, %v686
      %v688 = vpop.f32.mrf.mxu0
      %v689 = vadd.f32 %v670, %v688
      %690 = vmatmul.bf16.gmra.mxu0 %v645
      %v691 = vpop.f32.mrf.mxu0
      %v692 = vadd.f32 %v673, %v691
      %v693 = vpop.f32.mrf.mxu0
      %v694 = vadd.f32 %v675, %v693
      %695 = vdwg.mxu0
      %696 = vmatpush.bf16.msra.mxu0 0
      %697 = vmatpush.bf16.msra.mxu0 0
      %698 = vmatpush.bf16.msra.mxu0 0
      %699 = vmatpush.bf16.msra.mxu0 0
      %700 = vmatpush.bf16.msra.mxu0 0
      %701 = vmatpush.bf16.msra.mxu0 0
      %702 = vmatpush.bf16.msra.mxu0 %v618
      %703 = vmatpush.bf16.msra.mxu0 %v617
      %704 = vmatmul.bf16.gmra.mxu0 %v653
      %v705 = vpop.f32.mrf.mxu0
      %v706 = vadd.f32 %v687, %v705
      %v707 = vpop.f32.mrf.mxu0
      %v708 = vadd.f32 %v689, %v707
      %709 = vmatmul.bf16.gmra.mxu0 %v656
      %v710 = vpop.f32.mrf.mxu0
      %v711 = vadd.f32 %v692, %v710
      %v712 = vpop.f32.mrf.mxu0
      %v713 = vadd.f32 %v694, %v712
      %714 = vdwg.mxu0
      %v715 = vmul.f32 %v706, %v706
      %v716 = vmul.f32 %v708, %v708
      %v717 = vmul.f32 %v711, %v711
      %v718 = vmul.f32 %v713, %v713
      %vm719 = vcmask 523264
      %v721 = vsel %vm719, %v706, 0
      %v724 = vsel %vm719, %v708, 0
      %v727 = vsel %vm719, %v711, 0
      %v730 = vsel %vm719, %v713, 0
      %v733 = vsel %vm719, %v715, 0
      %v736 = vsel %vm719, %v716, 0
      %v739 = vsel %vm719, %v717, 0
      %v742 = vsel %vm719, %v718, 0
      %744 = vmatpush.msra.mxu0 0.0
      %745 = vmatpush.msra.mxu0 0.0
      %746 = vmatpush.msra.mxu0 0.0
      %747 = vmatpush.msra.mxu0 0.0
      %748 = vmatpush.msra.mxu0 0.0
      %749 = vmatpush.msra.mxu0 0.0
      %750 = vmatpush.msra.mxu0 0.0
      %751 = vmatpush.msra.mxu0 0.0
      %752 = vmatpush.msra.mxu0 %v252
      %753 = vmatpush.msra.mxu0 %v251
      %754 = vmatpush.msra.mxu0 %v250
      %755 = vmatpush.msra.mxu0 %v249
      %756 = vmatpush.msra.mxu0 %v248
      %757 = vmatpush.msra.mxu0 %v247
      %758 = vmatpush.msra.mxu0 %v246
      %759 = vmatpush.msra.mxu0 %v245
      %760 = vmatmul.f32.gmra.mxu0 %v721
      %v761 = vpop.f32.mrf.mxu0
      %v762 = vadd.f32 0.0, %v761
      %763 = vmatmul.f32.gmra.mxu0 %v724
      %v764 = vpop.f32.mrf.mxu0
      %v765 = vadd.f32 0.0, %v764
      %766 = vmatmul.f32.gmra.mxu0 %v727
      %v767 = vpop.f32.mrf.mxu0
      %v768 = vadd.f32 0.0, %v767
      %769 = vmatmul.f32.gmra.mxu0 %v730
      %v770 = vpop.f32.mrf.mxu0
      %v771 = vadd.f32 0.0, %v770
      %772 = vmatmul.f32.gmra.mxu0 %v733
      %v773 = vpop.f32.mrf.mxu0
      %v774 = vadd.f32 0.0, %v773
      %775 = vmatmul.f32.gmra.mxu0 %v736
      %v776 = vpop.f32.mrf.mxu0
      %v777 = vadd.f32 0.0, %v776
      %778 = vmatmul.f32.gmra.mxu0 %v739
      %v779 = vpop.f32.mrf.mxu0
      %v780 = vadd.f32 0.0, %v779
      %781 = vmatmul.f32.gmra.mxu0 %v742
      %v782 = vpop.f32.mrf.mxu0
      %v783 = vadd.f32 0.0, %v782
      %784 = vdwg.mxu0
      %v785 = vmul.f32 %v762, 0.0625
      %v786 = vmul.f32 %v765, 0.0625
      %v787 = vmul.f32 %v768, 0.0625
      %v788 = vmul.f32 %v771, 0.0625
      %v789 = vmul.f32 %v774, 0.0625
      %v790 = vmul.f32 %v777, 0.0625
      %v791 = vmul.f32 %v780, 0.0625
      %v792 = vmul.f32 %v783, 0.0625
      %v793 = vmul.f32 %v785, %v785
      %v794 = vmul.f32 %v786, %v786
      %v795 = vmul.f32 %v787, %v787
      %v796 = vmul.f32 %v788, %v788
      %v797 = vsub.f32 %v789, %v793
      %v798 = vsub.f32 %v790, %v794
      %v799 = vsub.f32 %v791, %v795
      %v800 = vsub.f32 %v792, %v796
      %v801 = vmax.f32 %v797, 0.0
      %v802 = vmax.f32 %v798, 0.0
      %v803 = vmax.f32 %v799, 0.0
      %v804 = vmax.f32 %v800, 0.0
      %v805 = vadd.f32 %v801, 1e-05
      %v806 = vadd.f32 %v802, 1e-05
      %v807 = vadd.f32 %v803, 1e-05
      %v808 = vadd.f32 %v804, 1e-05
      %v809 = vrsqrt.pop %v805
      %v810 = vmul.f32 %v809, %v805
      %v811 = vmul.f32 %v810, %v809
      %v812 = vmul.f32 0.5, %v811
      %v813 = vsub.f32 1.5, %v812
      %v814 = vmul.f32 %v809, %v813
      %vm815 = vweird.f32 %v805
      %vm816 = vweird.f32 %v809
      %vm817 = vmor %vm815, %vm816
      %v818 = vsel %vm817, %v809, %v814
      %v819 = vrsqrt.pop %v806
      %v820 = vmul.f32 %v819, %v806
      %v821 = vmul.f32 %v820, %v819
      %v822 = vmul.f32 0.5, %v821
      %v823 = vsub.f32 1.5, %v822
      %v824 = vmul.f32 %v819, %v823
      %vm825 = vweird.f32 %v806
      %vm826 = vweird.f32 %v819
      %vm827 = vmor %vm825, %vm826
      %v828 = vsel %vm827, %v819, %v824
      %v829 = vrsqrt.pop %v807
      %v830 = vmul.f32 %v829, %v807
      %v831 = vmul.f32 %v830, %v829
      %v832 = vmul.f32 0.5, %v831
      %v833 = vsub.f32 1.5, %v832
      %v834 = vmul.f32 %v829, %v833
      %vm835 = vweird.f32 %v807
      %vm836 = vweird.f32 %v829
      %vm837 = vmor %vm835, %vm836
      %v838 = vsel %vm837, %v829, %v834
      %v839 = vrsqrt.pop %v808
      %v840 = vmul.f32 %v839, %v808
      %v841 = vmul.f32 %v840, %v839
      %v842 = vmul.f32 0.5, %v841
      %v843 = vsub.f32 1.5, %v842
      %v844 = vmul.f32 %v839, %v843
      %vm845 = vweird.f32 %v808
      %vm846 = vweird.f32 %v839
      %vm847 = vmor %vm845, %vm846
      %v848 = vsel %vm847, %v839, %v844
      %v849 = vmul.f32 %v785, %v818
      %v850 = vmul.f32 %v786, %v828
      %v851 = vmul.f32 %v787, %v838
      %v852 = vmul.f32 %v788, %v848
      %v854 = vsel %vm317, %v849, 0
      %v857 = vsel %vm317, %v850, 0
      %v860 = vsel %vm317, %v851, 0
      %v863 = vsel %vm317, %v852, 0
      %v866 = vsel %vm317, %v818, 0
      %v869 = vsel %vm317, %v828, 0
      %v872 = vsel %vm317, %v838, 0
      %v875 = vsel %vm317, %v848, 0
      %vm877 = vcmask 1043456
      %v879 = vsel %vm877, %v260, 0
      %881 = vmatpush.msra.mxu0 0.0
      %882 = vmatpush.msra.mxu0 0.0
      %883 = vmatpush.msra.mxu0 0.0
      %884 = vmatpush.msra.mxu0 0.0
      %885 = vmatpush.msra.mxu0 0.0
      %886 = vmatpush.msra.mxu0 0.0
      %887 = vmatpush.msra.mxu0 0.0
      %888 = vmatpush.msra.mxu0 0.0
      %889 = vmatpush.msra.mxu0 0.0
      %890 = vmatpush.msra.mxu0 0.0
      %891 = vmatpush.msra.mxu0 0.0
      %892 = vmatpush.msra.mxu0 0.0
      %893 = vmatpush.msra.mxu0 0.0
      %894 = vmatpush.msra.mxu0 0.0
      %895 = vmatpush.msra.mxu0 0.0
      %896 = vmatpush.msra.mxu0 %v879
      %897 = vmatmul.f32.gmra.mxu0 %v854
      %v898 = vpop.f32.mrf.mxu0
      %v899 = vadd.f32 0.0, %v898
      %900 = vmatmul.f32.gmra.mxu0 %v857
      %v901 = vpop.f32.mrf.mxu0
      %v902 = vadd.f32 0.0, %v901
      %903 = vmatmul.f32.gmra.mxu0 %v860
      %v904 = vpop.f32.mrf.mxu0
      %v905 = vadd.f32 0.0, %v904
      %906 = vmatmul.f32.gmra.mxu0 %v863
      %v907 = vpop.f32.mrf.mxu0
      %v908 = vadd.f32 0.0, %v907
      %909 = vmatmul.f32.gmra.mxu0 %v866
      %v910 = vpop.f32.mrf.mxu0
      %v911 = vadd.f32 0.0, %v910
      %912 = vmatmul.f32.gmra.mxu0 %v869
      %v913 = vpop.f32.mrf.mxu0
      %v914 = vadd.f32 0.0, %v913
      %915 = vmatmul.f32.gmra.mxu0 %v872
      %v916 = vpop.f32.mrf.mxu0
      %v917 = vadd.f32 0.0, %v916
      %918 = vmatmul.f32.gmra.mxu0 %v875
      %v919 = vpop.f32.mrf.mxu0
      %v920 = vadd.f32 0.0, %v919
      %921 = vdwg.mxu0
      %v922 = vmul.f32 %v706, %v911
      %v923 = vmul.f32 %v708, %v914
      %v924 = vmul.f32 %v711, %v917
      %v925 = vmul.f32 %v713, %v920
      %v926 = vsub.f32 %v922, %v899
      %v927 = vsub.f32 %v923, %v902
      %v928 = vsub.f32 %v924, %v905
      %v929 = vsub.f32 %v925, %v908
      %vm930 = vcmp.ge.f32.partialorder %v926, 0.0
      %vm931 = vcmp.ge.f32.partialorder %v927, 0.0
      %vm932 = vcmp.ge.f32.partialorder %v928, 0.0
      %vm933 = vcmp.ge.f32.partialorder %v929, 0.0
      %v934 = vmul.f32 %v926, 0.01
      %v935 = vmul.f32 %v927, 0.01
      %v936 = vmul.f32 %v928, 0.01
      %v937 = vmul.f32 %v929, 0.01
      %v938 = vsel %vm930, %v926, %v934
      %v939 = vsel %vm931, %v927, %v935
      %v940 = vsel %vm932, %v928, %v936
      %v941 = vsel %vm933, %v929, %v937
      %v942 = vpack.c.bf16 %v938, %v938
      %v943 = vpack.c.bf16 %v939, %v939
      %v944 = vpack.c.bf16 %v940, %v940
      %v945 = vpack.c.bf16 %v941, %v941
      %s946 = scalar_lea.vmem %s1, 48
      %v947 = vld [vmem:[%s946] sm:$0xff]
      %v948 = vld [vmem:[%s946 + $0x8] sm:$0xf]
      %v949 = vld [vmem:[%s946 + $0xc] sm:$0xff]
      %v950 = vld [vmem:[%s946 + $0x14] sm:$0xf]
      %v951 = vld [vmem:[%s946 + $0x18] sm:$0xff]
      %v952 = vld [vmem:[%s946 + $0x20] sm:$0xf]
      %v953 = vld [vmem:[%s946 + $0x24] sm:$0xff]
      %v954 = vld [vmem:[%s946 + $0x2c] sm:$0xf]
      %v959 = vunpack.c.l.b16 %v942
      %v960 = vunpack.c.l.b16 %v943
      %v961 = vunpack.c.l.b16 %v944
      %v962 = vunpack.c.l.b16 %v945
      %v963 = vpack.c.b16 %v960, %v959
      %v964 = vpack.c.b16 %v962, %v961
      %965 = vrot.lane.b32.xlu0 %v963, 5
      %v966 = vpop.permute.xlu0 %965
      %967 = vrot.lane.b32.xlu0 %v964, 5
      %v968 = vpop.permute.xlu0 %967
      %v970 = vsel %vm287, 0, %v966
      %v973 = vsel %vm287, 0, %v968
      %v975 = vunpack.c.l.bf16 %v970
      %v976 = vunpack.c.h.bf16 %v970
      %v977 = vunpack.c.l.bf16 %v973
      %v978 = vunpack.c.h.bf16 %v973
      %v979 = vmul.f32 %v975, %v304
      %v980 = vmul.f32 %v976, %v304
      %v981 = vmul.f32 %v977, %v304
      %v982 = vmul.f32 %v978, %v304
      %v983 = vpack.c.bf16 %v979, %v979
      %v984 = vpack.c.bf16 %v980, %v980
      %v985 = vpack.c.bf16 %v981, %v981
      %v986 = vpack.c.bf16 %v982, %v982
      %987 = vrot.lane.b32.xlu0 %v963, 4
      %v988 = vpop.permute.xlu0 %987
      %989 = vrot.lane.b32.xlu0 %v964, 4
      %v990 = vpop.permute.xlu0 %989
      %v992 = vsel %vm317, 0, %v988
      %v995 = vsel %vm317, 0, %v990
      %v997 = vunpack.c.l.bf16 %v992
      %v998 = vunpack.c.h.bf16 %v992
      %v999 = vunpack.c.l.bf16 %v995
      %v1000 = vunpack.c.h.bf16 %v995
      %v1001 = vmul.f32 %v997, %v334
      %v1002 = vmul.f32 %v998, %v334
      %v1003 = vmul.f32 %v999, %v334
      %v1004 = vmul.f32 %v1000, %v334
      %v1005 = vpack.c.bf16 %v1001, %v1001
      %v1006 = vpack.c.bf16 %v1002, %v1002
      %v1007 = vpack.c.bf16 %v1003, %v1003
      %v1008 = vpack.c.bf16 %v1004, %v1004
      %1009 = vrot.lane.b32.xlu0 %v963, 3
      %v1010 = vpop.permute.xlu0 %1009
      %1011 = vrot.lane.b32.xlu0 %v964, 3
      %v1012 = vpop.permute.xlu0 %1011
      %v1014 = vsel %vm347, 0, %v1010
      %v1017 = vsel %vm347, 0, %v1012
      %v1019 = vunpack.c.l.bf16 %v1014
      %v1020 = vunpack.c.h.bf16 %v1014
      %v1021 = vunpack.c.l.bf16 %v1017
      %v1022 = vunpack.c.h.bf16 %v1017
      %v1023 = vmul.f32 %v1019, %v364
      %v1024 = vmul.f32 %v1020, %v364
      %v1025 = vmul.f32 %v1021, %v364
      %v1026 = vmul.f32 %v1022, %v364
      %v1027 = vpack.c.bf16 %v1023, %v1023
      %v1028 = vpack.c.bf16 %v1024, %v1024
      %v1029 = vpack.c.bf16 %v1025, %v1025
      %v1030 = vpack.c.bf16 %v1026, %v1026
      %1031 = vrot.lane.b32.xlu0 %v963, 1
      %v1032 = vpop.permute.xlu0 %1031
      %1033 = vrot.lane.b32.xlu0 %v964, 1
      %v1034 = vpop.permute.xlu0 %1033
      %v1036 = vsel %vm377, 0, %v1032
      %v1039 = vsel %vm377, 0, %v1034
      %v1041 = vunpack.c.l.bf16 %v1036
      %v1042 = vunpack.c.h.bf16 %v1036
      %v1043 = vunpack.c.l.bf16 %v1039
      %v1044 = vunpack.c.h.bf16 %v1039
      %v1045 = vmul.f32 %v1041, %v394
      %v1046 = vmul.f32 %v1042, %v394
      %v1047 = vmul.f32 %v1043, %v394
      %v1048 = vmul.f32 %v1044, %v394
      %v1049 = vpack.c.bf16 %v1045, %v1045
      %v1050 = vpack.c.bf16 %v1046, %v1046
      %v1051 = vpack.c.bf16 %v1047, %v1047
      %v1052 = vpack.c.bf16 %v1048, %v1048
      %1053 = vrot.lane.b32.xlu0 %v963, 127
      %v1054 = vpop.permute.xlu0 %1053
      %1055 = vrot.lane.b32.xlu0 %v964, 127
      %v1056 = vpop.permute.xlu0 %1055
      %v1058 = vsel %vm407, %v1054, 0
      %v1061 = vsel %vm407, %v1056, 0
      %v1063 = vunpack.c.l.bf16 %v1058
      %v1064 = vunpack.c.h.bf16 %v1058
      %v1065 = vunpack.c.l.bf16 %v1061
      %v1066 = vunpack.c.h.bf16 %v1061
      %v1067 = vmul.f32 %v1063, %v424
      %v1068 = vmul.f32 %v1064, %v424
      %v1069 = vmul.f32 %v1065, %v424
      %v1070 = vmul.f32 %v1066, %v424
      %v1071 = vpack.c.bf16 %v1067, %v1067
      %v1072 = vpack.c.bf16 %v1068, %v1068
      %v1073 = vpack.c.bf16 %v1069, %v1069
      %v1074 = vpack.c.bf16 %v1070, %v1070
      %1075 = vrot.lane.b32.xlu0 %v963, 125
      %v1076 = vpop.permute.xlu0 %1075
      %1077 = vrot.lane.b32.xlu0 %v964, 125
      %v1078 = vpop.permute.xlu0 %1077
      %v1080 = vsel %vm437, %v1076, 0
      %v1083 = vsel %vm437, %v1078, 0
      %v1085 = vunpack.c.l.bf16 %v1080
      %v1086 = vunpack.c.h.bf16 %v1080
      %v1087 = vunpack.c.l.bf16 %v1083
      %v1088 = vunpack.c.h.bf16 %v1083
      %v1089 = vmul.f32 %v1085, %v454
      %v1090 = vmul.f32 %v1086, %v454
      %v1091 = vmul.f32 %v1087, %v454
      %v1092 = vmul.f32 %v1088, %v454
      %v1093 = vpack.c.bf16 %v1089, %v1089
      %v1094 = vpack.c.bf16 %v1090, %v1090
      %v1095 = vpack.c.bf16 %v1091, %v1091
      %v1096 = vpack.c.bf16 %v1092, %v1092
      %1097 = vrot.lane.b32.xlu0 %v963, 124
      %v1098 = vpop.permute.xlu0 %1097
      %1099 = vrot.lane.b32.xlu0 %v964, 124
      %v1100 = vpop.permute.xlu0 %1099
      %v1102 = vsel %vm467, %v1098, 0
      %v1105 = vsel %vm467, %v1100, 0
      %v1107 = vunpack.c.l.bf16 %v1102
      %v1108 = vunpack.c.h.bf16 %v1102
      %v1109 = vunpack.c.l.bf16 %v1105
      %v1110 = vunpack.c.h.bf16 %v1105
      %v1111 = vmul.f32 %v1107, %v484
      %v1112 = vmul.f32 %v1108, %v484
      %v1113 = vmul.f32 %v1109, %v484
      %v1114 = vmul.f32 %v1110, %v484
      %v1115 = vpack.c.bf16 %v1111, %v1111
      %v1116 = vpack.c.bf16 %v1112, %v1112
      %v1117 = vpack.c.bf16 %v1113, %v1113
      %v1118 = vpack.c.bf16 %v1114, %v1114
      %1119 = vrot.lane.b32.xlu0 %v963, 123
      %v1120 = vpop.permute.xlu0 %1119
      %1121 = vrot.lane.b32.xlu0 %v964, 123
      %v1122 = vpop.permute.xlu0 %1121
      %v1124 = vsel %vm497, %v1120, 0
      %v1127 = vsel %vm497, %v1122, 0
      %v1129 = vunpack.c.l.bf16 %v1124
      %v1130 = vunpack.c.h.bf16 %v1124
      %v1131 = vunpack.c.l.bf16 %v1127
      %v1132 = vunpack.c.h.bf16 %v1127
      %v1133 = vmul.f32 %v1129, %v514
      %v1134 = vmul.f32 %v1130, %v514
      %v1135 = vmul.f32 %v1131, %v514
      %v1136 = vmul.f32 %v1132, %v514
      %v1137 = vpack.c.bf16 %v1133, %v1133
      %v1138 = vpack.c.bf16 %v1134, %v1134
      %v1139 = vpack.c.bf16 %v1135, %v1135
      %v1140 = vpack.c.bf16 %v1136, %v1136
      %v1145 = vunpack.c.l.b16 %v983
      %v1146 = vunpack.c.l.b16 %v984
      %v1147 = vunpack.c.l.b16 %v985
      %v1148 = vunpack.c.l.b16 %v986
      %v1149 = vpack.c.b16 %v1146, %v1145
      %v1150 = vpack.c.b16 %v1148, %v1147
      %v1157 = vunpack.c.l.b16 %v1005
      %v1158 = vunpack.c.l.b16 %v1006
      %v1159 = vunpack.c.l.b16 %v1007
      %v1160 = vunpack.c.l.b16 %v1008
      %v1161 = vpack.c.b16 %v1158, %v1157
      %v1162 = vpack.c.b16 %v1160, %v1159
      %v1169 = vunpack.c.l.b16 %v1027
      %v1170 = vunpack.c.l.b16 %v1028
      %v1171 = vunpack.c.l.b16 %v1029
      %v1172 = vunpack.c.l.b16 %v1030
      %v1173 = vpack.c.b16 %v1170, %v1169
      %v1174 = vpack.c.b16 %v1172, %v1171
      %v1181 = vunpack.c.l.b16 %v1049
      %v1182 = vunpack.c.l.b16 %v1050
      %v1183 = vunpack.c.l.b16 %v1051
      %v1184 = vunpack.c.l.b16 %v1052
      %v1185 = vpack.c.b16 %v1182, %v1181
      %v1186 = vpack.c.b16 %v1184, %v1183
      %v1195 = vunpack.c.l.b16 %v1071
      %v1196 = vunpack.c.l.b16 %v1072
      %v1197 = vunpack.c.l.b16 %v1073
      %v1198 = vunpack.c.l.b16 %v1074
      %v1199 = vpack.c.b16 %v1196, %v1195
      %v1200 = vpack.c.b16 %v1198, %v1197
      %v1207 = vunpack.c.l.b16 %v1093
      %v1208 = vunpack.c.l.b16 %v1094
      %v1209 = vunpack.c.l.b16 %v1095
      %v1210 = vunpack.c.l.b16 %v1096
      %v1211 = vpack.c.b16 %v1208, %v1207
      %v1212 = vpack.c.b16 %v1210, %v1209
      %v1219 = vunpack.c.l.b16 %v1115
      %v1220 = vunpack.c.l.b16 %v1116
      %v1221 = vunpack.c.l.b16 %v1117
      %v1222 = vunpack.c.l.b16 %v1118
      %v1223 = vpack.c.b16 %v1220, %v1219
      %v1224 = vpack.c.b16 %v1222, %v1221
      %v1231 = vunpack.c.l.b16 %v1137
      %v1232 = vunpack.c.l.b16 %v1138
      %v1233 = vunpack.c.l.b16 %v1139
      %v1234 = vunpack.c.l.b16 %v1140
      %v1235 = vpack.c.b16 %v1232, %v1231
      %v1236 = vpack.c.b16 %v1234, %v1233
      %v1247 = vunpack.c.l.b16 %v947
      %v1248 = vunpack.c.h.b16 %v947
      %v1249 = vunpack.c.l.b16 %v948
      %v1250 = vunpack.c.l.b16 %v949
      %v1251 = vunpack.c.h.b16 %v949
      %v1252 = vunpack.c.l.b16 %v950
      %v1253 = vunpack.c.l.b16 %v951
      %v1254 = vunpack.c.h.b16 %v951
      %v1255 = vunpack.c.l.b16 %v952
      %v1256 = vunpack.c.l.b16 %v953
      %v1257 = vunpack.c.h.b16 %v953
      %v1258 = vunpack.c.l.b16 %v954
      %v1259 = vpack.c.b16 %v1250, %v1247
      %v1260 = vpack.c.b16 %v1251, %v1248
      %v1261 = vpack.c.b16 %v1252, %v1249
      %v1262 = vpack.c.b16 %v1256, %v1253
      %v1263 = vpack.c.b16 %v1257, %v1254
      %v1264 = vpack.c.b16 %v1258, %v1255
      %v1270 = vsel %vm651, %v1261, 0
      %v1273 = vsel %vm651, %v1264, 0
      %1275 = vmatpush.bf16.msra.mxu0 %v1186
      %1276 = vmatpush.bf16.msra.mxu0 %v1185
      %1277 = vmatpush.bf16.msra.mxu0 %v1174
      %1278 = vmatpush.bf16.msra.mxu0 %v1173
      %1279 = vmatpush.bf16.msra.mxu0 %v1162
      %1280 = vmatpush.bf16.msra.mxu0 %v1161
      %1281 = vmatpush.bf16.msra.mxu0 %v1150
      %1282 = vmatpush.bf16.msra.mxu0 %v1149
      %1283 = vmatmul.bf16.gmra.mxu0 %v1259
      %v1284 = vpop.f32.mrf.mxu0
      %v1285 = vadd.f32 0.0, %v1284
      %v1286 = vpop.f32.mrf.mxu0
      %v1287 = vadd.f32 0.0, %v1286
      %1288 = vmatmul.bf16.gmra.mxu0 %v1262
      %v1289 = vpop.f32.mrf.mxu0
      %v1290 = vadd.f32 0.0, %v1289
      %v1291 = vpop.f32.mrf.mxu0
      %v1292 = vadd.f32 0.0, %v1291
      %1293 = vdwg.mxu0
      %1294 = vmatpush.bf16.msra.mxu0 %v1224
      %1295 = vmatpush.bf16.msra.mxu0 %v1223
      %1296 = vmatpush.bf16.msra.mxu0 %v1212
      %1297 = vmatpush.bf16.msra.mxu0 %v1211
      %1298 = vmatpush.bf16.msra.mxu0 %v1200
      %1299 = vmatpush.bf16.msra.mxu0 %v1199
      %1300 = vmatpush.bf16.msra.mxu0 %v964
      %1301 = vmatpush.bf16.msra.mxu0 %v963
      %1302 = vmatmul.bf16.gmra.mxu0 %v1260
      %v1303 = vpop.f32.mrf.mxu0
      %v1304 = vadd.f32 %v1285, %v1303
      %v1305 = vpop.f32.mrf.mxu0
      %v1306 = vadd.f32 %v1287, %v1305
      %1307 = vmatmul.bf16.gmra.mxu0 %v1263
      %v1308 = vpop.f32.mrf.mxu0
      %v1309 = vadd.f32 %v1290, %v1308
      %v1310 = vpop.f32.mrf.mxu0
      %v1311 = vadd.f32 %v1292, %v1310
      %1312 = vdwg.mxu0
      %1313 = vmatpush.bf16.msra.mxu0 0
      %1314 = vmatpush.bf16.msra.mxu0 0
      %1315 = vmatpush.bf16.msra.mxu0 0
      %1316 = vmatpush.bf16.msra.mxu0 0
      %1317 = vmatpush.bf16.msra.mxu0 0
      %1318 = vmatpush.bf16.msra.mxu0 0
      %1319 = vmatpush.bf16.msra.mxu0 %v1236
      %1320 = vmatpush.bf16.msra.mxu0 %v1235
      %1321 = vmatmul.bf16.gmra.mxu0 %v1270
      %v1322 = vpop.f32.mrf.mxu0
      %v1323 = vadd.f32 %v1304, %v1322
      %v1324 = vpop.f32.mrf.mxu0
      %v1325 = vadd.f32 %v1306, %v1324
      %1326 = vmatmul.bf16.gmra.mxu0 %v1273
      %v1327 = vpop.f32.mrf.mxu0
      %v1328 = vadd.f32 %v1309, %v1327
      %v1329 = vpop.f32.mrf.mxu0
      %v1330 = vadd.f32 %v1311, %v1329
      %1331 = vdwg.mxu0
      %v1332 = vmul.f32 %v1323, %v1323
      %v1333 = vmul.f32 %v1325, %v1325
      %v1334 = vmul.f32 %v1328, %v1328
      %v1335 = vmul.f32 %v1330, %v1330
      %v1337 = vsel %vm719, %v1323, 0
      %v1340 = vsel %vm719, %v1325, 0
      %v1343 = vsel %vm719, %v1328, 0
      %v1346 = vsel %vm719, %v1330, 0
      %v1349 = vsel %vm719, %v1332, 0
      %v1352 = vsel %vm719, %v1333, 0
      %v1355 = vsel %vm719, %v1334, 0
      %v1358 = vsel %vm719, %v1335, 0
      %1360 = vmatpush.msra.mxu0 0.0
      %1361 = vmatpush.msra.mxu0 0.0
      %1362 = vmatpush.msra.mxu0 0.0
      %1363 = vmatpush.msra.mxu0 0.0
      %1364 = vmatpush.msra.mxu0 0.0
      %1365 = vmatpush.msra.mxu0 0.0
      %1366 = vmatpush.msra.mxu0 0.0
      %1367 = vmatpush.msra.mxu0 0.0
      %1368 = vmatpush.msra.mxu0 %v252
      %1369 = vmatpush.msra.mxu0 %v251
      %1370 = vmatpush.msra.mxu0 %v250
      %1371 = vmatpush.msra.mxu0 %v249
      %1372 = vmatpush.msra.mxu0 %v248
      %1373 = vmatpush.msra.mxu0 %v247
      %1374 = vmatpush.msra.mxu0 %v246
      %1375 = vmatpush.msra.mxu0 %v245
      %1376 = vmatmul.f32.gmra.mxu0 %v1337
      %v1377 = vpop.f32.mrf.mxu0
      %v1378 = vadd.f32 0.0, %v1377
      %1379 = vmatmul.f32.gmra.mxu0 %v1340
      %v1380 = vpop.f32.mrf.mxu0
      %v1381 = vadd.f32 0.0, %v1380
      %1382 = vmatmul.f32.gmra.mxu0 %v1343
      %v1383 = vpop.f32.mrf.mxu0
      %v1384 = vadd.f32 0.0, %v1383
      %1385 = vmatmul.f32.gmra.mxu0 %v1346
      %v1386 = vpop.f32.mrf.mxu0
      %v1387 = vadd.f32 0.0, %v1386
      %1388 = vmatmul.f32.gmra.mxu0 %v1349
      %v1389 = vpop.f32.mrf.mxu0
      %v1390 = vadd.f32 0.0, %v1389
      %1391 = vmatmul.f32.gmra.mxu0 %v1352
      %v1392 = vpop.f32.mrf.mxu0
      %v1393 = vadd.f32 0.0, %v1392
      %1394 = vmatmul.f32.gmra.mxu0 %v1355
      %v1395 = vpop.f32.mrf.mxu0
      %v1396 = vadd.f32 0.0, %v1395
      %1397 = vmatmul.f32.gmra.mxu0 %v1358
      %v1398 = vpop.f32.mrf.mxu0
      %v1399 = vadd.f32 0.0, %v1398
      %1400 = vdwg.mxu0
      %v1401 = vmul.f32 %v1378, 0.0625
      %v1402 = vmul.f32 %v1381, 0.0625
      %v1403 = vmul.f32 %v1384, 0.0625
      %v1404 = vmul.f32 %v1387, 0.0625
      %v1405 = vmul.f32 %v1390, 0.0625
      %v1406 = vmul.f32 %v1393, 0.0625
      %v1407 = vmul.f32 %v1396, 0.0625
      %v1408 = vmul.f32 %v1399, 0.0625
      %v1409 = vmul.f32 %v1401, %v1401
      %v1410 = vmul.f32 %v1402, %v1402
      %v1411 = vmul.f32 %v1403, %v1403
      %v1412 = vmul.f32 %v1404, %v1404
      %v1413 = vsub.f32 %v1405, %v1409
      %v1414 = vsub.f32 %v1406, %v1410
      %v1415 = vsub.f32 %v1407, %v1411
      %v1416 = vsub.f32 %v1408, %v1412
      %v1417 = vmax.f32 %v1413, 0.0
      %v1418 = vmax.f32 %v1414, 0.0
      %v1419 = vmax.f32 %v1415, 0.0
      %v1420 = vmax.f32 %v1416, 0.0
      %v1421 = vadd.f32 %v1417, 1e-05
      %v1422 = vadd.f32 %v1418, 1e-05
      %v1423 = vadd.f32 %v1419, 1e-05
      %v1424 = vadd.f32 %v1420, 1e-05
      %v1425 = vrsqrt.pop %v1421
      %v1426 = vmul.f32 %v1425, %v1421
      %v1427 = vmul.f32 %v1426, %v1425
      %v1428 = vmul.f32 0.5, %v1427
      %v1429 = vsub.f32 1.5, %v1428
      %v1430 = vmul.f32 %v1425, %v1429
      %vm1431 = vweird.f32 %v1421
      %vm1432 = vweird.f32 %v1425
      %vm1433 = vmor %vm1431, %vm1432
      %v1434 = vsel %vm1433, %v1425, %v1430
      %v1435 = vrsqrt.pop %v1422
      %v1436 = vmul.f32 %v1435, %v1422
      %v1437 = vmul.f32 %v1436, %v1435
      %v1438 = vmul.f32 0.5, %v1437
      %v1439 = vsub.f32 1.5, %v1438
      %v1440 = vmul.f32 %v1435, %v1439
      %vm1441 = vweird.f32 %v1422
      %vm1442 = vweird.f32 %v1435
      %vm1443 = vmor %vm1441, %vm1442
      %v1444 = vsel %vm1443, %v1435, %v1440
      %v1445 = vrsqrt.pop %v1423
      %v1446 = vmul.f32 %v1445, %v1423
      %v1447 = vmul.f32 %v1446, %v1445
      %v1448 = vmul.f32 0.5, %v1447
      %v1449 = vsub.f32 1.5, %v1448
      %v1450 = vmul.f32 %v1445, %v1449
      %vm1451 = vweird.f32 %v1423
      %vm1452 = vweird.f32 %v1445
      %vm1453 = vmor %vm1451, %vm1452
      %v1454 = vsel %vm1453, %v1445, %v1450
      %v1455 = vrsqrt.pop %v1424
      %v1456 = vmul.f32 %v1455, %v1424
      %v1457 = vmul.f32 %v1456, %v1455
      %v1458 = vmul.f32 0.5, %v1457
      %v1459 = vsub.f32 1.5, %v1458
      %v1460 = vmul.f32 %v1455, %v1459
      %vm1461 = vweird.f32 %v1424
      %vm1462 = vweird.f32 %v1455
      %vm1463 = vmor %vm1461, %vm1462
      %v1464 = vsel %vm1463, %v1455, %v1460
      %v1465 = vmul.f32 %v1401, %v1434
      %v1466 = vmul.f32 %v1402, %v1444
      %v1467 = vmul.f32 %v1403, %v1454
      %v1468 = vmul.f32 %v1404, %v1464
      %v1470 = vsel %vm317, %v1465, 0
      %v1473 = vsel %vm317, %v1466, 0
      %v1476 = vsel %vm317, %v1467, 0
      %v1479 = vsel %vm317, %v1468, 0
      %v1482 = vsel %vm317, %v1434, 0
      %v1485 = vsel %vm317, %v1444, 0
      %v1488 = vsel %vm317, %v1454, 0
      %v1491 = vsel %vm317, %v1464, 0
      %1493 = vmatpush.msra.mxu0 0.0
      %1494 = vmatpush.msra.mxu0 0.0
      %1495 = vmatpush.msra.mxu0 0.0
      %1496 = vmatpush.msra.mxu0 0.0
      %1497 = vmatpush.msra.mxu0 0.0
      %1498 = vmatpush.msra.mxu0 0.0
      %1499 = vmatpush.msra.mxu0 0.0
      %1500 = vmatpush.msra.mxu0 0.0
      %1501 = vmatpush.msra.mxu0 0.0
      %1502 = vmatpush.msra.mxu0 0.0
      %1503 = vmatpush.msra.mxu0 0.0
      %1504 = vmatpush.msra.mxu0 0.0
      %1505 = vmatpush.msra.mxu0 0.0
      %1506 = vmatpush.msra.mxu0 0.0
      %1507 = vmatpush.msra.mxu0 0.0
      %1508 = vmatpush.msra.mxu0 %v879
      %1509 = vmatmul.f32.gmra.mxu0 %v1470
      %v1510 = vpop.f32.mrf.mxu0
      %v1511 = vadd.f32 0.0, %v1510
      %1512 = vmatmul.f32.gmra.mxu0 %v1473
      %v1513 = vpop.f32.mrf.mxu0
      %v1514 = vadd.f32 0.0, %v1513
      %1515 = vmatmul.f32.gmra.mxu0 %v1476
      %v1516 = vpop.f32.mrf.mxu0
      %v1517 = vadd.f32 0.0, %v1516
      %1518 = vmatmul.f32.gmra.mxu0 %v1479
      %v1519 = vpop.f32.mrf.mxu0
      %v1520 = vadd.f32 0.0, %v1519
      %1521 = vmatmul.f32.gmra.mxu0 %v1482
      %v1522 = vpop.f32.mrf.mxu0
      %v1523 = vadd.f32 0.0, %v1522
      %1524 = vmatmul.f32.gmra.mxu0 %v1485
      %v1525 = vpop.f32.mrf.mxu0
      %v1526 = vadd.f32 0.0, %v1525
      %1527 = vmatmul.f32.gmra.mxu0 %v1488
      %v1528 = vpop.f32.mrf.mxu0
      %v1529 = vadd.f32 0.0, %v1528
      %1530 = vmatmul.f32.gmra.mxu0 %v1491
      %v1531 = vpop.f32.mrf.mxu0
      %v1532 = vadd.f32 0.0, %v1531
      %1533 = vdwg.mxu0
      %v1534 = vmul.f32 %v1323, %v1523
      %v1535 = vmul.f32 %v1325, %v1526
      %v1536 = vmul.f32 %v1328, %v1529
      %v1537 = vmul.f32 %v1330, %v1532
      %v1538 = vsub.f32 %v1534, %v1511
      %v1539 = vsub.f32 %v1535, %v1514
      %v1540 = vsub.f32 %v1536, %v1517
      %v1541 = vsub.f32 %v1537, %v1520
      %vm1542 = vcmp.ge.f32.partialorder %v1538, 0.0
      %vm1543 = vcmp.ge.f32.partialorder %v1539, 0.0
      %vm1544 = vcmp.ge.f32.partialorder %v1540, 0.0
      %vm1545 = vcmp.ge.f32.partialorder %v1541, 0.0
      %v1546 = vmul.f32 %v1538, 0.01
      %v1547 = vmul.f32 %v1539, 0.01
      %v1548 = vmul.f32 %v1540, 0.01
      %v1549 = vmul.f32 %v1541, 0.01
      %v1550 = vsel %vm1542, %v1538, %v1546
      %v1551 = vsel %vm1543, %v1539, %v1547
      %v1552 = vsel %vm1544, %v1540, %v1548
      %v1553 = vsel %vm1545, %v1541, %v1549
      %v1554 = vpack.c.bf16 %v1550, %v1550
      %v1555 = vpack.c.bf16 %v1551, %v1551
      %v1556 = vpack.c.bf16 %v1552, %v1552
      %v1557 = vpack.c.bf16 %v1553, %v1553
      %s1558 = scalar_lea.vmem %s1, 96
      %v1559 = vld [vmem:[%s1558] sm:$0xff]
      %v1560 = vld [vmem:[%s1558 + $0x8] sm:$0xf]
      %v1561 = vld [vmem:[%s1558 + $0xc] sm:$0xff]
      %v1562 = vld [vmem:[%s1558 + $0x14] sm:$0xf]
      %v1563 = vld [vmem:[%s1558 + $0x18] sm:$0xff]
      %v1564 = vld [vmem:[%s1558 + $0x20] sm:$0xf]
      %v1565 = vld [vmem:[%s1558 + $0x24] sm:$0xff]
      %v1566 = vld [vmem:[%s1558 + $0x2c] sm:$0xf]
      %v1571 = vunpack.c.l.b16 %v1554
      %v1572 = vunpack.c.l.b16 %v1555
      %v1573 = vunpack.c.l.b16 %v1556
      %v1574 = vunpack.c.l.b16 %v1557
      %v1575 = vpack.c.b16 %v1572, %v1571
      %v1576 = vpack.c.b16 %v1574, %v1573
      %1577 = vrot.lane.b32.xlu0 %v1575, 5
      %v1578 = vpop.permute.xlu0 %1577
      %1579 = vrot.lane.b32.xlu0 %v1576, 5
      %v1580 = vpop.permute.xlu0 %1579
      %v1582 = vsel %vm287, 0, %v1578
      %v1585 = vsel %vm287, 0, %v1580
      %v1587 = vunpack.c.l.bf16 %v1582
      %v1588 = vunpack.c.h.bf16 %v1582
      %v1589 = vunpack.c.l.bf16 %v1585
      %v1590 = vunpack.c.h.bf16 %v1585
      %v1591 = vmul.f32 %v1587, %v304
      %v1592 = vmul.f32 %v1588, %v304
      %v1593 = vmul.f32 %v1589, %v304
      %v1594 = vmul.f32 %v1590, %v304
      %v1595 = vpack.c.bf16 %v1591, %v1591
      %v1596 = vpack.c.bf16 %v1592, %v1592
      %v1597 = vpack.c.bf16 %v1593, %v1593
      %v1598 = vpack.c.bf16 %v1594, %v1594
      %1599 = vrot.lane.b32.xlu0 %v1575, 4
      %v1600 = vpop.permute.xlu0 %1599
      %1601 = vrot.lane.b32.xlu0 %v1576, 4
      %v1602 = vpop.permute.xlu0 %1601
      %v1604 = vsel %vm317, 0, %v1600
      %v1607 = vsel %vm317, 0, %v1602
      %v1609 = vunpack.c.l.bf16 %v1604
      %v1610 = vunpack.c.h.bf16 %v1604
      %v1611 = vunpack.c.l.bf16 %v1607
      %v1612 = vunpack.c.h.bf16 %v1607
      %v1613 = vmul.f32 %v1609, %v334
      %v1614 = vmul.f32 %v1610, %v334
      %v1615 = vmul.f32 %v1611, %v334
      %v1616 = vmul.f32 %v1612, %v334
      %v1617 = vpack.c.bf16 %v1613, %v1613
      %v1618 = vpack.c.bf16 %v1614, %v1614
      %v1619 = vpack.c.bf16 %v1615, %v1615
      %v1620 = vpack.c.bf16 %v1616, %v1616
      %1621 = vrot.lane.b32.xlu0 %v1575, 3
      %v1622 = vpop.permute.xlu0 %1621
      %1623 = vrot.lane.b32.xlu0 %v1576, 3
      %v1624 = vpop.permute.xlu0 %1623
      %v1626 = vsel %vm347, 0, %v1622
      %v1629 = vsel %vm347, 0, %v1624
      %v1631 = vunpack.c.l.bf16 %v1626
      %v1632 = vunpack.c.h.bf16 %v1626
      %v1633 = vunpack.c.l.bf16 %v1629
      %v1634 = vunpack.c.h.bf16 %v1629
      %v1635 = vmul.f32 %v1631, %v364
      %v1636 = vmul.f32 %v1632, %v364
      %v1637 = vmul.f32 %v1633, %v364
      %v1638 = vmul.f32 %v1634, %v364
      %v1639 = vpack.c.bf16 %v1635, %v1635
      %v1640 = vpack.c.bf16 %v1636, %v1636
      %v1641 = vpack.c.bf16 %v1637, %v1637
      %v1642 = vpack.c.bf16 %v1638, %v1638
      %1643 = vrot.lane.b32.xlu0 %v1575, 1
      %v1644 = vpop.permute.xlu0 %1643
      %1645 = vrot.lane.b32.xlu0 %v1576, 1
      %v1646 = vpop.permute.xlu0 %1645
      %v1648 = vsel %vm377, 0, %v1644
      %v1651 = vsel %vm377, 0, %v1646
      %v1653 = vunpack.c.l.bf16 %v1648
      %v1654 = vunpack.c.h.bf16 %v1648
      %v1655 = vunpack.c.l.bf16 %v1651
      %v1656 = vunpack.c.h.bf16 %v1651
      %v1657 = vmul.f32 %v1653, %v394
      %v1658 = vmul.f32 %v1654, %v394
      %v1659 = vmul.f32 %v1655, %v394
      %v1660 = vmul.f32 %v1656, %v394
      %v1661 = vpack.c.bf16 %v1657, %v1657
      %v1662 = vpack.c.bf16 %v1658, %v1658
      %v1663 = vpack.c.bf16 %v1659, %v1659
      %v1664 = vpack.c.bf16 %v1660, %v1660
      %1665 = vrot.lane.b32.xlu0 %v1575, 127
      %v1666 = vpop.permute.xlu0 %1665
      %1667 = vrot.lane.b32.xlu0 %v1576, 127
      %v1668 = vpop.permute.xlu0 %1667
      %v1670 = vsel %vm407, %v1666, 0
      %v1673 = vsel %vm407, %v1668, 0
      %v1675 = vunpack.c.l.bf16 %v1670
      %v1676 = vunpack.c.h.bf16 %v1670
      %v1677 = vunpack.c.l.bf16 %v1673
      %v1678 = vunpack.c.h.bf16 %v1673
      %v1679 = vmul.f32 %v1675, %v424
      %v1680 = vmul.f32 %v1676, %v424
      %v1681 = vmul.f32 %v1677, %v424
      %v1682 = vmul.f32 %v1678, %v424
      %v1683 = vpack.c.bf16 %v1679, %v1679
      %v1684 = vpack.c.bf16 %v1680, %v1680
      %v1685 = vpack.c.bf16 %v1681, %v1681
      %v1686 = vpack.c.bf16 %v1682, %v1682
      %1687 = vrot.lane.b32.xlu0 %v1575, 125
      %v1688 = vpop.permute.xlu0 %1687
      %1689 = vrot.lane.b32.xlu0 %v1576, 125
      %v1690 = vpop.permute.xlu0 %1689
      %v1692 = vsel %vm437, %v1688, 0
      %v1695 = vsel %vm437, %v1690, 0
      %v1697 = vunpack.c.l.bf16 %v1692
      %v1698 = vunpack.c.h.bf16 %v1692
      %v1699 = vunpack.c.l.bf16 %v1695
      %v1700 = vunpack.c.h.bf16 %v1695
      %v1701 = vmul.f32 %v1697, %v454
      %v1702 = vmul.f32 %v1698, %v454
      %v1703 = vmul.f32 %v1699, %v454
      %v1704 = vmul.f32 %v1700, %v454
      %v1705 = vpack.c.bf16 %v1701, %v1701
      %v1706 = vpack.c.bf16 %v1702, %v1702
      %v1707 = vpack.c.bf16 %v1703, %v1703
      %v1708 = vpack.c.bf16 %v1704, %v1704
      %1709 = vrot.lane.b32.xlu0 %v1575, 124
      %v1710 = vpop.permute.xlu0 %1709
      %1711 = vrot.lane.b32.xlu0 %v1576, 124
      %v1712 = vpop.permute.xlu0 %1711
      %v1714 = vsel %vm467, %v1710, 0
      %v1717 = vsel %vm467, %v1712, 0
      %v1719 = vunpack.c.l.bf16 %v1714
      %v1720 = vunpack.c.h.bf16 %v1714
      %v1721 = vunpack.c.l.bf16 %v1717
      %v1722 = vunpack.c.h.bf16 %v1717
      %v1723 = vmul.f32 %v1719, %v484
      %v1724 = vmul.f32 %v1720, %v484
      %v1725 = vmul.f32 %v1721, %v484
      %v1726 = vmul.f32 %v1722, %v484
      %v1727 = vpack.c.bf16 %v1723, %v1723
      %v1728 = vpack.c.bf16 %v1724, %v1724
      %v1729 = vpack.c.bf16 %v1725, %v1725
      %v1730 = vpack.c.bf16 %v1726, %v1726
      %1731 = vrot.lane.b32.xlu0 %v1575, 123
      %v1732 = vpop.permute.xlu0 %1731
      %1733 = vrot.lane.b32.xlu0 %v1576, 123
      %v1734 = vpop.permute.xlu0 %1733
      %v1736 = vsel %vm497, %v1732, 0
      %v1739 = vsel %vm497, %v1734, 0
      %v1741 = vunpack.c.l.bf16 %v1736
      %v1742 = vunpack.c.h.bf16 %v1736
      %v1743 = vunpack.c.l.bf16 %v1739
      %v1744 = vunpack.c.h.bf16 %v1739
      %v1745 = vmul.f32 %v1741, %v514
      %v1746 = vmul.f32 %v1742, %v514
      %v1747 = vmul.f32 %v1743, %v514
      %v1748 = vmul.f32 %v1744, %v514
      %v1749 = vpack.c.bf16 %v1745, %v1745
      %v1750 = vpack.c.bf16 %v1746, %v1746
      %v1751 = vpack.c.bf16 %v1747, %v1747
      %v1752 = vpack.c.bf16 %v1748, %v1748
      %v1757 = vunpack.c.l.b16 %v1595
      %v1758 = vunpack.c.l.b16 %v1596
      %v1759 = vunpack.c.l.b16 %v1597
      %v1760 = vunpack.c.l.b16 %v1598
      %v1761 = vpack.c.b16 %v1758, %v1757
      %v1762 = vpack.c.b16 %v1760, %v1759
      %v1769 = vunpack.c.l.b16 %v1617
      %v1770 = vunpack.c.l.b16 %v1618
      %v1771 = vunpack.c.l.b16 %v1619
      %v1772 = vunpack.c.l.b16 %v1620
      %v1773 = vpack.c.b16 %v1770, %v1769
      %v1774 = vpack.c.b16 %v1772, %v1771
      %v1781 = vunpack.c.l.b16 %v1639
      %v1782 = vunpack.c.l.b16 %v1640
      %v1783 = vunpack.c.l.b16 %v1641
      %v1784 = vunpack.c.l.b16 %v1642
      %v1785 = vpack.c.b16 %v1782, %v1781
      %v1786 = vpack.c.b16 %v1784, %v1783
      %v1793 = vunpack.c.l.b16 %v1661
      %v1794 = vunpack.c.l.b16 %v1662
      %v1795 = vunpack.c.l.b16 %v1663
      %v1796 = vunpack.c.l.b16 %v1664
      %v1797 = vpack.c.b16 %v1794, %v1793
      %v1798 = vpack.c.b16 %v1796, %v1795
      %v1807 = vunpack.c.l.b16 %v1683
      %v1808 = vunpack.c.l.b16 %v1684
      %v1809 = vunpack.c.l.b16 %v1685
      %v1810 = vunpack.c.l.b16 %v1686
      %v1811 = vpack.c.b16 %v1808, %v1807
      %v1812 = vpack.c.b16 %v1810, %v1809
      %v1819 = vunpack.c.l.b16 %v1705
      %v1820 = vunpack.c.l.b16 %v1706
      %v1821 = vunpack.c.l.b16 %v1707
      %v1822 = vunpack.c.l.b16 %v1708
      %v1823 = vpack.c.b16 %v1820, %v1819
      %v1824 = vpack.c.b16 %v1822, %v1821
      %v1831 = vunpack.c.l.b16 %v1727
      %v1832 = vunpack.c.l.b16 %v1728
      %v1833 = vunpack.c.l.b16 %v1729
      %v1834 = vunpack.c.l.b16 %v1730
      %v1835 = vpack.c.b16 %v1832, %v1831
      %v1836 = vpack.c.b16 %v1834, %v1833
      %v1843 = vunpack.c.l.b16 %v1749
      %v1844 = vunpack.c.l.b16 %v1750
      %v1845 = vunpack.c.l.b16 %v1751
      %v1846 = vunpack.c.l.b16 %v1752
      %v1847 = vpack.c.b16 %v1844, %v1843
      %v1848 = vpack.c.b16 %v1846, %v1845
      %v1859 = vunpack.c.l.b16 %v1559
      %v1860 = vunpack.c.h.b16 %v1559
      %v1861 = vunpack.c.l.b16 %v1560
      %v1862 = vunpack.c.l.b16 %v1561
      %v1863 = vunpack.c.h.b16 %v1561
      %v1864 = vunpack.c.l.b16 %v1562
      %v1865 = vunpack.c.l.b16 %v1563
      %v1866 = vunpack.c.h.b16 %v1563
      %v1867 = vunpack.c.l.b16 %v1564
      %v1868 = vunpack.c.l.b16 %v1565
      %v1869 = vunpack.c.h.b16 %v1565
      %v1870 = vunpack.c.l.b16 %v1566
      %v1871 = vpack.c.b16 %v1862, %v1859
      %v1872 = vpack.c.b16 %v1863, %v1860
      %v1873 = vpack.c.b16 %v1864, %v1861
      %v1874 = vpack.c.b16 %v1868, %v1865
      %v1875 = vpack.c.b16 %v1869, %v1866
      %v1876 = vpack.c.b16 %v1870, %v1867
      %v1882 = vsel %vm651, %v1873, 0
      %v1885 = vsel %vm651, %v1876, 0
      %1887 = vmatpush.bf16.msra.mxu0 %v1798
      %1888 = vmatpush.bf16.msra.mxu0 %v1797
      %1889 = vmatpush.bf16.msra.mxu0 %v1786
      %1890 = vmatpush.bf16.msra.mxu0 %v1785
      %1891 = vmatpush.bf16.msra.mxu0 %v1774
      %1892 = vmatpush.bf16.msra.mxu0 %v1773
      %1893 = vmatpush.bf16.msra.mxu0 %v1762
      %1894 = vmatpush.bf16.msra.mxu0 %v1761
      %1895 = vmatmul.bf16.gmra.mxu0 %v1871
      %v1896 = vpop.f32.mrf.mxu0
      %v1897 = vadd.f32 0.0, %v1896
      %v1898 = vpop.f32.mrf.mxu0
      %v1899 = vadd.f32 0.0, %v1898
      %1900 = vmatmul.bf16.gmra.mxu0 %v1874
      %v1901 = vpop.f32.mrf.mxu0
      %v1902 = vadd.f32 0.0, %v1901
      %v1903 = vpop.f32.mrf.mxu0
      %v1904 = vadd.f32 0.0, %v1903
      %1905 = vdwg.mxu0
      %1906 = vmatpush.bf16.msra.mxu0 %v1836
      %1907 = vmatpush.bf16.msra.mxu0 %v1835
      %1908 = vmatpush.bf16.msra.mxu0 %v1824
      %1909 = vmatpush.bf16.msra.mxu0 %v1823
      %1910 = vmatpush.bf16.msra.mxu0 %v1812
      %1911 = vmatpush.bf16.msra.mxu0 %v1811
      %1912 = vmatpush.bf16.msra.mxu0 %v1576
      %1913 = vmatpush.bf16.msra.mxu0 %v1575
      %1914 = vmatmul.bf16.gmra.mxu0 %v1872
      %v1915 = vpop.f32.mrf.mxu0
      %v1916 = vadd.f32 %v1897, %v1915
      %v1917 = vpop.f32.mrf.mxu0
      %v1918 = vadd.f32 %v1899, %v1917
      %1919 = vmatmul.bf16.gmra.mxu0 %v1875
      %v1920 = vpop.f32.mrf.mxu0
      %v1921 = vadd.f32 %v1902, %v1920
      %v1922 = vpop.f32.mrf.mxu0
      %v1923 = vadd.f32 %v1904, %v1922
      %1924 = vdwg.mxu0
      %1925 = vmatpush.bf16.msra.mxu0 0
      %1926 = vmatpush.bf16.msra.mxu0 0
      %1927 = vmatpush.bf16.msra.mxu0 0
      %1928 = vmatpush.bf16.msra.mxu0 0
      %1929 = vmatpush.bf16.msra.mxu0 0
      %1930 = vmatpush.bf16.msra.mxu0 0
      %1931 = vmatpush.bf16.msra.mxu0 %v1848
      %1932 = vmatpush.bf16.msra.mxu0 %v1847
      %1933 = vmatmul.bf16.gmra.mxu0 %v1882
      %v1934 = vpop.f32.mrf.mxu0
      %v1935 = vadd.f32 %v1916, %v1934
      %v1936 = vpop.f32.mrf.mxu0
      %v1937 = vadd.f32 %v1918, %v1936
      %1938 = vmatmul.bf16.gmra.mxu0 %v1885
      %v1939 = vpop.f32.mrf.mxu0
      %v1940 = vadd.f32 %v1921, %v1939
      %v1941 = vpop.f32.mrf.mxu0
      %v1942 = vadd.f32 %v1923, %v1941
      %1943 = vdwg.mxu0
      %v1944 = vmul.f32 %v1935, %v1935
      %v1945 = vmul.f32 %v1937, %v1937
      %v1946 = vmul.f32 %v1940, %v1940
      %v1947 = vmul.f32 %v1942, %v1942
      %v1949 = vsel %vm719, %v1935, 0
      %v1952 = vsel %vm719, %v1937, 0
      %v1955 = vsel %vm719, %v1940, 0
      %v1958 = vsel %vm719, %v1942, 0
      %v1961 = vsel %vm719, %v1944, 0
      %v1964 = vsel %vm719, %v1945, 0
      %v1967 = vsel %vm719, %v1946, 0
      %v1970 = vsel %vm719, %v1947, 0
      %1972 = vmatpush.msra.mxu0 0.0
      %1973 = vmatpush.msra.mxu0 0.0
      %1974 = vmatpush.msra.mxu0 0.0
      %1975 = vmatpush.msra.mxu0 0.0
      %1976 = vmatpush.msra.mxu0 0.0
      %1977 = vmatpush.msra.mxu0 0.0
      %1978 = vmatpush.msra.mxu0 0.0
      %1979 = vmatpush.msra.mxu0 0.0
      %1980 = vmatpush.msra.mxu0 %v252
      %1981 = vmatpush.msra.mxu0 %v251
      %1982 = vmatpush.msra.mxu0 %v250
      %1983 = vmatpush.msra.mxu0 %v249
      %1984 = vmatpush.msra.mxu0 %v248
      %1985 = vmatpush.msra.mxu0 %v247
      %1986 = vmatpush.msra.mxu0 %v246
      %1987 = vmatpush.msra.mxu0 %v245
      %1988 = vmatmul.f32.gmra.mxu0 %v1949
      %v1989 = vpop.f32.mrf.mxu0
      %v1990 = vadd.f32 0.0, %v1989
      %1991 = vmatmul.f32.gmra.mxu0 %v1952
      %v1992 = vpop.f32.mrf.mxu0
      %v1993 = vadd.f32 0.0, %v1992
      %1994 = vmatmul.f32.gmra.mxu0 %v1955
      %v1995 = vpop.f32.mrf.mxu0
      %v1996 = vadd.f32 0.0, %v1995
      %1997 = vmatmul.f32.gmra.mxu0 %v1958
      %v1998 = vpop.f32.mrf.mxu0
      %v1999 = vadd.f32 0.0, %v1998
      %2000 = vmatmul.f32.gmra.mxu0 %v1961
      %v2001 = vpop.f32.mrf.mxu0
      %v2002 = vadd.f32 0.0, %v2001
      %2003 = vmatmul.f32.gmra.mxu0 %v1964
      %v2004 = vpop.f32.mrf.mxu0
      %v2005 = vadd.f32 0.0, %v2004
      %2006 = vmatmul.f32.gmra.mxu0 %v1967
      %v2007 = vpop.f32.mrf.mxu0
      %v2008 = vadd.f32 0.0, %v2007
      %2009 = vmatmul.f32.gmra.mxu0 %v1970
      %v2010 = vpop.f32.mrf.mxu0
      %v2011 = vadd.f32 0.0, %v2010
      %2012 = vdwg.mxu0
      %v2013 = vmul.f32 %v1990, 0.0625
      %v2014 = vmul.f32 %v1993, 0.0625
      %v2015 = vmul.f32 %v1996, 0.0625
      %v2016 = vmul.f32 %v1999, 0.0625
      %v2017 = vmul.f32 %v2002, 0.0625
      %v2018 = vmul.f32 %v2005, 0.0625
      %v2019 = vmul.f32 %v2008, 0.0625
      %v2020 = vmul.f32 %v2011, 0.0625
      %v2021 = vmul.f32 %v2013, %v2013
      %v2022 = vmul.f32 %v2014, %v2014
      %v2023 = vmul.f32 %v2015, %v2015
      %v2024 = vmul.f32 %v2016, %v2016
      %v2025 = vsub.f32 %v2017, %v2021
      %v2026 = vsub.f32 %v2018, %v2022
      %v2027 = vsub.f32 %v2019, %v2023
      %v2028 = vsub.f32 %v2020, %v2024
      %v2029 = vmax.f32 %v2025, 0.0
      %v2030 = vmax.f32 %v2026, 0.0
      %v2031 = vmax.f32 %v2027, 0.0
      %v2032 = vmax.f32 %v2028, 0.0
      %v2033 = vadd.f32 %v2029, 1e-05
      %v2034 = vadd.f32 %v2030, 1e-05
      %v2035 = vadd.f32 %v2031, 1e-05
      %v2036 = vadd.f32 %v2032, 1e-05
      %v2037 = vrsqrt.pop %v2033
      %v2038 = vmul.f32 %v2037, %v2033
      %v2039 = vmul.f32 %v2038, %v2037
      %v2040 = vmul.f32 0.5, %v2039
      %v2041 = vsub.f32 1.5, %v2040
      %v2042 = vmul.f32 %v2037, %v2041
      %vm2043 = vweird.f32 %v2033
      %vm2044 = vweird.f32 %v2037
      %vm2045 = vmor %vm2043, %vm2044
      %v2046 = vsel %vm2045, %v2037, %v2042
      %v2047 = vrsqrt.pop %v2034
      %v2048 = vmul.f32 %v2047, %v2034
      %v2049 = vmul.f32 %v2048, %v2047
      %v2050 = vmul.f32 0.5, %v2049
      %v2051 = vsub.f32 1.5, %v2050
      %v2052 = vmul.f32 %v2047, %v2051
      %vm2053 = vweird.f32 %v2034
      %vm2054 = vweird.f32 %v2047
      %vm2055 = vmor %vm2053, %vm2054
      %v2056 = vsel %vm2055, %v2047, %v2052
      %v2057 = vrsqrt.pop %v2035
      %v2058 = vmul.f32 %v2057, %v2035
      %v2059 = vmul.f32 %v2058, %v2057
      %v2060 = vmul.f32 0.5, %v2059
      %v2061 = vsub.f32 1.5, %v2060
      %v2062 = vmul.f32 %v2057, %v2061
      %vm2063 = vweird.f32 %v2035
      %vm2064 = vweird.f32 %v2057
      %vm2065 = vmor %vm2063, %vm2064
      %v2066 = vsel %vm2065, %v2057, %v2062
      %v2067 = vrsqrt.pop %v2036
      %v2068 = vmul.f32 %v2067, %v2036
      %v2069 = vmul.f32 %v2068, %v2067
      %v2070 = vmul.f32 0.5, %v2069
      %v2071 = vsub.f32 1.5, %v2070
      %v2072 = vmul.f32 %v2067, %v2071
      %vm2073 = vweird.f32 %v2036
      %vm2074 = vweird.f32 %v2067
      %vm2075 = vmor %vm2073, %vm2074
      %v2076 = vsel %vm2075, %v2067, %v2072
      %v2077 = vmul.f32 %v2013, %v2046
      %v2078 = vmul.f32 %v2014, %v2056
      %v2079 = vmul.f32 %v2015, %v2066
      %v2080 = vmul.f32 %v2016, %v2076
      %v2082 = vsel %vm317, %v2077, 0
      %v2085 = vsel %vm317, %v2078, 0
      %v2088 = vsel %vm317, %v2079, 0
      %v2091 = vsel %vm317, %v2080, 0
      %v2094 = vsel %vm317, %v2046, 0
      %v2097 = vsel %vm317, %v2056, 0
      %v2100 = vsel %vm317, %v2066, 0
      %v2103 = vsel %vm317, %v2076, 0
      %2105 = vmatpush.msra.mxu0 0.0
      %2106 = vmatpush.msra.mxu0 0.0
      %2107 = vmatpush.msra.mxu0 0.0
      %2108 = vmatpush.msra.mxu0 0.0
      %2109 = vmatpush.msra.mxu0 0.0
      %2110 = vmatpush.msra.mxu0 0.0
      %2111 = vmatpush.msra.mxu0 0.0
      %2112 = vmatpush.msra.mxu0 0.0
      %2113 = vmatpush.msra.mxu0 0.0
      %2114 = vmatpush.msra.mxu0 0.0
      %2115 = vmatpush.msra.mxu0 0.0
      %2116 = vmatpush.msra.mxu0 0.0
      %2117 = vmatpush.msra.mxu0 0.0
      %2118 = vmatpush.msra.mxu0 0.0
      %2119 = vmatpush.msra.mxu0 0.0
      %2120 = vmatpush.msra.mxu0 %v879
      %2121 = vmatmul.f32.gmra.mxu0 %v2082
      %v2122 = vpop.f32.mrf.mxu0
      %v2123 = vadd.f32 0.0, %v2122
      %2124 = vmatmul.f32.gmra.mxu0 %v2085
      %v2125 = vpop.f32.mrf.mxu0
      %v2126 = vadd.f32 0.0, %v2125
      %2127 = vmatmul.f32.gmra.mxu0 %v2088
      %v2128 = vpop.f32.mrf.mxu0
      %v2129 = vadd.f32 0.0, %v2128
      %2130 = vmatmul.f32.gmra.mxu0 %v2091
      %v2131 = vpop.f32.mrf.mxu0
      %v2132 = vadd.f32 0.0, %v2131
      %2133 = vmatmul.f32.gmra.mxu0 %v2094
      %v2134 = vpop.f32.mrf.mxu0
      %v2135 = vadd.f32 0.0, %v2134
      %2136 = vmatmul.f32.gmra.mxu0 %v2097
      %v2137 = vpop.f32.mrf.mxu0
      %v2138 = vadd.f32 0.0, %v2137
      %2139 = vmatmul.f32.gmra.mxu0 %v2100
      %v2140 = vpop.f32.mrf.mxu0
      %v2141 = vadd.f32 0.0, %v2140
      %2142 = vmatmul.f32.gmra.mxu0 %v2103
      %v2143 = vpop.f32.mrf.mxu0
      %v2144 = vadd.f32 0.0, %v2143
      %2145 = vdwg.mxu0
      %v2146 = vmul.f32 %v1935, %v2135
      %v2147 = vmul.f32 %v1937, %v2138
      %v2148 = vmul.f32 %v1940, %v2141
      %v2149 = vmul.f32 %v1942, %v2144
      %v2150 = vsub.f32 %v2146, %v2123
      %v2151 = vsub.f32 %v2147, %v2126
      %v2152 = vsub.f32 %v2148, %v2129
      %v2153 = vsub.f32 %v2149, %v2132
      %vm2154 = vcmp.ge.f32.partialorder %v2150, 0.0
      %vm2155 = vcmp.ge.f32.partialorder %v2151, 0.0
      %vm2156 = vcmp.ge.f32.partialorder %v2152, 0.0
      %vm2157 = vcmp.ge.f32.partialorder %v2153, 0.0
      %v2158 = vmul.f32 %v2150, 0.01
      %v2159 = vmul.f32 %v2151, 0.01
      %v2160 = vmul.f32 %v2152, 0.01
      %v2161 = vmul.f32 %v2153, 0.01
      %v2162 = vsel %vm2154, %v2150, %v2158
      %v2163 = vsel %vm2155, %v2151, %v2159
      %v2164 = vsel %vm2156, %v2152, %v2160
      %v2165 = vsel %vm2157, %v2153, %v2161
      %v2166 = vpack.c.bf16 %v2163, %v2162
      %v2167 = vpack.c.bf16 %v2165, %v2164
      %v2168 = vld [vmem:[%s2] sm:$0xf]
      %v2169 = vld [vmem:[%s2 + $0x4] sm:$0xf]
      %v2170 = vld [vmem:[%s2 + $0x8] sm:$0xf]
      %v2171 = vld [vmem:[%s2 + $0xc] sm:$0xf]
      %v2172 = vld [vmem:[%s2 + $0x10] sm:$0xf]
      %v2173 = vld [vmem:[%s2 + $0x14] sm:$0xf]
      %v2174 = vld [vmem:[%s2 + $0x18] sm:$0xf]
      %v2175 = vld [vmem:[%s2 + $0x1c] sm:$0xf]
      %v2184 = vunpack.c.l.b16 %v2168
      %v2185 = vunpack.c.l.b16 %v2169
      %v2186 = vunpack.c.l.b16 %v2170
      %v2187 = vunpack.c.l.b16 %v2171
      %v2188 = vunpack.c.l.b16 %v2172
      %v2189 = vunpack.c.l.b16 %v2173
      %v2190 = vunpack.c.l.b16 %v2174
      %v2191 = vunpack.c.l.b16 %v2175
      %v2192 = vpack.c.b16 %v2185, %v2184
      %v2193 = vpack.c.b16 %v2187, %v2186
      %v2194 = vpack.c.b16 %v2189, %v2188
      %v2195 = vpack.c.b16 %v2191, %v2190
      %v2197 = vsel %vm651, %v2192, 0
      %v2200 = vsel %vm651, %v2193, 0
      %v2203 = vsel %vm651, %v2194, 0
      %v2206 = vsel %vm651, %v2195, 0
      %2208 = vmatpush.bf16.msra.mxu0 0
      %2209 = vmatpush.bf16.msra.mxu0 0
      %2210 = vmatpush.bf16.msra.mxu0 0
      %2211 = vmatpush.bf16.msra.mxu0 0
      %2212 = vmatpush.bf16.msra.mxu0 0
      %2213 = vmatpush.bf16.msra.mxu0 0
      %2214 = vmatpush.bf16.msra.mxu0 %v2167
      %2215 = vmatpush.bf16.msra.mxu0 %v2166
      %2216 = vmatmul.bf16.gmra.mxu0 %v2197
      %v2217 = vpop.f32.mrf.mxu0
      %v2218 = vadd.f32 0.0, %v2217
      %v2219 = vpop.f32.mrf.mxu0
      %v2220 = vadd.f32 0.0, %v2219
      %2221 = vmatmul.bf16.gmra.mxu0 %v2200
      %v2222 = vpop.f32.mrf.mxu0
      %v2223 = vadd.f32 0.0, %v2222
      %v2224 = vpop.f32.mrf.mxu0
      %v2225 = vadd.f32 0.0, %v2224
      %2226 = vmatmul.bf16.gmra.mxu0 %v2203
      %v2227 = vpop.f32.mrf.mxu0
      %v2228 = vadd.f32 0.0, %v2227
      %v2229 = vpop.f32.mrf.mxu0
      %v2230 = vadd.f32 0.0, %v2229
      %2231 = vmatmul.bf16.gmra.mxu0 %v2206
      %v2232 = vpop.f32.mrf.mxu0
      %v2233 = vadd.f32 0.0, %v2232
      %v2234 = vpop.f32.mrf.mxu0
      %v2235 = vadd.f32 0.0, %v2234
      %2236 = vdwg.mxu0
      %v2237 = vmul.f32 %v2218, %v2218
      %v2238 = vmul.f32 %v2220, %v2220
      %v2239 = vmul.f32 %v2223, %v2223
      %v2240 = vmul.f32 %v2225, %v2225
      %v2241 = vmul.f32 %v2228, %v2228
      %v2242 = vmul.f32 %v2230, %v2230
      %v2243 = vmul.f32 %v2233, %v2233
      %v2244 = vmul.f32 %v2235, %v2235
      %v2246 = vsel %vm719, %v2218, 0
      %v2249 = vsel %vm719, %v2220, 0
      %v2252 = vsel %vm719, %v2223, 0
      %v2255 = vsel %vm719, %v2225, 0
      %v2258 = vsel %vm719, %v2228, 0
      %v2261 = vsel %vm719, %v2230, 0
      %v2264 = vsel %vm719, %v2233, 0
      %v2267 = vsel %vm719, %v2235, 0
      %v2270 = vsel %vm719, %v2237, 0
      %v2273 = vsel %vm719, %v2238, 0
      %v2276 = vsel %vm719, %v2239, 0
      %v2279 = vsel %vm719, %v2240, 0
      %v2282 = vsel %vm719, %v2241, 0
      %v2285 = vsel %vm719, %v2242, 0
      %v2288 = vsel %vm719, %v2243, 0
      %v2291 = vsel %vm719, %v2244, 0
      %2293 = vmatpush.msra.mxu0 0.0
      %2294 = vmatpush.msra.mxu0 0.0
      %2295 = vmatpush.msra.mxu0 0.0
      %2296 = vmatpush.msra.mxu0 0.0
      %2297 = vmatpush.msra.mxu0 0.0
      %2298 = vmatpush.msra.mxu0 0.0
      %2299 = vmatpush.msra.mxu0 0.0
      %2300 = vmatpush.msra.mxu0 0.0
      %2301 = vmatpush.msra.mxu0 %v252
      %2302 = vmatpush.msra.mxu0 %v251
      %2303 = vmatpush.msra.mxu0 %v250
      %2304 = vmatpush.msra.mxu0 %v249
      %2305 = vmatpush.msra.mxu0 %v248
      %2306 = vmatpush.msra.mxu0 %v247
      %2307 = vmatpush.msra.mxu0 %v246
      %2308 = vmatpush.msra.mxu0 %v245
      %2309 = vmatmul.f32.gmra.mxu0 %v2246
      %v2310 = vpop.f32.mrf.mxu0
      %v2311 = vadd.f32 0.0, %v2310
      %2312 = vmatmul.f32.gmra.mxu0 %v2249
      %v2313 = vpop.f32.mrf.mxu0
      %v2314 = vadd.f32 0.0, %v2313
      %2315 = vmatmul.f32.gmra.mxu0 %v2252
      %v2316 = vpop.f32.mrf.mxu0
      %v2317 = vadd.f32 0.0, %v2316
      %2318 = vmatmul.f32.gmra.mxu0 %v2255
      %v2319 = vpop.f32.mrf.mxu0
      %v2320 = vadd.f32 0.0, %v2319
      %2321 = vmatmul.f32.gmra.mxu0 %v2258
      %v2322 = vpop.f32.mrf.mxu0
      %v2323 = vadd.f32 0.0, %v2322
      %2324 = vmatmul.f32.gmra.mxu0 %v2261
      %v2325 = vpop.f32.mrf.mxu0
      %v2326 = vadd.f32 0.0, %v2325
      %2327 = vmatmul.f32.gmra.mxu0 %v2264
      %v2328 = vpop.f32.mrf.mxu0
      %v2329 = vadd.f32 0.0, %v2328
      %2330 = vmatmul.f32.gmra.mxu0 %v2267
      %v2331 = vpop.f32.mrf.mxu0
      %v2332 = vadd.f32 0.0, %v2331
      %2333 = vmatmul.f32.gmra.mxu0 %v2270
      %v2334 = vpop.f32.mrf.mxu0
      %v2335 = vadd.f32 0.0, %v2334
      %2336 = vmatmul.f32.gmra.mxu0 %v2273
      %v2337 = vpop.f32.mrf.mxu0
      %v2338 = vadd.f32 0.0, %v2337
      %2339 = vmatmul.f32.gmra.mxu0 %v2276
      %v2340 = vpop.f32.mrf.mxu0
      %v2341 = vadd.f32 0.0, %v2340
      %2342 = vmatmul.f32.gmra.mxu0 %v2279
      %v2343 = vpop.f32.mrf.mxu0
      %v2344 = vadd.f32 0.0, %v2343
      %2345 = vmatmul.f32.gmra.mxu0 %v2282
      %v2346 = vpop.f32.mrf.mxu0
      %v2347 = vadd.f32 0.0, %v2346
      %2348 = vmatmul.f32.gmra.mxu0 %v2285
      %v2349 = vpop.f32.mrf.mxu0
      %v2350 = vadd.f32 0.0, %v2349
      %2351 = vmatmul.f32.gmra.mxu0 %v2288
      %v2352 = vpop.f32.mrf.mxu0
      %v2353 = vadd.f32 0.0, %v2352
      %2354 = vmatmul.f32.gmra.mxu0 %v2291
      %v2355 = vpop.f32.mrf.mxu0
      %v2356 = vadd.f32 0.0, %v2355
      %2357 = vdwg.mxu0
      %v2358 = vadd.f32 %v2311, 0.0
      %v2359 = vadd.f32 %v2314, 0.0
      %v2360 = vadd.f32 %v2358, %v2317
      %v2361 = vadd.f32 %v2359, %v2320
      %v2362 = vadd.f32 %v2360, %v2323
      %v2363 = vadd.f32 %v2361, %v2326
      %v2364 = vadd.f32 %v2362, %v2329
      %v2365 = vadd.f32 %v2363, %v2332
      %v2366 = vadd.f32 %v2335, 0.0
      %v2367 = vadd.f32 %v2338, 0.0
      %v2368 = vadd.f32 %v2366, %v2341
      %v2369 = vadd.f32 %v2367, %v2344
      %v2370 = vadd.f32 %v2368, %v2347
      %v2371 = vadd.f32 %v2369, %v2350
      %v2372 = vadd.f32 %v2370, %v2353
      %v2373 = vadd.f32 %v2371, %v2356
      %v2374 = vmul.f32 %v2364, 0.015625
      %v2375 = vmul.f32 %v2365, 0.015625
      %v2376 = vmul.f32 %v2372, 0.015625
      %v2377 = vmul.f32 %v2373, 0.015625
      %v2378 = vmul.f32 %v2374, %v2374
      %v2379 = vmul.f32 %v2375, %v2375
      %v2380 = vsub.f32 %v2376, %v2378
      %v2381 = vsub.f32 %v2377, %v2379
      %v2382 = vmax.f32 %v2380, 0.0
      %v2383 = vmax.f32 %v2381, 0.0
      %v2384 = vadd.f32 %v2382, 1e-05
      %v2385 = vadd.f32 %v2383, 1e-05
      %v2386 = vrsqrt.pop %v2384
      %v2387 = vmul.f32 %v2386, %v2384
      %v2388 = vmul.f32 %v2387, %v2386
      %v2389 = vmul.f32 0.5, %v2388
      %v2390 = vsub.f32 1.5, %v2389
      %v2391 = vmul.f32 %v2386, %v2390
      %vm2392 = vweird.f32 %v2384
      %vm2393 = vweird.f32 %v2386
      %vm2394 = vmor %vm2392, %vm2393
      %v2395 = vsel %vm2394, %v2386, %v2391
      %v2396 = vrsqrt.pop %v2385
      %v2397 = vmul.f32 %v2396, %v2385
      %v2398 = vmul.f32 %v2397, %v2396
      %v2399 = vmul.f32 0.5, %v2398
      %v2400 = vsub.f32 1.5, %v2399
      %v2401 = vmul.f32 %v2396, %v2400
      %vm2402 = vweird.f32 %v2385
      %vm2403 = vweird.f32 %v2396
      %vm2404 = vmor %vm2402, %vm2403
      %v2405 = vsel %vm2404, %v2396, %v2401
      %v2406 = vmul.f32 %v2374, %v2395
      %v2407 = vmul.f32 %v2375, %v2405
      %v2409 = vsel %vm317, %v2406, 0
      %v2412 = vsel %vm317, %v2407, 0
      %v2415 = vsel %vm317, %v2395, 0
      %v2418 = vsel %vm317, %v2405, 0
      %2420 = vmatpush.msra.mxu0 0.0
      %2421 = vmatpush.msra.mxu0 0.0
      %2422 = vmatpush.msra.mxu0 0.0
      %2423 = vmatpush.msra.mxu0 0.0
      %2424 = vmatpush.msra.mxu0 0.0
      %2425 = vmatpush.msra.mxu0 0.0
      %2426 = vmatpush.msra.mxu0 0.0
      %2427 = vmatpush.msra.mxu0 0.0
      %2428 = vmatpush.msra.mxu0 0.0
      %2429 = vmatpush.msra.mxu0 0.0
      %2430 = vmatpush.msra.mxu0 0.0
      %2431 = vmatpush.msra.mxu0 0.0
      %2432 = vmatpush.msra.mxu0 0.0
      %2433 = vmatpush.msra.mxu0 0.0
      %2434 = vmatpush.msra.mxu0 0.0
      %2435 = vmatpush.msra.mxu0 %v879
      %2436 = vmatmul.f32.gmra.mxu0 %v2409
      %v2437 = vpop.f32.mrf.mxu0
      %v2438 = vadd.f32 0.0, %v2437
      %2439 = vmatmul.f32.gmra.mxu0 %v2412
      %v2440 = vpop.f32.mrf.mxu0
      %v2441 = vadd.f32 0.0, %v2440
      %2442 = vmatmul.f32.gmra.mxu0 %v2415
      %v2443 = vpop.f32.mrf.mxu0
      %v2444 = vadd.f32 0.0, %v2443
      %2445 = vmatmul.f32.gmra.mxu0 %v2418
      %v2446 = vpop.f32.mrf.mxu0
      %v2447 = vadd.f32 0.0, %v2446
      %2448 = vdwg.mxu0
      %v2449 = vmul.f32 %v2218, %v2444
      %v2450 = vmul.f32 %v2220, %v2447
      %v2451 = vmul.f32 %v2223, %v2444
      %v2452 = vmul.f32 %v2225, %v2447
      %v2453 = vmul.f32 %v2228, %v2444
      %v2454 = vmul.f32 %v2230, %v2447
      %v2455 = vmul.f32 %v2233, %v2444
      %v2456 = vmul.f32 %v2235, %v2447
      %v2457 = vsub.f32 %v2449, %v2438
      %v2458 = vsub.f32 %v2450, %v2441
      %v2459 = vsub.f32 %v2451, %v2438
      %v2460 = vsub.f32 %v2452, %v2441
      %v2461 = vsub.f32 %v2453, %v2438
      %v2462 = vsub.f32 %v2454, %v2441
      %v2463 = vsub.f32 %v2455, %v2438
      %v2464 = vsub.f32 %v2456, %v2441
      %vm2465 = vcmp.ge.f32.partialorder %v2457, 0.0
      %vm2466 = vcmp.ge.f32.partialorder %v2458, 0.0
      %vm2467 = vcmp.ge.f32.partialorder %v2459, 0.0
      %vm2468 = vcmp.ge.f32.partialorder %v2460, 0.0
      %vm2469 = vcmp.ge.f32.partialorder %v2461, 0.0
      %vm2470 = vcmp.ge.f32.partialorder %v2462, 0.0
      %vm2471 = vcmp.ge.f32.partialorder %v2463, 0.0
      %vm2472 = vcmp.ge.f32.partialorder %v2464, 0.0
      %v2473 = vmul.f32 %v2457, 0.01
      %v2474 = vmul.f32 %v2458, 0.01
      %v2475 = vmul.f32 %v2459, 0.01
      %v2476 = vmul.f32 %v2460, 0.01
      %v2477 = vmul.f32 %v2461, 0.01
      %v2478 = vmul.f32 %v2462, 0.01
      %v2479 = vmul.f32 %v2463, 0.01
      %v2480 = vmul.f32 %v2464, 0.01
      %v2481 = vsel %vm2465, %v2457, %v2473
      %v2482 = vsel %vm2466, %v2458, %v2474
      %v2483 = vsel %vm2467, %v2459, %v2475
      %v2484 = vsel %vm2468, %v2460, %v2476
      %v2485 = vsel %vm2469, %v2461, %v2477
      %v2486 = vsel %vm2470, %v2462, %v2478
      %v2487 = vsel %vm2471, %v2463, %v2479
      %v2488 = vsel %vm2472, %v2464, %v2480
      %v2489 = vpack.c.bf16 %v2481, %v2481
      %v2490 = vpack.c.bf16 %v2482, %v2482
      %v2491 = vpack.c.bf16 %v2483, %v2483
      %v2492 = vpack.c.bf16 %v2484, %v2484
      %v2493 = vpack.c.bf16 %v2485, %v2485
      %v2494 = vpack.c.bf16 %v2486, %v2486
      %v2495 = vpack.c.bf16 %v2487, %v2487
      %v2496 = vpack.c.bf16 %v2488, %v2488
      %vm2497 = vcmask 519168
      %2498 = vst.msk [vmem:[%s197] sm:$0xf] %vm2497, %v2489
      %2499 = vst.msk [vmem:[%s197 + $0x4] sm:$0xf] %vm2497, %v2490
      %2500 = vst.msk [vmem:[%s197 + $0x8] sm:$0xf] %vm2497, %v2491
      %2501 = vst.msk [vmem:[%s197 + $0xc] sm:$0xf] %vm2497, %v2492
      %2502 = vst.msk [vmem:[%s197 + $0x10] sm:$0xf] %vm2497, %v2493
      %2503 = vst.msk [vmem:[%s197 + $0x14] sm:$0xf] %vm2497, %v2494
      %2504 = vst.msk [vmem:[%s197 + $0x18] sm:$0xf] %vm2497, %v2495
      %2505 = vst.msk [vmem:[%s197 + $0x1c] sm:$0xf] %vm2497, %v2496
      %p2506 = scmp.lt.s32.totalorder %s15, 1
      %s2507 = scalar_select %p2506, %s15, 1
      %s2508 = smul.addr %s2507, 8
      %s2509 = smul.addr %s2508, 4
      %s2510 = scalar_lea.vmem %s4, %s2509
      // Predicated region
      $region37: #{generator_liu_forward.5} parent=35 // pred_check
        %p2511 = pneg %p122
      $region38: #{generator_liu_forward.5} parent=35 // pred_check_branch
        %2513 = sbr.rel (%p2511) target = $region40
      $region39: #{generator_liu_forward.5} parent=35 // pred_region
        _
      $region40: #{generator_liu_forward.5} parent=35 // pred_fallthru
        _
    $region36: #{generator_liu_forward.5} parent=5 // pred_fallthru
      _
    %p2514 = scmp.le.s32.totalorder 2, %s10
    // Predicated region
    $region41: #{generator_liu_forward.5} parent=5 // pred_check
      %p2515 = pneg %p2514
    $region42: #{generator_liu_forward.5} parent=5 // pred_check_branch
      %2517 = sbr.rel (%p2515) target = $region44
    $region43: #{generator_liu_forward.5} parent=5 // pred_region
      %s2518 = ssub.s32 %s10, 2
      // Predicated region
      $region45: #{generator_liu_forward.5} parent=43 // pred_check
        %p2519 = pneg %p128
      $region46: #{generator_liu_forward.5} parent=43 // pred_check_branch
        %2521 = sbr.rel (%p2519) target = $region48
      $region47: #{generator_liu_forward.5} parent=43 // pred_region
        %p2522 = scmp.lt.s32.totalorder %s16, 1
        %s2523 = scalar_select %p2522, %s16, 1
        %s2524 = smul.addr %s2523, 8
        %s2525 = smul.addr %s2524, 4
        %s2526 = scalar_lea.vmem %s4, %s2525
      $region48: #{generator_liu_forward.5} parent=43 // pred_fallthru
        _
    $region44: #{generator_liu_forward.5} parent=5 // pred_fallthru
      _
  $region6: #{generator_liu_forward.5} parent=0 // loop_footer
    %s14 = sadd.s32 1, %s10
  $region7: #{generator_liu_forward.5} parent=0 // loop_footer_branch
    %9 = sbr.rel target = $region3
  $region8: #{generator_liu_forward.5} parent=0 // loop_exit
    _

// kernel: generator_liu_forward.6
$region0: #{generator_liu_forward.6}
  #allocation0 [shape = 'u32[]', space=smem, size = 0x4, offset = 0x4, fixed_abs, tag = 'smem constant byte address 0x4 - core index']
  #allocation1 [shape = 'u32[72,128]{1,0:T(1,128)}', space=vmem, size = 0x9000, scoped, tag = 'internal scratch']
  %s0 = inlined_call_operand.vmem [shape: bf16[2,16,256], index: 0, kind: input, shape index: {}]
  %s1 = inlined_call_operand.vmem [shape: bf16[3,16,144], index: 1, kind: input, shape index: {}]
  %s2 = inlined_call_operand.vmem [shape: bf16[32,16], index: 2, kind: input, shape index: {}]
  %s3 = inlined_call_operand.vmem [shape: bf16[9,1,256], index: 3, kind: input, shape index: {}]
  %s4 = inlined_call_operand.vmem [shape: bf16[2,32,256], index: 4, kind: output, shape index: {}]
  %s5 = sld [smem:[#allocation0]]
  $region49: #{generator_liu_forward.6} parent=0
    _
  %s7 = ssub.s32 1, %s5
  %s8 = scalar_select 0, %s7, %s5
  loop: start=0, step=1, limit=4
  $region2: #{generator_liu_forward.6} parent=0 // loop_pre_header
    _
  $region3: #{generator_liu_forward.6} parent=0 // loop_header
    %s10 = sphi 0, %s14
    %p11 = scmp.ge.s32.totalorder %s10, 4
    %s20 = sphi 0, %s22
    %s23 = sphi 0, %s20
    %s24 = sphi 0, %s23
    %s40 = sphi 0, %s24
    %s44 = sphi 0, %s44
    %s46 = sphi 0, %s44
    %s47 = sphi 0, %s46
    %s61 = sphi 0, %s47
    %s65 = sphi 0, %s65
    %s67 = sphi 0, %s65
    %s68 = sphi 0, %s67
    %s82 = sphi 0, %s68
    %s86 = sphi 0, %s86
    %s88 = sphi 0, %s86
    %s89 = sphi 0, %s88
    %s103 = sphi 0, %s89
    %s109 = sphi 0, %s111
    %s112 = sphi 0, %s109
    %s113 = sphi 0, %s112
    %s129 = sphi 0, %s113
  $region4: #{generator_liu_forward.6} parent=0 // loop_header_branch
    %13 = sbr.rel (%p11) target = $region8
  $region5: #{generator_liu_forward.6} parent=0 // loop_body
    %s15 = ssub.s32 %s10, 1
    %s16 = ssub.s32 %s10, 2
    %s17 = sadd.s32 %s10, 1
    %s18 = ssub.s32 %s10, %s17
    %p19 = scmp.eq.s32.totalorder %s18, 0
    %s21 = sadd.s32 %s20, 1
    %s22 = scalar_select %p19, %s20, %s21
    %p25 = pneg %p19
    %p26 = scmp.eq.s32.totalorder %s10, 1
    %p27 = por %p25, %p26
    %p28 = scmp.ne.s32.totalorder %s20, %s23
    %p29 = scmp.eq.s32.totalorder %s10, 0
    %p30 = por %p28, %p29
    %p31 = scmp.ne.s32.totalorder %s20, %s23
    %p32 = scmp.eq.s32.totalorder %s15, 1
    %p33 = por %p31, %p32
    %p34 = scmp.ne.s32.totalorder %s23, %s24
    %p35 = scmp.eq.s32.totalorder %s15, 0
    %p36 = por %p34, %p35
    %p37 = scmp.ne.s32.totalorder %s23, %s24
    %p38 = scmp.eq.s32.totalorder %s16, 1
    %p39 = por %p37, %p38
    %p41 = scmp.ne.s32.totalorder %s24, %s40
    %p42 = scmp.eq.s32.totalorder %s16, 0
    %p43 = por %p41, %p42
    %s45 = sadd.s32 %s44, 1
    %p48 = scmp.eq.s32.totalorder %s10, 1
    %p49 = scmp.ne.s32.totalorder %s44, %s46
    %p50 = scmp.eq.s32.totalorder %s10, 0
    %p51 = por %p49, %p50
    %p52 = scmp.ne.s32.totalorder %s44, %s46
    %p53 = scmp.eq.s32.totalorder %s15, 1
    %p54 = por %p52, %p53
    %p55 = scmp.ne.s32.totalorder %s46, %s47
    %p56 = scmp.eq.s32.totalorder %s15, 0
    %p57 = por %p55, %p56
    %p58 = scmp.ne.s32.totalorder %s46, %s47
    %p59 = scmp.eq.s32.totalorder %s16, 1
    %p60 = por %p58, %p59
    %p62 = scmp.ne.s32.totalorder %s47, %s61
    %p63 = scmp.eq.s32.totalorder %s16, 0
    %p64 = por %p62, %p63
    %s66 = sadd.s32 %s65, 1
    %p69 = scmp.eq.s32.totalorder %s10, 1
    %p70 = scmp.ne.s32.totalorder %s65, %s67
    %p71 = scmp.eq.s32.totalorder %s10, 0
    %p72 = por %p70, %p71
    %p73 = scmp.ne.s32.totalorder %s65, %s67
    %p74 = scmp.eq.s32.totalorder %s15, 1
    %p75 = por %p73, %p74
    %p76 = scmp.ne.s32.totalorder %s67, %s68
    %p77 = scmp.eq.s32.totalorder %s15, 0
    %p78 = por %p76, %p77
    %p79 = scmp.ne.s32.totalorder %s67, %s68
    %p80 = scmp.eq.s32.totalorder %s16, 1
    %p81 = por %p79, %p80
    %p83 = scmp.ne.s32.totalorder %s68, %s82
    %p84 = scmp.eq.s32.totalorder %s16, 0
    %p85 = por %p83, %p84
    %s87 = sadd.s32 %s86, 1
    %p90 = scmp.eq.s32.totalorder %s10, 1
    %p91 = scmp.ne.s32.totalorder %s86, %s88
    %p92 = scmp.eq.s32.totalorder %s10, 0
    %p93 = por %p91, %p92
    %p94 = scmp.ne.s32.totalorder %s86, %s88
    %p95 = scmp.eq.s32.totalorder %s15, 1
    %p96 = por %p94, %p95
    %p97 = scmp.ne.s32.totalorder %s88, %s89
    %p98 = scmp.eq.s32.totalorder %s15, 0
    %p99 = por %p97, %p98
    %p100 = scmp.ne.s32.totalorder %s88, %s89
    %p101 = scmp.eq.s32.totalorder %s16, 1
    %p102 = por %p100, %p101
    %p104 = scmp.ne.s32.totalorder %s89, %s103
    %p105 = scmp.eq.s32.totalorder %s16, 0
    %p106 = por %p104, %p105
    %s107 = ssub.s32 %s10, %s17
    %p108 = scmp.eq.s32.totalorder %s107, 0
    %s110 = sadd.s32 %s109, 1
    %s111 = scalar_select %p108, %s109, %s110
    %p114 = pneg %p108
    %p115 = scmp.eq.s32.totalorder %s10, 1
    %p116 = por %p114, %p115
    %p117 = scmp.ne.s32.totalorder %s109, %s112
    %p118 = scmp.eq.s32.totalorder %s10, 0
    %p119 = por %p117, %p118
    %p120 = scmp.ne.s32.totalorder %s109, %s112
    %p121 = scmp.eq.s32.totalorder %s15, 1
    %p122 = por %p120, %p121
    %p123 = scmp.ne.s32.totalorder %s112, %s113
    %p124 = scmp.eq.s32.totalorder %s15, 0
    %p125 = por %p123, %p124
    %p126 = scmp.ne.s32.totalorder %s112, %s113
    %p127 = scmp.eq.s32.totalorder %s16, 1
    %p128 = por %p126, %p127
    %p130 = scmp.ne.s32.totalorder %s113, %s129
    %p131 = scmp.eq.s32.totalorder %s16, 0
    %p132 = por %p130, %p131
    %p133 = scmp.le.s32.totalorder 1, %s10
    %p134 = scmp.lt.s32.totalorder %s10, 3
    %p135 = pnand %p133, %p134
    %p136 = pneg %p135
    // Predicated region
    $region9: #{generator_liu_forward.6} parent=5 // pred_check
      _
    $region10: #{generator_liu_forward.6} parent=5 // pred_check_branch
      %138 = sbr.rel (%p135) target = $region12
    $region11: #{generator_liu_forward.6} parent=5 // pred_region
      %s139 = ssub.s32 %s10, 1
      // Predicated region
      $region13: #{generator_liu_forward.6} parent=11 // pred_check
        %p140 = pneg %p57
      $region14: #{generator_liu_forward.6} parent=11 // pred_check_branch
        %142 = sbr.rel (%p140) target = $region16
      $region15: #{generator_liu_forward.6} parent=11 // pred_region
        _
      $region16: #{generator_liu_forward.6} parent=11 // pred_fallthru
        _
      // Predicated region
      $region17: #{generator_liu_forward.6} parent=11 // pred_check
        %p143 = pneg %p78
      $region18: #{generator_liu_forward.6} parent=11 // pred_check_branch
        %145 = sbr.rel (%p143) target = $region20
      $region19: #{generator_liu_forward.6} parent=11 // pred_region
        _
      $region20: #{generator_liu_forward.6} parent=11 // pred_fallthru
        _
      // Predicated region
      $region21: #{generator_liu_forward.6} parent=11 // pred_check
        %p146 = pneg %p99
      $region22: #{generator_liu_forward.6} parent=11 // pred_check_branch
        %148 = sbr.rel (%p146) target = $region24
      $region23: #{generator_liu_forward.6} parent=11 // pred_region
        _
      $region24: #{generator_liu_forward.6} parent=11 // pred_fallthru
        _
    $region12: #{generator_liu_forward.6} parent=5 // pred_fallthru
      _
    %p149 = scmp.lt.s32.totalorder %s10, 2
    // Predicated region
    $region25: #{generator_liu_forward.6} parent=5 // pred_check
      %p150 = pneg %p149
    $region26: #{generator_liu_forward.6} parent=5 // pred_check_branch
      %152 = sbr.rel (%p150) target = $region28
    $region27: #{generator_liu_forward.6} parent=5 // pred_region
      // Predicated region
      $region29: #{generator_liu_forward.6} parent=27 // pred_check
        %p153 = pneg %p30
      $region30: #{generator_liu_forward.6} parent=27 // pred_check_branch
        %155 = sbr.rel (%p153) target = $region32
      $region31: #{generator_liu_forward.6} parent=27 // pred_region
        %p156 = scmp.lt.s32.totalorder %s10, 1
        %s157 = scalar_select %p156, %s10, 1
        %s158 = smul.addr %s157, 4
        %s159 = smul.addr %s158, 4
        %s160 = scalar_lea.vmem %s0, %s159
      $region32: #{generator_liu_forward.6} parent=27 // pred_fallthru
        _
    $region28: #{generator_liu_forward.6} parent=5 // pred_fallthru
      _
    %p161 = scmp.le.s32.totalorder 1, %s10
    %p162 = scmp.lt.s32.totalorder %s10, 3
    %p163 = pnand %p161, %p162
    %p164 = pneg %p163
    // Predicated region
    $region33: #{generator_liu_forward.6} parent=5 // pred_check
      _
    $region34: #{generator_liu_forward.6} parent=5 // pred_check_branch
      %166 = sbr.rel (%p163) target = $region36
    $region35: #{generator_liu_forward.6} parent=5 // pred_region
      %s167 = ssub.s32 %s10, 1
      %p168 = scmp.lt.s32.totalorder %s15, 1
      %s169 = scalar_select %p168, %s15, 1
      %s170 = smul.addr %s169, 4
      %s171 = smul.addr %s170, 4
      %s172 = scalar_lea.vmem %s0, %s171
      %p173 = pneg %p36
      %p174 = pneg %p33
      %p175 = pneg %p57
      %p176 = pneg %p54
      %p177 = pneg %p78
      %p178 = pneg %p75
      %p179 = pneg %p99
      %p180 = pneg %p96
      %p181 = pneg %p125
      %p182 = pneg %p122
      %p183 = scmp.lt.s32.totalorder %s15, 1
      %s184 = scalar_select %p183, %s15, 1
      %s185 = smul.addr %s184, 8
      %s186 = smul.addr %s185, 4
      %s187 = scalar_lea.vmem %s4, %s186
      %p188 = scmp.lt.s32.totalorder %s15, 1
      %s189 = scalar_select %p188, %s15, 1
      %s190 = smul.addr %s189, 4
      %s191 = smul.addr %s190, 4
      %s192 = scalar_lea.vmem %s0, %s191
      %p193 = scmp.lt.s32.totalorder %s15, 1
      %s194 = scalar_select %p193, %s15, 1
      %s195 = smul.addr %s194, 8
      %s196 = smul.addr %s195, 4
      %s197 = scalar_lea.vmem %s4, %s196
      %v199 = vlaneseq
      %v200 = vshrl.u32 %v199, 7
      %v201 = vadd.s32 %v200, 8
      %v202 = vadd.s32 %v200, 16
      %v203 = vadd.s32 %v200, 24
      %v204 = vadd.s32 %v200, 32
      %v205 = vadd.s32 %v200, 40
      %v206 = vadd.s32 %v200, 48
      %v207 = vadd.s32 %v200, 56
      %v208 = vadd.s32 %v200, 64
      %v209 = vadd.s32 %v200, 72
      %v210 = vadd.s32 %v200, 80
      %v211 = vadd.s32 %v200, 88
      %v212 = vadd.s32 %v200, 96
      %v213 = vadd.s32 %v200, 104
      %v214 = vadd.s32 %v200, 112
      %v215 = vadd.s32 %v200, 120
      %v216 = vadd.s32 %v200, 128
      %v217 = vadd.s32 %v200, 136
      %v218 = vadd.s32 %v200, 144
      %v219 = vadd.s32 %v200, 152
      %v220 = vadd.s32 %v200, 160
      %v221 = vadd.s32 %v200, 168
      %v222 = vadd.s32 %v200, 176
      %v223 = vadd.s32 %v200, 184
      %v224 = vadd.s32 %v200, 192
      %v225 = vadd.s32 %v200, 200
      %v226 = vadd.s32 %v200, 208
      %v227 = vadd.s32 %v200, 216
      %v228 = vadd.s32 %v200, 224
      %v229 = vadd.s32 %v200, 232
      %v230 = vadd.s32 %v200, 240
      %v231 = vadd.s32 %v200, 248
      %v232 = vlaneseq
      %v233 = vand.u32 %v232, 127
      %v234 = vmul.u32 %v233, 64
      %vm235 = vcmp.ge.s32.totalorder %v200, %v234
      %vm236 = vcmp.ge.s32.totalorder %v201, %v234
      %vm237 = vcmp.ge.s32.totalorder %v202, %v234
      %vm238 = vcmp.ge.s32.totalorder %v203, %v234
      %vm239 = vcmp.ge.s32.totalorder %v204, %v234
      %vm240 = vcmp.ge.s32.totalorder %v205, %v234
      %vm241 = vcmp.ge.s32.totalorder %v206, %v234
      %vm242 = vcmp.ge.s32.totalorder %v207, %v234
      %vm243 = vcmp.ge.s32.totalorder %v208, %v234
      %vm244 = vcmp.ge.s32.totalorder %v209, %v234
      %vm245 = vcmp.ge.s32.totalorder %v210, %v234
      %vm246 = vcmp.ge.s32.totalorder %v211, %v234
      %vm247 = vcmp.ge.s32.totalorder %v212, %v234
      %vm248 = vcmp.ge.s32.totalorder %v213, %v234
      %vm249 = vcmp.ge.s32.totalorder %v214, %v234
      %vm250 = vcmp.ge.s32.totalorder %v215, %v234
      %vm251 = vcmp.ge.s32.totalorder %v216, %v234
      %vm252 = vcmp.ge.s32.totalorder %v217, %v234
      %vm253 = vcmp.ge.s32.totalorder %v218, %v234
      %vm254 = vcmp.ge.s32.totalorder %v219, %v234
      %vm255 = vcmp.ge.s32.totalorder %v220, %v234
      %vm256 = vcmp.ge.s32.totalorder %v221, %v234
      %vm257 = vcmp.ge.s32.totalorder %v222, %v234
      %vm258 = vcmp.ge.s32.totalorder %v223, %v234
      %vm259 = vcmp.ge.s32.totalorder %v224, %v234
      %vm260 = vcmp.ge.s32.totalorder %v225, %v234
      %vm261 = vcmp.ge.s32.totalorder %v226, %v234
      %vm262 = vcmp.ge.s32.totalorder %v227, %v234
      %vm263 = vcmp.ge.s32.totalorder %v228, %v234
      %vm264 = vcmp.ge.s32.totalorder %v229, %v234
      %vm265 = vcmp.ge.s32.totalorder %v230, %v234
      %vm266 = vcmp.ge.s32.totalorder %v231, %v234
      %v267 = vadd.s32 %v233, 1
      %v268 = vmul.u32 %v267, 64
      %vm269 = vcmp.lt.s32.totalorder %v200, %v268
      %vm270 = vcmp.lt.s32.totalorder %v201, %v268
      %vm271 = vcmp.lt.s32.totalorder %v202, %v268
      %vm272 = vcmp.lt.s32.totalorder %v203, %v268
      %vm273 = vcmp.lt.s32.totalorder %v204, %v268
      %vm274 = vcmp.lt.s32.totalorder %v205, %v268
      %vm275 = vcmp.lt.s32.totalorder %v206, %v268
      %vm276 = vcmp.lt.s32.totalorder %v207, %v268
      %vm277 = vcmp.lt.s32.totalorder %v208, %v268
      %vm278 = vcmp.lt.s32.totalorder %v209, %v268
      %vm279 = vcmp.lt.s32.totalorder %v210, %v268
      %vm280 = vcmp.lt.s32.totalorder %v211, %v268
      %vm281 = vcmp.lt.s32.totalorder %v212, %v268
      %vm282 = vcmp.lt.s32.totalorder %v213, %v268
      %vm283 = vcmp.lt.s32.totalorder %v214, %v268
      %vm284 = vcmp.lt.s32.totalorder %v215, %v268
      %vm285 = vcmp.lt.s32.totalorder %v216, %v268
      %vm286 = vcmp.lt.s32.totalorder %v217, %v268
      %vm287 = vcmp.lt.s32.totalorder %v218, %v268
      %vm288 = vcmp.lt.s32.totalorder %v219, %v268
      %vm289 = vcmp.lt.s32.totalorder %v220, %v268
      %vm290 = vcmp.lt.s32.totalorder %v221, %v268
      %vm291 = vcmp.lt.s32.totalorder %v222, %v268
      %vm292 = vcmp.lt.s32.totalorder %v223, %v268
      %vm293 = vcmp.lt.s32.totalorder %v224, %v268
      %vm294 = vcmp.lt.s32.totalorder %v225, %v268
      %vm295 = vcmp.lt.s32.totalorder %v226, %v268
      %vm296 = vcmp.lt.s32.totalorder %v227, %v268
      %vm297 = vcmp.lt.s32.totalorder %v228, %v268
      %vm298 = vcmp.lt.s32.totalorder %v229, %v268
      %vm299 = vcmp.lt.s32.totalorder %v230, %v268
      %vm300 = vcmp.lt.s32.totalorder %v231, %v268
      %vm301 = vmand %vm235, %vm269
      %vm302 = vmand %vm236, %vm270
      %vm303 = vmand %vm237, %vm271
      %vm304 = vmand %vm238, %vm272
      %vm305 = vmand %vm239, %vm273
      %vm306 = vmand %vm240, %vm274
      %vm307 = vmand %vm241, %vm275
      %vm308 = vmand %vm242, %vm276
      %vm309 = vmand %vm243, %vm277
      %vm310 = vmand %vm244, %vm278
      %vm311 = vmand %vm245, %vm279
      %vm312 = vmand %vm246, %vm280
      %vm313 = vmand %vm247, %vm281
      %vm314 = vmand %vm248, %vm282
      %vm315 = vmand %vm249, %vm283
      %vm316 = vmand %vm250, %vm284
      %vm317 = vmand %vm251, %vm285
      %vm318 = vmand %vm252, %vm286
      %vm319 = vmand %vm253, %vm287
      %vm320 = vmand %vm254, %vm288
      %vm321 = vmand %vm255, %vm289
      %vm322 = vmand %vm256, %vm290
      %vm323 = vmand %vm257, %vm291
      %vm324 = vmand %vm258, %vm292
      %vm325 = vmand %vm259, %vm293
      %vm326 = vmand %vm260, %vm294
      %vm327 = vmand %vm261, %vm295
      %vm328 = vmand %vm262, %vm296
      %vm329 = vmand %vm263, %vm297
      %vm330 = vmand %vm264, %vm298
      %vm331 = vmand %vm265, %vm299
      %vm332 = vmand %vm266, %vm300
      %v333 = vsel %vm301, 1, 0
      %v334 = vsel %vm302, 1, 0
      %v335 = vsel %vm303, 1, 0
      %v336 = vsel %vm304, 1, 0
      %v337 = vsel %vm305, 1, 0
      %v338 = vsel %vm306, 1, 0
      %v339 = vsel %vm307, 1, 0
      %v340 = vsel %vm308, 1, 0
      %v341 = vsel %vm309, 1, 0
      %v342 = vsel %vm310, 1, 0
      %v343 = vsel %vm311, 1, 0
      %v344 = vsel %vm312, 1, 0
      %v345 = vsel %vm313, 1, 0
      %v346 = vsel %vm314, 1, 0
      %v347 = vsel %vm315, 1, 0
      %v348 = vsel %vm316, 1, 0
      %v349 = vsel %vm317, 1, 0
      %v350 = vsel %vm318, 1, 0
      %v351 = vsel %vm319, 1, 0
      %v352 = vsel %vm320, 1, 0
      %v353 = vsel %vm321, 1, 0
      %v354 = vsel %vm322, 1, 0
      %v355 = vsel %vm323, 1, 0
      %v356 = vsel %vm324, 1, 0
      %v357 = vsel %vm325, 1, 0
      %v358 = vsel %vm326, 1, 0
      %v359 = vsel %vm327, 1, 0
      %v360 = vsel %vm328, 1, 0
      %v361 = vsel %vm329, 1, 0
      %v362 = vsel %vm330, 1, 0
      %v363 = vsel %vm331, 1, 0
      %v364 = vsel %vm332, 1, 0
      %v365 = vcvt.s32.f32 %v333
      %v366 = vcvt.s32.f32 %v334
      %v367 = vcvt.s32.f32 %v335
      %v368 = vcvt.s32.f32 %v336
      %v369 = vcvt.s32.f32 %v337
      %v370 = vcvt.s32.f32 %v338
      %v371 = vcvt.s32.f32 %v339
      %v372 = vcvt.s32.f32 %v340
      %v373 = vcvt.s32.f32 %v341
      %v374 = vcvt.s32.f32 %v342
      %v375 = vcvt.s32.f32 %v343
      %v376 = vcvt.s32.f32 %v344
      %v377 = vcvt.s32.f32 %v345
      %v378 = vcvt.s32.f32 %v346
      %v379 = vcvt.s32.f32 %v347
      %v380 = vcvt.s32.f32 %v348
      %v381 = vcvt.s32.f32 %v349
      %v382 = vcvt.s32.f32 %v350
      %v383 = vcvt.s32.f32 %v351
      %v384 = vcvt.s32.f32 %v352
      %v385 = vcvt.s32.f32 %v353
      %v386 = vcvt.s32.f32 %v354
      %v387 = vcvt.s32.f32 %v355
      %v388 = vcvt.s32.f32 %v356
      %v389 = vcvt.s32.f32 %v357
      %v390 = vcvt.s32.f32 %v358
      %v391 = vcvt.s32.f32 %v359
      %v392 = vcvt.s32.f32 %v360
      %v393 = vcvt.s32.f32 %v361
      %v394 = vcvt.s32.f32 %v362
      %v395 = vcvt.s32.f32 %v363
      %v396 = vcvt.s32.f32 %v364
      %v397 = vadd.s32 %v233, 128
      %v398 = vmul.u32 %v200, 64
      %vm399 = vcmp.ge.s32.totalorder %v233, %v398
      %vm400 = vcmp.ge.s32.totalorder %v397, %v398
      %v401 = vadd.s32 %v200, 1
      %v402 = vmul.u32 %v401, 64
      %vm403 = vcmp.lt.s32.totalorder %v233, %v402
      %vm404 = vcmp.lt.s32.totalorder %v397, %v402
      %vm405 = vmand %vm399, %vm403
      %vm406 = vmand %vm400, %vm404
      %v407 = vsel %vm405, 1, 0
      %v408 = vsel %vm406, 1, 0
      %v409 = vcvt.s32.f32 %v407
      %v410 = vcvt.s32.f32 %v408
      %v411 = vld [vmem:[%s192] sm:$0xff]
      %v412 = vld [vmem:[%s192 + $0x8] sm:$0xff]
      %v413 = vld [vmem:[%s1] sm:$0xff]
      %v414 = vld [vmem:[%s1 + $0x8] sm:$0xff]
      %v417 = vunpack.c.l.b16 %v411
      %v418 = vunpack.c.h.b16 %v411
      %v419 = vunpack.c.l.b16 %v412
      %v420 = vunpack.c.h.b16 %v412
      %v421 = vpack.c.b16 %v419, %v417
      %v422 = vpack.c.b16 %v420, %v418
      %423 = vrot.lane.b32.xlu0 %v421, 9
      %v424 = vpop.permute.xlu0 %423
      %425 = vrot.lane.b32.xlu0 %v422, 9
      %v426 = vpop.permute.xlu0 %425
      %vm427 = vcmask 72704
      %v428 = vsel %vm427, %v424, %v426
      %vm430 = vcmask 72704
      %v433 = vsel %vm430, 0, %v424
      %v435 = vld [vmem:[%s3] sm:$0x3]
      %437 = vst [vmem:[#allocation1] ss:$9 sm:$0xff] %v435
      %v438 = vld [vmem:[#allocation1] sm:$0xff]
      %v439 = vld [vmem:[#allocation1 + $0x9] sm:$0xff]
      %v440 = vpack.i.b16 %v438, %v438
      %v442 = vperm.slane %v440, 0
      %v443 = vpack.i.b16 %v439, %v439
      %v445 = vperm.slane %v443, 0
      %v446 = vunpack.c.l.bf16 %v433
      %v447 = vunpack.c.l.bf16 %v428
      %v448 = vunpack.c.h.bf16 %v433
      %v449 = vunpack.c.h.bf16 %v428
      %v450 = vunpack.c.l.bf16 %v442
      %v451 = vunpack.c.l.bf16 %v445
      %v452 = vmul.f32 %v446, %v450
      %v453 = vmul.f32 %v447, %v451
      %v454 = vmul.f32 %v448, %v450
      %v455 = vmul.f32 %v449, %v451
      %v456 = vpack.c.bf16 %v453, %v452
      %v457 = vpack.c.bf16 %v455, %v454
      %458 = vrot.lane.b32.xlu0 %v421, 8
      %v459 = vpop.permute.xlu0 %458
      %460 = vrot.lane.b32.xlu0 %v422, 8
      %v461 = vpop.permute.xlu0 %460
      %vm462 = vcmask 64512
      %v463 = vsel %vm462, %v459, %v461
      %vm465 = vcmask 64512
      %v467 = vsel %vm465, 0, %v459
      %s469 = scalar_lea.vmem %s3, 2
      %v470 = vld [vmem:[%s469] sm:$0x3]
      %472 = vst [vmem:[#allocation1] ss:$9 sm:$0xff] %v470
      %v473 = vld [vmem:[#allocation1] sm:$0xff]
      %v474 = vld [vmem:[#allocation1 + $0x9] sm:$0xff]
      %v475 = vpack.i.b16 %v473, %v473
      %v477 = vperm.slane %v475, 0
      %v478 = vpack.i.b16 %v474, %v474
      %v480 = vperm.slane %v478, 0
      %v481 = vunpack.c.l.bf16 %v467
      %v482 = vunpack.c.l.bf16 %v463
      %v483 = vunpack.c.h.bf16 %v467
      %v484 = vunpack.c.h.bf16 %v463
      %v485 = vunpack.c.l.bf16 %v477
      %v486 = vunpack.c.l.bf16 %v480
      %v487 = vmul.f32 %v481, %v485
      %v488 = vmul.f32 %v482, %v486
      %v489 = vmul.f32 %v483, %v485
      %v490 = vmul.f32 %v484, %v486
      %v491 = vpack.c.bf16 %v488, %v487
      %v492 = vpack.c.bf16 %v490, %v489
      %493 = vrot.lane.b32.xlu0 %v421, 7
      %v494 = vpop.permute.xlu0 %493
      %495 = vrot.lane.b32.xlu0 %v422, 7
      %v496 = vpop.permute.xlu0 %495
      %vm497 = vcmask 56320
      %v498 = vsel %vm497, %v494, %v496
      %vm500 = vcmask 56320
      %v502 = vsel %vm500, 0, %v494
      %s504 = scalar_lea.vmem %s3, 4
      %v505 = vld [vmem:[%s504] sm:$0x3]
      %507 = vst [vmem:[#allocation1] ss:$9 sm:$0xff] %v505
      %v508 = vld [vmem:[#allocation1] sm:$0xff]
      %v509 = vld [vmem:[#allocation1 + $0x9] sm:$0xff]
      %v510 = vpack.i.b16 %v508, %v508
      %v512 = vperm.slane %v510, 0
      %v513 = vpack.i.b16 %v509, %v509
      %v515 = vperm.slane %v513, 0
      %v516 = vunpack.c.l.bf16 %v502
      %v517 = vunpack.c.l.bf16 %v498
      %v518 = vunpack.c.h.bf16 %v502
      %v519 = vunpack.c.h.bf16 %v498
      %v520 = vunpack.c.l.bf16 %v512
      %v521 = vunpack.c.l.bf16 %v515
      %v522 = vmul.f32 %v516, %v520
      %v523 = vmul.f32 %v517, %v521
      %v524 = vmul.f32 %v518, %v520
      %v525 = vmul.f32 %v519, %v521
      %v526 = vpack.c.bf16 %v523, %v522
      %v527 = vpack.c.bf16 %v525, %v524
      %528 = vrot.lane.b32.xlu0 %v421, 1
      %v529 = vpop.permute.xlu0 %528
      %530 = vrot.lane.b32.xlu0 %v422, 1
      %v531 = vpop.permute.xlu0 %530
      %vm532 = vcmask 7168
      %v533 = vsel %vm532, %v529, %v531
      %vm535 = vcmask 7168
      %v537 = vsel %vm535, 0, %v529
      %s539 = scalar_lea.vmem %s3, 6
      %v540 = vld [vmem:[%s539] sm:$0x3]
      %542 = vst [vmem:[#allocation1] ss:$9 sm:$0xff] %v540
      %v543 = vld [vmem:[#allocation1] sm:$0xff]
      %v544 = vld [vmem:[#allocation1 + $0x9] sm:$0xff]
      %v545 = vpack.i.b16 %v543, %v543
      %v547 = vperm.slane %v545, 0
      %v548 = vpack.i.b16 %v544, %v544
      %v550 = vperm.slane %v548, 0
      %v551 = vunpack.c.l.bf16 %v537
      %v552 = vunpack.c.l.bf16 %v533
      %v553 = vunpack.c.h.bf16 %v537
      %v554 = vunpack.c.h.bf16 %v533
      %v555 = vunpack.c.l.bf16 %v547
      %v556 = vunpack.c.l.bf16 %v550
      %v557 = vmul.f32 %v551, %v555
      %v558 = vmul.f32 %v552, %v556
      %v559 = vmul.f32 %v553, %v555
      %v560 = vmul.f32 %v554, %v556
      %v561 = vpack.c.bf16 %v558, %v557
      %v562 = vpack.c.bf16 %v560, %v559
      %563 = vrot.lane.b32.xlu0 %v421, 127
      %v564 = vpop.permute.xlu0 %563
      %565 = vrot.lane.b32.xlu0 %v422, 127
      %v566 = vpop.permute.xlu0 %565
      %vm567 = vcmask 1039360
      %v568 = vsel %vm567, %v564, %v566
      %vm570 = vcmask 1039360
      %v572 = vsel %vm570, %v566, 0
      %s574 = scalar_lea.vmem %s3, 10
      %v575 = vld [vmem:[%s574] sm:$0x3]
      %577 = vst [vmem:[#allocation1] ss:$9 sm:$0xff] %v575
      %v578 = vld [vmem:[#allocation1] sm:$0xff]
      %v579 = vld [vmem:[#allocation1 + $0x9] sm:$0xff]
      %v580 = vpack.i.b16 %v578, %v578
      %v582 = vperm.slane %v580, 0
      %v583 = vpack.i.b16 %v579, %v579
      %v585 = vperm.slane %v583, 0
      %v586 = vunpack.c.l.bf16 %v568
      %v587 = vunpack.c.l.bf16 %v572
      %v588 = vunpack.c.h.bf16 %v568
      %v589 = vunpack.c.h.bf16 %v572
      %v590 = vunpack.c.l.bf16 %v582
      %v591 = vunpack.c.l.bf16 %v585
      %v592 = vmul.f32 %v586, %v590
      %v593 = vmul.f32 %v587, %v591
      %v594 = vmul.f32 %v588, %v590
      %v595 = vmul.f32 %v589, %v591
      %v596 = vpack.c.bf16 %v593, %v592
      %v597 = vpack.c.bf16 %v595, %v594
      %598 = vrot.lane.b32.xlu0 %v421, 121
      %v599 = vpop.permute.xlu0 %598
      %600 = vrot.lane.b32.xlu0 %v422, 121
      %v601 = vpop.permute.xlu0 %600
      %vm602 = vcmask 990208
      %v603 = vsel %vm602, %v599, %v601
      %vm605 = vcmask 990208
      %v607 = vsel %vm605, %v601, 0
      %s609 = scalar_lea.vmem %s3, 12
      %v610 = vld [vmem:[%s609] sm:$0x3]
      %612 = vst [vmem:[#allocation1] ss:$9 sm:$0xff] %v610
      %v613 = vld [vmem:[#allocation1] sm:$0xff]
      %v614 = vld [vmem:[#allocation1 + $0x9] sm:$0xff]
      %v615 = vpack.i.b16 %v613, %v613
      %v617 = vperm.slane %v615, 0
      %v618 = vpack.i.b16 %v614, %v614
      %v620 = vperm.slane %v618, 0
      %v621 = vunpack.c.l.bf16 %v603
      %v622 = vunpack.c.l.bf16 %v607
      %v623 = vunpack.c.h.bf16 %v603
      %v624 = vunpack.c.h.bf16 %v607
      %v625 = vunpack.c.l.bf16 %v617
      %v626 = vunpack.c.l.bf16 %v620
      %v627 = vmul.f32 %v621, %v625
      %v628 = vmul.f32 %v622, %v626
      %v629 = vmul.f32 %v623, %v625
      %v630 = vmul.f32 %v624, %v626
      %v631 = vpack.c.bf16 %v628, %v627
      %v632 = vpack.c.bf16 %v630, %v629
      %633 = vrot.lane.b32.xlu0 %v421, 120
      %v634 = vpop.permute.xlu0 %633
      %635 = vrot.lane.b32.xlu0 %v422, 120
      %v636 = vpop.permute.xlu0 %635
      %vm637 = vcmask 982016
      %v638 = vsel %vm637, %v634, %v636
      %vm640 = vcmask 982016
      %v642 = vsel %vm640, %v636, 0
      %s644 = scalar_lea.vmem %s3, 14
      %v645 = vld [vmem:[%s644] sm:$0x3]
      %647 = vst [vmem:[#allocation1] ss:$9 sm:$0xff] %v645
      %v648 = vld [vmem:[#allocation1] sm:$0xff]
      %v649 = vld [vmem:[#allocation1 + $0x9] sm:$0xff]
      %v650 = vpack.i.b16 %v648, %v648
      %v652 = vperm.slane %v650, 0
      %v653 = vpack.i.b16 %v649, %v649
      %v655 = vperm.slane %v653, 0
      %v656 = vunpack.c.l.bf16 %v638
      %v657 = vunpack.c.l.bf16 %v642
      %v658 = vunpack.c.h.bf16 %v638
      %v659 = vunpack.c.h.bf16 %v642
      %v660 = vunpack.c.l.bf16 %v652
      %v661 = vunpack.c.l.bf16 %v655
      %v662 = vmul.f32 %v656, %v660
      %v663 = vmul.f32 %v657, %v661
      %v664 = vmul.f32 %v658, %v660
      %v665 = vmul.f32 %v659, %v661
      %v666 = vpack.c.bf16 %v663, %v662
      %v667 = vpack.c.bf16 %v665, %v664
      %668 = vrot.lane.b32.xlu0 %v421, 119
      %v669 = vpop.permute.xlu0 %668
      %670 = vrot.lane.b32.xlu0 %v422, 119
      %v671 = vpop.permute.xlu0 %670
      %vm672 = vcmask 973824
      %v673 = vsel %vm672, %v669, %v671
      %vm675 = vcmask 973824
      %v677 = vsel %vm675, %v671, 0
      %s679 = scalar_lea.vmem %s3, 16
      %v680 = vld [vmem:[%s679] sm:$0x3]
      %682 = vst [vmem:[#allocation1] ss:$9 sm:$0xff] %v680
      %v683 = vld [vmem:[#allocation1] sm:$0xff]
      %v684 = vld [vmem:[#allocation1 + $0x9] sm:$0xff]
      %v685 = vpack.i.b16 %v683, %v683
      %v687 = vperm.slane %v685, 0
      %v688 = vpack.i.b16 %v684, %v684
      %v690 = vperm.slane %v688, 0
      %v691 = vunpack.c.l.bf16 %v673
      %v692 = vunpack.c.l.bf16 %v677
      %v693 = vunpack.c.h.bf16 %v673
      %v694 = vunpack.c.h.bf16 %v677
      %v695 = vunpack.c.l.bf16 %v687
      %v696 = vunpack.c.l.bf16 %v690
      %v697 = vmul.f32 %v691, %v695
      %v698 = vmul.f32 %v692, %v696
      %v699 = vmul.f32 %v693, %v695
      %v700 = vmul.f32 %v694, %v696
      %v701 = vpack.c.bf16 %v698, %v697
      %v702 = vpack.c.bf16 %v700, %v699
      %v705 = vunpack.c.l.b16 %v456
      %v706 = vunpack.c.h.b16 %v456
      %v707 = vunpack.c.l.b16 %v457
      %v708 = vunpack.c.h.b16 %v457
      %v709 = vpack.c.b16 %v707, %v705
      %v710 = vpack.c.b16 %v708, %v706
      %v715 = vunpack.c.l.b16 %v491
      %v716 = vunpack.c.h.b16 %v491
      %v717 = vunpack.c.l.b16 %v492
      %v718 = vunpack.c.h.b16 %v492
      %v719 = vpack.c.b16 %v717, %v715
      %v720 = vpack.c.b16 %v718, %v716
      %v725 = vunpack.c.l.b16 %v526
      %v726 = vunpack.c.h.b16 %v526
      %v727 = vunpack.c.l.b16 %v527
      %v728 = vunpack.c.h.b16 %v527
      %v729 = vpack.c.b16 %v727, %v725
      %v730 = vpack.c.b16 %v728, %v726
      %v735 = vunpack.c.l.b16 %v561
      %v736 = vunpack.c.h.b16 %v561
      %v737 = vunpack.c.l.b16 %v562
      %v738 = vunpack.c.h.b16 %v562
      %v739 = vpack.c.b16 %v737, %v735
      %v740 = vpack.c.b16 %v738, %v736
      %v747 = vunpack.c.l.b16 %v596
      %v748 = vunpack.c.h.b16 %v596
      %v749 = vunpack.c.l.b16 %v597
      %v750 = vunpack.c.h.b16 %v597
      %v751 = vpack.c.b16 %v749, %v747
      %v752 = vpack.c.b16 %v750, %v748
      %v757 = vunpack.c.l.b16 %v631
      %v758 = vunpack.c.h.b16 %v631
      %v759 = vunpack.c.l.b16 %v632
      %v760 = vunpack.c.h.b16 %v632
      %v761 = vpack.c.b16 %v759, %v757
      %v762 = vpack.c.b16 %v760, %v758
      %v767 = vunpack.c.l.b16 %v666
      %v768 = vunpack.c.h.b16 %v666
      %v769 = vunpack.c.l.b16 %v667
      %v770 = vunpack.c.h.b16 %v667
      %v771 = vpack.c.b16 %v769, %v767
      %v772 = vpack.c.b16 %v770, %v768
      %v777 = vunpack.c.l.b16 %v701
      %v778 = vunpack.c.h.b16 %v701
      %v779 = vunpack.c.l.b16 %v702
      %v780 = vunpack.c.h.b16 %v702
      %v781 = vpack.c.b16 %v779, %v777
      %v782 = vpack.c.b16 %v780, %v778
      %v787 = vunpack.c.l.b16 %v413
      %v788 = vunpack.c.h.b16 %v413
      %v789 = vunpack.c.l.b16 %v414
      %v790 = vunpack.c.h.b16 %v414
      %v791 = vpack.c.b16 %v789, %v787
      %v792 = vpack.c.b16 %v790, %v788
      %vm794 = vcmask 130048
      %v796 = vsel %vm794, %v792, 0
      %798 = vmatpush.bf16.msra.mxu0 %v771
      %799 = vmatpush.bf16.msra.mxu0 %v761
      %800 = vmatpush.bf16.msra.mxu0 %v751
      %801 = vmatpush.bf16.msra.mxu0 %v421
      %802 = vmatpush.bf16.msra.mxu0 %v739
      %803 = vmatpush.bf16.msra.mxu0 %v729
      %804 = vmatpush.bf16.msra.mxu0 %v719
      %805 = vmatpush.bf16.msra.mxu0 %v709
      %806 = vmatmul.bf16.gmra.mxu0 %v791
      %v807 = vpop.f32.mrf.mxu0
      %v808 = vadd.f32 0.0, %v807
      %v809 = vpop.f32.mrf.mxu0
      %v810 = vadd.f32 0.0, %v809
      %811 = vdwg.mxu0
      %812 = vmatpush.bf16.msra.mxu0 0
      %813 = vmatpush.bf16.msra.mxu0 0
      %814 = vmatpush.bf16.msra.mxu0 0
      %815 = vmatpush.bf16.msra.mxu0 0
      %816 = vmatpush.bf16.msra.mxu0 0
      %817 = vmatpush.bf16.msra.mxu0 0
      %818 = vmatpush.bf16.msra.mxu0 0
      %819 = vmatpush.bf16.msra.mxu0 %v781
      %820 = vmatmul.bf16.gmra.mxu0 %v796
      %v821 = vpop.f32.mrf.mxu0
      %v822 = vadd.f32 %v808, %v821
      %v823 = vpop.f32.mrf.mxu0
      %v824 = vadd.f32 %v810, %v823
      %825 = vdwg.mxu0
      %826 = vmatpush.bf16.msra.mxu0 %v772
      %827 = vmatpush.bf16.msra.mxu0 %v762
      %828 = vmatpush.bf16.msra.mxu0 %v752
      %829 = vmatpush.bf16.msra.mxu0 %v422
      %830 = vmatpush.bf16.msra.mxu0 %v740
      %831 = vmatpush.bf16.msra.mxu0 %v730
      %832 = vmatpush.bf16.msra.mxu0 %v720
      %833 = vmatpush.bf16.msra.mxu0 %v710
      %834 = vmatmul.bf16.gmra.mxu0 %v791
      %v835 = vpop.f32.mrf.mxu0
      %v836 = vadd.f32 0.0, %v835
      %v837 = vpop.f32.mrf.mxu0
      %v838 = vadd.f32 0.0, %v837
      %839 = vdwg.mxu0
      %840 = vmatpush.bf16.msra.mxu0 0
      %841 = vmatpush.bf16.msra.mxu0 0
      %842 = vmatpush.bf16.msra.mxu0 0
      %843 = vmatpush.bf16.msra.mxu0 0
      %844 = vmatpush.bf16.msra.mxu0 0
      %845 = vmatpush.bf16.msra.mxu0 0
      %846 = vmatpush.bf16.msra.mxu0 0
      %847 = vmatpush.bf16.msra.mxu0 %v782
      %848 = vmatmul.bf16.gmra.mxu0 %v796
      %v849 = vpop.f32.mrf.mxu0
      %v850 = vadd.f32 %v836, %v849
      %v851 = vpop.f32.mrf.mxu0
      %v852 = vadd.f32 %v838, %v851
      %853 = vdwg.mxu0
      %v854 = vmul.f32 %v822, %v822
      %v855 = vmul.f32 %v850, %v850
      %v856 = vmul.f32 %v824, %v824
      %v857 = vmul.f32 %v852, %v852
      %858 = vmatpush.msra.mxu0 %v380
      %859 = vmatpush.msra.mxu0 %v379
      %860 = vmatpush.msra.mxu0 %v378
      %861 = vmatpush.msra.mxu0 %v377
      %862 = vmatpush.msra.mxu0 %v376
      %863 = vmatpush.msra.mxu0 %v375
      %864 = vmatpush.msra.mxu0 %v374
      %865 = vmatpush.msra.mxu0 %v373
      %866 = vmatpush.msra.mxu0 %v372
      %867 = vmatpush.msra.mxu0 %v371
      %868 = vmatpush.msra.mxu0 %v370
      %869 = vmatpush.msra.mxu0 %v369
      %870 = vmatpush.msra.mxu0 %v368
      %871 = vmatpush.msra.mxu0 %v367
      %872 = vmatpush.msra.mxu0 %v366
      %873 = vmatpush.msra.mxu0 %v365
      %874 = vmatmul.f32.gmra.mxu0 %v822
      %v875 = vpop.f32.mrf.mxu0
      %v876 = vadd.f32 0.0, %v875
      %877 = vmatmul.f32.gmra.mxu0 %v824
      %v878 = vpop.f32.mrf.mxu0
      %v879 = vadd.f32 0.0, %v878
      %880 = vmatmul.f32.gmra.mxu0 %v854
      %v881 = vpop.f32.mrf.mxu0
      %v882 = vadd.f32 0.0, %v881
      %883 = vmatmul.f32.gmra.mxu0 %v856
      %v884 = vpop.f32.mrf.mxu0
      %v885 = vadd.f32 0.0, %v884
      %886 = vdwg.mxu0
      %887 = vmatpush.msra.mxu0 %v396
      %888 = vmatpush.msra.mxu0 %v395
      %889 = vmatpush.msra.mxu0 %v394
      %890 = vmatpush.msra.mxu0 %v393
      %891 = vmatpush.msra.mxu0 %v392
      %892 = vmatpush.msra.mxu0 %v391
      %893 = vmatpush.msra.mxu0 %v390
      %894 = vmatpush.msra.mxu0 %v389
      %895 = vmatpush.msra.mxu0 %v388
      %896 = vmatpush.msra.mxu0 %v387
      %897 = vmatpush.msra.mxu0 %v386
      %898 = vmatpush.msra.mxu0 %v385
      %899 = vmatpush.msra.mxu0 %v384
      %900 = vmatpush.msra.mxu0 %v383
      %901 = vmatpush.msra.mxu0 %v382
      %902 = vmatpush.msra.mxu0 %v381
      %903 = vmatmul.f32.gmra.mxu0 %v850
      %v904 = vpop.f32.mrf.mxu0
      %v905 = vadd.f32 %v876, %v904
      %906 = vmatmul.f32.gmra.mxu0 %v852
      %v907 = vpop.f32.mrf.mxu0
      %v908 = vadd.f32 %v879, %v907
      %909 = vmatmul.f32.gmra.mxu0 %v855
      %v910 = vpop.f32.mrf.mxu0
      %v911 = vadd.f32 %v882, %v910
      %912 = vmatmul.f32.gmra.mxu0 %v857
      %v913 = vpop.f32.mrf.mxu0
      %v914 = vadd.f32 %v885, %v913
      %915 = vdwg.mxu0
      %v916 = vmul.f32 %v905, 0.015625
      %v917 = vmul.f32 %v908, 0.015625
      %v918 = vmul.f32 %v911, 0.015625
      %v919 = vmul.f32 %v914, 0.015625
      %v920 = vmul.f32 %v916, %v916
      %v921 = vmul.f32 %v917, %v917
      %v922 = vsub.f32 %v918, %v920
      %v923 = vsub.f32 %v919, %v921
      %v924 = vmax.f32 %v922, 0.0
      %v925 = vmax.f32 %v923, 0.0
      %v926 = vadd.f32 %v924, 1e-05
      %v927 = vadd.f32 %v925, 1e-05
      %v928 = vrsqrt.pop %v926
      %v929 = vmul.f32 %v928, %v926
      %v930 = vmul.f32 %v929, %v928
      %v931 = vmul.f32 0.5, %v930
      %v932 = vsub.f32 1.5, %v931
      %v933 = vmul.f32 %v928, %v932
      %vm934 = vweird.f32 %v926
      %vm935 = vweird.f32 %v928
      %vm936 = vmor %vm934, %vm935
      %v937 = vsel %vm936, %v928, %v933
      %v938 = vrsqrt.pop %v927
      %v939 = vmul.f32 %v938, %v927
      %v940 = vmul.f32 %v939, %v938
      %v941 = vmul.f32 0.5, %v940
      %v942 = vsub.f32 1.5, %v941
      %v943 = vmul.f32 %v938, %v942
      %vm944 = vweird.f32 %v927
      %vm945 = vweird.f32 %v938
      %vm946 = vmor %vm944, %vm945
      %v947 = vsel %vm946, %v938, %v943
      %v948 = vmul.f32 %v916, %v937
      %v949 = vmul.f32 %v917, %v947
      %vm950 = vcmask 31744
      %v952 = vsel %vm950, %v948, 0
      %v955 = vsel %vm950, %v949, 0
      %v958 = vsel %vm950, %v937, 0
      %v961 = vsel %vm950, %v947, 0
      %vm963 = vcmask 1043456
      %v965 = vsel %vm963, %v409, 0
      %v968 = vsel %vm963, %v410, 0
      %970 = vmatpush.msra.mxu0 0.0
      %971 = vmatpush.msra.mxu0 0.0
      %972 = vmatpush.msra.mxu0 0.0
      %973 = vmatpush.msra.mxu0 0.0
      %974 = vmatpush.msra.mxu0 0.0
      %975 = vmatpush.msra.mxu0 0.0
      %976 = vmatpush.msra.mxu0 0.0
      %977 = vmatpush.msra.mxu0 0.0
      %978 = vmatpush.msra.mxu0 0.0
      %979 = vmatpush.msra.mxu0 0.0
      %980 = vmatpush.msra.mxu0 0.0
      %981 = vmatpush.msra.mxu0 0.0
      %982 = vmatpush.msra.mxu0 0.0
      %983 = vmatpush.msra.mxu0 0.0
      %984 = vmatpush.msra.mxu0 0.0
      %985 = vmatpush.msra.mxu0 %v965
      %986 = vmatmul.f32.gmra.mxu0 %v952
      %v987 = vpop.f32.mrf.mxu0
      %v988 = vadd.f32 0.0, %v987
      %989 = vmatmul.f32.gmra.mxu0 %v955
      %v990 = vpop.f32.mrf.mxu0
      %v991 = vadd.f32 0.0, %v990
      %992 = vmatmul.f32.gmra.mxu0 %v958
      %v993 = vpop.f32.mrf.mxu0
      %v994 = vadd.f32 0.0, %v993
      %995 = vmatmul.f32.gmra.mxu0 %v961
      %v996 = vpop.f32.mrf.mxu0
      %v997 = vadd.f32 0.0, %v996
      %998 = vdwg.mxu0
      %999 = vmatpush.msra.mxu0 0.0
      %1000 = vmatpush.msra.mxu0 0.0
      %1001 = vmatpush.msra.mxu0 0.0
      %1002 = vmatpush.msra.mxu0 0.0
      %1003 = vmatpush.msra.mxu0 0.0
      %1004 = vmatpush.msra.mxu0 0.0
      %1005 = vmatpush.msra.mxu0 0.0
      %1006 = vmatpush.msra.mxu0 0.0
      %1007 = vmatpush.msra.mxu0 0.0
      %1008 = vmatpush.msra.mxu0 0.0
      %1009 = vmatpush.msra.mxu0 0.0
      %1010 = vmatpush.msra.mxu0 0.0
      %1011 = vmatpush.msra.mxu0 0.0
      %1012 = vmatpush.msra.mxu0 0.0
      %1013 = vmatpush.msra.mxu0 0.0
      %1014 = vmatpush.msra.mxu0 %v968
      %1015 = vmatmul.f32.gmra.mxu0 %v952
      %v1016 = vpop.f32.mrf.mxu0
      %v1017 = vadd.f32 0.0, %v1016
      %1018 = vmatmul.f32.gmra.mxu0 %v955
      %v1019 = vpop.f32.mrf.mxu0
      %v1020 = vadd.f32 0.0, %v1019
      %1021 = vmatmul.f32.gmra.mxu0 %v958
      %v1022 = vpop.f32.mrf.mxu0
      %v1023 = vadd.f32 0.0, %v1022
      %1024 = vmatmul.f32.gmra.mxu0 %v961
      %v1025 = vpop.f32.mrf.mxu0
      %v1026 = vadd.f32 0.0, %v1025
      %1027 = vdwg.mxu0
      %v1028 = vmul.f32 %v822, %v994
      %v1029 = vmul.f32 %v850, %v1023
      %v1030 = vmul.f32 %v824, %v997
      %v1031 = vmul.f32 %v852, %v1026
      %v1032 = vsub.f32 %v1028, %v988
      %v1033 = vsub.f32 %v1029, %v1017
      %v1034 = vsub.f32 %v1030, %v991
      %v1035 = vsub.f32 %v1031, %v1020
      %vm1036 = vcmp.ge.f32.partialorder %v1032, 0.0
      %vm1037 = vcmp.ge.f32.partialorder %v1033, 0.0
      %vm1038 = vcmp.ge.f32.partialorder %v1034, 0.0
      %vm1039 = vcmp.ge.f32.partialorder %v1035, 0.0
      %v1040 = vmul.f32 %v1032, 0.01
      %v1041 = vmul.f32 %v1033, 0.01
      %v1042 = vmul.f32 %v1034, 0.01
      %v1043 = vmul.f32 %v1035, 0.01
      %v1044 = vsel %vm1036, %v1032, %v1040
      %v1045 = vsel %vm1037, %v1033, %v1041
      %v1046 = vsel %vm1038, %v1034, %v1042
      %v1047 = vsel %vm1039, %v1035, %v1043
      %v1048 = vpack.c.bf16 %v1045, %v1044
      %v1049 = vpack.c.bf16 %v1047, %v1046
      %s1050 = scalar_lea.vmem %s1, 16
      %v1051 = vld [vmem:[%s1050] sm:$0xff]
      %v1052 = vld [vmem:[%s1050 + $0x8] sm:$0xff]
      %v1055 = vunpack.c.l.b16 %v1048
      %v1056 = vunpack.c.h.b16 %v1048
      %v1057 = vunpack.c.l.b16 %v1049
      %v1058 = vunpack.c.h.b16 %v1049
      %v1059 = vpack.c.b16 %v1057, %v1055
      %v1060 = vpack.c.b16 %v1058, %v1056
      %1061 = vrot.lane.b32.xlu0 %v1059, 9
      %v1062 = vpop.permute.xlu0 %1061
      %1063 = vrot.lane.b32.xlu0 %v1060, 9
      %v1064 = vpop.permute.xlu0 %1063
      %v1065 = vsel %vm427, %v1062, %v1064
      %v1068 = vsel %vm430, 0, %v1062
      %v1070 = vunpack.c.l.bf16 %v1068
      %v1071 = vunpack.c.l.bf16 %v1065
      %v1072 = vunpack.c.h.bf16 %v1068
      %v1073 = vunpack.c.h.bf16 %v1065
      %v1074 = vmul.f32 %v1070, %v450
      %v1075 = vmul.f32 %v1071, %v451
      %v1076 = vmul.f32 %v1072, %v450
      %v1077 = vmul.f32 %v1073, %v451
      %v1078 = vpack.c.bf16 %v1075, %v1074
      %v1079 = vpack.c.bf16 %v1077, %v1076
      %1080 = vrot.lane.b32.xlu0 %v1059, 8
      %v1081 = vpop.permute.xlu0 %1080
      %1082 = vrot.lane.b32.xlu0 %v1060, 8
      %v1083 = vpop.permute.xlu0 %1082
      %v1084 = vsel %vm462, %v1081, %v1083
      %v1087 = vsel %vm465, 0, %v1081
      %v1089 = vunpack.c.l.bf16 %v1087
      %v1090 = vunpack.c.l.bf16 %v1084
      %v1091 = vunpack.c.h.bf16 %v1087
      %v1092 = vunpack.c.h.bf16 %v1084
      %v1093 = vmul.f32 %v1089, %v485
      %v1094 = vmul.f32 %v1090, %v486
      %v1095 = vmul.f32 %v1091, %v485
      %v1096 = vmul.f32 %v1092, %v486
      %v1097 = vpack.c.bf16 %v1094, %v1093
      %v1098 = vpack.c.bf16 %v1096, %v1095
      %1099 = vrot.lane.b32.xlu0 %v1059, 7
      %v1100 = vpop.permute.xlu0 %1099
      %1101 = vrot.lane.b32.xlu0 %v1060, 7
      %v1102 = vpop.permute.xlu0 %1101
      %v1103 = vsel %vm497, %v1100, %v1102
      %v1106 = vsel %vm500, 0, %v1100
      %v1108 = vunpack.c.l.bf16 %v1106
      %v1109 = vunpack.c.l.bf16 %v1103
      %v1110 = vunpack.c.h.bf16 %v1106
      %v1111 = vunpack.c.h.bf16 %v1103
      %v1112 = vmul.f32 %v1108, %v520
      %v1113 = vmul.f32 %v1109, %v521
      %v1114 = vmul.f32 %v1110, %v520
      %v1115 = vmul.f32 %v1111, %v521
      %v1116 = vpack.c.bf16 %v1113, %v1112
      %v1117 = vpack.c.bf16 %v1115, %v1114
      %1118 = vrot.lane.b32.xlu0 %v1059, 1
      %v1119 = vpop.permute.xlu0 %1118
      %1120 = vrot.lane.b32.xlu0 %v1060, 1
      %v1121 = vpop.permute.xlu0 %1120
      %v1122 = vsel %vm532, %v1119, %v1121
      %v1125 = vsel %vm535, 0, %v1119
      %v1127 = vunpack.c.l.bf16 %v1125
      %v1128 = vunpack.c.l.bf16 %v1122
      %v1129 = vunpack.c.h.bf16 %v1125
      %v1130 = vunpack.c.h.bf16 %v1122
      %v1131 = vmul.f32 %v1127, %v555
      %v1132 = vmul.f32 %v1128, %v556
      %v1133 = vmul.f32 %v1129, %v555
      %v1134 = vmul.f32 %v1130, %v556
      %v1135 = vpack.c.bf16 %v1132, %v1131
      %v1136 = vpack.c.bf16 %v1134, %v1133
      %1137 = vrot.lane.b32.xlu0 %v1059, 127
      %v1138 = vpop.permute.xlu0 %1137
      %1139 = vrot.lane.b32.xlu0 %v1060, 127
      %v1140 = vpop.permute.xlu0 %1139
      %v1141 = vsel %vm567, %v1138, %v1140
      %v1144 = vsel %vm570, %v1140, 0
      %v1146 = vunpack.c.l.bf16 %v1141
      %v1147 = vunpack.c.l.bf16 %v1144
      %v1148 = vunpack.c.h.bf16 %v1141
      %v1149 = vunpack.c.h.bf16 %v1144
      %v1150 = vmul.f32 %v1146, %v590
      %v1151 = vmul.f32 %v1147, %v591
      %v1152 = vmul.f32 %v1148, %v590
      %v1153 = vmul.f32 %v1149, %v591
      %v1154 = vpack.c.bf16 %v1151, %v1150
      %v1155 = vpack.c.bf16 %v1153, %v1152
      %1156 = vrot.lane.b32.xlu0 %v1059, 121
      %v1157 = vpop.permute.xlu0 %1156
      %1158 = vrot.lane.b32.xlu0 %v1060, 121
      %v1159 = vpop.permute.xlu0 %1158
      %v1160 = vsel %vm602, %v1157, %v1159
      %v1163 = vsel %vm605, %v1159, 0
      %v1165 = vunpack.c.l.bf16 %v1160
      %v1166 = vunpack.c.l.bf16 %v1163
      %v1167 = vunpack.c.h.bf16 %v1160
      %v1168 = vunpack.c.h.bf16 %v1163
      %v1169 = vmul.f32 %v1165, %v625
      %v1170 = vmul.f32 %v1166, %v626
      %v1171 = vmul.f32 %v1167, %v625
      %v1172 = vmul.f32 %v1168, %v626
      %v1173 = vpack.c.bf16 %v1170, %v1169
      %v1174 = vpack.c.bf16 %v1172, %v1171
      %1175 = vrot.lane.b32.xlu0 %v1059, 120
      %v1176 = vpop.permute.xlu0 %1175
      %1177 = vrot.lane.b32.xlu0 %v1060, 120
      %v1178 = vpop.permute.xlu0 %1177
      %v1179 = vsel %vm637, %v1176, %v1178
      %v1182 = vsel %vm640, %v1178, 0
      %v1184 = vunpack.c.l.bf16 %v1179
      %v1185 = vunpack.c.l.bf16 %v1182
      %v1186 = vunpack.c.h.bf16 %v1179
      %v1187 = vunpack.c.h.bf16 %v1182
      %v1188 = vmul.f32 %v1184, %v660
      %v1189 = vmul.f32 %v1185, %v661
      %v1190 = vmul.f32 %v1186, %v660
      %v1191 = vmul.f32 %v1187, %v661
      %v1192 = vpack.c.bf16 %v1189, %v1188
      %v1193 = vpack.c.bf16 %v1191, %v1190
      %1194 = vrot.lane.b32.xlu0 %v1059, 119
      %v1195 = vpop.permute.xlu0 %1194
      %1196 = vrot.lane.b32.xlu0 %v1060, 119
      %v1197 = vpop.permute.xlu0 %1196
      %v1198 = vsel %vm672, %v1195, %v1197
      %v1201 = vsel %vm675, %v1197, 0
      %v1203 = vunpack.c.l.bf16 %v1198
      %v1204 = vunpack.c.l.bf16 %v1201
      %v1205 = vunpack.c.h.bf16 %v1198
      %v1206 = vunpack.c.h.bf16 %v1201
      %v1207 = vmul.f32 %v1203, %v695
      %v1208 = vmul.f32 %v1204, %v696
      %v1209 = vmul.f32 %v1205, %v695
      %v1210 = vmul.f32 %v1206, %v696
      %v1211 = vpack.c.bf16 %v1208, %v1207
      %v1212 = vpack.c.bf16 %v1210, %v1209
      %v1215 = vunpack.c.l.b16 %v1078
      %v1216 = vunpack.c.h.b16 %v1078
      %v1217 = vunpack.c.l.b16 %v1079
      %v1218 = vunpack.c.h.b16 %v1079
      %v1219 = vpack.c.b16 %v1217, %v1215
      %v1220 = vpack.c.b16 %v1218, %v1216
      %v1225 = vunpack.c.l.b16 %v1097
      %v1226 = vunpack.c.h.b16 %v1097
      %v1227 = vunpack.c.l.b16 %v1098
      %v1228 = vunpack.c.h.b16 %v1098
      %v1229 = vpack.c.b16 %v1227, %v1225
      %v1230 = vpack.c.b16 %v1228, %v1226
      %v1235 = vunpack.c.l.b16 %v1116
      %v1236 = vunpack.c.h.b16 %v1116
      %v1237 = vunpack.c.l.b16 %v1117
      %v1238 = vunpack.c.h.b16 %v1117
      %v1239 = vpack.c.b16 %v1237, %v1235
      %v1240 = vpack.c.b16 %v1238, %v1236
      %v1245 = vunpack.c.l.b16 %v1135
      %v1246 = vunpack.c.h.b16 %v1135
      %v1247 = vunpack.c.l.b16 %v1136
      %v1248 = vunpack.c.h.b16 %v1136
      %v1249 = vpack.c.b16 %v1247, %v1245
      %v1250 = vpack.c.b16 %v1248, %v1246
      %v1257 = vunpack.c.l.b16 %v1154
      %v1258 = vunpack.c.h.b16 %v1154
      %v1259 = vunpack.c.l.b16 %v1155
      %v1260 = vunpack.c.h.b16 %v1155
      %v1261 = vpack.c.b16 %v1259, %v1257
      %v1262 = vpack.c.b16 %v1260, %v1258
      %v1267 = vunpack.c.l.b16 %v1173
      %v1268 = vunpack.c.h.b16 %v1173
      %v1269 = vunpack.c.l.b16 %v1174
      %v1270 = vunpack.c.h.b16 %v1174
      %v1271 = vpack.c.b16 %v1269, %v1267
      %v1272 = vpack.c.b16 %v1270, %v1268
      %v1277 = vunpack.c.l.b16 %v1192
      %v1278 = vunpack.c.h.b16 %v1192
      %v1279 = vunpack.c.l.b16 %v1193
      %v1280 = vunpack.c.h.b16 %v1193
      %v1281 = vpack.c.b16 %v1279, %v1277
      %v1282 = vpack.c.b16 %v1280, %v1278
      %v1287 = vunpack.c.l.b16 %v1211
      %v1288 = vunpack.c.h.b16 %v1211
      %v1289 = vunpack.c.l.b16 %v1212
      %v1290 = vunpack.c.h.b16 %v1212
      %v1291 = vpack.c.b16 %v1289, %v1287
      %v1292 = vpack.c.b16 %v1290, %v1288
      %v1297 = vunpack.c.l.b16 %v1051
      %v1298 = vunpack.c.h.b16 %v1051
      %v1299 = vunpack.c.l.b16 %v1052
      %v1300 = vunpack.c.h.b16 %v1052
      %v1301 = vpack.c.b16 %v1299, %v1297
      %v1302 = vpack.c.b16 %v1300, %v1298
      %v1305 = vsel %vm794, %v1302, 0
      %1307 = vmatpush.bf16.msra.mxu0 %v1281
      %1308 = vmatpush.bf16.msra.mxu0 %v1271
      %1309 = vmatpush.bf16.msra.mxu0 %v1261
      %1310 = vmatpush.bf16.msra.mxu0 %v1059
      %1311 = vmatpush.bf16.msra.mxu0 %v1249
      %1312 = vmatpush.bf16.msra.mxu0 %v1239
      %1313 = vmatpush.bf16.msra.mxu0 %v1229
      %1314 = vmatpush.bf16.msra.mxu0 %v1219
      %1315 = vmatmul.bf16.gmra.mxu0 %v1301
      %v1316 = vpop.f32.mrf.mxu0
      %v1317 = vadd.f32 0.0, %v1316
      %v1318 = vpop.f32.mrf.mxu0
      %v1319 = vadd.f32 0.0, %v1318
      %1320 = vdwg.mxu0
      %1321 = vmatpush.bf16.msra.mxu0 0
      %1322 = vmatpush.bf16.msra.mxu0 0
      %1323 = vmatpush.bf16.msra.mxu0 0
      %1324 = vmatpush.bf16.msra.mxu0 0
      %1325 = vmatpush.bf16.msra.mxu0 0
      %1326 = vmatpush.bf16.msra.mxu0 0
      %1327 = vmatpush.bf16.msra.mxu0 0
      %1328 = vmatpush.bf16.msra.mxu0 %v1291
      %1329 = vmatmul.bf16.gmra.mxu0 %v1305
      %v1330 = vpop.f32.mrf.mxu0
      %v1331 = vadd.f32 %v1317, %v1330
      %v1332 = vpop.f32.mrf.mxu0
      %v1333 = vadd.f32 %v1319, %v1332
      %1334 = vdwg.mxu0
      %1335 = vmatpush.bf16.msra.mxu0 %v1282
      %1336 = vmatpush.bf16.msra.mxu0 %v1272
      %1337 = vmatpush.bf16.msra.mxu0 %v1262
      %1338 = vmatpush.bf16.msra.mxu0 %v1060
      %1339 = vmatpush.bf16.msra.mxu0 %v1250
      %1340 = vmatpush.bf16.msra.mxu0 %v1240
      %1341 = vmatpush.bf16.msra.mxu0 %v1230
      %1342 = vmatpush.bf16.msra.mxu0 %v1220
      %1343 = vmatmul.bf16.gmra.mxu0 %v1301
      %v1344 = vpop.f32.mrf.mxu0
      %v1345 = vadd.f32 0.0, %v1344
      %v1346 = vpop.f32.mrf.mxu0
      %v1347 = vadd.f32 0.0, %v1346
      %1348 = vdwg.mxu0
      %1349 = vmatpush.bf16.msra.mxu0 0
      %1350 = vmatpush.bf16.msra.mxu0 0
      %1351 = vmatpush.bf16.msra.mxu0 0
      %1352 = vmatpush.bf16.msra.mxu0 0
      %1353 = vmatpush.bf16.msra.mxu0 0
      %1354 = vmatpush.bf16.msra.mxu0 0
      %1355 = vmatpush.bf16.msra.mxu0 0
      %1356 = vmatpush.bf16.msra.mxu0 %v1292
      %1357 = vmatmul.bf16.gmra.mxu0 %v1305
      %v1358 = vpop.f32.mrf.mxu0
      %v1359 = vadd.f32 %v1345, %v1358
      %v1360 = vpop.f32.mrf.mxu0
      %v1361 = vadd.f32 %v1347, %v1360
      %1362 = vdwg.mxu0
      %v1363 = vmul.f32 %v1331, %v1331
      %v1364 = vmul.f32 %v1359, %v1359
      %v1365 = vmul.f32 %v1333, %v1333
      %v1366 = vmul.f32 %v1361, %v1361
      %1367 = vmatpush.msra.mxu0 %v380
      %1368 = vmatpush.msra.mxu0 %v379
      %1369 = vmatpush.msra.mxu0 %v378
      %1370 = vmatpush.msra.mxu0 %v377
      %1371 = vmatpush.msra.mxu0 %v376
      %1372 = vmatpush.msra.mxu0 %v375
      %1373 = vmatpush.msra.mxu0 %v374
      %1374 = vmatpush.msra.mxu0 %v373
      %1375 = vmatpush.msra.mxu0 %v372
      %1376 = vmatpush.msra.mxu0 %v371
      %1377 = vmatpush.msra.mxu0 %v370
      %1378 = vmatpush.msra.mxu0 %v369
      %1379 = vmatpush.msra.mxu0 %v368
      %1380 = vmatpush.msra.mxu0 %v367
      %1381 = vmatpush.msra.mxu0 %v366
      %1382 = vmatpush.msra.mxu0 %v365
      %1383 = vmatmul.f32.gmra.mxu0 %v1331
      %v1384 = vpop.f32.mrf.mxu0
      %v1385 = vadd.f32 0.0, %v1384
      %1386 = vmatmul.f32.gmra.mxu0 %v1333
      %v1387 = vpop.f32.mrf.mxu0
      %v1388 = vadd.f32 0.0, %v1387
      %1389 = vmatmul.f32.gmra.mxu0 %v1363
      %v1390 = vpop.f32.mrf.mxu0
      %v1391 = vadd.f32 0.0, %v1390
      %1392 = vmatmul.f32.gmra.mxu0 %v1365
      %v1393 = vpop.f32.mrf.mxu0
      %v1394 = vadd.f32 0.0, %v1393
      %1395 = vdwg.mxu0
      %1396 = vmatpush.msra.mxu0 %v396
      %1397 = vmatpush.msra.mxu0 %v395
      %1398 = vmatpush.msra.mxu0 %v394
      %1399 = vmatpush.msra.mxu0 %v393
      %1400 = vmatpush.msra.mxu0 %v392
      %1401 = vmatpush.msra.mxu0 %v391
      %1402 = vmatpush.msra.mxu0 %v390
      %1403 = vmatpush.msra.mxu0 %v389
      %1404 = vmatpush.msra.mxu0 %v388
      %1405 = vmatpush.msra.mxu0 %v387
      %1406 = vmatpush.msra.mxu0 %v386
      %1407 = vmatpush.msra.mxu0 %v385
      %1408 = vmatpush.msra.mxu0 %v384
      %1409 = vmatpush.msra.mxu0 %v383
      %1410 = vmatpush.msra.mxu0 %v382
      %1411 = vmatpush.msra.mxu0 %v381
      %1412 = vmatmul.f32.gmra.mxu0 %v1359
      %v1413 = vpop.f32.mrf.mxu0
      %v1414 = vadd.f32 %v1385, %v1413
      %1415 = vmatmul.f32.gmra.mxu0 %v1361
      %v1416 = vpop.f32.mrf.mxu0
      %v1417 = vadd.f32 %v1388, %v1416
      %1418 = vmatmul.f32.gmra.mxu0 %v1364
      %v1419 = vpop.f32.mrf.mxu0
      %v1420 = vadd.f32 %v1391, %v1419
      %1421 = vmatmul.f32.gmra.mxu0 %v1366
      %v1422 = vpop.f32.mrf.mxu0
      %v1423 = vadd.f32 %v1394, %v1422
      %1424 = vdwg.mxu0
      %v1425 = vmul.f32 %v1414, 0.015625
      %v1426 = vmul.f32 %v1417, 0.015625
      %v1427 = vmul.f32 %v1420, 0.015625
      %v1428 = vmul.f32 %v1423, 0.015625
      %v1429 = vmul.f32 %v1425, %v1425
      %v1430 = vmul.f32 %v1426, %v1426
      %v1431 = vsub.f32 %v1427, %v1429
      %v1432 = vsub.f32 %v1428, %v1430
      %v1433 = vmax.f32 %v1431, 0.0
      %v1434 = vmax.f32 %v1432, 0.0
      %v1435 = vadd.f32 %v1433, 1e-05
      %v1436 = vadd.f32 %v1434, 1e-05
      %v1437 = vrsqrt.pop %v1435
      %v1438 = vmul.f32 %v1437, %v1435
      %v1439 = vmul.f32 %v1438, %v1437
      %v1440 = vmul.f32 0.5, %v1439
      %v1441 = vsub.f32 1.5, %v1440
      %v1442 = vmul.f32 %v1437, %v1441
      %vm1443 = vweird.f32 %v1435
      %vm1444 = vweird.f32 %v1437
      %vm1445 = vmor %vm1443, %vm1444
      %v1446 = vsel %vm1445, %v1437, %v1442
      %v1447 = vrsqrt.pop %v1436
      %v1448 = vmul.f32 %v1447, %v1436
      %v1449 = vmul.f32 %v1448, %v1447
      %v1450 = vmul.f32 0.5, %v1449
      %v1451 = vsub.f32 1.5, %v1450
      %v1452 = vmul.f32 %v1447, %v1451
      %vm1453 = vweird.f32 %v1436
      %vm1454 = vweird.f32 %v1447
      %vm1455 = vmor %vm1453, %vm1454
      %v1456 = vsel %vm1455, %v1447, %v1452
      %v1457 = vmul.f32 %v1425, %v1446
      %v1458 = vmul.f32 %v1426, %v1456
      %v1460 = vsel %vm950, %v1457, 0
      %v1463 = vsel %vm950, %v1458, 0
      %v1466 = vsel %vm950, %v1446, 0
      %v1469 = vsel %vm950, %v1456, 0
      %1471 = vmatpush.msra.mxu0 0.0
      %1472 = vmatpush.msra.mxu0 0.0
      %1473 = vmatpush.msra.mxu0 0.0
      %1474 = vmatpush.msra.mxu0 0.0
      %1475 = vmatpush.msra.mxu0 0.0
      %1476 = vmatpush.msra.mxu0 0.0
      %1477 = vmatpush.msra.mxu0 0.0
      %1478 = vmatpush.msra.mxu0 0.0
      %1479 = vmatpush.msra.mxu0 0.0
      %1480 = vmatpush.msra.mxu0 0.0
      %1481 = vmatpush.msra.mxu0 0.0
      %1482 = vmatpush.msra.mxu0 0.0
      %1483 = vmatpush.msra.mxu0 0.0
      %1484 = vmatpush.msra.mxu0 0.0
      %1485 = vmatpush.msra.mxu0 0.0
      %1486 = vmatpush.msra.mxu0 %v965
      %1487 = vmatmul.f32.gmra.mxu0 %v1460
      %v1488 = vpop.f32.mrf.mxu0
      %v1489 = vadd.f32 0.0, %v1488
      %1490 = vmatmul.f32.gmra.mxu0 %v1463
      %v1491 = vpop.f32.mrf.mxu0
      %v1492 = vadd.f32 0.0, %v1491
      %1493 = vmatmul.f32.gmra.mxu0 %v1466
      %v1494 = vpop.f32.mrf.mxu0
      %v1495 = vadd.f32 0.0, %v1494
      %1496 = vmatmul.f32.gmra.mxu0 %v1469
      %v1497 = vpop.f32.mrf.mxu0
      %v1498 = vadd.f32 0.0, %v1497
      %1499 = vdwg.mxu0
      %1500 = vmatpush.msra.mxu0 0.0
      %1501 = vmatpush.msra.mxu0 0.0
      %1502 = vmatpush.msra.mxu0 0.0
      %1503 = vmatpush.msra.mxu0 0.0
      %1504 = vmatpush.msra.mxu0 0.0
      %1505 = vmatpush.msra.mxu0 0.0
      %1506 = vmatpush.msra.mxu0 0.0
      %1507 = vmatpush.msra.mxu0 0.0
      %1508 = vmatpush.msra.mxu0 0.0
      %1509 = vmatpush.msra.mxu0 0.0
      %1510 = vmatpush.msra.mxu0 0.0
      %1511 = vmatpush.msra.mxu0 0.0
      %1512 = vmatpush.msra.mxu0 0.0
      %1513 = vmatpush.msra.mxu0 0.0
      %1514 = vmatpush.msra.mxu0 0.0
      %1515 = vmatpush.msra.mxu0 %v968
      %1516 = vmatmul.f32.gmra.mxu0 %v1460
      %v1517 = vpop.f32.mrf.mxu0
      %v1518 = vadd.f32 0.0, %v1517
      %1519 = vmatmul.f32.gmra.mxu0 %v1463
      %v1520 = vpop.f32.mrf.mxu0
      %v1521 = vadd.f32 0.0, %v1520
      %1522 = vmatmul.f32.gmra.mxu0 %v1466
      %v1523 = vpop.f32.mrf.mxu0
      %v1524 = vadd.f32 0.0, %v1523
      %1525 = vmatmul.f32.gmra.mxu0 %v1469
      %v1526 = vpop.f32.mrf.mxu0
      %v1527 = vadd.f32 0.0, %v1526
      %1528 = vdwg.mxu0
      %v1529 = vmul.f32 %v1331, %v1495
      %v1530 = vmul.f32 %v1359, %v1524
      %v1531 = vmul.f32 %v1333, %v1498
      %v1532 = vmul.f32 %v1361, %v1527
      %v1533 = vsub.f32 %v1529, %v1489
      %v1534 = vsub.f32 %v1530, %v1518
      %v1535 = vsub.f32 %v1531, %v1492
      %v1536 = vsub.f32 %v1532, %v1521
      %vm1537 = vcmp.ge.f32.partialorder %v1533, 0.0
      %vm1538 = vcmp.ge.f32.partialorder %v1534, 0.0
      %vm1539 = vcmp.ge.f32.partialorder %v1535, 0.0
      %vm1540 = vcmp.ge.f32.partialorder %v1536, 0.0
      %v1541 = vmul.f32 %v1533, 0.01
      %v1542 = vmul.f32 %v1534, 0.01
      %v1543 = vmul.f32 %v1535, 0.01
      %v1544 = vmul.f32 %v1536, 0.01
      %v1545 = vsel %vm1537, %v1533, %v1541
      %v1546 = vsel %vm1538, %v1534, %v1542
      %v1547 = vsel %vm1539, %v1535, %v1543
      %v1548 = vsel %vm1540, %v1536, %v1544
      %v1549 = vpack.c.bf16 %v1546, %v1545
      %v1550 = vpack.c.bf16 %v1548, %v1547
      %s1551 = scalar_lea.vmem %s1, 32
      %v1552 = vld [vmem:[%s1551] sm:$0xff]
      %v1553 = vld [vmem:[%s1551 + $0x8] sm:$0xff]
      %v1556 = vunpack.c.l.b16 %v1549
      %v1557 = vunpack.c.h.b16 %v1549
      %v1558 = vunpack.c.l.b16 %v1550
      %v1559 = vunpack.c.h.b16 %v1550
      %v1560 = vpack.c.b16 %v1558, %v1556
      %v1561 = vpack.c.b16 %v1559, %v1557
      %1562 = vrot.lane.b32.xlu0 %v1560, 9
      %v1563 = vpop.permute.xlu0 %1562
      %1564 = vrot.lane.b32.xlu0 %v1561, 9
      %v1565 = vpop.permute.xlu0 %1564
      %v1566 = vsel %vm427, %v1563, %v1565
      %v1569 = vsel %vm430, 0, %v1563
      %v1571 = vunpack.c.l.bf16 %v1569
      %v1572 = vunpack.c.l.bf16 %v1566
      %v1573 = vunpack.c.h.bf16 %v1569
      %v1574 = vunpack.c.h.bf16 %v1566
      %v1575 = vmul.f32 %v1571, %v450
      %v1576 = vmul.f32 %v1572, %v451
      %v1577 = vmul.f32 %v1573, %v450
      %v1578 = vmul.f32 %v1574, %v451
      %v1579 = vpack.c.bf16 %v1576, %v1575
      %v1580 = vpack.c.bf16 %v1578, %v1577
      %1581 = vrot.lane.b32.xlu0 %v1560, 8
      %v1582 = vpop.permute.xlu0 %1581
      %1583 = vrot.lane.b32.xlu0 %v1561, 8
      %v1584 = vpop.permute.xlu0 %1583
      %v1585 = vsel %vm462, %v1582, %v1584
      %v1588 = vsel %vm465, 0, %v1582
      %v1590 = vunpack.c.l.bf16 %v1588
      %v1591 = vunpack.c.l.bf16 %v1585
      %v1592 = vunpack.c.h.bf16 %v1588
      %v1593 = vunpack.c.h.bf16 %v1585
      %v1594 = vmul.f32 %v1590, %v485
      %v1595 = vmul.f32 %v1591, %v486
      %v1596 = vmul.f32 %v1592, %v485
      %v1597 = vmul.f32 %v1593, %v486
      %v1598 = vpack.c.bf16 %v1595, %v1594
      %v1599 = vpack.c.bf16 %v1597, %v1596
      %1600 = vrot.lane.b32.xlu0 %v1560, 7
      %v1601 = vpop.permute.xlu0 %1600
      %1602 = vrot.lane.b32.xlu0 %v1561, 7
      %v1603 = vpop.permute.xlu0 %1602
      %v1604 = vsel %vm497, %v1601, %v1603
      %v1607 = vsel %vm500, 0, %v1601
      %v1609 = vunpack.c.l.bf16 %v1607
      %v1610 = vunpack.c.l.bf16 %v1604
      %v1611 = vunpack.c.h.bf16 %v1607
      %v1612 = vunpack.c.h.bf16 %v1604
      %v1613 = vmul.f32 %v1609, %v520
      %v1614 = vmul.f32 %v1610, %v521
      %v1615 = vmul.f32 %v1611, %v520
      %v1616 = vmul.f32 %v1612, %v521
      %v1617 = vpack.c.bf16 %v1614, %v1613
      %v1618 = vpack.c.bf16 %v1616, %v1615
      %1619 = vrot.lane.b32.xlu0 %v1560, 1
      %v1620 = vpop.permute.xlu0 %1619
      %1621 = vrot.lane.b32.xlu0 %v1561, 1
      %v1622 = vpop.permute.xlu0 %1621
      %v1623 = vsel %vm532, %v1620, %v1622
      %v1626 = vsel %vm535, 0, %v1620
      %v1628 = vunpack.c.l.bf16 %v1626
      %v1629 = vunpack.c.l.bf16 %v1623
      %v1630 = vunpack.c.h.bf16 %v1626
      %v1631 = vunpack.c.h.bf16 %v1623
      %v1632 = vmul.f32 %v1628, %v555
      %v1633 = vmul.f32 %v1629, %v556
      %v1634 = vmul.f32 %v1630, %v555
      %v1635 = vmul.f32 %v1631, %v556
      %v1636 = vpack.c.bf16 %v1633, %v1632
      %v1637 = vpack.c.bf16 %v1635, %v1634
      %1638 = vrot.lane.b32.xlu0 %v1560, 127
      %v1639 = vpop.permute.xlu0 %1638
      %1640 = vrot.lane.b32.xlu0 %v1561, 127
      %v1641 = vpop.permute.xlu0 %1640
      %v1642 = vsel %vm567, %v1639, %v1641
      %v1645 = vsel %vm570, %v1641, 0
      %v1647 = vunpack.c.l.bf16 %v1642
      %v1648 = vunpack.c.l.bf16 %v1645
      %v1649 = vunpack.c.h.bf16 %v1642
      %v1650 = vunpack.c.h.bf16 %v1645
      %v1651 = vmul.f32 %v1647, %v590
      %v1652 = vmul.f32 %v1648, %v591
      %v1653 = vmul.f32 %v1649, %v590
      %v1654 = vmul.f32 %v1650, %v591
      %v1655 = vpack.c.bf16 %v1652, %v1651
      %v1656 = vpack.c.bf16 %v1654, %v1653
      %1657 = vrot.lane.b32.xlu0 %v1560, 121
      %v1658 = vpop.permute.xlu0 %1657
      %1659 = vrot.lane.b32.xlu0 %v1561, 121
      %v1660 = vpop.permute.xlu0 %1659
      %v1661 = vsel %vm602, %v1658, %v1660
      %v1664 = vsel %vm605, %v1660, 0
      %v1666 = vunpack.c.l.bf16 %v1661
      %v1667 = vunpack.c.l.bf16 %v1664
      %v1668 = vunpack.c.h.bf16 %v1661
      %v1669 = vunpack.c.h.bf16 %v1664
      %v1670 = vmul.f32 %v1666, %v625
      %v1671 = vmul.f32 %v1667, %v626
      %v1672 = vmul.f32 %v1668, %v625
      %v1673 = vmul.f32 %v1669, %v626
      %v1674 = vpack.c.bf16 %v1671, %v1670
      %v1675 = vpack.c.bf16 %v1673, %v1672
      %1676 = vrot.lane.b32.xlu0 %v1560, 120
      %v1677 = vpop.permute.xlu0 %1676
      %1678 = vrot.lane.b32.xlu0 %v1561, 120
      %v1679 = vpop.permute.xlu0 %1678
      %v1680 = vsel %vm637, %v1677, %v1679
      %v1683 = vsel %vm640, %v1679, 0
      %v1685 = vunpack.c.l.bf16 %v1680
      %v1686 = vunpack.c.l.bf16 %v1683
      %v1687 = vunpack.c.h.bf16 %v1680
      %v1688 = vunpack.c.h.bf16 %v1683
      %v1689 = vmul.f32 %v1685, %v660
      %v1690 = vmul.f32 %v1686, %v661
      %v1691 = vmul.f32 %v1687, %v660
      %v1692 = vmul.f32 %v1688, %v661
      %v1693 = vpack.c.bf16 %v1690, %v1689
      %v1694 = vpack.c.bf16 %v1692, %v1691
      %1695 = vrot.lane.b32.xlu0 %v1560, 119
      %v1696 = vpop.permute.xlu0 %1695
      %1697 = vrot.lane.b32.xlu0 %v1561, 119
      %v1698 = vpop.permute.xlu0 %1697
      %v1699 = vsel %vm672, %v1696, %v1698
      %v1702 = vsel %vm675, %v1698, 0
      %v1704 = vunpack.c.l.bf16 %v1699
      %v1705 = vunpack.c.l.bf16 %v1702
      %v1706 = vunpack.c.h.bf16 %v1699
      %v1707 = vunpack.c.h.bf16 %v1702
      %v1708 = vmul.f32 %v1704, %v695
      %v1709 = vmul.f32 %v1705, %v696
      %v1710 = vmul.f32 %v1706, %v695
      %v1711 = vmul.f32 %v1707, %v696
      %v1712 = vpack.c.bf16 %v1709, %v1708
      %v1713 = vpack.c.bf16 %v1711, %v1710
      %v1716 = vunpack.c.l.b16 %v1579
      %v1717 = vunpack.c.h.b16 %v1579
      %v1718 = vunpack.c.l.b16 %v1580
      %v1719 = vunpack.c.h.b16 %v1580
      %v1720 = vpack.c.b16 %v1718, %v1716
      %v1721 = vpack.c.b16 %v1719, %v1717
      %v1726 = vunpack.c.l.b16 %v1598
      %v1727 = vunpack.c.h.b16 %v1598
      %v1728 = vunpack.c.l.b16 %v1599
      %v1729 = vunpack.c.h.b16 %v1599
      %v1730 = vpack.c.b16 %v1728, %v1726
      %v1731 = vpack.c.b16 %v1729, %v1727
      %v1736 = vunpack.c.l.b16 %v1617
      %v1737 = vunpack.c.h.b16 %v1617
      %v1738 = vunpack.c.l.b16 %v1618
      %v1739 = vunpack.c.h.b16 %v1618
      %v1740 = vpack.c.b16 %v1738, %v1736
      %v1741 = vpack.c.b16 %v1739, %v1737
      %v1746 = vunpack.c.l.b16 %v1636
      %v1747 = vunpack.c.h.b16 %v1636
      %v1748 = vunpack.c.l.b16 %v1637
      %v1749 = vunpack.c.h.b16 %v1637
      %v1750 = vpack.c.b16 %v1748, %v1746
      %v1751 = vpack.c.b16 %v1749, %v1747
      %v1758 = vunpack.c.l.b16 %v1655
      %v1759 = vunpack.c.h.b16 %v1655
      %v1760 = vunpack.c.l.b16 %v1656
      %v1761 = vunpack.c.h.b16 %v1656
      %v1762 = vpack.c.b16 %v1760, %v1758
      %v1763 = vpack.c.b16 %v1761, %v1759
      %v1768 = vunpack.c.l.b16 %v1674
      %v1769 = vunpack.c.h.b16 %v1674
      %v1770 = vunpack.c.l.b16 %v1675
      %v1771 = vunpack.c.h.b16 %v1675
      %v1772 = vpack.c.b16 %v1770, %v1768
      %v1773 = vpack.c.b16 %v1771, %v1769
      %v1778 = vunpack.c.l.b16 %v1693
      %v1779 = vunpack.c.h.b16 %v1693
      %v1780 = vunpack.c.l.b16 %v1694
      %v1781 = vunpack.c.h.b16 %v1694
      %v1782 = vpack.c.b16 %v1780, %v1778
      %v1783 = vpack.c.b16 %v1781, %v1779
      %v1788 = vunpack.c.l.b16 %v1712
      %v1789 = vunpack.c.h.b16 %v1712
      %v1790 = vunpack.c.l.b16 %v1713
      %v1791 = vunpack.c.h.b16 %v1713
      %v1792 = vpack.c.b16 %v1790, %v1788
      %v1793 = vpack.c.b16 %v1791, %v1789
      %v1798 = vunpack.c.l.b16 %v1552
      %v1799 = vunpack.c.h.b16 %v1552
      %v1800 = vunpack.c.l.b16 %v1553
      %v1801 = vunpack.c.h.b16 %v1553
      %v1802 = vpack.c.b16 %v1800, %v1798
      %v1803 = vpack.c.b16 %v1801, %v1799
      %v1806 = vsel %vm794, %v1803, 0
      %1808 = vmatpush.bf16.msra.mxu0 %v1782
      %1809 = vmatpush.bf16.msra.mxu0 %v1772
      %1810 = vmatpush.bf16.msra.mxu0 %v1762
      %1811 = vmatpush.bf16.msra.mxu0 %v1560
      %1812 = vmatpush.bf16.msra.mxu0 %v1750
      %1813 = vmatpush.bf16.msra.mxu0 %v1740
      %1814 = vmatpush.bf16.msra.mxu0 %v1730
      %1815 = vmatpush.bf16.msra.mxu0 %v1720
      %1816 = vmatmul.bf16.gmra.mxu0 %v1802
      %v1817 = vpop.f32.mrf.mxu0
      %v1818 = vadd.f32 0.0, %v1817
      %v1819 = vpop.f32.mrf.mxu0
      %v1820 = vadd.f32 0.0, %v1819
      %1821 = vdwg.mxu0
      %1822 = vmatpush.bf16.msra.mxu0 0
      %1823 = vmatpush.bf16.msra.mxu0 0
      %1824 = vmatpush.bf16.msra.mxu0 0
      %1825 = vmatpush.bf16.msra.mxu0 0
      %1826 = vmatpush.bf16.msra.mxu0 0
      %1827 = vmatpush.bf16.msra.mxu0 0
      %1828 = vmatpush.bf16.msra.mxu0 0
      %1829 = vmatpush.bf16.msra.mxu0 %v1792
      %1830 = vmatmul.bf16.gmra.mxu0 %v1806
      %v1831 = vpop.f32.mrf.mxu0
      %v1832 = vadd.f32 %v1818, %v1831
      %v1833 = vpop.f32.mrf.mxu0
      %v1834 = vadd.f32 %v1820, %v1833
      %1835 = vdwg.mxu0
      %1836 = vmatpush.bf16.msra.mxu0 %v1783
      %1837 = vmatpush.bf16.msra.mxu0 %v1773
      %1838 = vmatpush.bf16.msra.mxu0 %v1763
      %1839 = vmatpush.bf16.msra.mxu0 %v1561
      %1840 = vmatpush.bf16.msra.mxu0 %v1751
      %1841 = vmatpush.bf16.msra.mxu0 %v1741
      %1842 = vmatpush.bf16.msra.mxu0 %v1731
      %1843 = vmatpush.bf16.msra.mxu0 %v1721
      %1844 = vmatmul.bf16.gmra.mxu0 %v1802
      %v1845 = vpop.f32.mrf.mxu0
      %v1846 = vadd.f32 0.0, %v1845
      %v1847 = vpop.f32.mrf.mxu0
      %v1848 = vadd.f32 0.0, %v1847
      %1849 = vdwg.mxu0
      %1850 = vmatpush.bf16.msra.mxu0 0
      %1851 = vmatpush.bf16.msra.mxu0 0
      %1852 = vmatpush.bf16.msra.mxu0 0
      %1853 = vmatpush.bf16.msra.mxu0 0
      %1854 = vmatpush.bf16.msra.mxu0 0
      %1855 = vmatpush.bf16.msra.mxu0 0
      %1856 = vmatpush.bf16.msra.mxu0 0
      %1857 = vmatpush.bf16.msra.mxu0 %v1793
      %1858 = vmatmul.bf16.gmra.mxu0 %v1806
      %v1859 = vpop.f32.mrf.mxu0
      %v1860 = vadd.f32 %v1846, %v1859
      %v1861 = vpop.f32.mrf.mxu0
      %v1862 = vadd.f32 %v1848, %v1861
      %1863 = vdwg.mxu0
      %v1864 = vmul.f32 %v1832, %v1832
      %v1865 = vmul.f32 %v1860, %v1860
      %v1866 = vmul.f32 %v1834, %v1834
      %v1867 = vmul.f32 %v1862, %v1862
      %1868 = vmatpush.msra.mxu0 %v380
      %1869 = vmatpush.msra.mxu0 %v379
      %1870 = vmatpush.msra.mxu0 %v378
      %1871 = vmatpush.msra.mxu0 %v377
      %1872 = vmatpush.msra.mxu0 %v376
      %1873 = vmatpush.msra.mxu0 %v375
      %1874 = vmatpush.msra.mxu0 %v374
      %1875 = vmatpush.msra.mxu0 %v373
      %1876 = vmatpush.msra.mxu0 %v372
      %1877 = vmatpush.msra.mxu0 %v371
      %1878 = vmatpush.msra.mxu0 %v370
      %1879 = vmatpush.msra.mxu0 %v369
      %1880 = vmatpush.msra.mxu0 %v368
      %1881 = vmatpush.msra.mxu0 %v367
      %1882 = vmatpush.msra.mxu0 %v366
      %1883 = vmatpush.msra.mxu0 %v365
      %1884 = vmatmul.f32.gmra.mxu0 %v1832
      %v1885 = vpop.f32.mrf.mxu0
      %v1886 = vadd.f32 0.0, %v1885
      %1887 = vmatmul.f32.gmra.mxu0 %v1834
      %v1888 = vpop.f32.mrf.mxu0
      %v1889 = vadd.f32 0.0, %v1888
      %1890 = vmatmul.f32.gmra.mxu0 %v1864
      %v1891 = vpop.f32.mrf.mxu0
      %v1892 = vadd.f32 0.0, %v1891
      %1893 = vmatmul.f32.gmra.mxu0 %v1866
      %v1894 = vpop.f32.mrf.mxu0
      %v1895 = vadd.f32 0.0, %v1894
      %1896 = vdwg.mxu0
      %1897 = vmatpush.msra.mxu0 %v396
      %1898 = vmatpush.msra.mxu0 %v395
      %1899 = vmatpush.msra.mxu0 %v394
      %1900 = vmatpush.msra.mxu0 %v393
      %1901 = vmatpush.msra.mxu0 %v392
      %1902 = vmatpush.msra.mxu0 %v391
      %1903 = vmatpush.msra.mxu0 %v390
      %1904 = vmatpush.msra.mxu0 %v389
      %1905 = vmatpush.msra.mxu0 %v388
      %1906 = vmatpush.msra.mxu0 %v387
      %1907 = vmatpush.msra.mxu0 %v386
      %1908 = vmatpush.msra.mxu0 %v385
      %1909 = vmatpush.msra.mxu0 %v384
      %1910 = vmatpush.msra.mxu0 %v383
      %1911 = vmatpush.msra.mxu0 %v382
      %1912 = vmatpush.msra.mxu0 %v381
      %1913 = vmatmul.f32.gmra.mxu0 %v1860
      %v1914 = vpop.f32.mrf.mxu0
      %v1915 = vadd.f32 %v1886, %v1914
      %1916 = vmatmul.f32.gmra.mxu0 %v1862
      %v1917 = vpop.f32.mrf.mxu0
      %v1918 = vadd.f32 %v1889, %v1917
      %1919 = vmatmul.f32.gmra.mxu0 %v1865
      %v1920 = vpop.f32.mrf.mxu0
      %v1921 = vadd.f32 %v1892, %v1920
      %1922 = vmatmul.f32.gmra.mxu0 %v1867
      %v1923 = vpop.f32.mrf.mxu0
      %v1924 = vadd.f32 %v1895, %v1923
      %1925 = vdwg.mxu0
      %v1926 = vmul.f32 %v1915, 0.015625
      %v1927 = vmul.f32 %v1918, 0.015625
      %v1928 = vmul.f32 %v1921, 0.015625
      %v1929 = vmul.f32 %v1924, 0.015625
      %v1930 = vmul.f32 %v1926, %v1926
      %v1931 = vmul.f32 %v1927, %v1927
      %v1932 = vsub.f32 %v1928, %v1930
      %v1933 = vsub.f32 %v1929, %v1931
      %v1934 = vmax.f32 %v1932, 0.0
      %v1935 = vmax.f32 %v1933, 0.0
      %v1936 = vadd.f32 %v1934, 1e-05
      %v1937 = vadd.f32 %v1935, 1e-05
      %v1938 = vrsqrt.pop %v1936
      %v1939 = vmul.f32 %v1938, %v1936
      %v1940 = vmul.f32 %v1939, %v1938
      %v1941 = vmul.f32 0.5, %v1940
      %v1942 = vsub.f32 1.5, %v1941
      %v1943 = vmul.f32 %v1938, %v1942
      %vm1944 = vweird.f32 %v1936
      %vm1945 = vweird.f32 %v1938
      %vm1946 = vmor %vm1944, %vm1945
      %v1947 = vsel %vm1946, %v1938, %v1943
      %v1948 = vrsqrt.pop %v1937
      %v1949 = vmul.f32 %v1948, %v1937
      %v1950 = vmul.f32 %v1949, %v1948
      %v1951 = vmul.f32 0.5, %v1950
      %v1952 = vsub.f32 1.5, %v1951
      %v1953 = vmul.f32 %v1948, %v1952
      %vm1954 = vweird.f32 %v1937
      %vm1955 = vweird.f32 %v1948
      %vm1956 = vmor %vm1954, %vm1955
      %v1957 = vsel %vm1956, %v1948, %v1953
      %v1958 = vmul.f32 %v1926, %v1947
      %v1959 = vmul.f32 %v1927, %v1957
      %v1961 = vsel %vm950, %v1958, 0
      %v1964 = vsel %vm950, %v1959, 0
      %v1967 = vsel %vm950, %v1947, 0
      %v1970 = vsel %vm950, %v1957, 0
      %1972 = vmatpush.msra.mxu0 0.0
      %1973 = vmatpush.msra.mxu0 0.0
      %1974 = vmatpush.msra.mxu0 0.0
      %1975 = vmatpush.msra.mxu0 0.0
      %1976 = vmatpush.msra.mxu0 0.0
      %1977 = vmatpush.msra.mxu0 0.0
      %1978 = vmatpush.msra.mxu0 0.0
      %1979 = vmatpush.msra.mxu0 0.0
      %1980 = vmatpush.msra.mxu0 0.0
      %1981 = vmatpush.msra.mxu0 0.0
      %1982 = vmatpush.msra.mxu0 0.0
      %1983 = vmatpush.msra.mxu0 0.0
      %1984 = vmatpush.msra.mxu0 0.0
      %1985 = vmatpush.msra.mxu0 0.0
      %1986 = vmatpush.msra.mxu0 0.0
      %1987 = vmatpush.msra.mxu0 %v965
      %1988 = vmatmul.f32.gmra.mxu0 %v1961
      %v1989 = vpop.f32.mrf.mxu0
      %v1990 = vadd.f32 0.0, %v1989
      %1991 = vmatmul.f32.gmra.mxu0 %v1964
      %v1992 = vpop.f32.mrf.mxu0
      %v1993 = vadd.f32 0.0, %v1992
      %1994 = vmatmul.f32.gmra.mxu0 %v1967
      %v1995 = vpop.f32.mrf.mxu0
      %v1996 = vadd.f32 0.0, %v1995
      %1997 = vmatmul.f32.gmra.mxu0 %v1970
      %v1998 = vpop.f32.mrf.mxu0
      %v1999 = vadd.f32 0.0, %v1998
      %2000 = vdwg.mxu0
      %2001 = vmatpush.msra.mxu0 0.0
      %2002 = vmatpush.msra.mxu0 0.0
      %2003 = vmatpush.msra.mxu0 0.0
      %2004 = vmatpush.msra.mxu0 0.0
      %2005 = vmatpush.msra.mxu0 0.0
      %2006 = vmatpush.msra.mxu0 0.0
      %2007 = vmatpush.msra.mxu0 0.0
      %2008 = vmatpush.msra.mxu0 0.0
      %2009 = vmatpush.msra.mxu0 0.0
      %2010 = vmatpush.msra.mxu0 0.0
      %2011 = vmatpush.msra.mxu0 0.0
      %2012 = vmatpush.msra.mxu0 0.0
      %2013 = vmatpush.msra.mxu0 0.0
      %2014 = vmatpush.msra.mxu0 0.0
      %2015 = vmatpush.msra.mxu0 0.0
      %2016 = vmatpush.msra.mxu0 %v968
      %2017 = vmatmul.f32.gmra.mxu0 %v1961
      %v2018 = vpop.f32.mrf.mxu0
      %v2019 = vadd.f32 0.0, %v2018
      %2020 = vmatmul.f32.gmra.mxu0 %v1964
      %v2021 = vpop.f32.mrf.mxu0
      %v2022 = vadd.f32 0.0, %v2021
      %2023 = vmatmul.f32.gmra.mxu0 %v1967
      %v2024 = vpop.f32.mrf.mxu0
      %v2025 = vadd.f32 0.0, %v2024
      %2026 = vmatmul.f32.gmra.mxu0 %v1970
      %v2027 = vpop.f32.mrf.mxu0
      %v2028 = vadd.f32 0.0, %v2027
      %2029 = vdwg.mxu0
      %v2030 = vmul.f32 %v1832, %v1996
      %v2031 = vmul.f32 %v1860, %v2025
      %v2032 = vmul.f32 %v1834, %v1999
      %v2033 = vmul.f32 %v1862, %v2028
      %v2034 = vsub.f32 %v2030, %v1990
      %v2035 = vsub.f32 %v2031, %v2019
      %v2036 = vsub.f32 %v2032, %v1993
      %v2037 = vsub.f32 %v2033, %v2022
      %vm2038 = vcmp.ge.f32.partialorder %v2034, 0.0
      %vm2039 = vcmp.ge.f32.partialorder %v2035, 0.0
      %vm2040 = vcmp.ge.f32.partialorder %v2036, 0.0
      %vm2041 = vcmp.ge.f32.partialorder %v2037, 0.0
      %v2042 = vmul.f32 %v2034, 0.01
      %v2043 = vmul.f32 %v2035, 0.01
      %v2044 = vmul.f32 %v2036, 0.01
      %v2045 = vmul.f32 %v2037, 0.01
      %v2046 = vsel %vm2038, %v2034, %v2042
      %v2047 = vsel %vm2039, %v2035, %v2043
      %v2048 = vsel %vm2040, %v2036, %v2044
      %v2049 = vsel %vm2041, %v2037, %v2045
      %v2050 = vpack.c.bf16 %v2048, %v2046
      %v2051 = vpack.c.bf16 %v2049, %v2047
      %v2052 = vld [vmem:[%s2] sm:$0xf]
      %v2053 = vld [vmem:[%s2 + $0x4] sm:$0xf]
      %v2054 = vld [vmem:[%s2 + $0x8] sm:$0xf]
      %v2055 = vld [vmem:[%s2 + $0xc] sm:$0xf]
      %v2060 = vunpack.c.l.b16 %v2052
      %v2061 = vunpack.c.l.b16 %v2053
      %v2062 = vunpack.c.l.b16 %v2054
      %v2063 = vunpack.c.l.b16 %v2055
      %v2064 = vpack.c.b16 %v2061, %v2060
      %v2065 = vpack.c.b16 %v2063, %v2062
      %v2067 = vsel %vm794, %v2064, 0
      %v2070 = vsel %vm794, %v2065, 0
      %2072 = vmatpush.bf16.msra.mxu0 0
      %2073 = vmatpush.bf16.msra.mxu0 0
      %2074 = vmatpush.bf16.msra.mxu0 0
      %2075 = vmatpush.bf16.msra.mxu0 0
      %2076 = vmatpush.bf16.msra.mxu0 0
      %2077 = vmatpush.bf16.msra.mxu0 0
      %2078 = vmatpush.bf16.msra.mxu0 0
      %2079 = vmatpush.bf16.msra.mxu0 %v2050
      %2080 = vmatmul.bf16.gmra.mxu0 %v2067
      %v2081 = vpop.f32.mrf.mxu0
      %v2082 = vadd.f32 0.0, %v2081
      %v2083 = vpop.f32.mrf.mxu0
      %v2084 = vadd.f32 0.0, %v2083
      %2085 = vmatmul.bf16.gmra.mxu0 %v2070
      %v2086 = vpop.f32.mrf.mxu0
      %v2087 = vadd.f32 0.0, %v2086
      %v2088 = vpop.f32.mrf.mxu0
      %v2089 = vadd.f32 0.0, %v2088
      %2090 = vdwg.mxu0
      %2091 = vmatpush.bf16.msra.mxu0 0
      %2092 = vmatpush.bf16.msra.mxu0 0
      %2093 = vmatpush.bf16.msra.mxu0 0
      %2094 = vmatpush.bf16.msra.mxu0 0
      %2095 = vmatpush.bf16.msra.mxu0 0
      %2096 = vmatpush.bf16.msra.mxu0 0
      %2097 = vmatpush.bf16.msra.mxu0 0
      %2098 = vmatpush.bf16.msra.mxu0 %v2051
      %2099 = vmatmul.bf16.gmra.mxu0 %v2067
      %v2100 = vpop.f32.mrf.mxu0
      %v2101 = vadd.f32 0.0, %v2100
      %v2102 = vpop.f32.mrf.mxu0
      %v2103 = vadd.f32 0.0, %v2102
      %2104 = vmatmul.bf16.gmra.mxu0 %v2070
      %v2105 = vpop.f32.mrf.mxu0
      %v2106 = vadd.f32 0.0, %v2105
      %v2107 = vpop.f32.mrf.mxu0
      %v2108 = vadd.f32 0.0, %v2107
      %2109 = vdwg.mxu0
      %v2110 = vmul.f32 %v2082, %v2082
      %v2111 = vmul.f32 %v2101, %v2101
      %v2112 = vmul.f32 %v2084, %v2084
      %v2113 = vmul.f32 %v2103, %v2103
      %v2114 = vmul.f32 %v2087, %v2087
      %v2115 = vmul.f32 %v2106, %v2106
      %v2116 = vmul.f32 %v2089, %v2089
      %v2117 = vmul.f32 %v2108, %v2108
      %2118 = vmatpush.msra.mxu0 %v380
      %2119 = vmatpush.msra.mxu0 %v379
      %2120 = vmatpush.msra.mxu0 %v378
      %2121 = vmatpush.msra.mxu0 %v377
      %2122 = vmatpush.msra.mxu0 %v376
      %2123 = vmatpush.msra.mxu0 %v375
      %2124 = vmatpush.msra.mxu0 %v374
      %2125 = vmatpush.msra.mxu0 %v373
      %2126 = vmatpush.msra.mxu0 %v372
      %2127 = vmatpush.msra.mxu0 %v371
      %2128 = vmatpush.msra.mxu0 %v370
      %2129 = vmatpush.msra.mxu0 %v369
      %2130 = vmatpush.msra.mxu0 %v368
      %2131 = vmatpush.msra.mxu0 %v367
      %2132 = vmatpush.msra.mxu0 %v366
      %2133 = vmatpush.msra.mxu0 %v365
      %2134 = vmatmul.f32.gmra.mxu0 %v2082
      %v2135 = vpop.f32.mrf.mxu0
      %v2136 = vadd.f32 0.0, %v2135
      %2137 = vmatmul.f32.gmra.mxu0 %v2084
      %v2138 = vpop.f32.mrf.mxu0
      %v2139 = vadd.f32 0.0, %v2138
      %2140 = vmatmul.f32.gmra.mxu0 %v2087
      %v2141 = vpop.f32.mrf.mxu0
      %v2142 = vadd.f32 0.0, %v2141
      %2143 = vmatmul.f32.gmra.mxu0 %v2089
      %v2144 = vpop.f32.mrf.mxu0
      %v2145 = vadd.f32 0.0, %v2144
      %2146 = vmatmul.f32.gmra.mxu0 %v2110
      %v2147 = vpop.f32.mrf.mxu0
      %v2148 = vadd.f32 0.0, %v2147
      %2149 = vmatmul.f32.gmra.mxu0 %v2112
      %v2150 = vpop.f32.mrf.mxu0
      %v2151 = vadd.f32 0.0, %v2150
      %2152 = vmatmul.f32.gmra.mxu0 %v2114
      %v2153 = vpop.f32.mrf.mxu0
      %v2154 = vadd.f32 0.0, %v2153
      %2155 = vmatmul.f32.gmra.mxu0 %v2116
      %v2156 = vpop.f32.mrf.mxu0
      %v2157 = vadd.f32 0.0, %v2156
      %2158 = vdwg.mxu0
      %2159 = vmatpush.msra.mxu0 %v396
      %2160 = vmatpush.msra.mxu0 %v395
      %2161 = vmatpush.msra.mxu0 %v394
      %2162 = vmatpush.msra.mxu0 %v393
      %2163 = vmatpush.msra.mxu0 %v392
      %2164 = vmatpush.msra.mxu0 %v391
      %2165 = vmatpush.msra.mxu0 %v390
      %2166 = vmatpush.msra.mxu0 %v389
      %2167 = vmatpush.msra.mxu0 %v388
      %2168 = vmatpush.msra.mxu0 %v387
      %2169 = vmatpush.msra.mxu0 %v386
      %2170 = vmatpush.msra.mxu0 %v385
      %2171 = vmatpush.msra.mxu0 %v384
      %2172 = vmatpush.msra.mxu0 %v383
      %2173 = vmatpush.msra.mxu0 %v382
      %2174 = vmatpush.msra.mxu0 %v381
      %2175 = vmatmul.f32.gmra.mxu0 %v2101
      %v2176 = vpop.f32.mrf.mxu0
      %v2177 = vadd.f32 %v2136, %v2176
      %2178 = vmatmul.f32.gmra.mxu0 %v2103
      %v2179 = vpop.f32.mrf.mxu0
      %v2180 = vadd.f32 %v2139, %v2179
      %2181 = vmatmul.f32.gmra.mxu0 %v2106
      %v2182 = vpop.f32.mrf.mxu0
      %v2183 = vadd.f32 %v2142, %v2182
      %2184 = vmatmul.f32.gmra.mxu0 %v2108
      %v2185 = vpop.f32.mrf.mxu0
      %v2186 = vadd.f32 %v2145, %v2185
      %2187 = vmatmul.f32.gmra.mxu0 %v2111
      %v2188 = vpop.f32.mrf.mxu0
      %v2189 = vadd.f32 %v2148, %v2188
      %2190 = vmatmul.f32.gmra.mxu0 %v2113
      %v2191 = vpop.f32.mrf.mxu0
      %v2192 = vadd.f32 %v2151, %v2191
      %2193 = vmatmul.f32.gmra.mxu0 %v2115
      %v2194 = vpop.f32.mrf.mxu0
      %v2195 = vadd.f32 %v2154, %v2194
      %2196 = vmatmul.f32.gmra.mxu0 %v2117
      %v2197 = vpop.f32.mrf.mxu0
      %v2198 = vadd.f32 %v2157, %v2197
      %2199 = vdwg.mxu0
      %v2200 = vadd.f32 %v2177, 0.0
      %v2201 = vadd.f32 %v2200, %v2180
      %v2202 = vadd.f32 %v2201, %v2183
      %v2203 = vadd.f32 %v2202, %v2186
      %v2204 = vadd.f32 %v2189, 0.0
      %v2205 = vadd.f32 %v2204, %v2192
      %v2206 = vadd.f32 %v2205, %v2195
      %v2207 = vadd.f32 %v2206, %v2198
      %v2208 = vmul.f32 %v2203, 0.00390625
      %v2209 = vmul.f32 %v2207, 0.00390625
      %v2210 = vmul.f32 %v2208, %v2208
      %v2211 = vsub.f32 %v2209, %v2210
      %v2212 = vmax.f32 %v2211, 0.0
      %v2213 = vadd.f32 %v2212, 1e-05
      %v2214 = vrsqrt.pop %v2213
      %v2215 = vmul.f32 %v2214, %v2213
      %v2216 = vmul.f32 %v2215, %v2214
      %v2217 = vmul.f32 0.5, %v2216
      %v2218 = vsub.f32 1.5, %v2217
      %v2219 = vmul.f32 %v2214, %v2218
      %vm2220 = vweird.f32 %v2213
      %vm2221 = vweird.f32 %v2214
      %vm2222 = vmor %vm2220, %vm2221
      %v2223 = vsel %vm2222, %v2214, %v2219
      %v2224 = vmul.f32 %v2208, %v2223
      %v2226 = vsel %vm950, %v2224, 0
      %v2229 = vsel %vm950, %v2223, 0
      %2231 = vmatpush.msra.mxu0 0.0
      %2232 = vmatpush.msra.mxu0 0.0
      %2233 = vmatpush.msra.mxu0 0.0
      %2234 = vmatpush.msra.mxu0 0.0
      %2235 = vmatpush.msra.mxu0 0.0
      %2236 = vmatpush.msra.mxu0 0.0
      %2237 = vmatpush.msra.mxu0 0.0
      %2238 = vmatpush.msra.mxu0 0.0
      %2239 = vmatpush.msra.mxu0 0.0
      %2240 = vmatpush.msra.mxu0 0.0
      %2241 = vmatpush.msra.mxu0 0.0
      %2242 = vmatpush.msra.mxu0 0.0
      %2243 = vmatpush.msra.mxu0 0.0
      %2244 = vmatpush.msra.mxu0 0.0
      %2245 = vmatpush.msra.mxu0 0.0
      %2246 = vmatpush.msra.mxu0 %v965
      %2247 = vmatmul.f32.gmra.mxu0 %v2226
      %v2248 = vpop.f32.mrf.mxu0
      %v2249 = vadd.f32 0.0, %v2248
      %2250 = vmatmul.f32.gmra.mxu0 %v2229
      %v2251 = vpop.f32.mrf.mxu0
      %v2252 = vadd.f32 0.0, %v2251
      %2253 = vdwg.mxu0
      %2254 = vmatpush.msra.mxu0 0.0
      %2255 = vmatpush.msra.mxu0 0.0
      %2256 = vmatpush.msra.mxu0 0.0
      %2257 = vmatpush.msra.mxu0 0.0
      %2258 = vmatpush.msra.mxu0 0.0
      %2259 = vmatpush.msra.mxu0 0.0
      %2260 = vmatpush.msra.mxu0 0.0
      %2261 = vmatpush.msra.mxu0 0.0
      %2262 = vmatpush.msra.mxu0 0.0
      %2263 = vmatpush.msra.mxu0 0.0
      %2264 = vmatpush.msra.mxu0 0.0
      %2265 = vmatpush.msra.mxu0 0.0
      %2266 = vmatpush.msra.mxu0 0.0
      %2267 = vmatpush.msra.mxu0 0.0
      %2268 = vmatpush.msra.mxu0 0.0
      %2269 = vmatpush.msra.mxu0 %v968
      %2270 = vmatmul.f32.gmra.mxu0 %v2226
      %v2271 = vpop.f32.mrf.mxu0
      %v2272 = vadd.f32 0.0, %v2271
      %2273 = vmatmul.f32.gmra.mxu0 %v2229
      %v2274 = vpop.f32.mrf.mxu0
      %v2275 = vadd.f32 0.0, %v2274
      %2276 = vdwg.mxu0
      %v2277 = vmul.f32 %v2082, %v2252
      %v2278 = vmul.f32 %v2101, %v2275
      %v2279 = vmul.f32 %v2084, %v2252
      %v2280 = vmul.f32 %v2103, %v2275
      %v2281 = vmul.f32 %v2087, %v2252
      %v2282 = vmul.f32 %v2106, %v2275
      %v2283 = vmul.f32 %v2089, %v2252
      %v2284 = vmul.f32 %v2108, %v2275
      %v2285 = vsub.f32 %v2277, %v2249
      %v2286 = vsub.f32 %v2278, %v2272
      %v2287 = vsub.f32 %v2279, %v2249
      %v2288 = vsub.f32 %v2280, %v2272
      %v2289 = vsub.f32 %v2281, %v2249
      %v2290 = vsub.f32 %v2282, %v2272
      %v2291 = vsub.f32 %v2283, %v2249
      %v2292 = vsub.f32 %v2284, %v2272
      %vm2293 = vcmp.ge.f32.partialorder %v2285, 0.0
      %vm2294 = vcmp.ge.f32.partialorder %v2286, 0.0
      %vm2295 = vcmp.ge.f32.partialorder %v2287, 0.0
      %vm2296 = vcmp.ge.f32.partialorder %v2288, 0.0
      %vm2297 = vcmp.ge.f32.partialorder %v2289, 0.0
      %vm2298 = vcmp.ge.f32.partialorder %v2290, 0.0
      %vm2299 = vcmp.ge.f32.partialorder %v2291, 0.0
      %vm2300 = vcmp.ge.f32.partialorder %v2292, 0.0
      %v2301 = vmul.f32 %v2285, 0.01
      %v2302 = vmul.f32 %v2286, 0.01
      %v2303 = vmul.f32 %v2287, 0.01
      %v2304 = vmul.f32 %v2288, 0.01
      %v2305 = vmul.f32 %v2289, 0.01
      %v2306 = vmul.f32 %v2290, 0.01
      %v2307 = vmul.f32 %v2291, 0.01
      %v2308 = vmul.f32 %v2292, 0.01
      %v2309 = vsel %vm2293, %v2285, %v2301
      %v2310 = vsel %vm2294, %v2286, %v2302
      %v2311 = vsel %vm2295, %v2287, %v2303
      %v2312 = vsel %vm2296, %v2288, %v2304
      %v2313 = vsel %vm2297, %v2289, %v2305
      %v2314 = vsel %vm2298, %v2290, %v2306
      %v2315 = vsel %vm2299, %v2291, %v2307
      %v2316 = vsel %vm2300, %v2292, %v2308
      %v2317 = vpack.c.bf16 %v2310, %v2309
      %v2318 = vpack.c.bf16 %v2312, %v2311
      %v2319 = vpack.c.bf16 %v2314, %v2313
      %v2320 = vpack.c.bf16 %v2316, %v2315
      %2321 = vst [vmem:[%s197] sm:$0xff] %v2317
      %2322 = vst [vmem:[%s197 + $0x8] sm:$0xff] %v2318
      %2323 = vst [vmem:[%s197 + $0x10] sm:$0xff] %v2319
      %2324 = vst [vmem:[%s197 + $0x18] sm:$0xff] %v2320
      %p2325 = scmp.lt.s32.totalorder %s15, 1
      %s2326 = scalar_select %p2325, %s15, 1
      %s2327 = smul.addr %s2326, 8
      %s2328 = smul.addr %s2327, 4
      %s2329 = scalar_lea.vmem %s4, %s2328
      // Predicated region
      $region37: #{generator_liu_forward.6} parent=35 // pred_check
        %p2330 = pneg %p122
      $region38: #{generator_liu_forward.6} parent=35 // pred_check_branch
        %2332 = sbr.rel (%p2330) target = $region40
      $region39: #{generator_liu_forward.6} parent=35 // pred_region
        _
      $region40: #{generator_liu_forward.6} parent=35 // pred_fallthru
        _
    $region36: #{generator_liu_forward.6} parent=5 // pred_fallthru
      _
    %p2333 = scmp.le.s32.totalorder 2, %s10
    // Predicated region
    $region41: #{generator_liu_forward.6} parent=5 // pred_check
      %p2334 = pneg %p2333
    $region42: #{generator_liu_forward.6} parent=5 // pred_check_branch
      %2336 = sbr.rel (%p2334) target = $region44
    $region43: #{generator_liu_forward.6} parent=5 // pred_region
      %s2337 = ssub.s32 %s10, 2
      // Predicated region
      $region45: #{generator_liu_forward.6} parent=43 // pred_check
        %p2338 = pneg %p128
      $region46: #{generator_liu_forward.6} parent=43 // pred_check_branch
        %2340 = sbr.rel (%p2338) target = $region48
      $region47: #{generator_liu_forward.6} parent=43 // pred_region
        %p2341 = scmp.lt.s32.totalorder %s16, 1
        %s2342 = scalar_select %p2341, %s16, 1
        %s2343 = smul.addr %s2342, 8
        %s2344 = smul.addr %s2343, 4
        %s2345 = scalar_lea.vmem %s4, %s2344
      $region48: #{generator_liu_forward.6} parent=43 // pred_fallthru
        _
    $region44: #{generator_liu_forward.6} parent=5 // pred_fallthru
      _
  $region6: #{generator_liu_forward.6} parent=0 // loop_footer
    %s14 = sadd.s32 1, %s10
  $region7: #{generator_liu_forward.6} parent=0 // loop_footer_branch
    %9 = sbr.rel target = $region3
  $region8: #{generator_liu_forward.6} parent=0 // loop_exit
    _

// kernel: generator_liu_forward.7
$region0: #{generator_liu_forward.7}
  #allocation0 [shape = 'u32[]', space=smem, size = 0x4, offset = 0x4, fixed_abs, tag = 'smem constant byte address 0x4 - core index']
  #allocation1 [shape = 'u32[72,128]{1,0:T(1,128)}', space=vmem, size = 0x9000, scoped, tag = 'internal scratch']
  %s0 = inlined_call_operand.vmem [shape: bf16[2,8,1024], index: 0, kind: input, shape index: {}]
  %s1 = inlined_call_operand.vmem [shape: bf16[9,8,8], index: 1, kind: input, shape index: {}]
  %s2 = inlined_call_operand.vmem [shape: bf16[9,1,1024], index: 2, kind: input, shape index: {}]
  %s3 = inlined_call_operand.vmem [shape: f32[2,8,1024], index: 3, kind: output, shape index: {}]
  %s4 = sld [smem:[#allocation0]]
  $region45: #{generator_liu_forward.7} parent=0
    _
  %s6 = ssub.s32 1, %s4
  %s7 = scalar_select 0, %s6, %s4
  loop: start=0, step=1, limit=4
  $region2: #{generator_liu_forward.7} parent=0 // loop_pre_header
    _
  $region3: #{generator_liu_forward.7} parent=0 // loop_header
    %s9 = sphi 0, %s13
    %p10 = scmp.ge.s32.totalorder %s9, 4
    %s19 = sphi 0, %s21
    %s22 = sphi 0, %s19
    %s23 = sphi 0, %s22
    %s39 = sphi 0, %s23
    %s43 = sphi 0, %s43
    %s45 = sphi 0, %s43
    %s46 = sphi 0, %s45
    %s60 = sphi 0, %s46
    %s64 = sphi 0, %s64
    %s66 = sphi 0, %s64
    %s67 = sphi 0, %s66
    %s81 = sphi 0, %s67
    %s87 = sphi 0, %s89
    %s90 = sphi 0, %s87
    %s91 = sphi 0, %s90
    %s107 = sphi 0, %s91
  $region4: #{generator_liu_forward.7} parent=0 // loop_header_branch
    %12 = sbr.rel (%p10) target = $region8
  $region5: #{generator_liu_forward.7} parent=0 // loop_body
    %s14 = ssub.s32 %s9, 1
    %s15 = ssub.s32 %s9, 2
    %s16 = sadd.s32 %s9, 1
    %s17 = ssub.s32 %s9, %s16
    %p18 = scmp.eq.s32.totalorder %s17, 0
    %s20 = sadd.s32 %s19, 1
    %s21 = scalar_select %p18, %s19, %s20
    %p24 = pneg %p18
    %p25 = scmp.eq.s32.totalorder %s9, 1
    %p26 = por %p24, %p25
    %p27 = scmp.ne.s32.totalorder %s19, %s22
    %p28 = scmp.eq.s32.totalorder %s9, 0
    %p29 = por %p27, %p28
    %p30 = scmp.ne.s32.totalorder %s19, %s22
    %p31 = scmp.eq.s32.totalorder %s14, 1
    %p32 = por %p30, %p31
    %p33 = scmp.ne.s32.totalorder %s22, %s23
    %p34 = scmp.eq.s32.totalorder %s14, 0
    %p35 = por %p33, %p34
    %p36 = scmp.ne.s32.totalorder %s22, %s23
    %p37 = scmp.eq.s32.totalorder %s15, 1
    %p38 = por %p36, %p37
    %p40 = scmp.ne.s32.totalorder %s23, %s39
    %p41 = scmp.eq.s32.totalorder %s15, 0
    %p42 = por %p40, %p41
    %s44 = sadd.s32 %s43, 1
    %p47 = scmp.eq.s32.totalorder %s9, 1
    %p48 = scmp.ne.s32.totalorder %s43, %s45
    %p49 = scmp.eq.s32.totalorder %s9, 0
    %p50 = por %p48, %p49
    %p51 = scmp.ne.s32.totalorder %s43, %s45
    %p52 = scmp.eq.s32.totalorder %s14, 1
    %p53 = por %p51, %p52
    %p54 = scmp.ne.s32.totalorder %s45, %s46
    %p55 = scmp.eq.s32.totalorder %s14, 0
    %p56 = por %p54, %p55
    %p57 = scmp.ne.s32.totalorder %s45, %s46
    %p58 = scmp.eq.s32.totalorder %s15, 1
    %p59 = por %p57, %p58
    %p61 = scmp.ne.s32.totalorder %s46, %s60
    %p62 = scmp.eq.s32.totalorder %s15, 0
    %p63 = por %p61, %p62
    %s65 = sadd.s32 %s64, 1
    %p68 = scmp.eq.s32.totalorder %s9, 1
    %p69 = scmp.ne.s32.totalorder %s64, %s66
    %p70 = scmp.eq.s32.totalorder %s9, 0
    %p71 = por %p69, %p70
    %p72 = scmp.ne.s32.totalorder %s64, %s66
    %p73 = scmp.eq.s32.totalorder %s14, 1
    %p74 = por %p72, %p73
    %p75 = scmp.ne.s32.totalorder %s66, %s67
    %p76 = scmp.eq.s32.totalorder %s14, 0
    %p77 = por %p75, %p76
    %p78 = scmp.ne.s32.totalorder %s66, %s67
    %p79 = scmp.eq.s32.totalorder %s15, 1
    %p80 = por %p78, %p79
    %p82 = scmp.ne.s32.totalorder %s67, %s81
    %p83 = scmp.eq.s32.totalorder %s15, 0
    %p84 = por %p82, %p83
    %s85 = ssub.s32 %s9, %s16
    %p86 = scmp.eq.s32.totalorder %s85, 0
    %s88 = sadd.s32 %s87, 1
    %s89 = scalar_select %p86, %s87, %s88
    %p92 = pneg %p86
    %p93 = scmp.eq.s32.totalorder %s9, 1
    %p94 = por %p92, %p93
    %p95 = scmp.ne.s32.totalorder %s87, %s90
    %p96 = scmp.eq.s32.totalorder %s9, 0
    %p97 = por %p95, %p96
    %p98 = scmp.ne.s32.totalorder %s87, %s90
    %p99 = scmp.eq.s32.totalorder %s14, 1
    %p100 = por %p98, %p99
    %p101 = scmp.ne.s32.totalorder %s90, %s91
    %p102 = scmp.eq.s32.totalorder %s14, 0
    %p103 = por %p101, %p102
    %p104 = scmp.ne.s32.totalorder %s90, %s91
    %p105 = scmp.eq.s32.totalorder %s15, 1
    %p106 = por %p104, %p105
    %p108 = scmp.ne.s32.totalorder %s91, %s107
    %p109 = scmp.eq.s32.totalorder %s15, 0
    %p110 = por %p108, %p109
    %p111 = scmp.le.s32.totalorder 1, %s9
    %p112 = scmp.lt.s32.totalorder %s9, 3
    %p113 = pnand %p111, %p112
    %p114 = pneg %p113
    // Predicated region
    $region9: #{generator_liu_forward.7} parent=5 // pred_check
      _
    $region10: #{generator_liu_forward.7} parent=5 // pred_check_branch
      %116 = sbr.rel (%p113) target = $region12
    $region11: #{generator_liu_forward.7} parent=5 // pred_region
      %s117 = ssub.s32 %s9, 1
      // Predicated region
      $region13: #{generator_liu_forward.7} parent=11 // pred_check
        %p118 = pneg %p56
      $region14: #{generator_liu_forward.7} parent=11 // pred_check_branch
        %120 = sbr.rel (%p118) target = $region16
      $region15: #{generator_liu_forward.7} parent=11 // pred_region
        _
      $region16: #{generator_liu_forward.7} parent=11 // pred_fallthru
        _
      // Predicated region
      $region17: #{generator_liu_forward.7} parent=11 // pred_check
        %p121 = pneg %p77
      $region18: #{generator_liu_forward.7} parent=11 // pred_check_branch
        %123 = sbr.rel (%p121) target = $region20
      $region19: #{generator_liu_forward.7} parent=11 // pred_region
        _
      $region20: #{generator_liu_forward.7} parent=11 // pred_fallthru
        _
    $region12: #{generator_liu_forward.7} parent=5 // pred_fallthru
      _
    %p124 = scmp.lt.s32.totalorder %s9, 2
    // Predicated region
    $region21: #{generator_liu_forward.7} parent=5 // pred_check
      %p125 = pneg %p124
    $region22: #{generator_liu_forward.7} parent=5 // pred_check_branch
      %127 = sbr.rel (%p125) target = $region24
    $region23: #{generator_liu_forward.7} parent=5 // pred_region
      // Predicated region
      $region25: #{generator_liu_forward.7} parent=23 // pred_check
        %p128 = pneg %p29
      $region26: #{generator_liu_forward.7} parent=23 // pred_check_branch
        %130 = sbr.rel (%p128) target = $region28
      $region27: #{generator_liu_forward.7} parent=23 // pred_region
        %p131 = scmp.lt.s32.totalorder %s9, 1
        %s132 = scalar_select %p131, %s9, 1
        %s133 = smul.addr %s132, 8
        %s134 = smul.addr %s133, 4
        %s135 = scalar_lea.vmem %s0, %s134
      $region28: #{generator_liu_forward.7} parent=23 // pred_fallthru
        _
    $region24: #{generator_liu_forward.7} parent=5 // pred_fallthru
      _
    %p136 = scmp.le.s32.totalorder 1, %s9
    %p137 = scmp.lt.s32.totalorder %s9, 3
    %p138 = pnand %p136, %p137
    %p139 = pneg %p138
    // Predicated region
    $region29: #{generator_liu_forward.7} parent=5 // pred_check
      _
    $region30: #{generator_liu_forward.7} parent=5 // pred_check_branch
      %141 = sbr.rel (%p138) target = $region32
    $region31: #{generator_liu_forward.7} parent=5 // pred_region
      %s142 = ssub.s32 %s9, 1
      %p143 = scmp.lt.s32.totalorder %s14, 1
      %s144 = scalar_select %p143, %s14, 1
      %s145 = smul.addr %s144, 8
      %s146 = smul.addr %s145, 4
      %s147 = scalar_lea.vmem %s0, %s146
      %p148 = pneg %p35
      %p149 = pneg %p32
      %p150 = pneg %p56
      %p151 = pneg %p53
      %p152 = pneg %p77
      %p153 = pneg %p74
      %p154 = pneg %p103
      %p155 = pneg %p100
      %p156 = scmp.lt.s32.totalorder %s14, 1
      %s157 = scalar_select %p156, %s14, 1
      %s158 = smul.addr %s157, 8
      %s159 = smul.addr %s158, 8
      %s160 = scalar_lea.vmem %s3, %s159
      %p161 = scmp.lt.s32.totalorder %s14, 1
      %s162 = scalar_select %p161, %s14, 1
      %s163 = smul.addr %s162, 8
      %s164 = smul.addr %s163, 4
      %s165 = scalar_lea.vmem %s0, %s164
      %p166 = scmp.lt.s32.totalorder %s14, 1
      %s167 = scalar_select %p166, %s14, 1
      %s168 = smul.addr %s167, 8
      %s169 = smul.addr %s168, 8
      %s170 = scalar_lea.vmem %s3, %s169
      %v172 = vld [vmem:[%s165] sm:$0xff]
      %v173 = vld [vmem:[%s165 + $0x8] sm:$0xff]
      %v174 = vld [vmem:[%s165 + $0x10] sm:$0xff]
      %v175 = vld [vmem:[%s165 + $0x18] sm:$0xff]
      %v180 = vunpack.c.l.b16 %v172
      %v181 = vunpack.c.h.b16 %v172
      %v182 = vunpack.c.l.b16 %v173
      %v183 = vunpack.c.h.b16 %v173
      %v184 = vunpack.c.l.b16 %v174
      %v185 = vunpack.c.h.b16 %v174
      %v186 = vunpack.c.l.b16 %v175
      %v187 = vunpack.c.h.b16 %v175
      %v188 = vpack.c.b16 %v180, %v180
      %v189 = vpack.c.b16 %v181, %v181
      %v190 = vpack.c.b16 %v182, %v182
      %v191 = vpack.c.b16 %v183, %v183
      %v192 = vpack.c.b16 %v184, %v184
      %v193 = vpack.c.b16 %v185, %v185
      %v194 = vpack.c.b16 %v186, %v186
      %v195 = vpack.c.b16 %v187, %v187
      %196 = vrot.lane.b32.xlu0 %v188, 17
      %v197 = vpop.permute.xlu0 %196
      %198 = vrot.lane.b32.xlu0 %v189, 17
      %v199 = vpop.permute.xlu0 %198
      %200 = vrot.lane.b32.xlu0 %v190, 17
      %v201 = vpop.permute.xlu0 %200
      %202 = vrot.lane.b32.xlu0 %v191, 17
      %v203 = vpop.permute.xlu0 %202
      %204 = vrot.lane.b32.xlu0 %v192, 17
      %v205 = vpop.permute.xlu0 %204
      %206 = vrot.lane.b32.xlu0 %v193, 17
      %v207 = vpop.permute.xlu0 %206
      %208 = vrot.lane.b32.xlu0 %v194, 17
      %v209 = vpop.permute.xlu0 %208
      %210 = vrot.lane.b32.xlu0 %v195, 17
      %v211 = vpop.permute.xlu0 %210
      %vm212 = vcmask 138240
      %v213 = vsel %vm212, %v197, %v199
      %v214 = vsel %vm212, %v199, %v201
      %v215 = vsel %vm212, %v201, %v203
      %v216 = vsel %vm212, %v203, %v205
      %v217 = vsel %vm212, %v205, %v207
      %v218 = vsel %vm212, %v207, %v209
      %v219 = vsel %vm212, %v209, %v211
      %vm227 = vcmask 138240
      %v230 = vsel %vm227, 0, %v197
      %v232 = vld [vmem:[%s2] sm:$0xff]
      %234 = vst [vmem:[#allocation1] ss:$9 sm:$0xff] %v232
      %v235 = vld [vmem:[#allocation1] sm:$0xff]
      %v236 = vld [vmem:[#allocation1 + $0x9] sm:$0xff]
      %v237 = vld [vmem:[#allocation1 + $0x12] sm:$0xff]
      %v238 = vld [vmem:[#allocation1 + $0x1b] sm:$0xff]
      %v239 = vld [vmem:[#allocation1 + $0x24] sm:$0xff]
      %v240 = vld [vmem:[#allocation1 + $0x2d] sm:$0xff]
      %v241 = vld [vmem:[#allocation1 + $0x36] sm:$0xff]
      %v242 = vld [vmem:[#allocation1 + $0x3f] sm:$0xff]
      %v243 = vpack.i.b16 %v235, %v235
      %v245 = vperm.slane %v243, 0
      %v246 = vpack.i.b16 %v236, %v236
      %v248 = vperm.slane %v246, 0
      %v249 = vpack.i.b16 %v237, %v237
      %v251 = vperm.slane %v249, 0
      %v252 = vpack.i.b16 %v238, %v238
      %v254 = vperm.slane %v252, 0
      %v255 = vpack.i.b16 %v239, %v239
      %v257 = vperm.slane %v255, 0
      %v258 = vpack.i.b16 %v240, %v240
      %v260 = vperm.slane %v258, 0
      %v261 = vpack.i.b16 %v241, %v241
      %v263 = vperm.slane %v261, 0
      %v264 = vpack.i.b16 %v242, %v242
      %v266 = vperm.slane %v264, 0
      %v267 = vunpack.c.l.bf16 %v230
      %v268 = vunpack.c.l.bf16 %v213
      %v269 = vunpack.c.l.bf16 %v214
      %v270 = vunpack.c.l.bf16 %v215
      %v271 = vunpack.c.l.bf16 %v216
      %v272 = vunpack.c.l.bf16 %v217
      %v273 = vunpack.c.l.bf16 %v218
      %v274 = vunpack.c.l.bf16 %v219
      %v275 = vunpack.c.l.bf16 %v245
      %v276 = vunpack.c.l.bf16 %v248
      %v277 = vunpack.c.l.bf16 %v251
      %v278 = vunpack.c.l.bf16 %v254
      %v279 = vunpack.c.l.bf16 %v257
      %v280 = vunpack.c.l.bf16 %v260
      %v281 = vunpack.c.l.bf16 %v263
      %v282 = vunpack.c.l.bf16 %v266
      %v283 = vmul.f32 %v267, %v275
      %v284 = vmul.f32 %v268, %v276
      %v285 = vmul.f32 %v269, %v277
      %v286 = vmul.f32 %v270, %v278
      %v287 = vmul.f32 %v271, %v279
      %v288 = vmul.f32 %v272, %v280
      %v289 = vmul.f32 %v273, %v281
      %v290 = vmul.f32 %v274, %v282
      %v291 = vpack.c.bf16 %v283, %v283
      %v292 = vpack.c.bf16 %v284, %v284
      %v293 = vpack.c.bf16 %v285, %v285
      %v294 = vpack.c.bf16 %v286, %v286
      %v295 = vpack.c.bf16 %v287, %v287
      %v296 = vpack.c.bf16 %v288, %v288
      %v297 = vpack.c.bf16 %v289, %v289
      %v298 = vpack.c.bf16 %v290, %v290
      %v299 = vld [vmem:[%s1] sm:$0xf]
      %300 = vrot.lane.b32.xlu0 %v188, 16
      %v301 = vpop.permute.xlu0 %300
      %302 = vrot.lane.b32.xlu0 %v189, 16
      %v303 = vpop.permute.xlu0 %302
      %304 = vrot.lane.b32.xlu0 %v190, 16
      %v305 = vpop.permute.xlu0 %304
      %306 = vrot.lane.b32.xlu0 %v191, 16
      %v307 = vpop.permute.xlu0 %306
      %308 = vrot.lane.b32.xlu0 %v192, 16
      %v309 = vpop.permute.xlu0 %308
      %310 = vrot.lane.b32.xlu0 %v193, 16
      %v311 = vpop.permute.xlu0 %310
      %312 = vrot.lane.b32.xlu0 %v194, 16
      %v313 = vpop.permute.xlu0 %312
      %314 = vrot.lane.b32.xlu0 %v195, 16
      %v315 = vpop.permute.xlu0 %314
      %vm316 = vcmask 130048
      %v317 = vsel %vm316, %v301, %v303
      %v318 = vsel %vm316, %v303, %v305
      %v319 = vsel %vm316, %v305, %v307
      %v320 = vsel %vm316, %v307, %v309
      %v321 = vsel %vm316, %v309, %v311
      %v322 = vsel %vm316, %v311, %v313
      %v323 = vsel %vm316, %v313, %v315
      %vm331 = vcmask 130048
      %v333 = vsel %vm331, 0, %v301
      %s335 = scalar_lea.vmem %s2, 8
      %v336 = vld [vmem:[%s335] sm:$0xff]
      %338 = vst [vmem:[#allocation1] ss:$9 sm:$0xff] %v336
      %v339 = vld [vmem:[#allocation1] sm:$0xff]
      %v340 = vld [vmem:[#allocation1 + $0x9] sm:$0xff]
      %v341 = vld [vmem:[#allocation1 + $0x12] sm:$0xff]
      %v342 = vld [vmem:[#allocation1 + $0x1b] sm:$0xff]
      %v343 = vld [vmem:[#allocation1 + $0x24] sm:$0xff]
      %v344 = vld [vmem:[#allocation1 + $0x2d] sm:$0xff]
      %v345 = vld [vmem:[#allocation1 + $0x36] sm:$0xff]
      %v346 = vld [vmem:[#allocation1 + $0x3f] sm:$0xff]
      %v347 = vpack.i.b16 %v339, %v339
      %v349 = vperm.slane %v347, 0
      %v350 = vpack.i.b16 %v340, %v340
      %v352 = vperm.slane %v350, 0
      %v353 = vpack.i.b16 %v341, %v341
      %v355 = vperm.slane %v353, 0
      %v356 = vpack.i.b16 %v342, %v342
      %v358 = vperm.slane %v356, 0
      %v359 = vpack.i.b16 %v343, %v343
      %v361 = vperm.slane %v359, 0
      %v362 = vpack.i.b16 %v344, %v344
      %v364 = vperm.slane %v362, 0
      %v365 = vpack.i.b16 %v345, %v345
      %v367 = vperm.slane %v365, 0
      %v368 = vpack.i.b16 %v346, %v346
      %v370 = vperm.slane %v368, 0
      %v371 = vunpack.c.l.bf16 %v333
      %v372 = vunpack.c.l.bf16 %v317
      %v373 = vunpack.c.l.bf16 %v318
      %v374 = vunpack.c.l.bf16 %v319
      %v375 = vunpack.c.l.bf16 %v320
      %v376 = vunpack.c.l.bf16 %v321
      %v377 = vunpack.c.l.bf16 %v322
      %v378 = vunpack.c.l.bf16 %v323
      %v379 = vunpack.c.l.bf16 %v349
      %v380 = vunpack.c.l.bf16 %v352
      %v381 = vunpack.c.l.bf16 %v355
      %v382 = vunpack.c.l.bf16 %v358
      %v383 = vunpack.c.l.bf16 %v361
      %v384 = vunpack.c.l.bf16 %v364
      %v385 = vunpack.c.l.bf16 %v367
      %v386 = vunpack.c.l.bf16 %v370
      %v387 = vmul.f32 %v371, %v379
      %v388 = vmul.f32 %v372, %v380
      %v389 = vmul.f32 %v373, %v381
      %v390 = vmul.f32 %v374, %v382
      %v391 = vmul.f32 %v375, %v383
      %v392 = vmul.f32 %v376, %v384
      %v393 = vmul.f32 %v377, %v385
      %v394 = vmul.f32 %v378, %v386
      %v395 = vpack.c.bf16 %v387, %v387
      %v396 = vpack.c.bf16 %v388, %v388
      %v397 = vpack.c.bf16 %v389, %v389
      %v398 = vpack.c.bf16 %v390, %v390
      %v399 = vpack.c.bf16 %v391, %v391
      %v400 = vpack.c.bf16 %v392, %v392
      %v401 = vpack.c.bf16 %v393, %v393
      %v402 = vpack.c.bf16 %v394, %v394
      %s403 = scalar_lea.vmem %s1, 4
      %v404 = vld [vmem:[%s403] sm:$0xf]
      %vm405 = vcmask 64512
      %v407 = vsel %vm405, %v404, 0
      %vm409 = vcmask 1043456
      %v411 = vsel %vm409, %v395, 0
      %v414 = vsel %vm409, %v396, 0
      %v417 = vsel %vm409, %v397, 0
      %v420 = vsel %vm409, %v398, 0
      %v423 = vsel %vm409, %v399, 0
      %v426 = vsel %vm409, %v400, 0
      %v429 = vsel %vm409, %v401, 0
      %v432 = vsel %vm409, %v402, 0
      %434 = vmatpush.bf16.msra.mxu0 0
      %435 = vmatpush.bf16.msra.mxu0 0
      %436 = vmatpush.bf16.msra.mxu0 0
      %437 = vmatpush.bf16.msra.mxu0 0
      %438 = vmatpush.bf16.msra.mxu0 0
      %439 = vmatpush.bf16.msra.mxu0 0
      %440 = vmatpush.bf16.msra.mxu0 0
      %441 = vmatpush.bf16.msra.mxu0 %v411
      %442 = vmatmul.bf16.gmra.mxu0 %v407
      %v443 = vpop.f32.mrf.mxu0
      %v444 = vadd.f32 0.0, %v443
      %v445 = vpop.f32.mrf.mxu0
      %446 = vdwg.mxu0
      %447 = vmatpush.bf16.msra.mxu0 0
      %448 = vmatpush.bf16.msra.mxu0 0
      %449 = vmatpush.bf16.msra.mxu0 0
      %450 = vmatpush.bf16.msra.mxu0 0
      %451 = vmatpush.bf16.msra.mxu0 0
      %452 = vmatpush.bf16.msra.mxu0 0
      %453 = vmatpush.bf16.msra.mxu0 0
      %454 = vmatpush.bf16.msra.mxu0 %v414
      %455 = vmatmul.bf16.gmra.mxu0 %v407
      %v456 = vpop.f32.mrf.mxu0
      %v457 = vadd.f32 0.0, %v456
      %v458 = vpop.f32.mrf.mxu0
      %459 = vdwg.mxu0
      %460 = vmatpush.bf16.msra.mxu0 0
      %461 = vmatpush.bf16.msra.mxu0 0
      %462 = vmatpush.bf16.msra.mxu0 0
      %463 = vmatpush.bf16.msra.mxu0 0
      %464 = vmatpush.bf16.msra.mxu0 0
      %465 = vmatpush.bf16.msra.mxu0 0
      %466 = vmatpush.bf16.msra.mxu0 0
      %467 = vmatpush.bf16.msra.mxu0 %v417
      %468 = vmatmul.bf16.gmra.mxu0 %v407
      %v469 = vpop.f32.mrf.mxu0
      %v470 = vadd.f32 0.0, %v469
      %v471 = vpop.f32.mrf.mxu0
      %472 = vdwg.mxu0
      %473 = vmatpush.bf16.msra.mxu0 0
      %474 = vmatpush.bf16.msra.mxu0 0
      %475 = vmatpush.bf16.msra.mxu0 0
      %476 = vmatpush.bf16.msra.mxu0 0
      %477 = vmatpush.bf16.msra.mxu0 0
      %478 = vmatpush.bf16.msra.mxu0 0
      %479 = vmatpush.bf16.msra.mxu0 0
      %480 = vmatpush.bf16.msra.mxu0 %v420
      %481 = vmatmul.bf16.gmra.mxu0 %v407
      %v482 = vpop.f32.mrf.mxu0
      %v483 = vadd.f32 0.0, %v482
      %v484 = vpop.f32.mrf.mxu0
      %485 = vdwg.mxu0
      %486 = vmatpush.bf16.msra.mxu0 0
      %487 = vmatpush.bf16.msra.mxu0 0
      %488 = vmatpush.bf16.msra.mxu0 0
      %489 = vmatpush.bf16.msra.mxu0 0
      %490 = vmatpush.bf16.msra.mxu0 0
      %491 = vmatpush.bf16.msra.mxu0 0
      %492 = vmatpush.bf16.msra.mxu0 0
      %493 = vmatpush.bf16.msra.mxu0 %v423
      %494 = vmatmul.bf16.gmra.mxu0 %v407
      %v495 = vpop.f32.mrf.mxu0
      %v496 = vadd.f32 0.0, %v495
      %v497 = vpop.f32.mrf.mxu0
      %498 = vdwg.mxu0
      %499 = vmatpush.bf16.msra.mxu0 0
      %500 = vmatpush.bf16.msra.mxu0 0
      %501 = vmatpush.bf16.msra.mxu0 0
      %502 = vmatpush.bf16.msra.mxu0 0
      %503 = vmatpush.bf16.msra.mxu0 0
      %504 = vmatpush.bf16.msra.mxu0 0
      %505 = vmatpush.bf16.msra.mxu0 0
      %506 = vmatpush.bf16.msra.mxu0 %v426
      %507 = vmatmul.bf16.gmra.mxu0 %v407
      %v508 = vpop.f32.mrf.mxu0
      %v509 = vadd.f32 0.0, %v508
      %v510 = vpop.f32.mrf.mxu0
      %511 = vdwg.mxu0
      %512 = vmatpush.bf16.msra.mxu0 0
      %513 = vmatpush.bf16.msra.mxu0 0
      %514 = vmatpush.bf16.msra.mxu0 0
      %515 = vmatpush.bf16.msra.mxu0 0
      %516 = vmatpush.bf16.msra.mxu0 0
      %517 = vmatpush.bf16.msra.mxu0 0
      %518 = vmatpush.bf16.msra.mxu0 0
      %519 = vmatpush.bf16.msra.mxu0 %v429
      %520 = vmatmul.bf16.gmra.mxu0 %v407
      %v521 = vpop.f32.mrf.mxu0
      %v522 = vadd.f32 0.0, %v521
      %v523 = vpop.f32.mrf.mxu0
      %524 = vdwg.mxu0
      %525 = vmatpush.bf16.msra.mxu0 0
      %526 = vmatpush.bf16.msra.mxu0 0
      %527 = vmatpush.bf16.msra.mxu0 0
      %528 = vmatpush.bf16.msra.mxu0 0
      %529 = vmatpush.bf16.msra.mxu0 0
      %530 = vmatpush.bf16.msra.mxu0 0
      %531 = vmatpush.bf16.msra.mxu0 0
      %532 = vmatpush.bf16.msra.mxu0 %v432
      %533 = vmatmul.bf16.gmra.mxu0 %v407
      %v534 = vpop.f32.mrf.mxu0
      %v535 = vadd.f32 0.0, %v534
      %v536 = vpop.f32.mrf.mxu0
      %537 = vdwg.mxu0
      %v539 = vsel %vm405, %v299, 0
      %v542 = vsel %vm409, %v291, 0
      %v545 = vsel %vm409, %v292, 0
      %v548 = vsel %vm409, %v293, 0
      %v551 = vsel %vm409, %v294, 0
      %v554 = vsel %vm409, %v295, 0
      %v557 = vsel %vm409, %v296, 0
      %v560 = vsel %vm409, %v297, 0
      %v563 = vsel %vm409, %v298, 0
      %565 = vmatpush.bf16.msra.mxu0 0
      %566 = vmatpush.bf16.msra.mxu0 0
      %567 = vmatpush.bf16.msra.mxu0 0
      %568 = vmatpush.bf16.msra.mxu0 0
      %569 = vmatpush.bf16.msra.mxu0 0
      %570 = vmatpush.bf16.msra.mxu0 0
      %571 = vmatpush.bf16.msra.mxu0 0
      %572 = vmatpush.bf16.msra.mxu0 %v542
      %573 = vmatmul.bf16.gmra.mxu0 %v539
      %v574 = vpop.f32.mrf.mxu0
      %v575 = vadd.f32 %v444, %v574
      %v576 = vpop.f32.mrf.mxu0
      %577 = vdwg.mxu0
      %578 = vmatpush.bf16.msra.mxu0 0
      %579 = vmatpush.bf16.msra.mxu0 0
      %580 = vmatpush.bf16.msra.mxu0 0
      %581 = vmatpush.bf16.msra.mxu0 0
      %582 = vmatpush.bf16.msra.mxu0 0
      %583 = vmatpush.bf16.msra.mxu0 0
      %584 = vmatpush.bf16.msra.mxu0 0
      %585 = vmatpush.bf16.msra.mxu0 %v545
      %586 = vmatmul.bf16.gmra.mxu0 %v539
      %v587 = vpop.f32.mrf.mxu0
      %v588 = vadd.f32 %v457, %v587
      %v589 = vpop.f32.mrf.mxu0
      %590 = vdwg.mxu0
      %591 = vmatpush.bf16.msra.mxu0 0
      %592 = vmatpush.bf16.msra.mxu0 0
      %593 = vmatpush.bf16.msra.mxu0 0
      %594 = vmatpush.bf16.msra.mxu0 0
      %595 = vmatpush.bf16.msra.mxu0 0
      %596 = vmatpush.bf16.msra.mxu0 0
      %597 = vmatpush.bf16.msra.mxu0 0
      %598 = vmatpush.bf16.msra.mxu0 %v548
      %599 = vmatmul.bf16.gmra.mxu0 %v539
      %v600 = vpop.f32.mrf.mxu0
      %v601 = vadd.f32 %v470, %v600
      %v602 = vpop.f32.mrf.mxu0
      %603 = vdwg.mxu0
      %604 = vmatpush.bf16.msra.mxu0 0
      %605 = vmatpush.bf16.msra.mxu0 0
      %606 = vmatpush.bf16.msra.mxu0 0
      %607 = vmatpush.bf16.msra.mxu0 0
      %608 = vmatpush.bf16.msra.mxu0 0
      %609 = vmatpush.bf16.msra.mxu0 0
      %610 = vmatpush.bf16.msra.mxu0 0
      %611 = vmatpush.bf16.msra.mxu0 %v551
      %612 = vmatmul.bf16.gmra.mxu0 %v539
      %v613 = vpop.f32.mrf.mxu0
      %v614 = vadd.f32 %v483, %v613
      %v615 = vpop.f32.mrf.mxu0
      %616 = vdwg.mxu0
      %617 = vmatpush.bf16.msra.mxu0 0
      %618 = vmatpush.bf16.msra.mxu0 0
      %619 = vmatpush.bf16.msra.mxu0 0
      %620 = vmatpush.bf16.msra.mxu0 0
      %621 = vmatpush.bf16.msra.mxu0 0
      %622 = vmatpush.bf16.msra.mxu0 0
      %623 = vmatpush.bf16.msra.mxu0 0
      %624 = vmatpush.bf16.msra.mxu0 %v554
      %625 = vmatmul.bf16.gmra.mxu0 %v539
      %v626 = vpop.f32.mrf.mxu0
      %v627 = vadd.f32 %v496, %v626
      %v628 = vpop.f32.mrf.mxu0
      %629 = vdwg.mxu0
      %630 = vmatpush.bf16.msra.mxu0 0
      %631 = vmatpush.bf16.msra.mxu0 0
      %632 = vmatpush.bf16.msra.mxu0 0
      %633 = vmatpush.bf16.msra.mxu0 0
      %634 = vmatpush.bf16.msra.mxu0 0
      %635 = vmatpush.bf16.msra.mxu0 0
      %636 = vmatpush.bf16.msra.mxu0 0
      %637 = vmatpush.bf16.msra.mxu0 %v557
      %638 = vmatmul.bf16.gmra.mxu0 %v539
      %v639 = vpop.f32.mrf.mxu0
      %v640 = vadd.f32 %v509, %v639
      %v641 = vpop.f32.mrf.mxu0
      %642 = vdwg.mxu0
      %643 = vmatpush.bf16.msra.mxu0 0
      %644 = vmatpush.bf16.msra.mxu0 0
      %645 = vmatpush.bf16.msra.mxu0 0
      %646 = vmatpush.bf16.msra.mxu0 0
      %647 = vmatpush.bf16.msra.mxu0 0
      %648 = vmatpush.bf16.msra.mxu0 0
      %649 = vmatpush.bf16.msra.mxu0 0
      %650 = vmatpush.bf16.msra.mxu0 %v560
      %651 = vmatmul.bf16.gmra.mxu0 %v539
      %v652 = vpop.f32.mrf.mxu0
      %v653 = vadd.f32 %v522, %v652
      %v654 = vpop.f32.mrf.mxu0
      %655 = vdwg.mxu0
      %656 = vmatpush.bf16.msra.mxu0 0
      %657 = vmatpush.bf16.msra.mxu0 0
      %658 = vmatpush.bf16.msra.mxu0 0
      %659 = vmatpush.bf16.msra.mxu0 0
      %660 = vmatpush.bf16.msra.mxu0 0
      %661 = vmatpush.bf16.msra.mxu0 0
      %662 = vmatpush.bf16.msra.mxu0 0
      %663 = vmatpush.bf16.msra.mxu0 %v563
      %664 = vmatmul.bf16.gmra.mxu0 %v539
      %v665 = vpop.f32.mrf.mxu0
      %v666 = vadd.f32 %v535, %v665
      %v667 = vpop.f32.mrf.mxu0
      %668 = vdwg.mxu0
      %669 = vrot.lane.b32.xlu0 %v188, 15
      %v670 = vpop.permute.xlu0 %669
      %671 = vrot.lane.b32.xlu0 %v189, 15
      %v672 = vpop.permute.xlu0 %671
      %673 = vrot.lane.b32.xlu0 %v190, 15
      %v674 = vpop.permute.xlu0 %673
      %675 = vrot.lane.b32.xlu0 %v191, 15
      %v676 = vpop.permute.xlu0 %675
      %677 = vrot.lane.b32.xlu0 %v192, 15
      %v678 = vpop.permute.xlu0 %677
      %679 = vrot.lane.b32.xlu0 %v193, 15
      %v680 = vpop.permute.xlu0 %679
      %681 = vrot.lane.b32.xlu0 %v194, 15
      %v682 = vpop.permute.xlu0 %681
      %683 = vrot.lane.b32.xlu0 %v195, 15
      %v684 = vpop.permute.xlu0 %683
      %vm685 = vcmask 121856
      %v686 = vsel %vm685, %v670, %v672
      %v687 = vsel %vm685, %v672, %v674
      %v688 = vsel %vm685, %v674, %v676
      %v689 = vsel %vm685, %v676, %v678
      %v690 = vsel %vm685, %v678, %v680
      %v691 = vsel %vm685, %v680, %v682
      %v692 = vsel %vm685, %v682, %v684
      %vm700 = vcmask 121856
      %v702 = vsel %vm700, 0, %v670
      %s704 = scalar_lea.vmem %s2, 16
      %v705 = vld [vmem:[%s704] sm:$0xff]
      %707 = vst [vmem:[#allocation1] ss:$9 sm:$0xff] %v705
      %v708 = vld [vmem:[#allocation1] sm:$0xff]
      %v709 = vld [vmem:[#allocation1 + $0x9] sm:$0xff]
      %v710 = vld [vmem:[#allocation1 + $0x12] sm:$0xff]
      %v711 = vld [vmem:[#allocation1 + $0x1b] sm:$0xff]
      %v712 = vld [vmem:[#allocation1 + $0x24] sm:$0xff]
      %v713 = vld [vmem:[#allocation1 + $0x2d] sm:$0xff]
      %v714 = vld [vmem:[#allocation1 + $0x36] sm:$0xff]
      %v715 = vld [vmem:[#allocation1 + $0x3f] sm:$0xff]
      %v716 = vpack.i.b16 %v708, %v708
      %v718 = vperm.slane %v716, 0
      %v719 = vpack.i.b16 %v709, %v709
      %v721 = vperm.slane %v719, 0
      %v722 = vpack.i.b16 %v710, %v710
      %v724 = vperm.slane %v722, 0
      %v725 = vpack.i.b16 %v711, %v711
      %v727 = vperm.slane %v725, 0
      %v728 = vpack.i.b16 %v712, %v712
      %v730 = vperm.slane %v728, 0
      %v731 = vpack.i.b16 %v713, %v713
      %v733 = vperm.slane %v731, 0
      %v734 = vpack.i.b16 %v714, %v714
      %v736 = vperm.slane %v734, 0
      %v737 = vpack.i.b16 %v715, %v715
      %v739 = vperm.slane %v737, 0
      %v740 = vunpack.c.l.bf16 %v702
      %v741 = vunpack.c.l.bf16 %v686
      %v742 = vunpack.c.l.bf16 %v687
      %v743 = vunpack.c.l.bf16 %v688
      %v744 = vunpack.c.l.bf16 %v689
      %v745 = vunpack.c.l.bf16 %v690
      %v746 = vunpack.c.l.bf16 %v691
      %v747 = vunpack.c.l.bf16 %v692
      %v748 = vunpack.c.l.bf16 %v718
      %v749 = vunpack.c.l.bf16 %v721
      %v750 = vunpack.c.l.bf16 %v724
      %v751 = vunpack.c.l.bf16 %v727
      %v752 = vunpack.c.l.bf16 %v730
      %v753 = vunpack.c.l.bf16 %v733
      %v754 = vunpack.c.l.bf16 %v736
      %v755 = vunpack.c.l.bf16 %v739
      %v756 = vmul.f32 %v740, %v748
      %v757 = vmul.f32 %v741, %v749
      %v758 = vmul.f32 %v742, %v750
      %v759 = vmul.f32 %v743, %v751
      %v760 = vmul.f32 %v744, %v752
      %v761 = vmul.f32 %v745, %v753
      %v762 = vmul.f32 %v746, %v754
      %v763 = vmul.f32 %v747, %v755
      %v764 = vpack.c.bf16 %v756, %v756
      %v765 = vpack.c.bf16 %v757, %v757
      %v766 = vpack.c.bf16 %v758, %v758
      %v767 = vpack.c.bf16 %v759, %v759
      %v768 = vpack.c.bf16 %v760, %v760
      %v769 = vpack.c.bf16 %v761, %v761
      %v770 = vpack.c.bf16 %v762, %v762
      %v771 = vpack.c.bf16 %v763, %v763
      %s772 = scalar_lea.vmem %s1, 8
      %v773 = vld [vmem:[%s772] sm:$0xf]
      %v775 = vsel %vm405, %v773, 0
      %v778 = vsel %vm409, %v764, 0
      %v781 = vsel %vm409, %v765, 0
      %v784 = vsel %vm409, %v766, 0
      %v787 = vsel %vm409, %v767, 0
      %v790 = vsel %vm409, %v768, 0
      %v793 = vsel %vm409, %v769, 0
      %v796 = vsel %vm409, %v770, 0
      %v799 = vsel %vm409, %v771, 0
      %801 = vmatpush.bf16.msra.mxu0 0
      %802 = vmatpush.bf16.msra.mxu0 0
      %803 = vmatpush.bf16.msra.mxu0 0
      %804 = vmatpush.bf16.msra.mxu0 0
      %805 = vmatpush.bf16.msra.mxu0 0
      %806 = vmatpush.bf16.msra.mxu0 0
      %807 = vmatpush.bf16.msra.mxu0 0
      %808 = vmatpush.bf16.msra.mxu0 %v778
      %809 = vmatmul.bf16.gmra.mxu0 %v775
      %v810 = vpop.f32.mrf.mxu0
      %v811 = vadd.f32 0.0, %v810
      %v812 = vpop.f32.mrf.mxu0
      %813 = vdwg.mxu0
      %814 = vmatpush.bf16.msra.mxu0 0
      %815 = vmatpush.bf16.msra.mxu0 0
      %816 = vmatpush.bf16.msra.mxu0 0
      %817 = vmatpush.bf16.msra.mxu0 0
      %818 = vmatpush.bf16.msra.mxu0 0
      %819 = vmatpush.bf16.msra.mxu0 0
      %820 = vmatpush.bf16.msra.mxu0 0
      %821 = vmatpush.bf16.msra.mxu0 %v781
      %822 = vmatmul.bf16.gmra.mxu0 %v775
      %v823 = vpop.f32.mrf.mxu0
      %v824 = vadd.f32 0.0, %v823
      %v825 = vpop.f32.mrf.mxu0
      %826 = vdwg.mxu0
      %827 = vmatpush.bf16.msra.mxu0 0
      %828 = vmatpush.bf16.msra.mxu0 0
      %829 = vmatpush.bf16.msra.mxu0 0
      %830 = vmatpush.bf16.msra.mxu0 0
      %831 = vmatpush.bf16.msra.mxu0 0
      %832 = vmatpush.bf16.msra.mxu0 0
      %833 = vmatpush.bf16.msra.mxu0 0
      %834 = vmatpush.bf16.msra.mxu0 %v784
      %835 = vmatmul.bf16.gmra.mxu0 %v775
      %v836 = vpop.f32.mrf.mxu0
      %v837 = vadd.f32 0.0, %v836
      %v838 = vpop.f32.mrf.mxu0
      %839 = vdwg.mxu0
      %840 = vmatpush.bf16.msra.mxu0 0
      %841 = vmatpush.bf16.msra.mxu0 0
      %842 = vmatpush.bf16.msra.mxu0 0
      %843 = vmatpush.bf16.msra.mxu0 0
      %844 = vmatpush.bf16.msra.mxu0 0
      %845 = vmatpush.bf16.msra.mxu0 0
      %846 = vmatpush.bf16.msra.mxu0 0
      %847 = vmatpush.bf16.msra.mxu0 %v787
      %848 = vmatmul.bf16.gmra.mxu0 %v775
      %v849 = vpop.f32.mrf.mxu0
      %v850 = vadd.f32 0.0, %v849
      %v851 = vpop.f32.mrf.mxu0
      %852 = vdwg.mxu0
      %853 = vmatpush.bf16.msra.mxu0 0
      %854 = vmatpush.bf16.msra.mxu0 0
      %855 = vmatpush.bf16.msra.mxu0 0
      %856 = vmatpush.bf16.msra.mxu0 0
      %857 = vmatpush.bf16.msra.mxu0 0
      %858 = vmatpush.bf16.msra.mxu0 0
      %859 = vmatpush.bf16.msra.mxu0 0
      %860 = vmatpush.bf16.msra.mxu0 %v790
      %861 = vmatmul.bf16.gmra.mxu0 %v775
      %v862 = vpop.f32.mrf.mxu0
      %v863 = vadd.f32 0.0, %v862
      %v864 = vpop.f32.mrf.mxu0
      %865 = vdwg.mxu0
      %866 = vmatpush.bf16.msra.mxu0 0
      %867 = vmatpush.bf16.msra.mxu0 0
      %868 = vmatpush.bf16.msra.mxu0 0
      %869 = vmatpush.bf16.msra.mxu0 0
      %870 = vmatpush.bf16.msra.mxu0 0
      %871 = vmatpush.bf16.msra.mxu0 0
      %872 = vmatpush.bf16.msra.mxu0 0
      %873 = vmatpush.bf16.msra.mxu0 %v793
      %874 = vmatmul.bf16.gmra.mxu0 %v775
      %v875 = vpop.f32.mrf.mxu0
      %v876 = vadd.f32 0.0, %v875
      %v877 = vpop.f32.mrf.mxu0
      %878 = vdwg.mxu0
      %879 = vmatpush.bf16.msra.mxu0 0
      %880 = vmatpush.bf16.msra.mxu0 0
      %881 = vmatpush.bf16.msra.mxu0 0
      %882 = vmatpush.bf16.msra.mxu0 0
      %883 = vmatpush.bf16.msra.mxu0 0
      %884 = vmatpush.bf16.msra.mxu0 0
      %885 = vmatpush.bf16.msra.mxu0 0
      %886 = vmatpush.bf16.msra.mxu0 %v796
      %887 = vmatmul.bf16.gmra.mxu0 %v775
      %v888 = vpop.f32.mrf.mxu0
      %v889 = vadd.f32 0.0, %v888
      %v890 = vpop.f32.mrf.mxu0
      %891 = vdwg.mxu0
      %892 = vmatpush.bf16.msra.mxu0 0
      %893 = vmatpush.bf16.msra.mxu0 0
      %894 = vmatpush.bf16.msra.mxu0 0
      %895 = vmatpush.bf16.msra.mxu0 0
      %896 = vmatpush.bf16.msra.mxu0 0
      %897 = vmatpush.bf16.msra.mxu0 0
      %898 = vmatpush.bf16.msra.mxu0 0
      %899 = vmatpush.bf16.msra.mxu0 %v799
      %900 = vmatmul.bf16.gmra.mxu0 %v775
      %v901 = vpop.f32.mrf.mxu0
      %v902 = vadd.f32 0.0, %v901
      %v903 = vpop.f32.mrf.mxu0
      %904 = vdwg.mxu0
      %v905 = vadd.f32 %v575, %v811
      %v906 = vadd.f32 %v588, %v824
      %v907 = vadd.f32 %v601, %v837
      %v908 = vadd.f32 %v614, %v850
      %v909 = vadd.f32 %v627, %v863
      %v910 = vadd.f32 %v640, %v876
      %v911 = vadd.f32 %v653, %v889
      %v912 = vadd.f32 %v666, %v902
      %913 = vrot.lane.b32.xlu0 %v188, 1
      %v914 = vpop.permute.xlu0 %913
      %915 = vrot.lane.b32.xlu0 %v189, 1
      %v916 = vpop.permute.xlu0 %915
      %917 = vrot.lane.b32.xlu0 %v190, 1
      %v918 = vpop.permute.xlu0 %917
      %919 = vrot.lane.b32.xlu0 %v191, 1
      %v920 = vpop.permute.xlu0 %919
      %921 = vrot.lane.b32.xlu0 %v192, 1
      %v922 = vpop.permute.xlu0 %921
      %923 = vrot.lane.b32.xlu0 %v193, 1
      %v924 = vpop.permute.xlu0 %923
      %925 = vrot.lane.b32.xlu0 %v194, 1
      %v926 = vpop.permute.xlu0 %925
      %927 = vrot.lane.b32.xlu0 %v195, 1
      %v928 = vpop.permute.xlu0 %927
      %vm929 = vcmask 7168
      %v930 = vsel %vm929, %v914, %v916
      %v931 = vsel %vm929, %v916, %v918
      %v932 = vsel %vm929, %v918, %v920
      %v933 = vsel %vm929, %v920, %v922
      %v934 = vsel %vm929, %v922, %v924
      %v935 = vsel %vm929, %v924, %v926
      %v936 = vsel %vm929, %v926, %v928
      %vm944 = vcmask 7168
      %v946 = vsel %vm944, 0, %v914
      %s948 = scalar_lea.vmem %s2, 24
      %v949 = vld [vmem:[%s948] sm:$0xff]
      %951 = vst [vmem:[#allocation1] ss:$9 sm:$0xff] %v949
      %v952 = vld [vmem:[#allocation1] sm:$0xff]
      %v953 = vld [vmem:[#allocation1 + $0x9] sm:$0xff]
      %v954 = vld [vmem:[#allocation1 + $0x12] sm:$0xff]
      %v955 = vld [vmem:[#allocation1 + $0x1b] sm:$0xff]
      %v956 = vld [vmem:[#allocation1 + $0x24] sm:$0xff]
      %v957 = vld [vmem:[#allocation1 + $0x2d] sm:$0xff]
      %v958 = vld [vmem:[#allocation1 + $0x36] sm:$0xff]
      %v959 = vld [vmem:[#allocation1 + $0x3f] sm:$0xff]
      %v960 = vpack.i.b16 %v952, %v952
      %v962 = vperm.slane %v960, 0
      %v963 = vpack.i.b16 %v953, %v953
      %v965 = vperm.slane %v963, 0
      %v966 = vpack.i.b16 %v954, %v954
      %v968 = vperm.slane %v966, 0
      %v969 = vpack.i.b16 %v955, %v955
      %v971 = vperm.slane %v969, 0
      %v972 = vpack.i.b16 %v956, %v956
      %v974 = vperm.slane %v972, 0
      %v975 = vpack.i.b16 %v957, %v957
      %v977 = vperm.slane %v975, 0
      %v978 = vpack.i.b16 %v958, %v958
      %v980 = vperm.slane %v978, 0
      %v981 = vpack.i.b16 %v959, %v959
      %v983 = vperm.slane %v981, 0
      %v984 = vunpack.c.l.bf16 %v946
      %v985 = vunpack.c.l.bf16 %v930
      %v986 = vunpack.c.l.bf16 %v931
      %v987 = vunpack.c.l.bf16 %v932
      %v988 = vunpack.c.l.bf16 %v933
      %v989 = vunpack.c.l.bf16 %v934
      %v990 = vunpack.c.l.bf16 %v935
      %v991 = vunpack.c.l.bf16 %v936
      %v992 = vunpack.c.l.bf16 %v962
      %v993 = vunpack.c.l.bf16 %v965
      %v994 = vunpack.c.l.bf16 %v968
      %v995 = vunpack.c.l.bf16 %v971
      %v996 = vunpack.c.l.bf16 %v974
      %v997 = vunpack.c.l.bf16 %v977
      %v998 = vunpack.c.l.bf16 %v980
      %v999 = vunpack.c.l.bf16 %v983
      %v1000 = vmul.f32 %v984, %v992
      %v1001 = vmul.f32 %v985, %v993
      %v1002 = vmul.f32 %v986, %v994
      %v1003 = vmul.f32 %v987, %v995
      %v1004 = vmul.f32 %v988, %v996
      %v1005 = vmul.f32 %v989, %v997
      %v1006 = vmul.f32 %v990, %v998
      %v1007 = vmul.f32 %v991, %v999
      %v1008 = vpack.c.bf16 %v1000, %v1000
      %v1009 = vpack.c.bf16 %v1001, %v1001
      %v1010 = vpack.c.bf16 %v1002, %v1002
      %v1011 = vpack.c.bf16 %v1003, %v1003
      %v1012 = vpack.c.bf16 %v1004, %v1004
      %v1013 = vpack.c.bf16 %v1005, %v1005
      %v1014 = vpack.c.bf16 %v1006, %v1006
      %v1015 = vpack.c.bf16 %v1007, %v1007
      %s1016 = scalar_lea.vmem %s1, 12
      %v1017 = vld [vmem:[%s1016] sm:$0xf]
      %v1019 = vsel %vm405, %v1017, 0
      %v1022 = vsel %vm409, %v1008, 0
      %v1025 = vsel %vm409, %v1009, 0
      %v1028 = vsel %vm409, %v1010, 0
      %v1031 = vsel %vm409, %v1011, 0
      %v1034 = vsel %vm409, %v1012, 0
      %v1037 = vsel %vm409, %v1013, 0
      %v1040 = vsel %vm409, %v1014, 0
      %v1043 = vsel %vm409, %v1015, 0
      %1045 = vmatpush.bf16.msra.mxu0 0
      %1046 = vmatpush.bf16.msra.mxu0 0
      %1047 = vmatpush.bf16.msra.mxu0 0
      %1048 = vmatpush.bf16.msra.mxu0 0
      %1049 = vmatpush.bf16.msra.mxu0 0
      %1050 = vmatpush.bf16.msra.mxu0 0
      %1051 = vmatpush.bf16.msra.mxu0 0
      %1052 = vmatpush.bf16.msra.mxu0 %v1022
      %1053 = vmatmul.bf16.gmra.mxu0 %v1019
      %v1054 = vpop.f32.mrf.mxu0
      %v1055 = vadd.f32 0.0, %v1054
      %v1056 = vpop.f32.mrf.mxu0
      %1057 = vdwg.mxu0
      %1058 = vmatpush.bf16.msra.mxu0 0
      %1059 = vmatpush.bf16.msra.mxu0 0
      %1060 = vmatpush.bf16.msra.mxu0 0
      %1061 = vmatpush.bf16.msra.mxu0 0
      %1062 = vmatpush.bf16.msra.mxu0 0
      %1063 = vmatpush.bf16.msra.mxu0 0
      %1064 = vmatpush.bf16.msra.mxu0 0
      %1065 = vmatpush.bf16.msra.mxu0 %v1025
      %1066 = vmatmul.bf16.gmra.mxu0 %v1019
      %v1067 = vpop.f32.mrf.mxu0
      %v1068 = vadd.f32 0.0, %v1067
      %v1069 = vpop.f32.mrf.mxu0
      %1070 = vdwg.mxu0
      %1071 = vmatpush.bf16.msra.mxu0 0
      %1072 = vmatpush.bf16.msra.mxu0 0
      %1073 = vmatpush.bf16.msra.mxu0 0
      %1074 = vmatpush.bf16.msra.mxu0 0
      %1075 = vmatpush.bf16.msra.mxu0 0
      %1076 = vmatpush.bf16.msra.mxu0 0
      %1077 = vmatpush.bf16.msra.mxu0 0
      %1078 = vmatpush.bf16.msra.mxu0 %v1028
      %1079 = vmatmul.bf16.gmra.mxu0 %v1019
      %v1080 = vpop.f32.mrf.mxu0
      %v1081 = vadd.f32 0.0, %v1080
      %v1082 = vpop.f32.mrf.mxu0
      %1083 = vdwg.mxu0
      %1084 = vmatpush.bf16.msra.mxu0 0
      %1085 = vmatpush.bf16.msra.mxu0 0
      %1086 = vmatpush.bf16.msra.mxu0 0
      %1087 = vmatpush.bf16.msra.mxu0 0
      %1088 = vmatpush.bf16.msra.mxu0 0
      %1089 = vmatpush.bf16.msra.mxu0 0
      %1090 = vmatpush.bf16.msra.mxu0 0
      %1091 = vmatpush.bf16.msra.mxu0 %v1031
      %1092 = vmatmul.bf16.gmra.mxu0 %v1019
      %v1093 = vpop.f32.mrf.mxu0
      %v1094 = vadd.f32 0.0, %v1093
      %v1095 = vpop.f32.mrf.mxu0
      %1096 = vdwg.mxu0
      %1097 = vmatpush.bf16.msra.mxu0 0
      %1098 = vmatpush.bf16.msra.mxu0 0
      %1099 = vmatpush.bf16.msra.mxu0 0
      %1100 = vmatpush.bf16.msra.mxu0 0
      %1101 = vmatpush.bf16.msra.mxu0 0
      %1102 = vmatpush.bf16.msra.mxu0 0
      %1103 = vmatpush.bf16.msra.mxu0 0
      %1104 = vmatpush.bf16.msra.mxu0 %v1034
      %1105 = vmatmul.bf16.gmra.mxu0 %v1019
      %v1106 = vpop.f32.mrf.mxu0
      %v1107 = vadd.f32 0.0, %v1106
      %v1108 = vpop.f32.mrf.mxu0
      %1109 = vdwg.mxu0
      %1110 = vmatpush.bf16.msra.mxu0 0
      %1111 = vmatpush.bf16.msra.mxu0 0
      %1112 = vmatpush.bf16.msra.mxu0 0
      %1113 = vmatpush.bf16.msra.mxu0 0
      %1114 = vmatpush.bf16.msra.mxu0 0
      %1115 = vmatpush.bf16.msra.mxu0 0
      %1116 = vmatpush.bf16.msra.mxu0 0
      %1117 = vmatpush.bf16.msra.mxu0 %v1037
      %1118 = vmatmul.bf16.gmra.mxu0 %v1019
      %v1119 = vpop.f32.mrf.mxu0
      %v1120 = vadd.f32 0.0, %v1119
      %v1121 = vpop.f32.mrf.mxu0
      %1122 = vdwg.mxu0
      %1123 = vmatpush.bf16.msra.mxu0 0
      %1124 = vmatpush.bf16.msra.mxu0 0
      %1125 = vmatpush.bf16.msra.mxu0 0
      %1126 = vmatpush.bf16.msra.mxu0 0
      %1127 = vmatpush.bf16.msra.mxu0 0
      %1128 = vmatpush.bf16.msra.mxu0 0
      %1129 = vmatpush.bf16.msra.mxu0 0
      %1130 = vmatpush.bf16.msra.mxu0 %v1040
      %1131 = vmatmul.bf16.gmra.mxu0 %v1019
      %v1132 = vpop.f32.mrf.mxu0
      %v1133 = vadd.f32 0.0, %v1132
      %v1134 = vpop.f32.mrf.mxu0
      %1135 = vdwg.mxu0
      %1136 = vmatpush.bf16.msra.mxu0 0
      %1137 = vmatpush.bf16.msra.mxu0 0
      %1138 = vmatpush.bf16.msra.mxu0 0
      %1139 = vmatpush.bf16.msra.mxu0 0
      %1140 = vmatpush.bf16.msra.mxu0 0
      %1141 = vmatpush.bf16.msra.mxu0 0
      %1142 = vmatpush.bf16.msra.mxu0 0
      %1143 = vmatpush.bf16.msra.mxu0 %v1043
      %1144 = vmatmul.bf16.gmra.mxu0 %v1019
      %v1145 = vpop.f32.mrf.mxu0
      %v1146 = vadd.f32 0.0, %v1145
      %v1147 = vpop.f32.mrf.mxu0
      %1148 = vdwg.mxu0
      %v1149 = vadd.f32 %v905, %v1055
      %v1150 = vadd.f32 %v906, %v1068
      %v1151 = vadd.f32 %v907, %v1081
      %v1152 = vadd.f32 %v908, %v1094
      %v1153 = vadd.f32 %v909, %v1107
      %v1154 = vadd.f32 %v910, %v1120
      %v1155 = vadd.f32 %v911, %v1133
      %v1156 = vadd.f32 %v912, %v1146
      %s1157 = scalar_lea.vmem %s1, 16
      %v1158 = vld [vmem:[%s1157] sm:$0xf]
      %v1160 = vsel %vm405, %v1158, 0
      %v1163 = vsel %vm409, %v188, 0
      %v1166 = vsel %vm409, %v189, 0
      %v1169 = vsel %vm409, %v190, 0
      %v1172 = vsel %vm409, %v191, 0
      %v1175 = vsel %vm409, %v192, 0
      %v1178 = vsel %vm409, %v193, 0
      %v1181 = vsel %vm409, %v194, 0
      %v1184 = vsel %vm409, %v195, 0
      %1186 = vmatpush.bf16.msra.mxu0 0
      %1187 = vmatpush.bf16.msra.mxu0 0
      %1188 = vmatpush.bf16.msra.mxu0 0
      %1189 = vmatpush.bf16.msra.mxu0 0
      %1190 = vmatpush.bf16.msra.mxu0 0
      %1191 = vmatpush.bf16.msra.mxu0 0
      %1192 = vmatpush.bf16.msra.mxu0 0
      %1193 = vmatpush.bf16.msra.mxu0 %v1163
      %1194 = vmatmul.bf16.gmra.mxu0 %v1160
      %v1195 = vpop.f32.mrf.mxu0
      %v1196 = vadd.f32 0.0, %v1195
      %v1197 = vpop.f32.mrf.mxu0
      %1198 = vdwg.mxu0
      %1199 = vmatpush.bf16.msra.mxu0 0
      %1200 = vmatpush.bf16.msra.mxu0 0
      %1201 = vmatpush.bf16.msra.mxu0 0
      %1202 = vmatpush.bf16.msra.mxu0 0
      %1203 = vmatpush.bf16.msra.mxu0 0
      %1204 = vmatpush.bf16.msra.mxu0 0
      %1205 = vmatpush.bf16.msra.mxu0 0
      %1206 = vmatpush.bf16.msra.mxu0 %v1166
      %1207 = vmatmul.bf16.gmra.mxu0 %v1160
      %v1208 = vpop.f32.mrf.mxu0
      %v1209 = vadd.f32 0.0, %v1208
      %v1210 = vpop.f32.mrf.mxu0
      %1211 = vdwg.mxu0
      %1212 = vmatpush.bf16.msra.mxu0 0
      %1213 = vmatpush.bf16.msra.mxu0 0
      %1214 = vmatpush.bf16.msra.mxu0 0
      %1215 = vmatpush.bf16.msra.mxu0 0
      %1216 = vmatpush.bf16.msra.mxu0 0
      %1217 = vmatpush.bf16.msra.mxu0 0
      %1218 = vmatpush.bf16.msra.mxu0 0
      %1219 = vmatpush.bf16.msra.mxu0 %v1169
      %1220 = vmatmul.bf16.gmra.mxu0 %v1160
      %v1221 = vpop.f32.mrf.mxu0
      %v1222 = vadd.f32 0.0, %v1221
      %v1223 = vpop.f32.mrf.mxu0
      %1224 = vdwg.mxu0
      %1225 = vmatpush.bf16.msra.mxu0 0
      %1226 = vmatpush.bf16.msra.mxu0 0
      %1227 = vmatpush.bf16.msra.mxu0 0
      %1228 = vmatpush.bf16.msra.mxu0 0
      %1229 = vmatpush.bf16.msra.mxu0 0
      %1230 = vmatpush.bf16.msra.mxu0 0
      %1231 = vmatpush.bf16.msra.mxu0 0
      %1232 = vmatpush.bf16.msra.mxu0 %v1172
      %1233 = vmatmul.bf16.gmra.mxu0 %v1160
      %v1234 = vpop.f32.mrf.mxu0
      %v1235 = vadd.f32 0.0, %v1234
      %v1236 = vpop.f32.mrf.mxu0
      %1237 = vdwg.mxu0
      %1238 = vmatpush.bf16.msra.mxu0 0
      %1239 = vmatpush.bf16.msra.mxu0 0
      %1240 = vmatpush.bf16.msra.mxu0 0
      %1241 = vmatpush.bf16.msra.mxu0 0
      %1242 = vmatpush.bf16.msra.mxu0 0
      %1243 = vmatpush.bf16.msra.mxu0 0
      %1244 = vmatpush.bf16.msra.mxu0 0
      %1245 = vmatpush.bf16.msra.mxu0 %v1175
      %1246 = vmatmul.bf16.gmra.mxu0 %v1160
      %v1247 = vpop.f32.mrf.mxu0
      %v1248 = vadd.f32 0.0, %v1247
      %v1249 = vpop.f32.mrf.mxu0
      %1250 = vdwg.mxu0
      %1251 = vmatpush.bf16.msra.mxu0 0
      %1252 = vmatpush.bf16.msra.mxu0 0
      %1253 = vmatpush.bf16.msra.mxu0 0
      %1254 = vmatpush.bf16.msra.mxu0 0
      %1255 = vmatpush.bf16.msra.mxu0 0
      %1256 = vmatpush.bf16.msra.mxu0 0
      %1257 = vmatpush.bf16.msra.mxu0 0
      %1258 = vmatpush.bf16.msra.mxu0 %v1178
      %1259 = vmatmul.bf16.gmra.mxu0 %v1160
      %v1260 = vpop.f32.mrf.mxu0
      %v1261 = vadd.f32 0.0, %v1260
      %v1262 = vpop.f32.mrf.mxu0
      %1263 = vdwg.mxu0
      %1264 = vmatpush.bf16.msra.mxu0 0
      %1265 = vmatpush.bf16.msra.mxu0 0
      %1266 = vmatpush.bf16.msra.mxu0 0
      %1267 = vmatpush.bf16.msra.mxu0 0
      %1268 = vmatpush.bf16.msra.mxu0 0
      %1269 = vmatpush.bf16.msra.mxu0 0
      %1270 = vmatpush.bf16.msra.mxu0 0
      %1271 = vmatpush.bf16.msra.mxu0 %v1181
      %1272 = vmatmul.bf16.gmra.mxu0 %v1160
      %v1273 = vpop.f32.mrf.mxu0
      %v1274 = vadd.f32 0.0, %v1273
      %v1275 = vpop.f32.mrf.mxu0
      %1276 = vdwg.mxu0
      %1277 = vmatpush.bf16.msra.mxu0 0
      %1278 = vmatpush.bf16.msra.mxu0 0
      %1279 = vmatpush.bf16.msra.mxu0 0
      %1280 = vmatpush.bf16.msra.mxu0 0
      %1281 = vmatpush.bf16.msra.mxu0 0
      %1282 = vmatpush.bf16.msra.mxu0 0
      %1283 = vmatpush.bf16.msra.mxu0 0
      %1284 = vmatpush.bf16.msra.mxu0 %v1184
      %1285 = vmatmul.bf16.gmra.mxu0 %v1160
      %v1286 = vpop.f32.mrf.mxu0
      %v1287 = vadd.f32 0.0, %v1286
      %v1288 = vpop.f32.mrf.mxu0
      %1289 = vdwg.mxu0
      %v1290 = vadd.f32 %v1149, %v1196
      %v1291 = vadd.f32 %v1150, %v1209
      %v1292 = vadd.f32 %v1151, %v1222
      %v1293 = vadd.f32 %v1152, %v1235
      %v1294 = vadd.f32 %v1153, %v1248
      %v1295 = vadd.f32 %v1154, %v1261
      %v1296 = vadd.f32 %v1155, %v1274
      %v1297 = vadd.f32 %v1156, %v1287
      %1298 = vrot.lane.b32.xlu0 %v188, 127
      %v1299 = vpop.permute.xlu0 %1298
      %1300 = vrot.lane.b32.xlu0 %v189, 127
      %v1301 = vpop.permute.xlu0 %1300
      %1302 = vrot.lane.b32.xlu0 %v190, 127
      %v1303 = vpop.permute.xlu0 %1302
      %1304 = vrot.lane.b32.xlu0 %v191, 127
      %v1305 = vpop.permute.xlu0 %1304
      %1306 = vrot.lane.b32.xlu0 %v192, 127
      %v1307 = vpop.permute.xlu0 %1306
      %1308 = vrot.lane.b32.xlu0 %v193, 127
      %v1309 = vpop.permute.xlu0 %1308
      %1310 = vrot.lane.b32.xlu0 %v194, 127
      %v1311 = vpop.permute.xlu0 %1310
      %1312 = vrot.lane.b32.xlu0 %v195, 127
      %v1313 = vpop.permute.xlu0 %1312
      %vm1314 = vcmask 1039360
      %v1315 = vsel %vm1314, %v1299, %v1301
      %v1316 = vsel %vm1314, %v1301, %v1303
      %v1317 = vsel %vm1314, %v1303, %v1305
      %v1318 = vsel %vm1314, %v1305, %v1307
      %v1319 = vsel %vm1314, %v1307, %v1309
      %v1320 = vsel %vm1314, %v1309, %v1311
      %v1321 = vsel %vm1314, %v1311, %v1313
      %vm1329 = vcmask 1039360
      %v1331 = vsel %vm1329, %v1313, 0
      %s1333 = scalar_lea.vmem %s2, 40
      %v1334 = vld [vmem:[%s1333] sm:$0xff]
      %1336 = vst [vmem:[#allocation1] ss:$9 sm:$0xff] %v1334
      %v1337 = vld [vmem:[#allocation1] sm:$0xff]
      %v1338 = vld [vmem:[#allocation1 + $0x9] sm:$0xff]
      %v1339 = vld [vmem:[#allocation1 + $0x12] sm:$0xff]
      %v1340 = vld [vmem:[#allocation1 + $0x1b] sm:$0xff]
      %v1341 = vld [vmem:[#allocation1 + $0x24] sm:$0xff]
      %v1342 = vld [vmem:[#allocation1 + $0x2d] sm:$0xff]
      %v1343 = vld [vmem:[#allocation1 + $0x36] sm:$0xff]
      %v1344 = vld [vmem:[#allocation1 + $0x3f] sm:$0xff]
      %v1345 = vpack.i.b16 %v1337, %v1337
      %v1347 = vperm.slane %v1345, 0
      %v1348 = vpack.i.b16 %v1338, %v1338
      %v1350 = vperm.slane %v1348, 0
      %v1351 = vpack.i.b16 %v1339, %v1339
      %v1353 = vperm.slane %v1351, 0
      %v1354 = vpack.i.b16 %v1340, %v1340
      %v1356 = vperm.slane %v1354, 0
      %v1357 = vpack.i.b16 %v1341, %v1341
      %v1359 = vperm.slane %v1357, 0
      %v1360 = vpack.i.b16 %v1342, %v1342
      %v1362 = vperm.slane %v1360, 0
      %v1363 = vpack.i.b16 %v1343, %v1343
      %v1365 = vperm.slane %v1363, 0
      %v1366 = vpack.i.b16 %v1344, %v1344
      %v1368 = vperm.slane %v1366, 0
      %v1369 = vunpack.c.l.bf16 %v1315
      %v1370 = vunpack.c.l.bf16 %v1316
      %v1371 = vunpack.c.l.bf16 %v1317
      %v1372 = vunpack.c.l.bf16 %v1318
      %v1373 = vunpack.c.l.bf16 %v1319
      %v1374 = vunpack.c.l.bf16 %v1320
      %v1375 = vunpack.c.l.bf16 %v1321
      %v1376 = vunpack.c.l.bf16 %v1331
      %v1377 = vunpack.c.l.bf16 %v1347
      %v1378 = vunpack.c.l.bf16 %v1350
      %v1379 = vunpack.c.l.bf16 %v1353
      %v1380 = vunpack.c.l.bf16 %v1356
      %v1381 = vunpack.c.l.bf16 %v1359
      %v1382 = vunpack.c.l.bf16 %v1362
      %v1383 = vunpack.c.l.bf16 %v1365
      %v1384 = vunpack.c.l.bf16 %v1368
      %v1385 = vmul.f32 %v1369, %v1377
      %v1386 = vmul.f32 %v1370, %v1378
      %v1387 = vmul.f32 %v1371, %v1379
      %v1388 = vmul.f32 %v1372, %v1380
      %v1389 = vmul.f32 %v1373, %v1381
      %v1390 = vmul.f32 %v1374, %v1382
      %v1391 = vmul.f32 %v1375, %v1383
      %v1392 = vmul.f32 %v1376, %v1384
      %v1393 = vpack.c.bf16 %v1385, %v1385
      %v1394 = vpack.c.bf16 %v1386, %v1386
      %v1395 = vpack.c.bf16 %v1387, %v1387
      %v1396 = vpack.c.bf16 %v1388, %v1388
      %v1397 = vpack.c.bf16 %v1389, %v1389
      %v1398 = vpack.c.bf16 %v1390, %v1390
      %v1399 = vpack.c.bf16 %v1391, %v1391
      %v1400 = vpack.c.bf16 %v1392, %v1392
      %s1401 = scalar_lea.vmem %s1, 20
      %v1402 = vld [vmem:[%s1401] sm:$0xf]
      %v1404 = vsel %vm405, %v1402, 0
      %v1407 = vsel %vm409, %v1393, 0
      %v1410 = vsel %vm409, %v1394, 0
      %v1413 = vsel %vm409, %v1395, 0
      %v1416 = vsel %vm409, %v1396, 0
      %v1419 = vsel %vm409, %v1397, 0
      %v1422 = vsel %vm409, %v1398, 0
      %v1425 = vsel %vm409, %v1399, 0
      %v1428 = vsel %vm409, %v1400, 0
      %1430 = vmatpush.bf16.msra.mxu0 0
      %1431 = vmatpush.bf16.msra.mxu0 0
      %1432 = vmatpush.bf16.msra.mxu0 0
      %1433 = vmatpush.bf16.msra.mxu0 0
      %1434 = vmatpush.bf16.msra.mxu0 0
      %1435 = vmatpush.bf16.msra.mxu0 0
      %1436 = vmatpush.bf16.msra.mxu0 0
      %1437 = vmatpush.bf16.msra.mxu0 %v1407
      %1438 = vmatmul.bf16.gmra.mxu0 %v1404
      %v1439 = vpop.f32.mrf.mxu0
      %v1440 = vadd.f32 0.0, %v1439
      %v1441 = vpop.f32.mrf.mxu0
      %1442 = vdwg.mxu0
      %1443 = vmatpush.bf16.msra.mxu0 0
      %1444 = vmatpush.bf16.msra.mxu0 0
      %1445 = vmatpush.bf16.msra.mxu0 0
      %1446 = vmatpush.bf16.msra.mxu0 0
      %1447 = vmatpush.bf16.msra.mxu0 0
      %1448 = vmatpush.bf16.msra.mxu0 0
      %1449 = vmatpush.bf16.msra.mxu0 0
      %1450 = vmatpush.bf16.msra.mxu0 %v1410
      %1451 = vmatmul.bf16.gmra.mxu0 %v1404
      %v1452 = vpop.f32.mrf.mxu0
      %v1453 = vadd.f32 0.0, %v1452
      %v1454 = vpop.f32.mrf.mxu0
      %1455 = vdwg.mxu0
      %1456 = vmatpush.bf16.msra.mxu0 0
      %1457 = vmatpush.bf16.msra.mxu0 0
      %1458 = vmatpush.bf16.msra.mxu0 0
      %1459 = vmatpush.bf16.msra.mxu0 0
      %1460 = vmatpush.bf16.msra.mxu0 0
      %1461 = vmatpush.bf16.msra.mxu0 0
      %1462 = vmatpush.bf16.msra.mxu0 0
      %1463 = vmatpush.bf16.msra.mxu0 %v1413
      %1464 = vmatmul.bf16.gmra.mxu0 %v1404
      %v1465 = vpop.f32.mrf.mxu0
      %v1466 = vadd.f32 0.0, %v1465
      %v1467 = vpop.f32.mrf.mxu0
      %1468 = vdwg.mxu0
      %1469 = vmatpush.bf16.msra.mxu0 0
      %1470 = vmatpush.bf16.msra.mxu0 0
      %1471 = vmatpush.bf16.msra.mxu0 0
      %1472 = vmatpush.bf16.msra.mxu0 0
      %1473 = vmatpush.bf16.msra.mxu0 0
      %1474 = vmatpush.bf16.msra.mxu0 0
      %1475 = vmatpush.bf16.msra.mxu0 0
      %1476 = vmatpush.bf16.msra.mxu0 %v1416
      %1477 = vmatmul.bf16.gmra.mxu0 %v1404
      %v1478 = vpop.f32.mrf.mxu0
      %v1479 = vadd.f32 0.0, %v1478
      %v1480 = vpop.f32.mrf.mxu0
      %1481 = vdwg.mxu0
      %1482 = vmatpush.bf16.msra.mxu0 0
      %1483 = vmatpush.bf16.msra.mxu0 0
      %1484 = vmatpush.bf16.msra.mxu0 0
      %1485 = vmatpush.bf16.msra.mxu0 0
      %1486 = vmatpush.bf16.msra.mxu0 0
      %1487 = vmatpush.bf16.msra.mxu0 0
      %1488 = vmatpush.bf16.msra.mxu0 0
      %1489 = vmatpush.bf16.msra.mxu0 %v1419
      %1490 = vmatmul.bf16.gmra.mxu0 %v1404
      %v1491 = vpop.f32.mrf.mxu0
      %v1492 = vadd.f32 0.0, %v1491
      %v1493 = vpop.f32.mrf.mxu0
      %1494 = vdwg.mxu0
      %1495 = vmatpush.bf16.msra.mxu0 0
      %1496 = vmatpush.bf16.msra.mxu0 0
      %1497 = vmatpush.bf16.msra.mxu0 0
      %1498 = vmatpush.bf16.msra.mxu0 0
      %1499 = vmatpush.bf16.msra.mxu0 0
      %1500 = vmatpush.bf16.msra.mxu0 0
      %1501 = vmatpush.bf16.msra.mxu0 0
      %1502 = vmatpush.bf16.msra.mxu0 %v1422
      %1503 = vmatmul.bf16.gmra.mxu0 %v1404
      %v1504 = vpop.f32.mrf.mxu0
      %v1505 = vadd.f32 0.0, %v1504
      %v1506 = vpop.f32.mrf.mxu0
      %1507 = vdwg.mxu0
      %1508 = vmatpush.bf16.msra.mxu0 0
      %1509 = vmatpush.bf16.msra.mxu0 0
      %1510 = vmatpush.bf16.msra.mxu0 0
      %1511 = vmatpush.bf16.msra.mxu0 0
      %1512 = vmatpush.bf16.msra.mxu0 0
      %1513 = vmatpush.bf16.msra.mxu0 0
      %1514 = vmatpush.bf16.msra.mxu0 0
      %1515 = vmatpush.bf16.msra.mxu0 %v1425
      %1516 = vmatmul.bf16.gmra.mxu0 %v1404
      %v1517 = vpop.f32.mrf.mxu0
      %v1518 = vadd.f32 0.0, %v1517
      %v1519 = vpop.f32.mrf.mxu0
      %1520 = vdwg.mxu0
      %1521 = vmatpush.bf16.msra.mxu0 0
      %1522 = vmatpush.bf16.msra.mxu0 0
      %1523 = vmatpush.bf16.msra.mxu0 0
      %1524 = vmatpush.bf16.msra.mxu0 0
      %1525 = vmatpush.bf16.msra.mxu0 0
      %1526 = vmatpush.bf16.msra.mxu0 0
      %1527 = vmatpush.bf16.msra.mxu0 0
      %1528 = vmatpush.bf16.msra.mxu0 %v1428
      %1529 = vmatmul.bf16.gmra.mxu0 %v1404
      %v1530 = vpop.f32.mrf.mxu0
      %v1531 = vadd.f32 0.0, %v1530
      %v1532 = vpop.f32.mrf.mxu0
      %1533 = vdwg.mxu0
      %v1534 = vadd.f32 %v1290, %v1440
      %v1535 = vadd.f32 %v1291, %v1453
      %v1536 = vadd.f32 %v1292, %v1466
      %v1537 = vadd.f32 %v1293, %v1479
      %v1538 = vadd.f32 %v1294, %v1492
      %v1539 = vadd.f32 %v1295, %v1505
      %v1540 = vadd.f32 %v1296, %v1518
      %v1541 = vadd.f32 %v1297, %v1531
      %1542 = vrot.lane.b32.xlu0 %v188, 113
      %v1543 = vpop.permute.xlu0 %1542
      %1544 = vrot.lane.b32.xlu0 %v189, 113
      %v1545 = vpop.permute.xlu0 %1544
      %1546 = vrot.lane.b32.xlu0 %v190, 113
      %v1547 = vpop.permute.xlu0 %1546
      %1548 = vrot.lane.b32.xlu0 %v191, 113
      %v1549 = vpop.permute.xlu0 %1548
      %1550 = vrot.lane.b32.xlu0 %v192, 113
      %v1551 = vpop.permute.xlu0 %1550
      %1552 = vrot.lane.b32.xlu0 %v193, 113
      %v1553 = vpop.permute.xlu0 %1552
      %1554 = vrot.lane.b32.xlu0 %v194, 113
      %v1555 = vpop.permute.xlu0 %1554
      %1556 = vrot.lane.b32.xlu0 %v195, 113
      %v1557 = vpop.permute.xlu0 %1556
      %vm1558 = vcmask 924672
      %v1559 = vsel %vm1558, %v1543, %v1545
      %v1560 = vsel %vm1558, %v1545, %v1547
      %v1561 = vsel %vm1558, %v1547, %v1549
      %v1562 = vsel %vm1558, %v1549, %v1551
      %v1563 = vsel %vm1558, %v1551, %v1553
      %v1564 = vsel %vm1558, %v1553, %v1555
      %v1565 = vsel %vm1558, %v1555, %v1557
      %vm1573 = vcmask 924672
      %v1575 = vsel %vm1573, %v1557, 0
      %s1577 = scalar_lea.vmem %s2, 48
      %v1578 = vld [vmem:[%s1577] sm:$0xff]
      %1580 = vst [vmem:[#allocation1] ss:$9 sm:$0xff] %v1578
      %v1581 = vld [vmem:[#allocation1] sm:$0xff]
      %v1582 = vld [vmem:[#allocation1 + $0x9] sm:$0xff]
      %v1583 = vld [vmem:[#allocation1 + $0x12] sm:$0xff]
      %v1584 = vld [vmem:[#allocation1 + $0x1b] sm:$0xff]
      %v1585 = vld [vmem:[#allocation1 + $0x24] sm:$0xff]
      %v1586 = vld [vmem:[#allocation1 + $0x2d] sm:$0xff]
      %v1587 = vld [vmem:[#allocation1 + $0x36] sm:$0xff]
      %v1588 = vld [vmem:[#allocation1 + $0x3f] sm:$0xff]
      %v1589 = vpack.i.b16 %v1581, %v1581
      %v1591 = vperm.slane %v1589, 0
      %v1592 = vpack.i.b16 %v1582, %v1582
      %v1594 = vperm.slane %v1592, 0
      %v1595 = vpack.i.b16 %v1583, %v1583
      %v1597 = vperm.slane %v1595, 0
      %v1598 = vpack.i.b16 %v1584, %v1584
      %v1600 = vperm.slane %v1598, 0
      %v1601 = vpack.i.b16 %v1585, %v1585
      %v1603 = vperm.slane %v1601, 0
      %v1604 = vpack.i.b16 %v1586, %v1586
      %v1606 = vperm.slane %v1604, 0
      %v1607 = vpack.i.b16 %v1587, %v1587
      %v1609 = vperm.slane %v1607, 0
      %v1610 = vpack.i.b16 %v1588, %v1588
      %v1612 = vperm.slane %v1610, 0
      %v1613 = vunpack.c.l.bf16 %v1559
      %v1614 = vunpack.c.l.bf16 %v1560
      %v1615 = vunpack.c.l.bf16 %v1561
      %v1616 = vunpack.c.l.bf16 %v1562
      %v1617 = vunpack.c.l.bf16 %v1563
      %v1618 = vunpack.c.l.bf16 %v1564
      %v1619 = vunpack.c.l.bf16 %v1565
      %v1620 = vunpack.c.l.bf16 %v1575
      %v1621 = vunpack.c.l.bf16 %v1591
      %v1622 = vunpack.c.l.bf16 %v1594
      %v1623 = vunpack.c.l.bf16 %v1597
      %v1624 = vunpack.c.l.bf16 %v1600
      %v1625 = vunpack.c.l.bf16 %v1603
      %v1626 = vunpack.c.l.bf16 %v1606
      %v1627 = vunpack.c.l.bf16 %v1609
      %v1628 = vunpack.c.l.bf16 %v1612
      %v1629 = vmul.f32 %v1613, %v1621
      %v1630 = vmul.f32 %v1614, %v1622
      %v1631 = vmul.f32 %v1615, %v1623
      %v1632 = vmul.f32 %v1616, %v1624
      %v1633 = vmul.f32 %v1617, %v1625
      %v1634 = vmul.f32 %v1618, %v1626
      %v1635 = vmul.f32 %v1619, %v1627
      %v1636 = vmul.f32 %v1620, %v1628
      %v1637 = vpack.c.bf16 %v1629, %v1629
      %v1638 = vpack.c.bf16 %v1630, %v1630
      %v1639 = vpack.c.bf16 %v1631, %v1631
      %v1640 = vpack.c.bf16 %v1632, %v1632
      %v1641 = vpack.c.bf16 %v1633, %v1633
      %v1642 = vpack.c.bf16 %v1634, %v1634
      %v1643 = vpack.c.bf16 %v1635, %v1635
      %v1644 = vpack.c.bf16 %v1636, %v1636
      %s1645 = scalar_lea.vmem %s1, 24
      %v1646 = vld [vmem:[%s1645] sm:$0xf]
      %v1648 = vsel %vm405, %v1646, 0
      %v1651 = vsel %vm409, %v1637, 0
      %v1654 = vsel %vm409, %v1638, 0
      %v1657 = vsel %vm409, %v1639, 0
      %v1660 = vsel %vm409, %v1640, 0
      %v1663 = vsel %vm409, %v1641, 0
      %v1666 = vsel %vm409, %v1642, 0
      %v1669 = vsel %vm409, %v1643, 0
      %v1672 = vsel %vm409, %v1644, 0
      %1674 = vmatpush.bf16.msra.mxu0 0
      %1675 = vmatpush.bf16.msra.mxu0 0
      %1676 = vmatpush.bf16.msra.mxu0 0
      %1677 = vmatpush.bf16.msra.mxu0 0
      %1678 = vmatpush.bf16.msra.mxu0 0
      %1679 = vmatpush.bf16.msra.mxu0 0
      %1680 = vmatpush.bf16.msra.mxu0 0
      %1681 = vmatpush.bf16.msra.mxu0 %v1651
      %1682 = vmatmul.bf16.gmra.mxu0 %v1648
      %v1683 = vpop.f32.mrf.mxu0
      %v1684 = vadd.f32 0.0, %v1683
      %v1685 = vpop.f32.mrf.mxu0
      %1686 = vdwg.mxu0
      %1687 = vmatpush.bf16.msra.mxu0 0
      %1688 = vmatpush.bf16.msra.mxu0 0
      %1689 = vmatpush.bf16.msra.mxu0 0
      %1690 = vmatpush.bf16.msra.mxu0 0
      %1691 = vmatpush.bf16.msra.mxu0 0
      %1692 = vmatpush.bf16.msra.mxu0 0
      %1693 = vmatpush.bf16.msra.mxu0 0
      %1694 = vmatpush.bf16.msra.mxu0 %v1654
      %1695 = vmatmul.bf16.gmra.mxu0 %v1648
      %v1696 = vpop.f32.mrf.mxu0
      %v1697 = vadd.f32 0.0, %v1696
      %v1698 = vpop.f32.mrf.mxu0
      %1699 = vdwg.mxu0
      %1700 = vmatpush.bf16.msra.mxu0 0
      %1701 = vmatpush.bf16.msra.mxu0 0
      %1702 = vmatpush.bf16.msra.mxu0 0
      %1703 = vmatpush.bf16.msra.mxu0 0
      %1704 = vmatpush.bf16.msra.mxu0 0
      %1705 = vmatpush.bf16.msra.mxu0 0
      %1706 = vmatpush.bf16.msra.mxu0 0
      %1707 = vmatpush.bf16.msra.mxu0 %v1657
      %1708 = vmatmul.bf16.gmra.mxu0 %v1648
      %v1709 = vpop.f32.mrf.mxu0
      %v1710 = vadd.f32 0.0, %v1709
      %v1711 = vpop.f32.mrf.mxu0
      %1712 = vdwg.mxu0
      %1713 = vmatpush.bf16.msra.mxu0 0
      %1714 = vmatpush.bf16.msra.mxu0 0
      %1715 = vmatpush.bf16.msra.mxu0 0
      %1716 = vmatpush.bf16.msra.mxu0 0
      %1717 = vmatpush.bf16.msra.mxu0 0
      %1718 = vmatpush.bf16.msra.mxu0 0
      %1719 = vmatpush.bf16.msra.mxu0 0
      %1720 = vmatpush.bf16.msra.mxu0 %v1660
      %1721 = vmatmul.bf16.gmra.mxu0 %v1648
      %v1722 = vpop.f32.mrf.mxu0
      %v1723 = vadd.f32 0.0, %v1722
      %v1724 = vpop.f32.mrf.mxu0
      %1725 = vdwg.mxu0
      %1726 = vmatpush.bf16.msra.mxu0 0
      %1727 = vmatpush.bf16.msra.mxu0 0
      %1728 = vmatpush.bf16.msra.mxu0 0
      %1729 = vmatpush.bf16.msra.mxu0 0
      %1730 = vmatpush.bf16.msra.mxu0 0
      %1731 = vmatpush.bf16.msra.mxu0 0
      %1732 = vmatpush.bf16.msra.mxu0 0
      %1733 = vmatpush.bf16.msra.mxu0 %v1663
      %1734 = vmatmul.bf16.gmra.mxu0 %v1648
      %v1735 = vpop.f32.mrf.mxu0
      %v1736 = vadd.f32 0.0, %v1735
      %v1737 = vpop.f32.mrf.mxu0
      %1738 = vdwg.mxu0
      %1739 = vmatpush.bf16.msra.mxu0 0
      %1740 = vmatpush.bf16.msra.mxu0 0
      %1741 = vmatpush.bf16.msra.mxu0 0
      %1742 = vmatpush.bf16.msra.mxu0 0
      %1743 = vmatpush.bf16.msra.mxu0 0
      %1744 = vmatpush.bf16.msra.mxu0 0
      %1745 = vmatpush.bf16.msra.mxu0 0
      %1746 = vmatpush.bf16.msra.mxu0 %v1666
      %1747 = vmatmul.bf16.gmra.mxu0 %v1648
      %v1748 = vpop.f32.mrf.mxu0
      %v1749 = vadd.f32 0.0, %v1748
      %v1750 = vpop.f32.mrf.mxu0
      %1751 = vdwg.mxu0
      %1752 = vmatpush.bf16.msra.mxu0 0
      %1753 = vmatpush.bf16.msra.mxu0 0
      %1754 = vmatpush.bf16.msra.mxu0 0
      %1755 = vmatpush.bf16.msra.mxu0 0
      %1756 = vmatpush.bf16.msra.mxu0 0
      %1757 = vmatpush.bf16.msra.mxu0 0
      %1758 = vmatpush.bf16.msra.mxu0 0
      %1759 = vmatpush.bf16.msra.mxu0 %v1669
      %1760 = vmatmul.bf16.gmra.mxu0 %v1648
      %v1761 = vpop.f32.mrf.mxu0
      %v1762 = vadd.f32 0.0, %v1761
      %v1763 = vpop.f32.mrf.mxu0
      %1764 = vdwg.mxu0
      %1765 = vmatpush.bf16.msra.mxu0 0
      %1766 = vmatpush.bf16.msra.mxu0 0
      %1767 = vmatpush.bf16.msra.mxu0 0
      %1768 = vmatpush.bf16.msra.mxu0 0
      %1769 = vmatpush.bf16.msra.mxu0 0
      %1770 = vmatpush.bf16.msra.mxu0 0
      %1771 = vmatpush.bf16.msra.mxu0 0
      %1772 = vmatpush.bf16.msra.mxu0 %v1672
      %1773 = vmatmul.bf16.gmra.mxu0 %v1648
      %v1774 = vpop.f32.mrf.mxu0
      %v1775 = vadd.f32 0.0, %v1774
      %v1776 = vpop.f32.mrf.mxu0
      %1777 = vdwg.mxu0
      %v1778 = vadd.f32 %v1534, %v1684
      %v1779 = vadd.f32 %v1535, %v1697
      %v1780 = vadd.f32 %v1536, %v1710
      %v1781 = vadd.f32 %v1537, %v1723
      %v1782 = vadd.f32 %v1538, %v1736
      %v1783 = vadd.f32 %v1539, %v1749
      %v1784 = vadd.f32 %v1540, %v1762
      %v1785 = vadd.f32 %v1541, %v1775
      %1786 = vrot.lane.b32.xlu0 %v188, 112
      %v1787 = vpop.permute.xlu0 %1786
      %1788 = vrot.lane.b32.xlu0 %v189, 112
      %v1789 = vpop.permute.xlu0 %1788
      %1790 = vrot.lane.b32.xlu0 %v190, 112
      %v1791 = vpop.permute.xlu0 %1790
      %1792 = vrot.lane.b32.xlu0 %v191, 112
      %v1793 = vpop.permute.xlu0 %1792
      %1794 = vrot.lane.b32.xlu0 %v192, 112
      %v1795 = vpop.permute.xlu0 %1794
      %1796 = vrot.lane.b32.xlu0 %v193, 112
      %v1797 = vpop.permute.xlu0 %1796
      %1798 = vrot.lane.b32.xlu0 %v194, 112
      %v1799 = vpop.permute.xlu0 %1798
      %1800 = vrot.lane.b32.xlu0 %v195, 112
      %v1801 = vpop.permute.xlu0 %1800
      %vm1802 = vcmask 916480
      %v1803 = vsel %vm1802, %v1787, %v1789
      %v1804 = vsel %vm1802, %v1789, %v1791
      %v1805 = vsel %vm1802, %v1791, %v1793
      %v1806 = vsel %vm1802, %v1793, %v1795
      %v1807 = vsel %vm1802, %v1795, %v1797
      %v1808 = vsel %vm1802, %v1797, %v1799
      %v1809 = vsel %vm1802, %v1799, %v1801
      %vm1817 = vcmask 916480
      %v1819 = vsel %vm1817, %v1801, 0
      %s1821 = scalar_lea.vmem %s2, 56
      %v1822 = vld [vmem:[%s1821] sm:$0xff]
      %1824 = vst [vmem:[#allocation1] ss:$9 sm:$0xff] %v1822
      %v1825 = vld [vmem:[#allocation1] sm:$0xff]
      %v1826 = vld [vmem:[#allocation1 + $0x9] sm:$0xff]
      %v1827 = vld [vmem:[#allocation1 + $0x12] sm:$0xff]
      %v1828 = vld [vmem:[#allocation1 + $0x1b] sm:$0xff]
      %v1829 = vld [vmem:[#allocation1 + $0x24] sm:$0xff]
      %v1830 = vld [vmem:[#allocation1 + $0x2d] sm:$0xff]
      %v1831 = vld [vmem:[#allocation1 + $0x36] sm:$0xff]
      %v1832 = vld [vmem:[#allocation1 + $0x3f] sm:$0xff]
      %v1833 = vpack.i.b16 %v1825, %v1825
      %v1835 = vperm.slane %v1833, 0
      %v1836 = vpack.i.b16 %v1826, %v1826
      %v1838 = vperm.slane %v1836, 0
      %v1839 = vpack.i.b16 %v1827, %v1827
      %v1841 = vperm.slane %v1839, 0
      %v1842 = vpack.i.b16 %v1828, %v1828
      %v1844 = vperm.slane %v1842, 0
      %v1845 = vpack.i.b16 %v1829, %v1829
      %v1847 = vperm.slane %v1845, 0
      %v1848 = vpack.i.b16 %v1830, %v1830
      %v1850 = vperm.slane %v1848, 0
      %v1851 = vpack.i.b16 %v1831, %v1831
      %v1853 = vperm.slane %v1851, 0
      %v1854 = vpack.i.b16 %v1832, %v1832
      %v1856 = vperm.slane %v1854, 0
      %v1857 = vunpack.c.l.bf16 %v1803
      %v1858 = vunpack.c.l.bf16 %v1804
      %v1859 = vunpack.c.l.bf16 %v1805
      %v1860 = vunpack.c.l.bf16 %v1806
      %v1861 = vunpack.c.l.bf16 %v1807
      %v1862 = vunpack.c.l.bf16 %v1808
      %v1863 = vunpack.c.l.bf16 %v1809
      %v1864 = vunpack.c.l.bf16 %v1819
      %v1865 = vunpack.c.l.bf16 %v1835
      %v1866 = vunpack.c.l.bf16 %v1838
      %v1867 = vunpack.c.l.bf16 %v1841
      %v1868 = vunpack.c.l.bf16 %v1844
      %v1869 = vunpack.c.l.bf16 %v1847
      %v1870 = vunpack.c.l.bf16 %v1850
      %v1871 = vunpack.c.l.bf16 %v1853
      %v1872 = vunpack.c.l.bf16 %v1856
      %v1873 = vmul.f32 %v1857, %v1865
      %v1874 = vmul.f32 %v1858, %v1866
      %v1875 = vmul.f32 %v1859, %v1867
      %v1876 = vmul.f32 %v1860, %v1868
      %v1877 = vmul.f32 %v1861, %v1869
      %v1878 = vmul.f32 %v1862, %v1870
      %v1879 = vmul.f32 %v1863, %v1871
      %v1880 = vmul.f32 %v1864, %v1872
      %v1881 = vpack.c.bf16 %v1873, %v1873
      %v1882 = vpack.c.bf16 %v1874, %v1874
      %v1883 = vpack.c.bf16 %v1875, %v1875
      %v1884 = vpack.c.bf16 %v1876, %v1876
      %v1885 = vpack.c.bf16 %v1877, %v1877
      %v1886 = vpack.c.bf16 %v1878, %v1878
      %v1887 = vpack.c.bf16 %v1879, %v1879
      %v1888 = vpack.c.bf16 %v1880, %v1880
      %s1889 = scalar_lea.vmem %s1, 28
      %v1890 = vld [vmem:[%s1889] sm:$0xf]
      %v1892 = vsel %vm405, %v1890, 0
      %v1895 = vsel %vm409, %v1881, 0
      %v1898 = vsel %vm409, %v1882, 0
      %v1901 = vsel %vm409, %v1883, 0
      %v1904 = vsel %vm409, %v1884, 0
      %v1907 = vsel %vm409, %v1885, 0
      %v1910 = vsel %vm409, %v1886, 0
      %v1913 = vsel %vm409, %v1887, 0
      %v1916 = vsel %vm409, %v1888, 0
      %1918 = vmatpush.bf16.msra.mxu0 0
      %1919 = vmatpush.bf16.msra.mxu0 0
      %1920 = vmatpush.bf16.msra.mxu0 0
      %1921 = vmatpush.bf16.msra.mxu0 0
      %1922 = vmatpush.bf16.msra.mxu0 0
      %1923 = vmatpush.bf16.msra.mxu0 0
      %1924 = vmatpush.bf16.msra.mxu0 0
      %1925 = vmatpush.bf16.msra.mxu0 %v1895
      %1926 = vmatmul.bf16.gmra.mxu0 %v1892
      %v1927 = vpop.f32.mrf.mxu0
      %v1928 = vadd.f32 0.0, %v1927
      %v1929 = vpop.f32.mrf.mxu0
      %1930 = vdwg.mxu0
      %1931 = vmatpush.bf16.msra.mxu0 0
      %1932 = vmatpush.bf16.msra.mxu0 0
      %1933 = vmatpush.bf16.msra.mxu0 0
      %1934 = vmatpush.bf16.msra.mxu0 0
      %1935 = vmatpush.bf16.msra.mxu0 0
      %1936 = vmatpush.bf16.msra.mxu0 0
      %1937 = vmatpush.bf16.msra.mxu0 0
      %1938 = vmatpush.bf16.msra.mxu0 %v1898
      %1939 = vmatmul.bf16.gmra.mxu0 %v1892
      %v1940 = vpop.f32.mrf.mxu0
      %v1941 = vadd.f32 0.0, %v1940
      %v1942 = vpop.f32.mrf.mxu0
      %1943 = vdwg.mxu0
      %1944 = vmatpush.bf16.msra.mxu0 0
      %1945 = vmatpush.bf16.msra.mxu0 0
      %1946 = vmatpush.bf16.msra.mxu0 0
      %1947 = vmatpush.bf16.msra.mxu0 0
      %1948 = vmatpush.bf16.msra.mxu0 0
      %1949 = vmatpush.bf16.msra.mxu0 0
      %1950 = vmatpush.bf16.msra.mxu0 0
      %1951 = vmatpush.bf16.msra.mxu0 %v1901
      %1952 = vmatmul.bf16.gmra.mxu0 %v1892
      %v1953 = vpop.f32.mrf.mxu0
      %v1954 = vadd.f32 0.0, %v1953
      %v1955 = vpop.f32.mrf.mxu0
      %1956 = vdwg.mxu0
      %1957 = vmatpush.bf16.msra.mxu0 0
      %1958 = vmatpush.bf16.msra.mxu0 0
      %1959 = vmatpush.bf16.msra.mxu0 0
      %1960 = vmatpush.bf16.msra.mxu0 0
      %1961 = vmatpush.bf16.msra.mxu0 0
      %1962 = vmatpush.bf16.msra.mxu0 0
      %1963 = vmatpush.bf16.msra.mxu0 0
      %1964 = vmatpush.bf16.msra.mxu0 %v1904
      %1965 = vmatmul.bf16.gmra.mxu0 %v1892
      %v1966 = vpop.f32.mrf.mxu0
      %v1967 = vadd.f32 0.0, %v1966
      %v1968 = vpop.f32.mrf.mxu0
      %1969 = vdwg.mxu0
      %1970 = vmatpush.bf16.msra.mxu0 0
      %1971 = vmatpush.bf16.msra.mxu0 0
      %1972 = vmatpush.bf16.msra.mxu0 0
      %1973 = vmatpush.bf16.msra.mxu0 0
      %1974 = vmatpush.bf16.msra.mxu0 0
      %1975 = vmatpush.bf16.msra.mxu0 0
      %1976 = vmatpush.bf16.msra.mxu0 0
      %1977 = vmatpush.bf16.msra.mxu0 %v1907
      %1978 = vmatmul.bf16.gmra.mxu0 %v1892
      %v1979 = vpop.f32.mrf.mxu0
      %v1980 = vadd.f32 0.0, %v1979
      %v1981 = vpop.f32.mrf.mxu0
      %1982 = vdwg.mxu0
      %1983 = vmatpush.bf16.msra.mxu0 0
      %1984 = vmatpush.bf16.msra.mxu0 0
      %1985 = vmatpush.bf16.msra.mxu0 0
      %1986 = vmatpush.bf16.msra.mxu0 0
      %1987 = vmatpush.bf16.msra.mxu0 0
      %1988 = vmatpush.bf16.msra.mxu0 0
      %1989 = vmatpush.bf16.msra.mxu0 0
      %1990 = vmatpush.bf16.msra.mxu0 %v1910
      %1991 = vmatmul.bf16.gmra.mxu0 %v1892
      %v1992 = vpop.f32.mrf.mxu0
      %v1993 = vadd.f32 0.0, %v1992
      %v1994 = vpop.f32.mrf.mxu0
      %1995 = vdwg.mxu0
      %1996 = vmatpush.bf16.msra.mxu0 0
      %1997 = vmatpush.bf16.msra.mxu0 0
      %1998 = vmatpush.bf16.msra.mxu0 0
      %1999 = vmatpush.bf16.msra.mxu0 0
      %2000 = vmatpush.bf16.msra.mxu0 0
      %2001 = vmatpush.bf16.msra.mxu0 0
      %2002 = vmatpush.bf16.msra.mxu0 0
      %2003 = vmatpush.bf16.msra.mxu0 %v1913
      %2004 = vmatmul.bf16.gmra.mxu0 %v1892
      %v2005 = vpop.f32.mrf.mxu0
      %v2006 = vadd.f32 0.0, %v2005
      %v2007 = vpop.f32.mrf.mxu0
      %2008 = vdwg.mxu0
      %2009 = vmatpush.bf16.msra.mxu0 0
      %2010 = vmatpush.bf16.msra.mxu0 0
      %2011 = vmatpush.bf16.msra.mxu0 0
      %2012 = vmatpush.bf16.msra.mxu0 0
      %2013 = vmatpush.bf16.msra.mxu0 0
      %2014 = vmatpush.bf16.msra.mxu0 0
      %2015 = vmatpush.bf16.msra.mxu0 0
      %2016 = vmatpush.bf16.msra.mxu0 %v1916
      %2017 = vmatmul.bf16.gmra.mxu0 %v1892
      %v2018 = vpop.f32.mrf.mxu0
      %v2019 = vadd.f32 0.0, %v2018
      %v2020 = vpop.f32.mrf.mxu0
      %2021 = vdwg.mxu0
      %v2022 = vadd.f32 %v1778, %v1928
      %v2023 = vadd.f32 %v1779, %v1941
      %v2024 = vadd.f32 %v1780, %v1954
      %v2025 = vadd.f32 %v1781, %v1967
      %v2026 = vadd.f32 %v1782, %v1980
      %v2027 = vadd.f32 %v1783, %v1993
      %v2028 = vadd.f32 %v1784, %v2006
      %v2029 = vadd.f32 %v1785, %v2019
      %2030 = vrot.lane.b32.xlu0 %v188, 111
      %v2031 = vpop.permute.xlu0 %2030
      %2032 = vrot.lane.b32.xlu0 %v189, 111
      %v2033 = vpop.permute.xlu0 %2032
      %2034 = vrot.lane.b32.xlu0 %v190, 111
      %v2035 = vpop.permute.xlu0 %2034
      %2036 = vrot.lane.b32.xlu0 %v191, 111
      %v2037 = vpop.permute.xlu0 %2036
      %2038 = vrot.lane.b32.xlu0 %v192, 111
      %v2039 = vpop.permute.xlu0 %2038
      %2040 = vrot.lane.b32.xlu0 %v193, 111
      %v2041 = vpop.permute.xlu0 %2040
      %2042 = vrot.lane.b32.xlu0 %v194, 111
      %v2043 = vpop.permute.xlu0 %2042
      %2044 = vrot.lane.b32.xlu0 %v195, 111
      %v2045 = vpop.permute.xlu0 %2044
      %vm2046 = vcmask 908288
      %v2047 = vsel %vm2046, %v2031, %v2033
      %v2048 = vsel %vm2046, %v2033, %v2035
      %v2049 = vsel %vm2046, %v2035, %v2037
      %v2050 = vsel %vm2046, %v2037, %v2039
      %v2051 = vsel %vm2046, %v2039, %v2041
      %v2052 = vsel %vm2046, %v2041, %v2043
      %v2053 = vsel %vm2046, %v2043, %v2045
      %vm2061 = vcmask 908288
      %v2063 = vsel %vm2061, %v2045, 0
      %s2065 = scalar_lea.vmem %s2, 64
      %v2066 = vld [vmem:[%s2065] sm:$0xff]
      %2068 = vst [vmem:[#allocation1] ss:$9 sm:$0xff] %v2066
      %v2069 = vld [vmem:[#allocation1] sm:$0xff]
      %v2070 = vld [vmem:[#allocation1 + $0x9] sm:$0xff]
      %v2071 = vld [vmem:[#allocation1 + $0x12] sm:$0xff]
      %v2072 = vld [vmem:[#allocation1 + $0x1b] sm:$0xff]
      %v2073 = vld [vmem:[#allocation1 + $0x24] sm:$0xff]
      %v2074 = vld [vmem:[#allocation1 + $0x2d] sm:$0xff]
      %v2075 = vld [vmem:[#allocation1 + $0x36] sm:$0xff]
      %v2076 = vld [vmem:[#allocation1 + $0x3f] sm:$0xff]
      %v2077 = vpack.i.b16 %v2069, %v2069
      %v2079 = vperm.slane %v2077, 0
      %v2080 = vpack.i.b16 %v2070, %v2070
      %v2082 = vperm.slane %v2080, 0
      %v2083 = vpack.i.b16 %v2071, %v2071
      %v2085 = vperm.slane %v2083, 0
      %v2086 = vpack.i.b16 %v2072, %v2072
      %v2088 = vperm.slane %v2086, 0
      %v2089 = vpack.i.b16 %v2073, %v2073
      %v2091 = vperm.slane %v2089, 0
      %v2092 = vpack.i.b16 %v2074, %v2074
      %v2094 = vperm.slane %v2092, 0
      %v2095 = vpack.i.b16 %v2075, %v2075
      %v2097 = vperm.slane %v2095, 0
      %v2098 = vpack.i.b16 %v2076, %v2076
      %v2100 = vperm.slane %v2098, 0
      %v2101 = vunpack.c.l.bf16 %v2047
      %v2102 = vunpack.c.l.bf16 %v2048
      %v2103 = vunpack.c.l.bf16 %v2049
      %v2104 = vunpack.c.l.bf16 %v2050
      %v2105 = vunpack.c.l.bf16 %v2051
      %v2106 = vunpack.c.l.bf16 %v2052
      %v2107 = vunpack.c.l.bf16 %v2053
      %v2108 = vunpack.c.l.bf16 %v2063
      %v2109 = vunpack.c.l.bf16 %v2079
      %v2110 = vunpack.c.l.bf16 %v2082
      %v2111 = vunpack.c.l.bf16 %v2085
      %v2112 = vunpack.c.l.bf16 %v2088
      %v2113 = vunpack.c.l.bf16 %v2091
      %v2114 = vunpack.c.l.bf16 %v2094
      %v2115 = vunpack.c.l.bf16 %v2097
      %v2116 = vunpack.c.l.bf16 %v2100
      %v2117 = vmul.f32 %v2101, %v2109
      %v2118 = vmul.f32 %v2102, %v2110
      %v2119 = vmul.f32 %v2103, %v2111
      %v2120 = vmul.f32 %v2104, %v2112
      %v2121 = vmul.f32 %v2105, %v2113
      %v2122 = vmul.f32 %v2106, %v2114
      %v2123 = vmul.f32 %v2107, %v2115
      %v2124 = vmul.f32 %v2108, %v2116
      %v2125 = vpack.c.bf16 %v2117, %v2117
      %v2126 = vpack.c.bf16 %v2118, %v2118
      %v2127 = vpack.c.bf16 %v2119, %v2119
      %v2128 = vpack.c.bf16 %v2120, %v2120
      %v2129 = vpack.c.bf16 %v2121, %v2121
      %v2130 = vpack.c.bf16 %v2122, %v2122
      %v2131 = vpack.c.bf16 %v2123, %v2123
      %v2132 = vpack.c.bf16 %v2124, %v2124
      %s2133 = scalar_lea.vmem %s1, 32
      %v2134 = vld [vmem:[%s2133] sm:$0xf]
      %v2136 = vsel %vm405, %v2134, 0
      %v2139 = vsel %vm409, %v2125, 0
      %v2142 = vsel %vm409, %v2126, 0
      %v2145 = vsel %vm409, %v2127, 0
      %v2148 = vsel %vm409, %v2128, 0
      %v2151 = vsel %vm409, %v2129, 0
      %v2154 = vsel %vm409, %v2130, 0
      %v2157 = vsel %vm409, %v2131, 0
      %v2160 = vsel %vm409, %v2132, 0
      %2162 = vmatpush.bf16.msra.mxu0 0
      %2163 = vmatpush.bf16.msra.mxu0 0
      %2164 = vmatpush.bf16.msra.mxu0 0
      %2165 = vmatpush.bf16.msra.mxu0 0
      %2166 = vmatpush.bf16.msra.mxu0 0
      %2167 = vmatpush.bf16.msra.mxu0 0
      %2168 = vmatpush.bf16.msra.mxu0 0
      %2169 = vmatpush.bf16.msra.mxu0 %v2139
      %2170 = vmatmul.bf16.gmra.mxu0 %v2136
      %v2171 = vpop.f32.mrf.mxu0
      %v2172 = vadd.f32 0.0, %v2171
      %v2173 = vpop.f32.mrf.mxu0
      %2174 = vdwg.mxu0
      %2175 = vmatpush.bf16.msra.mxu0 0
      %2176 = vmatpush.bf16.msra.mxu0 0
      %2177 = vmatpush.bf16.msra.mxu0 0
      %2178 = vmatpush.bf16.msra.mxu0 0
      %2179 = vmatpush.bf16.msra.mxu0 0
      %2180 = vmatpush.bf16.msra.mxu0 0
      %2181 = vmatpush.bf16.msra.mxu0 0
      %2182 = vmatpush.bf16.msra.mxu0 %v2142
      %2183 = vmatmul.bf16.gmra.mxu0 %v2136
      %v2184 = vpop.f32.mrf.mxu0
      %v2185 = vadd.f32 0.0, %v2184
      %v2186 = vpop.f32.mrf.mxu0
      %2187 = vdwg.mxu0
      %2188 = vmatpush.bf16.msra.mxu0 0
      %2189 = vmatpush.bf16.msra.mxu0 0
      %2190 = vmatpush.bf16.msra.mxu0 0
      %2191 = vmatpush.bf16.msra.mxu0 0
      %2192 = vmatpush.bf16.msra.mxu0 0
      %2193 = vmatpush.bf16.msra.mxu0 0
      %2194 = vmatpush.bf16.msra.mxu0 0
      %2195 = vmatpush.bf16.msra.mxu0 %v2145
      %2196 = vmatmul.bf16.gmra.mxu0 %v2136
      %v2197 = vpop.f32.mrf.mxu0
      %v2198 = vadd.f32 0.0, %v2197
      %v2199 = vpop.f32.mrf.mxu0
      %2200 = vdwg.mxu0
      %2201 = vmatpush.bf16.msra.mxu0 0
      %2202 = vmatpush.bf16.msra.mxu0 0
      %2203 = vmatpush.bf16.msra.mxu0 0
      %2204 = vmatpush.bf16.msra.mxu0 0
      %2205 = vmatpush.bf16.msra.mxu0 0
      %2206 = vmatpush.bf16.msra.mxu0 0
      %2207 = vmatpush.bf16.msra.mxu0 0
      %2208 = vmatpush.bf16.msra.mxu0 %v2148
      %2209 = vmatmul.bf16.gmra.mxu0 %v2136
      %v2210 = vpop.f32.mrf.mxu0
      %v2211 = vadd.f32 0.0, %v2210
      %v2212 = vpop.f32.mrf.mxu0
      %2213 = vdwg.mxu0
      %2214 = vmatpush.bf16.msra.mxu0 0
      %2215 = vmatpush.bf16.msra.mxu0 0
      %2216 = vmatpush.bf16.msra.mxu0 0
      %2217 = vmatpush.bf16.msra.mxu0 0
      %2218 = vmatpush.bf16.msra.mxu0 0
      %2219 = vmatpush.bf16.msra.mxu0 0
      %2220 = vmatpush.bf16.msra.mxu0 0
      %2221 = vmatpush.bf16.msra.mxu0 %v2151
      %2222 = vmatmul.bf16.gmra.mxu0 %v2136
      %v2223 = vpop.f32.mrf.mxu0
      %v2224 = vadd.f32 0.0, %v2223
      %v2225 = vpop.f32.mrf.mxu0
      %2226 = vdwg.mxu0
      %2227 = vmatpush.bf16.msra.mxu0 0
      %2228 = vmatpush.bf16.msra.mxu0 0
      %2229 = vmatpush.bf16.msra.mxu0 0
      %2230 = vmatpush.bf16.msra.mxu0 0
      %2231 = vmatpush.bf16.msra.mxu0 0
      %2232 = vmatpush.bf16.msra.mxu0 0
      %2233 = vmatpush.bf16.msra.mxu0 0
      %2234 = vmatpush.bf16.msra.mxu0 %v2154
      %2235 = vmatmul.bf16.gmra.mxu0 %v2136
      %v2236 = vpop.f32.mrf.mxu0
      %v2237 = vadd.f32 0.0, %v2236
      %v2238 = vpop.f32.mrf.mxu0
      %2239 = vdwg.mxu0
      %2240 = vmatpush.bf16.msra.mxu0 0
      %2241 = vmatpush.bf16.msra.mxu0 0
      %2242 = vmatpush.bf16.msra.mxu0 0
      %2243 = vmatpush.bf16.msra.mxu0 0
      %2244 = vmatpush.bf16.msra.mxu0 0
      %2245 = vmatpush.bf16.msra.mxu0 0
      %2246 = vmatpush.bf16.msra.mxu0 0
      %2247 = vmatpush.bf16.msra.mxu0 %v2157
      %2248 = vmatmul.bf16.gmra.mxu0 %v2136
      %v2249 = vpop.f32.mrf.mxu0
      %v2250 = vadd.f32 0.0, %v2249
      %v2251 = vpop.f32.mrf.mxu0
      %2252 = vdwg.mxu0
      %2253 = vmatpush.bf16.msra.mxu0 0
      %2254 = vmatpush.bf16.msra.mxu0 0
      %2255 = vmatpush.bf16.msra.mxu0 0
      %2256 = vmatpush.bf16.msra.mxu0 0
      %2257 = vmatpush.bf16.msra.mxu0 0
      %2258 = vmatpush.bf16.msra.mxu0 0
      %2259 = vmatpush.bf16.msra.mxu0 0
      %2260 = vmatpush.bf16.msra.mxu0 %v2160
      %2261 = vmatmul.bf16.gmra.mxu0 %v2136
      %v2262 = vpop.f32.mrf.mxu0
      %v2263 = vadd.f32 0.0, %v2262
      %v2264 = vpop.f32.mrf.mxu0
      %2265 = vdwg.mxu0
      %v2266 = vadd.f32 %v2022, %v2172
      %v2267 = vadd.f32 %v2023, %v2185
      %v2268 = vadd.f32 %v2024, %v2198
      %v2269 = vadd.f32 %v2025, %v2211
      %v2270 = vadd.f32 %v2026, %v2224
      %v2271 = vadd.f32 %v2027, %v2237
      %v2272 = vadd.f32 %v2028, %v2250
      %v2273 = vadd.f32 %v2029, %v2263
      %2274 = vst [vmem:[%s170] sm:$0xff] %v2266
      %2275 = vst [vmem:[%s170 + $0x8] sm:$0xff] %v2267
      %2276 = vst [vmem:[%s170 + $0x10] sm:$0xff] %v2268
      %2277 = vst [vmem:[%s170 + $0x18] sm:$0xff] %v2269
      %2278 = vst [vmem:[%s170 + $0x20] sm:$0xff] %v2270
      %2279 = vst [vmem:[%s170 + $0x28] sm:$0xff] %v2271
      %2280 = vst [vmem:[%s170 + $0x30] sm:$0xff] %v2272
      %2281 = vst [vmem:[%s170 + $0x38] sm:$0xff] %v2273
      %p2282 = scmp.lt.s32.totalorder %s14, 1
      %s2283 = scalar_select %p2282, %s14, 1
      %s2284 = smul.addr %s2283, 8
      %s2285 = smul.addr %s2284, 8
      %s2286 = scalar_lea.vmem %s3, %s2285
      // Predicated region
      $region33: #{generator_liu_forward.7} parent=31 // pred_check
        %p2287 = pneg %p100
      $region34: #{generator_liu_forward.7} parent=31 // pred_check_branch
        %2289 = sbr.rel (%p2287) target = $region36
      $region35: #{generator_liu_forward.7} parent=31 // pred_region
        _
      $region36: #{generator_liu_forward.7} parent=31 // pred_fallthru
        _
    $region32: #{generator_liu_forward.7} parent=5 // pred_fallthru
      _
    %p2290 = scmp.le.s32.totalorder 2, %s9
    // Predicated region
    $region37: #{generator_liu_forward.7} parent=5 // pred_check
      %p2291 = pneg %p2290
    $region38: #{generator_liu_forward.7} parent=5 // pred_check_branch
      %2293 = sbr.rel (%p2291) target = $region40
    $region39: #{generator_liu_forward.7} parent=5 // pred_region
      %s2294 = ssub.s32 %s9, 2
      // Predicated region
      $region41: #{generator_liu_forward.7} parent=39 // pred_check
        %p2295 = pneg %p106
      $region42: #{generator_liu_forward.7} parent=39 // pred_check_branch
        %2297 = sbr.rel (%p2295) target = $region44
      $region43: #{generator_liu_forward.7} parent=39 // pred_region
        %p2298 = scmp.lt.s32.totalorder %s15, 1
        %s2299 = scalar_select %p2298, %s15, 1
        %s2300 = smul.addr %s2299, 8
        %s2301 = smul.addr %s2300, 8
        %s2302 = scalar_lea.vmem %s3, %s2301
      $region44: #{generator_liu_forward.7} parent=39 // pred_fallthru
        _
    $region40: #{generator_liu_forward.7} parent=5 // pred_fallthru
      _
  $region6: #{generator_liu_forward.7} parent=0 // loop_footer
    %s13 = sadd.s32 1, %s9
  $region7: #{generator_liu_forward.7} parent=0 // loop_footer_branch
    %8 = sbr.rel target = $region3
  $region8: #{generator_liu_forward.7} parent=0 // loop_exit
    _

</llo_original>
